<compile_context>
chip_gen: v7x
topology: tpu7x:2x2x1
jax: 0.10.0
libtpu: 0.0.40
codegen_flags: <defaults>
</compile_context>

<pallas_src>
import jax
import jax.numpy as jnp
import numpy as np
from jax.experimental import pallas as pl
from jax.experimental.pallas import tpu as pltpu

# ----------------------------- Detect-head constants -----------------------------
NC = 1                      # face detection: 1 class
NO = NC + 5 + 10            # 16 outputs per anchor (xywh, obj, 10 landmarks, cls)
NA = 3                      # anchors per level
NL = 3                      # detection levels
K = NA * NO                 # conv output channels per level = 48
KP = 128                    # lane-padded channel width
STRIDES = (8.0, 16.0, 32.0)
# pixel-space anchors (== the `anchor_grid` buffer in Detect)
ANCHORS = np.array(
    [[[4., 5.], [8., 10.], [13., 16.]],
     [[23., 29.], [43., 55.], [73., 105.]],
     [[146., 217.], [231., 300.], [335., 433.]]], dtype=np.float32)

IMG = 64                                        # input spatial size
BB_CH = [(12, 16), (64, 24), (96, 32), (128, 48), (192, 64)]   # backbone (cin, cout)
DET_CIN = [32, 48, 64]                          # P3/P4/P5 channels
FMAP = [8, 4, 2]                                # P3/P4/P5 feature-map side (64-px input)


# --------------- block-recursive row ordering (makes s2d a slice-sum) -------------
# Internal spatial ordering chosen so that at every space-to-depth stage
#     out_row r , channel-block j   <-   in_row  j * R_out + r
# i.e. four *contiguous* sublane slices - no reshape / transpose inside the kernel.
def _build_orders():
    orders = {5: np.array([[y, x] for y in range(2) for x in range(2)], dtype=np.int64)}
    for lvl in range(4, 0, -1):
        nxt = orders[lvl + 1]
        s_next = nxt.shape[0]
        o = np.zeros((4 * s_next, 2), np.int64)
        for j in range(4):
            dy, dx = divmod(j, 2)
            o[j * s_next:(j + 1) * s_next, 0] = 2 * nxt[:, 0] + dy
            o[j * s_next:(j + 1) * s_next, 1] = 2 * nxt[:, 1] + dx
        orders[lvl] = o
    return orders


_ORDERS = _build_orders()                               # level -> (S, 2) of (y, x)


def _raster_perm(lvl):
    side = IMG >> lvl
    o = _ORDERS[lvl]
    return o[:, 0] * side + o[:, 1]                     # internal index -> raster index


_INV_DET = {lvl: np.argsort(_raster_perm(lvl)) for lvl in (3, 4, 5)}


# ------------------- input gather: NCHW -> s2d -> internal order, one gather -------
def _build_input_gather():
    o = _ORDERS[1]                                      # (1024, 2) of (Y, X) on the 32x32 map
    idx = np.zeros((1024, 12), np.int64)
    for j in range(12):
        q, ch = divmod(j, 3)                            # s2d channel j = (dy*2+dx)*3 + ch
        dy, dx = divmod(q, 2)
        idx[:, j] = ch * IMG * IMG + (2 * o[:, 0] + dy) * IMG + (2 * o[:, 1] + dx)
    return idx.astype(np.int32)


_IN_GATHER = _build_input_gather()                      # (1024, 12) flat index into (3,64,64)


# ----------------------------- decode tables (numpy constants) ---------------------
def _decode_tables_np(level, batch):
    """coef: (3, 128) rows [a2, a1, ap];  add: (S*B, 128) = a0 + agx*gx + agy*gy, so that
       y = a2*sig^2 + a1*sig + ap*p + add  reproduces Detect's decode (p includes conv bias)."""
    stride = STRIDES[level]
    a2 = np.zeros(K, np.float32); a1 = np.zeros(K, np.float32)
    a0 = np.zeros(K, np.float32); ap = np.zeros(K, np.float32)
    agx = np.zeros(K, np.float32); agy = np.zeros(K, np.float32)
    for a in range(NA):
        for c in range(NO):
            k = a * NO + c
            if c in (0, 1):                              # box center: (2*sig - 0.5 + g)*stride
                a1[k] = 2.0 * stride
                a0[k] = -0.5 * stride
                (agx if c == 0 else agy)[k] = stride
            elif c in (2, 3):                            # box size: (2*sig)^2 * anchor
                a2[k] = 4.0 * ANCHORS[level, a, c - 2]
            elif c == 4 or c == 15:                      # objectness / class score: sig
                a1[k] = 1.0
            elif 5 <= c <= 14:                           # 5 landmark (x, y) pairs: p*anchor + g*stride
                par = (c - 5) % 2
                ap[k] = ANCHORS[level, a, par]
                (agx if par == 0 else agy)[k] = stride

    def pad(v):
        out = np.zeros(KP, np.float32); out[:K] = v; return out

    coef = np.stack([pad(a2), pad(a1), pad(ap)])                      # (3, 128)
    o = _ORDERS[3 + level].astype(np.float32)                         # (S, 2) of (y, x)
    gx = np.repeat(o[:, 1], batch)
    gy = np.repeat(o[:, 0], batch)                                    # batch-innermost rows
    add = (pad(a0)[None, :] + gx[:, None] * pad(agx)[None, :]
           + gy[:, None] * pad(agy)[None, :]).astype(np.float32)      # (S*B, 128)
    return coef, add


# ------------------- output gather tables (un-permute to PyTorch layouts) ----------
def _build_out_gathers(batch):
    lanes = 2 * KP
    row_off = 0
    z_parts, x_parts = [], []
    k_lane = (np.arange(NA)[:, None] * NO + np.arange(NO)[None, :]).astype(np.int64)  # (NA, NO)
    for i in range(NL):
        n = FMAP[i]; s = n * n
        inv = _INV_DET[3 + i]                                                   # raster -> internal
        rows = row_off + inv[None, :] * batch + np.arange(batch)[:, None]       # (B, s) absolute rows
        base = rows[:, None, :, None] * lanes + k_lane[None, :, None, :]        # (B, NA, s, NO) -> y lanes
        z_parts.append(base.reshape(batch, NA * s, NO))
        x_parts.append((base + KP).reshape(batch, NA, n, n, NO))                # raw p lanes
        row_off += s * batch
    z_idx = np.concatenate(z_parts, axis=1).astype(np.int32)                    # (B, 252, NO)
    return z_idx, [xp.astype(np.int32) for xp in x_parts]


# ----------------------------- fused Pallas kernel ---------------------------------
def _make_model_kernel(batch):
    r1, r2, r3, r4, r5 = 1024 * batch, 256 * batch, 64 * batch, 16 * batch, 4 * batch

    def sigmoid(v):                                     # exp + approx rcp -> EUP slot
        return pl.reciprocal(1.0 + jnp.exp(-v), approx=True)

    def silu_bf16(v):                                   # f32 math, single cast at producer
        return (v * sigmoid(v)).astype(jnp.bfloat16)

    def kernel(x1_ref, w1_ref, b1_ref, w2_ref, b2_ref, w3_ref, b3_ref,
               w4_ref, b4_ref, w5_ref, b5_ref,
               dw3_ref, db3_ref, c3_ref, add3_ref,
               dw4_ref, db4_ref, c4_ref, add4_ref,
               dw5_ref, db5_ref, c5_ref, add5_ref,
               out_ref):

        def fold_conv(h, w_ref, b_ref, rows_out):
            # space_to_depth + 1x1 conv:
            #   y = sum_j  h[j*rows_out:(j+1)*rows_out] @ W[j]      (bias folded into j == 0)
            acc = jnp.dot(h[0:rows_out, :], w_ref[0],
                          preferred_element_type=jnp.float32) + b_ref[...]
            for j in range(1, 4):
                acc = acc + jnp.dot(h[j * rows_out:(j + 1) * rows_out, :], w_ref[j],
                                    preferred_element_type=jnp.float32)
            return acc

        # ----- backbone (all intermediates stay on-chip, bf16 activations) -----
        h = silu_bf16(jnp.dot(x1_ref[...], w1_ref[...],
                              preferred_element_type=jnp.float32) + b1_ref[...])   # (r1, 16)
        h = silu_bf16(fold_conv(h, w2_ref, b2_ref, r2))                            # (r2, 24)
        p3 = silu_bf16(fold_conv(h, w3_ref, b3_ref, r3))                           # (r3, 32)  P3
        p4 = silu_bf16(fold_conv(p3, w4_ref, b4_ref, r4))                          # (r4, 48)  P4
        p5 = silu_bf16(fold_conv(p4, w5_ref, b5_ref, r5))                          # (r5, 64)  P5

        # ----- Detect head: 1x1 conv (lane-padded to 128) + affine-folded decode -----
        def detect(feat, dw_ref, db_ref, c_ref, add_ref, off, rows):
            p = jnp.dot(feat, dw_ref[...],
                        preferred_element_type=jnp.float32) + db_ref[...]          # (rows, 128)
            sg = sigmoid(p)
            c = c_ref[...]
            y = (c[0:1, :] * (sg * sg) + c[1:2, :] * sg + c[2:3, :] * p + add_ref[...])
            # lane-dense, 128-aligned stores (y in lanes 0:128, raw p in lanes 128:256)
            out_ref[off:off + rows, 0:KP] = y
            out_ref[off:off + rows, KP:2 * KP] = p

        detect(p3, dw3_ref, db3_ref, c3_ref, add3_ref, 0, r3)
        detect(p4, dw4_ref, db4_ref, c4_ref, add4_ref, r3, r4)
        detect(p5, dw5_ref, db5_ref, c5_ref, add5_ref, r3 + r4, r5)

    return kernel


# ----------------------------- parameters ------------------------------------------
def init_params(key):
    keys = jax.random.split(key, 16)
    ki = 0
    backbone = []
    for si, (cin, cout) in enumerate(BB_CH):
        w = jax.random.normal(keys[ki], (cin, cout), jnp.float32) / np.sqrt(cin); ki += 1
        b = jnp.zeros((1, cout), jnp.float32)
        w = w.astype(jnp.bfloat16)                      # pre-cast: MXU-native, halves DMA
        if si > 0:
            w = w.reshape(4, cin // 4, cout)            # stacked: whole-block in-kernel slices
        backbone.append((w, b))
    dw, db = [], []
    for cin in DET_CIN:
        w = 0.2 * jax.random.normal(keys[ki], (cin, K), jnp.float32) / np.sqrt(cin); ki += 1
        b = 0.1 * jax.random.normal(keys[ki], (K,), jnp.float32); ki += 1
        w128 = jnp.zeros((cin, KP), jnp.float32).at[:, :K].set(w).astype(jnp.bfloat16)
        b128 = jnp.zeros((1, KP), jnp.float32).at[0, :K].set(b)
        dw.append(w128); db.append(b128)
    return {"backbone": backbone, "detect_w": dw, "detect_b": db}


# ----------------------------- model forward ---------------------------------------
@jax.jit
def model_forward(x_nchw, params):
    """Eval-mode forward, like Detect: returns (z, x_list),
       z: (B, sum(na*ny*nx), no), x_list[i]: (B, na, ny, nx, no) raw conv outputs."""
    batch = x_nchw.shape[0]
    tot = (64 + 16 + 4) * batch

    # input restructuring (NCHW -> NHWC -> space_to_depth -> internal row order -> batch fold)
    # collapsed into ONE flat gather with a precomputed index table.
    chw = 3 * IMG * IMG
    in_idx = (_IN_GATHER[:, None, :]
              + (np.arange(batch, dtype=np.int32) * chw)[None, :, None]
              ).reshape(1024 * batch, 12)
    x1 = x_nchw.reshape(-1)[in_idx].astype(jnp.bfloat16)         # (1024*B, 12)

    tables = [_decode_tables_np(i, batch) for i in range(NL)]    # trace-time numpy constants

    args = [x1]
    for w, b in params["backbone"]:
        args += [w, b]
    for i in range(NL):
        coef, add = tables[i]
        args += [params["detect_w"][i], params["detect_b"][i],
                 jnp.asarray(coef), jnp.asarray(add)]

    out = pl.pallas_call(
        _make_model_kernel(batch),
        out_shape=jax.ShapeDtypeStruct((tot, 2 * KP), jnp.float32),
        # No grid: the whole working set (a few MiB incl. lane padding) lives in VMEM on
        # every generation (v5e/v6e/v7x).  Default whole-array BlockSpecs -> VMEM refs.
        compiler_params=pltpu.CompilerParams(vmem_limit_bytes=32 * 1024 * 1024),
    )(*args)

    # un-permute back to the layouts the PyTorch Detect returns: one gather for z, one per level
    z_idx, x_idx = _build_out_gathers(batch)
    flat = out.reshape(-1)
    z = flat[z_idx]                                              # (B, 252, NO)
    x_list = [flat[xi] for xi in x_idx]                          # (B, NA, n, n, NO)
    return z, x_list


# ----------------------------- pure-JAX reference (validation) ---------------------
def space_to_depth(x):
    bs, h, w, c = x.shape
    x = x.reshape(bs, h // 2, 2, w // 2, 2, c).transpose(0, 1, 3, 2, 4, 5)
    return x.reshape(bs, h // 2, w // 2, 4 * c)


def _detect_ref(p5, level):
    bs, na, ny, nx, no = p5.shape
    gy, gx = jnp.meshgrid(jnp.arange(ny, dtype=jnp.float32),
                          jnp.arange(nx, dtype=jnp.float32), indexing="ij")
    grid = jnp.stack((gx, gy), -1).reshape(1, 1, ny, nx, 2)
    anchor = jnp.asarray(ANCHORS[level]).reshape(1, na, 1, 1, 2)
    stride = STRIDES[level]
    sig = jax.nn.sigmoid(p5)
    xy = (sig[..., 0:2] * 2.0 - 0.5 + grid) * stride
    wh = (sig[..., 2:4] * 2.0) ** 2 * anchor
    obj = sig[..., 4:5]
    lm = p5[..., 5:15].reshape(bs, na, ny, nx, 5, 2)
    lm = (lm * anchor[..., None, :] + grid[..., None, :] * stride).reshape(bs, na, ny, nx, 10)
    cls = sig[..., 15:16]
    return jnp.concatenate([xy, wh, obj, lm, cls], -1).reshape(bs, -1, no)


def model_forward_ref(x_nchw, params):
    # Matmul operands in bf16 (f32 accumulation) to define the same intended numerics.
    x = jnp.transpose(x_nchw, (0, 2, 3, 1)).astype(jnp.float32)
    feats = []
    for si, (w, b) in enumerate(params["backbone"]):
        wf = w if si == 0 else w.reshape(-1, w.shape[-1])        # (4, cin, cout) -> (4*cin, cout)
        x = space_to_depth(x)
        y = jnp.einsum("bhwc,cd->bhwd", x.astype(jnp.bfloat16), wf,
                       preferred_element_type=jnp.float32) + b.reshape(1, 1, 1, -1)
        x = y * jax.nn.sigmoid(y)
        if si >= 2:
            feats.append(x)
    z, xs = [], []
    for i, f in enumerate(feats):
        bs, ny, nx, _ = f.shape
        p = jnp.einsum("bhwc,ck->bhwk", f.astype(jnp.bfloat16),
                       params["detect_w"][i][:, :K],
                       preferred_element_type=jnp.float32) + params["detect_b"][i][0, :K]
        p5 = p.reshape(bs, ny, nx, NA, NO).transpose(0, 3, 1, 2, 4)
        xs.append(p5)
        z.append(_detect_ref(p5, i))
    return jnp.concatenate(z, axis=1), xs


# ----------------------------- main -------------------------------------------------
if __name__ == "__main__":
    params = init_params(jax.random.PRNGKey(0))
    x = jax.random.normal(jax.random.PRNGKey(1), (2, 3, 64, 64), jnp.float32)

    z, x_list = model_forward(x, params)
    jax.block_until_ready(z)
    for xi in x_list:
        jax.block_until_ready(xi)

    assert z.shape == (2, NA * (8 * 8 + 4 * 4 + 2 * 2), NO)
    assert [tuple(xi.shape) for xi in x_list] == [(2, NA, 8, 8, NO), (2, NA, 4, 4, NO), (2, NA, 2, 2, NO)]

    z_ref, x_ref = model_forward_ref(x, params)
    np.testing.assert_allclose(np.asarray(z), np.asarray(z_ref), rtol=2e-2, atol=2e-2)
    for xi, xr in zip(x_list, x_ref):
        np.testing.assert_allclose(np.asarray(xi), np.asarray(xr), rtol=2e-2, atol=2e-2)

    print("KERNEL_OK")
</pallas_src>

<mosaic_0001>
module attributes {stable_mosaic.version = 11 : i64} {
  func.func private @main(%arg0: i32) attributes {dimension_semantics = [#tpu.dimension_semantics<core_parallel>], iteration_bounds = array<i64: 2>, tpu.core_type = #tpu.core_type<sc_scalar_subcore>, window_params = []} {
    return
  }
}

module attributes {stable_mosaic.version = 11 : i64} {
  func.func private @main(%arg0: i32) attributes {dimension_semantics = [#tpu.dimension_semantics<core_parallel>], iteration_bounds = array<i64: 2>, tpu.core_type = #tpu.core_type<sc_scalar_subcore>, window_params = []} {
    return
  }
}

module attributes {stable_mosaic.version = 11 : i64} {
  func.func @kernel(%arg0: memref<2048x12xbf16, #tpu.memory_space<vmem>>, %arg1: memref<12x16xbf16, #tpu.memory_space<vmem>>, %arg2: memref<1x16xf32, #tpu.memory_space<vmem>>, %arg3: memref<4x16x24xbf16, #tpu.memory_space<vmem>>, %arg4: memref<1x24xf32, #tpu.memory_space<vmem>>, %arg5: memref<4x24x32xbf16, #tpu.memory_space<vmem>>, %arg6: memref<1x32xf32, #tpu.memory_space<vmem>>, %arg7: memref<4x32x48xbf16, #tpu.memory_space<vmem>>, %arg8: memref<1x48xf32, #tpu.memory_space<vmem>>, %arg9: memref<4x48x64xbf16, #tpu.memory_space<vmem>>, %arg10: memref<1x64xf32, #tpu.memory_space<vmem>>, %arg11: memref<32x128xbf16, #tpu.memory_space<vmem>>, %arg12: memref<1x128xf32, #tpu.memory_space<vmem>>, %arg13: memref<3x128xf32, #tpu.memory_space<vmem>>, %arg14: memref<128x128xf32, #tpu.memory_space<vmem>>, %arg15: memref<48x128xbf16, #tpu.memory_space<vmem>>, %arg16: memref<1x128xf32, #tpu.memory_space<vmem>>, %arg17: memref<3x128xf32, #tpu.memory_space<vmem>>, %arg18: memref<32x128xf32, #tpu.memory_space<vmem>>, %arg19: memref<64x128xbf16, #tpu.memory_space<vmem>>, %arg20: memref<1x128xf32, #tpu.memory_space<vmem>>, %arg21: memref<3x128xf32, #tpu.memory_space<vmem>>, %arg22: memref<8x128xf32, #tpu.memory_space<vmem>>, %arg23: memref<168x256xf32, #tpu.memory_space<vmem>>) attributes {dimension_semantics = [], scalar_prefetch = 0 : i64, scratch_operands = 0 : i64, tpu.core_type = #tpu.core_type<tc>} {
    %c0 = arith.constant 0 : index
    %c0_0 = arith.constant 0 : index
    %0 = vector.load %arg0[%c0, %c0_0] : memref<2048x12xbf16, #tpu.memory_space<vmem>>, vector<2048x12xbf16>
    %c0_1 = arith.constant 0 : index
    %c0_2 = arith.constant 0 : index
    %1 = vector.load %arg1[%c0_1, %c0_2] : memref<12x16xbf16, #tpu.memory_space<vmem>>, vector<12x16xbf16>
    %cst = arith.constant dense<0.000000e+00> : vector<2048x16xf32>
    %2 = tpu.matmul %0, %1, %cst {dimension_numbers = #tpu.dot_dimension_numbers<[1], [0], [0], [1], [0, 0, 1, 1], [], []>} : vector<2048x12xbf16>, vector<12x16xbf16>, vector<2048x16xf32> -> vector<2048x16xf32>
    %c0_3 = arith.constant 0 : index
    %c0_4 = arith.constant 0 : index
    %3 = vector.load %arg2[%c0_3, %c0_4] : memref<1x16xf32, #tpu.memory_space<vmem>>, vector<1x16xf32>
    %4 = vector.broadcast %3 : vector<1x16xf32> to vector<2048x16xf32>
    %5 = arith.addf %2, %4 : vector<2048x16xf32>
    %cst_5 = arith.constant 0.000000e+00 : f32
    %6 = vector.broadcast %cst_5 : f32 to vector<2048x16xf32>
    %7 = arith.subf %6, %5 : vector<2048x16xf32>
    %8 = math.exp %7 : vector<2048x16xf32>
    %cst_6 = arith.constant 1.000000e+00 : f32
    %9 = vector.broadcast %cst_6 : f32 to vector<2048x16xf32>
    %10 = arith.addf %9, %8 : vector<2048x16xf32>
    %11 = tpu.reciprocal %10 {approx = true} : vector<2048x16xf32> -> vector<2048x16xf32>
    %12 = arith.mulf %5, %11 : vector<2048x16xf32>
    %13 = arith.truncf %12 : vector<2048x16xf32> to vector<2048x16xbf16>
    %14 = vector.extract_strided_slice %13 {offsets = [0, 0], sizes = [512, 16], strides = [1, 1]} : vector<2048x16xbf16> to vector<512x16xbf16>
    %c0_7 = arith.constant 0 : index
    %c0_8 = arith.constant 0 : index
    %c0_9 = arith.constant 0 : index
    %15 = vector.load %arg3[%c0_7, %c0_8, %c0_9] : memref<4x16x24xbf16, #tpu.memory_space<vmem>>, vector<1x16x24xbf16>
    %16 = vector.shape_cast %15 : vector<1x16x24xbf16> to vector<16x24xbf16>
    %cst_10 = arith.constant dense<0.000000e+00> : vector<512x24xf32>
    %17 = tpu.matmul %14, %16, %cst_10 {dimension_numbers = #tpu.dot_dimension_numbers<[1], [0], [0], [1], [0, 0, 1, 1], [], []>} : vector<512x16xbf16>, vector<16x24xbf16>, vector<512x24xf32> -> vector<512x24xf32>
    %c0_11 = arith.constant 0 : index
    %c0_12 = arith.constant 0 : index
    %18 = vector.load %arg4[%c0_11, %c0_12] : memref<1x24xf32, #tpu.memory_space<vmem>>, vector<1x24xf32>
    %19 = vector.broadcast %18 : vector<1x24xf32> to vector<512x24xf32>
    %20 = arith.addf %17, %19 : vector<512x24xf32>
    %21 = vector.extract_strided_slice %13 {offsets = [512, 0], sizes = [512, 16], strides = [1, 1]} : vector<2048x16xbf16> to vector<512x16xbf16>
    %c1 = arith.constant 1 : index
    %c0_13 = arith.constant 0 : index
    %c0_14 = arith.constant 0 : index
    %22 = vector.load %arg3[%c1, %c0_13, %c0_14] : memref<4x16x24xbf16, #tpu.memory_space<vmem>>, vector<1x16x24xbf16>
    %23 = vector.shape_cast %22 : vector<1x16x24xbf16> to vector<16x24xbf16>
    %cst_15 = arith.constant dense<0.000000e+00> : vector<512x24xf32>
    %24 = tpu.matmul %21, %23, %cst_15 {dimension_numbers = #tpu.dot_dimension_numbers<[1], [0], [0], [1], [0, 0, 1, 1], [], []>} : vector<512x16xbf16>, vector<16x24xbf16>, vector<512x24xf32> -> vector<512x24xf32>
    %25 = arith.addf %20, %24 : vector<512x24xf32>
    %26 = vector.extract_strided_slice %13 {offsets = [1024, 0], sizes = [512, 16], strides = [1, 1]} : vector<2048x16xbf16> to vector<512x16xbf16>
    %c2 = arith.constant 2 : index
    %c0_16 = arith.constant 0 : index
    %c0_17 = arith.constant 0 : index
    %27 = vector.load %arg3[%c2, %c0_16, %c0_17] : memref<4x16x24xbf16, #tpu.memory_space<vmem>>, vector<1x16x24xbf16>
    %28 = vector.shape_cast %27 : vector<1x16x24xbf16> to vector<16x24xbf16>
    %cst_18 = arith.constant dense<0.000000e+00> : vector<512x24xf32>
    %29 = tpu.matmul %26, %28, %cst_18 {dimension_numbers = #tpu.dot_dimension_numbers<[1], [0], [0], [1], [0, 0, 1, 1], [], []>} : vector<512x16xbf16>, vector<16x24xbf16>, vector<512x24xf32> -> vector<512x24xf32>
    %30 = arith.addf %25, %29 : vector<512x24xf32>
    %31 = vector.extract_strided_slice %13 {offsets = [1536, 0], sizes = [512, 16], strides = [1, 1]} : vector<2048x16xbf16> to vector<512x16xbf16>
    %c3 = arith.constant 3 : index
    %c0_19 = arith.constant 0 : index
    %c0_20 = arith.constant 0 : index
    %32 = vector.load %arg3[%c3, %c0_19, %c0_20] : memref<4x16x24xbf16, #tpu.memory_space<vmem>>, vector<1x16x24xbf16>
    %33 = vector.shape_cast %32 : vector<1x16x24xbf16> to vector<16x24xbf16>
    %cst_21 = arith.constant dense<0.000000e+00> : vector<512x24xf32>
    %34 = tpu.matmul %31, %33, %cst_21 {dimension_numbers = #tpu.dot_dimension_numbers<[1], [0], [0], [1], [0, 0, 1, 1], [], []>} : vector<512x16xbf16>, vector<16x24xbf16>, vector<512x24xf32> -> vector<512x24xf32>
    %35 = arith.addf %30, %34 : vector<512x24xf32>
    %cst_22 = arith.constant 0.000000e+00 : f32
    %36 = vector.broadcast %cst_22 : f32 to vector<512x24xf32>
    %37 = arith.subf %36, %35 : vector<512x24xf32>
    %38 = math.exp %37 : vector<512x24xf32>
    %cst_23 = arith.constant 1.000000e+00 : f32
    %39 = vector.broadcast %cst_23 : f32 to vector<512x24xf32>
    %40 = arith.addf %39, %38 : vector<512x24xf32>
    %41 = tpu.reciprocal %40 {approx = true} : vector<512x24xf32> -> vector<512x24xf32>
    %42 = arith.mulf %35, %41 : vector<512x24xf32>
    %43 = arith.truncf %42 : vector<512x24xf32> to vector<512x24xbf16>
    %44 = vector.extract_strided_slice %43 {offsets = [0, 0], sizes = [128, 24], strides = [1, 1]} : vector<512x24xbf16> to vector<128x24xbf16>
    %c0_24 = arith.constant 0 : index
    %c0_25 = arith.constant 0 : index
    %c0_26 = arith.constant 0 : index
    %45 = vector.load %arg5[%c0_24, %c0_25, %c0_26] : memref<4x24x32xbf16, #tpu.memory_space<vmem>>, vector<1x24x32xbf16>
    %46 = vector.shape_cast %45 : vector<1x24x32xbf16> to vector<24x32xbf16>
    %cst_27 = arith.constant dense<0.000000e+00> : vector<128x32xf32>
    %47 = tpu.matmul %44, %46, %cst_27 {dimension_numbers = #tpu.dot_dimension_numbers<[1], [0], [0], [1], [0, 0, 1, 1], [], []>} : vector<128x24xbf16>, vector<24x32xbf16>, vector<128x32xf32> -> vector<128x32xf32>
    %c0_28 = arith.constant 0 : index
    %c0_29 = arith.constant 0 : index
    %48 = vector.load %arg6[%c0_28, %c0_29] : memref<1x32xf32, #tpu.memory_space<vmem>>, vector<1x32xf32>
    %49 = vector.broadcast %48 : vector<1x32xf32> to vector<128x32xf32>
    %50 = arith.addf %47, %49 : vector<128x32xf32>
    %51 = vector.extract_strided_slice %43 {offsets = [128, 0], sizes = [128, 24], strides = [1, 1]} : vector<512x24xbf16> to vector<128x24xbf16>
    %c1_30 = arith.constant 1 : index
    %c0_31 = arith.constant 0 : index
    %c0_32 = arith.constant 0 : index
    %52 = vector.load %arg5[%c1_30, %c0_31, %c0_32] : memref<4x24x32xbf16, #tpu.memory_space<vmem>>, vector<1x24x32xbf16>
    %53 = vector.shape_cast %52 : vector<1x24x32xbf16> to vector<24x32xbf16>
    %cst_33 = arith.constant dense<0.000000e+00> : vector<128x32xf32>
    %54 = tpu.matmul %51, %53, %cst_33 {dimension_numbers = #tpu.dot_dimension_numbers<[1], [0], [0], [1], [0, 0, 1, 1], [], []>} : vector<128x24xbf16>, vector<24x32xbf16>, vector<128x32xf32> -> vector<128x32xf32>
    %55 = arith.addf %50, %54 : vector<128x32xf32>
    %56 = vector.extract_strided_slice %43 {offsets = [256, 0], sizes = [128, 24], strides = [1, 1]} : vector<512x24xbf16> to vector<128x24xbf16>
    %c2_34 = arith.constant 2 : index
    %c0_35 = arith.constant 0 : index
    %c0_36 = arith.constant 0 : index
    %57 = vector.load %arg5[%c2_34, %c0_35, %c0_36] : memref<4x24x32xbf16, #tpu.memory_space<vmem>>, vector<1x24x32xbf16>
    %58 = vector.shape_cast %57 : vector<1x24x32xbf16> to vector<24x32xbf16>
    %cst_37 = arith.constant dense<0.000000e+00> : vector<128x32xf32>
    %59 = tpu.matmul %56, %58, %cst_37 {dimension_numbers = #tpu.dot_dimension_numbers<[1], [0], [0], [1], [0, 0, 1, 1], [], []>} : vector<128x24xbf16>, vector<24x32xbf16>, vector<128x32xf32> -> vector<128x32xf32>
    %60 = arith.addf %55, %59 : vector<128x32xf32>
    %61 = vector.extract_strided_slice %43 {offsets = [384, 0], sizes = [128, 24], strides = [1, 1]} : vector<512x24xbf16> to vector<128x24xbf16>
    %c3_38 = arith.constant 3 : index
    %c0_39 = arith.constant 0 : index
    %c0_40 = arith.constant 0 : index
    %62 = vector.load %arg5[%c3_38, %c0_39, %c0_40] : memref<4x24x32xbf16, #tpu.memory_space<vmem>>, vector<1x24x32xbf16>
    %63 = vector.shape_cast %62 : vector<1x24x32xbf16> to vector<24x32xbf16>
    %cst_41 = arith.constant dense<0.000000e+00> : vector<128x32xf32>
    %64 = tpu.matmul %61, %63, %cst_41 {dimension_numbers = #tpu.dot_dimension_numbers<[1], [0], [0], [1], [0, 0, 1, 1], [], []>} : vector<128x24xbf16>, vector<24x32xbf16>, vector<128x32xf32> -> vector<128x32xf32>
    %65 = arith.addf %60, %64 : vector<128x32xf32>
    %cst_42 = arith.constant 0.000000e+00 : f32
    %66 = vector.broadcast %cst_42 : f32 to vector<128x32xf32>
    %67 = arith.subf %66, %65 : vector<128x32xf32>
    %68 = math.exp %67 : vector<128x32xf32>
    %cst_43 = arith.constant 1.000000e+00 : f32
    %69 = vector.broadcast %cst_43 : f32 to vector<128x32xf32>
    %70 = arith.addf %69, %68 : vector<128x32xf32>
    %71 = tpu.reciprocal %70 {approx = true} : vector<128x32xf32> -> vector<128x32xf32>
    %72 = arith.mulf %65, %71 : vector<128x32xf32>
    %73 = arith.truncf %72 : vector<128x32xf32> to vector<128x32xbf16>
    %74 = vector.extract_strided_slice %73 {offsets = [0, 0], sizes = [32, 32], strides = [1, 1]} : vector<128x32xbf16> to vector<32x32xbf16>
    %c0_44 = arith.constant 0 : index
    %c0_45 = arith.constant 0 : index
    %c0_46 = arith.constant 0 : index
    %75 = vector.load %arg7[%c0_44, %c0_45, %c0_46] : memref<4x32x48xbf16, #tpu.memory_space<vmem>>, vector<1x32x48xbf16>
    %76 = vector.shape_cast %75 : vector<1x32x48xbf16> to vector<32x48xbf16>
    %cst_47 = arith.constant dense<0.000000e+00> : vector<32x48xf32>
    %77 = tpu.matmul %74, %76, %cst_47 {dimension_numbers = #tpu.dot_dimension_numbers<[1], [0], [0], [1], [0, 0, 1, 1], [], []>} : vector<32x32xbf16>, vector<32x48xbf16>, vector<32x48xf32> -> vector<32x48xf32>
    %c0_48 = arith.constant 0 : index
    %c0_49 = arith.constant 0 : index
    %78 = vector.load %arg8[%c0_48, %c0_49] : memref<1x48xf32, #tpu.memory_space<vmem>>, vector<1x48xf32>
    %79 = vector.broadcast %78 : vector<1x48xf32> to vector<32x48xf32>
    %80 = arith.addf %77, %79 : vector<32x48xf32>
    %81 = vector.extract_strided_slice %73 {offsets = [32, 0], sizes = [32, 32], strides = [1, 1]} : vector<128x32xbf16> to vector<32x32xbf16>
    %c1_50 = arith.constant 1 : index
    %c0_51 = arith.constant 0 : index
    %c0_52 = arith.constant 0 : index
    %82 = vector.load %arg7[%c1_50, %c0_51, %c0_52] : memref<4x32x48xbf16, #tpu.memory_space<vmem>>, vector<1x32x48xbf16>
    %83 = vector.shape_cast %82 : vector<1x32x48xbf16> to vector<32x48xbf16>
    %cst_53 = arith.constant dense<0.000000e+00> : vector<32x48xf32>
    %84 = tpu.matmul %81, %83, %cst_53 {dimension_numbers = #tpu.dot_dimension_numbers<[1], [0], [0], [1], [0, 0, 1, 1], [], []>} : vector<32x32xbf16>, vector<32x48xbf16>, vector<32x48xf32> -> vector<32x48xf32>
    %85 = arith.addf %80, %84 : vector<32x48xf32>
    %86 = vector.extract_strided_slice %73 {offsets = [64, 0], sizes = [32, 32], strides = [1, 1]} : vector<128x32xbf16> to vector<32x32xbf16>
    %c2_54 = arith.constant 2 : index
    %c0_55 = arith.constant 0 : index
    %c0_56 = arith.constant 0 : index
    %87 = vector.load %arg7[%c2_54, %c0_55, %c0_56] : memref<4x32x48xbf16, #tpu.memory_space<vmem>>, vector<1x32x48xbf16>
    %88 = vector.shape_cast %87 : vector<1x32x48xbf16> to vector<32x48xbf16>
    %cst_57 = arith.constant dense<0.000000e+00> : vector<32x48xf32>
    %89 = tpu.matmul %86, %88, %cst_57 {dimension_numbers = #tpu.dot_dimension_numbers<[1], [0], [0], [1], [0, 0, 1, 1], [], []>} : vector<32x32xbf16>, vector<32x48xbf16>, vector<32x48xf32> -> vector<32x48xf32>
    %90 = arith.addf %85, %89 : vector<32x48xf32>
    %91 = vector.extract_strided_slice %73 {offsets = [96, 0], sizes = [32, 32], strides = [1, 1]} : vector<128x32xbf16> to vector<32x32xbf16>
    %c3_58 = arith.constant 3 : index
    %c0_59 = arith.constant 0 : index
    %c0_60 = arith.constant 0 : index
    %92 = vector.load %arg7[%c3_58, %c0_59, %c0_60] : memref<4x32x48xbf16, #tpu.memory_space<vmem>>, vector<1x32x48xbf16>
    %93 = vector.shape_cast %92 : vector<1x32x48xbf16> to vector<32x48xbf16>
    %cst_61 = arith.constant dense<0.000000e+00> : vector<32x48xf32>
    %94 = tpu.matmul %91, %93, %cst_61 {dimension_numbers = #tpu.dot_dimension_numbers<[1], [0], [0], [1], [0, 0, 1, 1], [], []>} : vector<32x32xbf16>, vector<32x48xbf16>, vector<32x48xf32> -> vector<32x48xf32>
    %95 = arith.addf %90, %94 : vector<32x48xf32>
    %cst_62 = arith.constant 0.000000e+00 : f32
    %96 = vector.broadcast %cst_62 : f32 to vector<32x48xf32>
    %97 = arith.subf %96, %95 : vector<32x48xf32>
    %98 = math.exp %97 : vector<32x48xf32>
    %cst_63 = arith.constant 1.000000e+00 : f32
    %99 = vector.broadcast %cst_63 : f32 to vector<32x48xf32>
    %100 = arith.addf %99, %98 : vector<32x48xf32>
    %101 = tpu.reciprocal %100 {approx = true} : vector<32x48xf32> -> vector<32x48xf32>
    %102 = arith.mulf %95, %101 : vector<32x48xf32>
    %103 = arith.truncf %102 : vector<32x48xf32> to vector<32x48xbf16>
    %104 = vector.extract_strided_slice %103 {offsets = [0, 0], sizes = [8, 48], strides = [1, 1]} : vector<32x48xbf16> to vector<8x48xbf16>
    %c0_64 = arith.constant 0 : index
    %c0_65 = arith.constant 0 : index
    %c0_66 = arith.constant 0 : index
    %105 = vector.load %arg9[%c0_64, %c0_65, %c0_66] : memref<4x48x64xbf16, #tpu.memory_space<vmem>>, vector<1x48x64xbf16>
    %106 = vector.shape_cast %105 : vector<1x48x64xbf16> to vector<48x64xbf16>
    %cst_67 = arith.constant dense<0.000000e+00> : vector<8x64xf32>
    %107 = tpu.matmul %104, %106, %cst_67 {dimension_numbers = #tpu.dot_dimension_numbers<[1], [0], [0], [1], [0, 0, 1, 1], [], []>} : vector<8x48xbf16>, vector<48x64xbf16>, vector<8x64xf32> -> vector<8x64xf32>
    %c0_68 = arith.constant 0 : index
    %c0_69 = arith.constant 0 : index
    %108 = vector.load %arg10[%c0_68, %c0_69] : memref<1x64xf32, #tpu.memory_space<vmem>>, vector<1x64xf32>
    %109 = vector.broadcast %108 : vector<1x64xf32> to vector<8x64xf32>
    %110 = arith.addf %107, %109 : vector<8x64xf32>
    %111 = vector.extract_strided_slice %103 {offsets = [8, 0], sizes = [8, 48], strides = [1, 1]} : vector<32x48xbf16> to vector<8x48xbf16>
    %c1_70 = arith.constant 1 : index
    %c0_71 = arith.constant 0 : index
    %c0_72 = arith.constant 0 : index
    %112 = vector.load %arg9[%c1_70, %c0_71, %c0_72] : memref<4x48x64xbf16, #tpu.memory_space<vmem>>, vector<1x48x64xbf16>
    %113 = vector.shape_cast %112 : vector<1x48x64xbf16> to vector<48x64xbf16>
    %cst_73 = arith.constant dense<0.000000e+00> : vector<8x64xf32>
    %114 = tpu.matmul %111, %113, %cst_73 {dimension_numbers = #tpu.dot_dimension_numbers<[1], [0], [0], [1], [0, 0, 1, 1], [], []>} : vector<8x48xbf16>, vector<48x64xbf16>, vector<8x64xf32> -> vector<8x64xf32>
    %115 = arith.addf %110, %114 : vector<8x64xf32>
    %116 = vector.extract_strided_slice %103 {offsets = [16, 0], sizes = [8, 48], strides = [1, 1]} : vector<32x48xbf16> to vector<8x48xbf16>
    %c2_74 = arith.constant 2 : index
    %c0_75 = arith.constant 0 : index
    %c0_76 = arith.constant 0 : index
    %117 = vector.load %arg9[%c2_74, %c0_75, %c0_76] : memref<4x48x64xbf16, #tpu.memory_space<vmem>>, vector<1x48x64xbf16>
    %118 = vector.shape_cast %117 : vector<1x48x64xbf16> to vector<48x64xbf16>
    %cst_77 = arith.constant dense<0.000000e+00> : vector<8x64xf32>
    %119 = tpu.matmul %116, %118, %cst_77 {dimension_numbers = #tpu.dot_dimension_numbers<[1], [0], [0], [1], [0, 0, 1, 1], [], []>} : vector<8x48xbf16>, vector<48x64xbf16>, vector<8x64xf32> -> vector<8x64xf32>
    %120 = arith.addf %115, %119 : vector<8x64xf32>
    %121 = vector.extract_strided_slice %103 {offsets = [24, 0], sizes = [8, 48], strides = [1, 1]} : vector<32x48xbf16> to vector<8x48xbf16>
    %c3_78 = arith.constant 3 : index
    %c0_79 = arith.constant 0 : index
    %c0_80 = arith.constant 0 : index
    %122 = vector.load %arg9[%c3_78, %c0_79, %c0_80] : memref<4x48x64xbf16, #tpu.memory_space<vmem>>, vector<1x48x64xbf16>
    %123 = vector.shape_cast %122 : vector<1x48x64xbf16> to vector<48x64xbf16>
    %cst_81 = arith.constant dense<0.000000e+00> : vector<8x64xf32>
    %124 = tpu.matmul %121, %123, %cst_81 {dimension_numbers = #tpu.dot_dimension_numbers<[1], [0], [0], [1], [0, 0, 1, 1], [], []>} : vector<8x48xbf16>, vector<48x64xbf16>, vector<8x64xf32> -> vector<8x64xf32>
    %125 = arith.addf %120, %124 : vector<8x64xf32>
    %cst_82 = arith.constant 0.000000e+00 : f32
    %126 = vector.broadcast %cst_82 : f32 to vector<8x64xf32>
    %127 = arith.subf %126, %125 : vector<8x64xf32>
    %128 = math.exp %127 : vector<8x64xf32>
    %cst_83 = arith.constant 1.000000e+00 : f32
    %129 = vector.broadcast %cst_83 : f32 to vector<8x64xf32>
    %130 = arith.addf %129, %128 : vector<8x64xf32>
    %131 = tpu.reciprocal %130 {approx = true} : vector<8x64xf32> -> vector<8x64xf32>
    %132 = arith.mulf %125, %131 : vector<8x64xf32>
    %133 = arith.truncf %132 : vector<8x64xf32> to vector<8x64xbf16>
    %c0_84 = arith.constant 0 : index
    %c0_85 = arith.constant 0 : index
    %134 = vector.load %arg11[%c0_84, %c0_85] : memref<32x128xbf16, #tpu.memory_space<vmem>>, vector<32x128xbf16>
    %cst_86 = arith.constant dense<0.000000e+00> : vector<128x128xf32>
    %135 = tpu.matmul %73, %134, %cst_86 {dimension_numbers = #tpu.dot_dimension_numbers<[1], [0], [0], [1], [0, 0, 1, 1], [], []>} : vector<128x32xbf16>, vector<32x128xbf16>, vector<128x128xf32> -> vector<128x128xf32>
    %c0_87 = arith.constant 0 : index
    %c0_88 = arith.constant 0 : index
    %136 = vector.load %arg12[%c0_87, %c0_88] : memref<1x128xf32, #tpu.memory_space<vmem>>, vector<1x128xf32>
    %137 = vector.broadcast %136 : vector<1x128xf32> to vector<128x128xf32>
    %138 = arith.addf %135, %137 : vector<128x128xf32>
    %cst_89 = arith.constant 0.000000e+00 : f32
    %139 = vector.broadcast %cst_89 : f32 to vector<128x128xf32>
    %140 = arith.subf %139, %138 : vector<128x128xf32>
    %141 = math.exp %140 : vector<128x128xf32>
    %cst_90 = arith.constant 1.000000e+00 : f32
    %142 = vector.broadcast %cst_90 : f32 to vector<128x128xf32>
    %143 = arith.addf %142, %141 : vector<128x128xf32>
    %144 = tpu.reciprocal %143 {approx = true} : vector<128x128xf32> -> vector<128x128xf32>
    %c0_91 = arith.constant 0 : index
    %c0_92 = arith.constant 0 : index
    %145 = vector.load %arg13[%c0_91, %c0_92] : memref<3x128xf32, #tpu.memory_space<vmem>>, vector<3x128xf32>
    %146 = vector.extract_strided_slice %145 {offsets = [0, 0], sizes = [1, 128], strides = [1, 1]} : vector<3x128xf32> to vector<1x128xf32>
    %147 = arith.mulf %144, %144 : vector<128x128xf32>
    %148 = vector.broadcast %146 : vector<1x128xf32> to vector<128x128xf32>
    %149 = arith.mulf %148, %147 : vector<128x128xf32>
    %150 = vector.extract_strided_slice %145 {offsets = [1, 0], sizes = [1, 128], strides = [1, 1]} : vector<3x128xf32> to vector<1x128xf32>
    %151 = vector.broadcast %150 : vector<1x128xf32> to vector<128x128xf32>
    %152 = arith.mulf %151, %144 : vector<128x128xf32>
    %153 = arith.addf %149, %152 : vector<128x128xf32>
    %154 = vector.extract_strided_slice %145 {offsets = [2, 0], sizes = [1, 128], strides = [1, 1]} : vector<3x128xf32> to vector<1x128xf32>
    %155 = vector.broadcast %154 : vector<1x128xf32> to vector<128x128xf32>
    %156 = arith.mulf %155, %138 : vector<128x128xf32>
    %157 = arith.addf %153, %156 : vector<128x128xf32>
    %c0_93 = arith.constant 0 : index
    %c0_94 = arith.constant 0 : index
    %158 = vector.load %arg14[%c0_93, %c0_94] : memref<128x128xf32, #tpu.memory_space<vmem>>, vector<128x128xf32>
    %159 = arith.addf %157, %158 : vector<128x128xf32>
    %c0_95 = arith.constant 0 : index
    %c0_96 = arith.constant 0 : index
    %160 = vector.load %arg23[%c0_95, %c0_96] : memref<168x256xf32, #tpu.memory_space<vmem>>, vector<128x128xf32>
    tpu.vector_store %arg23[%c0_95, %c0_96], %159 {strides = array<i32>} : memref<168x256xf32, #tpu.memory_space<vmem>>, vector<128x128xf32>,
    %c0_97 = arith.constant 0 : index
    %c128 = arith.constant 128 : index
    %161 = vector.load %arg23[%c0_97, %c128] : memref<168x256xf32, #tpu.memory_space<vmem>>, vector<128x128xf32>
    tpu.vector_store %arg23[%c0_97, %c128], %138 {strides = array<i32>} : memref<168x256xf32, #tpu.memory_space<vmem>>, vector<128x128xf32>,
    %c0_98 = arith.constant 0 : index
    %c0_99 = arith.constant 0 : index
    %162 = vector.load %arg15[%c0_98, %c0_99] : memref<48x128xbf16, #tpu.memory_space<vmem>>, vector<48x128xbf16>
    %cst_100 = arith.constant dense<0.000000e+00> : vector<32x128xf32>
    %163 = tpu.matmul %103, %162, %cst_100 {dimension_numbers = #tpu.dot_dimension_numbers<[1], [0], [0], [1], [0, 0, 1, 1], [], []>} : vector<32x48xbf16>, vector<48x128xbf16>, vector<32x128xf32> -> vector<32x128xf32>
    %c0_101 = arith.constant 0 : index
    %c0_102 = arith.constant 0 : index
    %164 = vector.load %arg16[%c0_101, %c0_102] : memref<1x128xf32, #tpu.memory_space<vmem>>, vector<1x128xf32>
    %165 = vector.broadcast %164 : vector<1x128xf32> to vector<32x128xf32>
    %166 = arith.addf %163, %165 : vector<32x128xf32>
    %cst_103 = arith.constant 0.000000e+00 : f32
    %167 = vector.broadcast %cst_103 : f32 to vector<32x128xf32>
    %168 = arith.subf %167, %166 : vector<32x128xf32>
    %169 = math.exp %168 : vector<32x128xf32>
    %cst_104 = arith.constant 1.000000e+00 : f32
    %170 = vector.broadcast %cst_104 : f32 to vector<32x128xf32>
    %171 = arith.addf %170, %169 : vector<32x128xf32>
    %172 = tpu.reciprocal %171 {approx = true} : vector<32x128xf32> -> vector<32x128xf32>
    %c0_105 = arith.constant 0 : index
    %c0_106 = arith.constant 0 : index
    %173 = vector.load %arg17[%c0_105, %c0_106] : memref<3x128xf32, #tpu.memory_space<vmem>>, vector<3x128xf32>
    %174 = vector.extract_strided_slice %173 {offsets = [0, 0], sizes = [1, 128], strides = [1, 1]} : vector<3x128xf32> to vector<1x128xf32>
    %175 = arith.mulf %172, %172 : vector<32x128xf32>
    %176 = vector.broadcast %174 : vector<1x128xf32> to vector<32x128xf32>
    %177 = arith.mulf %176, %175 : vector<32x128xf32>
    %178 = vector.extract_strided_slice %173 {offsets = [1, 0], sizes = [1, 128], strides = [1, 1]} : vector<3x128xf32> to vector<1x128xf32>
    %179 = vector.broadcast %178 : vector<1x128xf32> to vector<32x128xf32>
    %180 = arith.mulf %179, %172 : vector<32x128xf32>
    %181 = arith.addf %177, %180 : vector<32x128xf32>
    %182 = vector.extract_strided_slice %173 {offsets = [2, 0], sizes = [1, 128], strides = [1, 1]} : vector<3x128xf32> to vector<1x128xf32>
    %183 = vector.broadcast %182 : vector<1x128xf32> to vector<32x128xf32>
    %184 = arith.mulf %183, %166 : vector<32x128xf32>
    %185 = arith.addf %181, %184 : vector<32x128xf32>
    %c0_107 = arith.constant 0 : index
    %c0_108 = arith.constant 0 : index
    %186 = vector.load %arg18[%c0_107, %c0_108] : memref<32x128xf32, #tpu.memory_space<vmem>>, vector<32x128xf32>
    %187 = arith.addf %185, %186 : vector<32x128xf32>
    %c128_109 = arith.constant 128 : index
    %c0_110 = arith.constant 0 : index
    %188 = vector.load %arg23[%c128_109, %c0_110] : memref<168x256xf32, #tpu.memory_space<vmem>>, vector<32x128xf32>
    tpu.vector_store %arg23[%c128_109, %c0_110], %187 {strides = array<i32>} : memref<168x256xf32, #tpu.memory_space<vmem>>, vector<32x128xf32>,
    %c128_111 = arith.constant 128 : index
    %c128_112 = arith.constant 128 : index
    %189 = vector.load %arg23[%c128_111, %c128_112] : memref<168x256xf32, #tpu.memory_space<vmem>>, vector<32x128xf32>
    tpu.vector_store %arg23[%c128_111, %c128_112], %166 {strides = array<i32>} : memref<168x256xf32, #tpu.memory_space<vmem>>, vector<32x128xf32>,
    %c0_113 = arith.constant 0 : index
    %c0_114 = arith.constant 0 : index
    %190 = vector.load %arg19[%c0_113, %c0_114] : memref<64x128xbf16, #tpu.memory_space<vmem>>, vector<64x128xbf16>
    %cst_115 = arith.constant dense<0.000000e+00> : vector<8x128xf32>
    %191 = tpu.matmul %133, %190, %cst_115 {dimension_numbers = #tpu.dot_dimension_numbers<[1], [0], [0], [1], [0, 0, 1, 1], [], []>} : vector<8x64xbf16>, vector<64x128xbf16>, vector<8x128xf32> -> vector<8x128xf32>
    %c0_116 = arith.constant 0 : index
    %c0_117 = arith.constant 0 : index
    %192 = vector.load %arg20[%c0_116, %c0_117] : memref<1x128xf32, #tpu.memory_space<vmem>>, vector<1x128xf32>
    %193 = vector.broadcast %192 : vector<1x128xf32> to vector<8x128xf32>
    %194 = arith.addf %191, %193 : vector<8x128xf32>
    %cst_118 = arith.constant 0.000000e+00 : f32
    %195 = vector.broadcast %cst_118 : f32 to vector<8x128xf32>
    %196 = arith.subf %195, %194 : vector<8x128xf32>
    %197 = math.exp %196 : vector<8x128xf32>
    %cst_119 = arith.constant 1.000000e+00 : f32
    %198 = vector.broadcast %cst_119 : f32 to vector<8x128xf32>
    %199 = arith.addf %198, %197 : vector<8x128xf32>
    %200 = tpu.reciprocal %199 {approx = true} : vector<8x128xf32> -> vector<8x128xf32>
    %c0_120 = arith.constant 0 : index
    %c0_121 = arith.constant 0 : index
    %201 = vector.load %arg21[%c0_120, %c0_121] : memref<3x128xf32, #tpu.memory_space<vmem>>, vector<3x128xf32>
    %202 = vector.extract_strided_slice %201 {offsets = [0, 0], sizes = [1, 128], strides = [1, 1]} : vector<3x128xf32> to vector<1x128xf32>
    %203 = arith.mulf %200, %200 : vector<8x128xf32>
    %204 = vector.broadcast %202 : vector<1x128xf32> to vector<8x128xf32>
    %205 = arith.mulf %204, %203 : vector<8x128xf32>
    %206 = vector.extract_strided_slice %201 {offsets = [1, 0], sizes = [1, 128], strides = [1, 1]} : vector<3x128xf32> to vector<1x128xf32>
    %207 = vector.broadcast %206 : vector<1x128xf32> to vector<8x128xf32>
    %208 = arith.mulf %207, %200 : vector<8x128xf32>
    %209 = arith.addf %205, %208 : vector<8x128xf32>
    %210 = vector.extract_strided_slice %201 {offsets = [2, 0], sizes = [1, 128], strides = [1, 1]} : vector<3x128xf32> to vector<1x128xf32>
    %211 = vector.broadcast %210 : vector<1x128xf32> to vector<8x128xf32>
    %212 = arith.mulf %211, %194 : vector<8x128xf32>
    %213 = arith.addf %209, %212 : vector<8x128xf32>
    %c0_122 = arith.constant 0 : index
    %c0_123 = arith.constant 0 : index
    %214 = vector.load %arg22[%c0_122, %c0_123] : memref<8x128xf32, #tpu.memory_space<vmem>>, vector<8x128xf32>
    %215 = arith.addf %213, %214 : vector<8x128xf32>
    %c160 = arith.constant 160 : index
    %c0_124 = arith.constant 0 : index
    %216 = vector.load %arg23[%c160, %c0_124] : memref<168x256xf32, #tpu.memory_space<vmem>>, vector<8x128xf32>
    tpu.vector_store %arg23[%c160, %c0_124], %215 {strides = array<i32>} : memref<168x256xf32, #tpu.memory_space<vmem>>, vector<8x128xf32>,
    %c160_125 = arith.constant 160 : index
    %c128_126 = arith.constant 128 : index
    %217 = vector.load %arg23[%c160_125, %c128_126] : memref<168x256xf32, #tpu.memory_space<vmem>>, vector<8x128xf32>
    tpu.vector_store %arg23[%c160_125, %c128_126], %194 {strides = array<i32>} : memref<168x256xf32, #tpu.memory_space<vmem>>, vector<8x128xf32>,
    return
  }
}

</mosaic_0001>

<llo_original>
// kernel: model_forward.1
$region0: #{model_forward.1}
  #allocation0 [shape = 'u32[]', space=smem, size = 0x4, offset = 0x4, fixed_abs, tag = 'smem constant byte address 0x4 - core index']
  #allocation1 [shape = 'u32[144,128]{1,0:T(1,128)}', space=vmem, size = 0x12000, scoped, tag = 'internal scratch']
  %s0 = inlined_call_operand.vmem [shape: bf16[2048,12], index: 0, kind: input, shape index: {}]
  %s1 = inlined_call_operand.vmem [shape: bf16[12,16], index: 1, kind: input, shape index: {}]
  %s2 = inlined_call_operand.vmem [shape: f32[1,16], index: 2, kind: input, shape index: {}]
  %s3 = inlined_call_operand.vmem [shape: bf16[4,16,24], index: 3, kind: input, shape index: {}]
  %s4 = inlined_call_operand.vmem [shape: f32[1,24], index: 4, kind: input, shape index: {}]
  %s5 = inlined_call_operand.vmem [shape: bf16[4,24,32], index: 5, kind: input, shape index: {}]
  %s6 = inlined_call_operand.vmem [shape: f32[1,32], index: 6, kind: input, shape index: {}]
  %s7 = inlined_call_operand.vmem [shape: bf16[4,32,48], index: 7, kind: input, shape index: {}]
  %s8 = inlined_call_operand.vmem [shape: f32[1,48], index: 8, kind: input, shape index: {}]
  %s9 = inlined_call_operand.vmem [shape: bf16[4,48,64], index: 9, kind: input, shape index: {}]
  %s10 = inlined_call_operand.vmem [shape: f32[1,64], index: 10, kind: input, shape index: {}]
  %s11 = inlined_call_operand.vmem [shape: bf16[32,128], index: 11, kind: input, shape index: {}]
  %s12 = inlined_call_operand.vmem [shape: f32[1,128], index: 12, kind: input, shape index: {}]
  %s13 = inlined_call_operand.vmem [shape: f32[3,128], index: 13, kind: input, shape index: {}]
  %s14 = inlined_call_operand.vmem [shape: f32[128,128], index: 14, kind: input, shape index: {}]
  %s15 = inlined_call_operand.vmem [shape: bf16[48,128], index: 15, kind: input, shape index: {}]
  %s16 = inlined_call_operand.vmem [shape: f32[1,128], index: 16, kind: input, shape index: {}]
  %s17 = inlined_call_operand.vmem [shape: f32[3,128], index: 17, kind: input, shape index: {}]
  %s18 = inlined_call_operand.vmem [shape: f32[32,128], index: 18, kind: input, shape index: {}]
  %s19 = inlined_call_operand.vmem [shape: bf16[64,128], index: 19, kind: input, shape index: {}]
  %s20 = inlined_call_operand.vmem [shape: f32[1,128], index: 20, kind: input, shape index: {}]
  %s21 = inlined_call_operand.vmem [shape: f32[3,128], index: 21, kind: input, shape index: {}]
  %s22 = inlined_call_operand.vmem [shape: f32[8,128], index: 22, kind: input, shape index: {}]
  %s23 = inlined_call_operand.vmem [shape: f32[168,256], index: 23, kind: output, shape index: {}]
  %s24 = sld [smem:[#allocation0]]
  $region102: #{model_forward.1} parent=0
    _
  %s26 = ssub.s32 1, %s24
  %s27 = scalar_select 0, %s26, %s24
  // Predicated region
  $region2: #{model_forward.1} parent=0 // pred_check
    _
  $region3: #{model_forward.1} parent=0 // pred_check_branch
    %29 = sbr.rel (0) target = $region5
  $region4: #{model_forward.1} parent=0 // pred_region
    _
  $region5: #{model_forward.1} parent=0 // pred_fallthru
    _
  // Predicated region
  $region6: #{model_forward.1} parent=0 // pred_check
    _
  $region7: #{model_forward.1} parent=0 // pred_check_branch
    %31 = sbr.rel (0) target = $region9
  $region8: #{model_forward.1} parent=0 // pred_region
    _
  $region9: #{model_forward.1} parent=0 // pred_fallthru
    _
  // Predicated region
  $region10: #{model_forward.1} parent=0 // pred_check
    _
  $region11: #{model_forward.1} parent=0 // pred_check_branch
    %33 = sbr.rel (0) target = $region13
  $region12: #{model_forward.1} parent=0 // pred_region
    _
  $region13: #{model_forward.1} parent=0 // pred_fallthru
    _
  // Predicated region
  $region14: #{model_forward.1} parent=0 // pred_check
    _
  $region15: #{model_forward.1} parent=0 // pred_check_branch
    %35 = sbr.rel (0) target = $region17
  $region16: #{model_forward.1} parent=0 // pred_region
    _
  $region17: #{model_forward.1} parent=0 // pred_fallthru
    _
  // Predicated region
  $region18: #{model_forward.1} parent=0 // pred_check
    _
  $region19: #{model_forward.1} parent=0 // pred_check_branch
    %37 = sbr.rel (0) target = $region21
  $region20: #{model_forward.1} parent=0 // pred_region
    _
  $region21: #{model_forward.1} parent=0 // pred_fallthru
    _
  // Predicated region
  $region22: #{model_forward.1} parent=0 // pred_check
    _
  $region23: #{model_forward.1} parent=0 // pred_check_branch
    %39 = sbr.rel (0) target = $region25
  $region24: #{model_forward.1} parent=0 // pred_region
    _
  $region25: #{model_forward.1} parent=0 // pred_fallthru
    _
  // Predicated region
  $region26: #{model_forward.1} parent=0 // pred_check
    _
  $region27: #{model_forward.1} parent=0 // pred_check_branch
    %41 = sbr.rel (0) target = $region29
  $region28: #{model_forward.1} parent=0 // pred_region
    _
  $region29: #{model_forward.1} parent=0 // pred_fallthru
    _
  // Predicated region
  $region30: #{model_forward.1} parent=0 // pred_check
    _
  $region31: #{model_forward.1} parent=0 // pred_check_branch
    %43 = sbr.rel (0) target = $region33
  $region32: #{model_forward.1} parent=0 // pred_region
    _
  $region33: #{model_forward.1} parent=0 // pred_fallthru
    _
  // Predicated region
  $region34: #{model_forward.1} parent=0 // pred_check
    _
  $region35: #{model_forward.1} parent=0 // pred_check_branch
    %45 = sbr.rel (0) target = $region37
  $region36: #{model_forward.1} parent=0 // pred_region
    _
  $region37: #{model_forward.1} parent=0 // pred_fallthru
    _
  // Predicated region
  $region38: #{model_forward.1} parent=0 // pred_check
    _
  $region39: #{model_forward.1} parent=0 // pred_check_branch
    %47 = sbr.rel (0) target = $region41
  $region40: #{model_forward.1} parent=0 // pred_region
    _
  $region41: #{model_forward.1} parent=0 // pred_fallthru
    _
  // Predicated region
  $region42: #{model_forward.1} parent=0 // pred_check
    _
  $region43: #{model_forward.1} parent=0 // pred_check_branch
    %49 = sbr.rel (0) target = $region45
  $region44: #{model_forward.1} parent=0 // pred_region
    _
  $region45: #{model_forward.1} parent=0 // pred_fallthru
    _
  // Predicated region
  $region46: #{model_forward.1} parent=0 // pred_check
    _
  $region47: #{model_forward.1} parent=0 // pred_check_branch
    %51 = sbr.rel (0) target = $region49
  $region48: #{model_forward.1} parent=0 // pred_region
    _
  $region49: #{model_forward.1} parent=0 // pred_fallthru
    _
  // Predicated region
  $region50: #{model_forward.1} parent=0 // pred_check
    _
  $region51: #{model_forward.1} parent=0 // pred_check_branch
    %53 = sbr.rel (0) target = $region53
  $region52: #{model_forward.1} parent=0 // pred_region
    _
  $region53: #{model_forward.1} parent=0 // pred_fallthru
    _
  // Predicated region
  $region54: #{model_forward.1} parent=0 // pred_check
    _
  $region55: #{model_forward.1} parent=0 // pred_check_branch
    %55 = sbr.rel (0) target = $region57
  $region56: #{model_forward.1} parent=0 // pred_region
    _
  $region57: #{model_forward.1} parent=0 // pred_fallthru
    _
  // Predicated region
  $region58: #{model_forward.1} parent=0 // pred_check
    _
  $region59: #{model_forward.1} parent=0 // pred_check_branch
    %57 = sbr.rel (0) target = $region61
  $region60: #{model_forward.1} parent=0 // pred_region
    _
  $region61: #{model_forward.1} parent=0 // pred_fallthru
    _
  // Predicated region
  $region62: #{model_forward.1} parent=0 // pred_check
    _
  $region63: #{model_forward.1} parent=0 // pred_check_branch
    %59 = sbr.rel (0) target = $region65
  $region64: #{model_forward.1} parent=0 // pred_region
    _
  $region65: #{model_forward.1} parent=0 // pred_fallthru
    _
  // Predicated region
  $region66: #{model_forward.1} parent=0 // pred_check
    _
  $region67: #{model_forward.1} parent=0 // pred_check_branch
    %61 = sbr.rel (0) target = $region69
  $region68: #{model_forward.1} parent=0 // pred_region
    _
  $region69: #{model_forward.1} parent=0 // pred_fallthru
    _
  // Predicated region
  $region70: #{model_forward.1} parent=0 // pred_check
    _
  $region71: #{model_forward.1} parent=0 // pred_check_branch
    %63 = sbr.rel (0) target = $region73
  $region72: #{model_forward.1} parent=0 // pred_region
    _
  $region73: #{model_forward.1} parent=0 // pred_fallthru
    _
  // Predicated region
  $region74: #{model_forward.1} parent=0 // pred_check
    _
  $region75: #{model_forward.1} parent=0 // pred_check_branch
    %65 = sbr.rel (0) target = $region77
  $region76: #{model_forward.1} parent=0 // pred_region
    _
  $region77: #{model_forward.1} parent=0 // pred_fallthru
    _
  // Predicated region
  $region78: #{model_forward.1} parent=0 // pred_check
    _
  $region79: #{model_forward.1} parent=0 // pred_check_branch
    %67 = sbr.rel (0) target = $region81
  $region80: #{model_forward.1} parent=0 // pred_region
    _
  $region81: #{model_forward.1} parent=0 // pred_fallthru
    _
  // Predicated region
  $region82: #{model_forward.1} parent=0 // pred_check
    _
  $region83: #{model_forward.1} parent=0 // pred_check_branch
    %69 = sbr.rel (0) target = $region85
  $region84: #{model_forward.1} parent=0 // pred_region
    _
  $region85: #{model_forward.1} parent=0 // pred_fallthru
    _
  // Predicated region
  $region86: #{model_forward.1} parent=0 // pred_check
    _
  $region87: #{model_forward.1} parent=0 // pred_check_branch
    %71 = sbr.rel (0) target = $region89
  $region88: #{model_forward.1} parent=0 // pred_region
    _
  $region89: #{model_forward.1} parent=0 // pred_fallthru
    _
  // Predicated region
  $region90: #{model_forward.1} parent=0 // pred_check
    _
  $region91: #{model_forward.1} parent=0 // pred_check_branch
    %73 = sbr.rel (0) target = $region93
  $region92: #{model_forward.1} parent=0 // pred_region
    _
  $region93: #{model_forward.1} parent=0 // pred_fallthru
    _
  %v75 = vld [vmem:[%s0] sm:$0xf]
  %v76 = vld [vmem:[%s0 + $0x4] sm:$0xf]
  %v77 = vld [vmem:[%s0 + $0x8] sm:$0xf]
  %v78 = vld [vmem:[%s0 + $0xc] sm:$0xf]
  %v79 = vld [vmem:[%s0 + $0x10] sm:$0xf]
  %v80 = vld [vmem:[%s0 + $0x14] sm:$0xf]
  %v81 = vld [vmem:[%s0 + $0x18] sm:$0xf]
  %v82 = vld [vmem:[%s0 + $0x1c] sm:$0xf]
  %v83 = vld [vmem:[%s0 + $0x20] sm:$0xf]
  %v84 = vld [vmem:[%s0 + $0x24] sm:$0xf]
  %v85 = vld [vmem:[%s0 + $0x28] sm:$0xf]
  %v86 = vld [vmem:[%s0 + $0x2c] sm:$0xf]
  %v87 = vld [vmem:[%s0 + $0x30] sm:$0xf]
  %v88 = vld [vmem:[%s0 + $0x34] sm:$0xf]
  %v89 = vld [vmem:[%s0 + $0x38] sm:$0xf]
  %v90 = vld [vmem:[%s0 + $0x3c] sm:$0xf]
  %v91 = vld [vmem:[%s0 + $0x40] sm:$0xf]
  %v92 = vld [vmem:[%s0 + $0x44] sm:$0xf]
  %v93 = vld [vmem:[%s0 + $0x48] sm:$0xf]
  %v94 = vld [vmem:[%s0 + $0x4c] sm:$0xf]
  %v95 = vld [vmem:[%s0 + $0x50] sm:$0xf]
  %v96 = vld [vmem:[%s0 + $0x54] sm:$0xf]
  %v97 = vld [vmem:[%s0 + $0x58] sm:$0xf]
  %v98 = vld [vmem:[%s0 + $0x5c] sm:$0xf]
  %v99 = vld [vmem:[%s0 + $0x60] sm:$0xf]
  %v100 = vld [vmem:[%s0 + $0x64] sm:$0xf]
  %v101 = vld [vmem:[%s0 + $0x68] sm:$0xf]
  %v102 = vld [vmem:[%s0 + $0x6c] sm:$0xf]
  %v103 = vld [vmem:[%s0 + $0x70] sm:$0xf]
  %v104 = vld [vmem:[%s0 + $0x74] sm:$0xf]
  %v105 = vld [vmem:[%s0 + $0x78] sm:$0xf]
  %v106 = vld [vmem:[%s0 + $0x7c] sm:$0xf]
  %v107 = vld [vmem:[%s0 + $0x80] sm:$0xf]
  %v108 = vld [vmem:[%s0 + $0x84] sm:$0xf]
  %v109 = vld [vmem:[%s0 + $0x88] sm:$0xf]
  %v110 = vld [vmem:[%s0 + $0x8c] sm:$0xf]
  %v111 = vld [vmem:[%s0 + $0x90] sm:$0xf]
  %v112 = vld [vmem:[%s0 + $0x94] sm:$0xf]
  %v113 = vld [vmem:[%s0 + $0x98] sm:$0xf]
  %v114 = vld [vmem:[%s0 + $0x9c] sm:$0xf]
  %v115 = vld [vmem:[%s0 + $0xa0] sm:$0xf]
  %v116 = vld [vmem:[%s0 + $0xa4] sm:$0xf]
  %v117 = vld [vmem:[%s0 + $0xa8] sm:$0xf]
  %v118 = vld [vmem:[%s0 + $0xac] sm:$0xf]
  %v119 = vld [vmem:[%s0 + $0xb0] sm:$0xf]
  %v120 = vld [vmem:[%s0 + $0xb4] sm:$0xf]
  %v121 = vld [vmem:[%s0 + $0xb8] sm:$0xf]
  %v122 = vld [vmem:[%s0 + $0xbc] sm:$0xf]
  %v123 = vld [vmem:[%s0 + $0xc0] sm:$0xf]
  %v124 = vld [vmem:[%s0 + $0xc4] sm:$0xf]
  %v125 = vld [vmem:[%s0 + $0xc8] sm:$0xf]
  %v126 = vld [vmem:[%s0 + $0xcc] sm:$0xf]
  %v127 = vld [vmem:[%s0 + $0xd0] sm:$0xf]
  %v128 = vld [vmem:[%s0 + $0xd4] sm:$0xf]
  %v129 = vld [vmem:[%s0 + $0xd8] sm:$0xf]
  %v130 = vld [vmem:[%s0 + $0xdc] sm:$0xf]
  %v131 = vld [vmem:[%s0 + $0xe0] sm:$0xf]
  %v132 = vld [vmem:[%s0 + $0xe4] sm:$0xf]
  %v133 = vld [vmem:[%s0 + $0xe8] sm:$0xf]
  %v134 = vld [vmem:[%s0 + $0xec] sm:$0xf]
  %v135 = vld [vmem:[%s0 + $0xf0] sm:$0xf]
  %v136 = vld [vmem:[%s0 + $0xf4] sm:$0xf]
  %v137 = vld [vmem:[%s0 + $0xf8] sm:$0xf]
  %v138 = vld [vmem:[%s0 + $0xfc] sm:$0xf]
  %v139 = vld [vmem:[%s0 + $0x100] sm:$0xf]
  %v140 = vld [vmem:[%s0 + $0x104] sm:$0xf]
  %v141 = vld [vmem:[%s0 + $0x108] sm:$0xf]
  %v142 = vld [vmem:[%s0 + $0x10c] sm:$0xf]
  %v143 = vld [vmem:[%s0 + $0x110] sm:$0xf]
  %v144 = vld [vmem:[%s0 + $0x114] sm:$0xf]
  %v145 = vld [vmem:[%s0 + $0x118] sm:$0xf]
  %v146 = vld [vmem:[%s0 + $0x11c] sm:$0xf]
  %v147 = vld [vmem:[%s0 + $0x120] sm:$0xf]
  %v148 = vld [vmem:[%s0 + $0x124] sm:$0xf]
  %v149 = vld [vmem:[%s0 + $0x128] sm:$0xf]
  %v150 = vld [vmem:[%s0 + $0x12c] sm:$0xf]
  %v151 = vld [vmem:[%s0 + $0x130] sm:$0xf]
  %v152 = vld [vmem:[%s0 + $0x134] sm:$0xf]
  %v153 = vld [vmem:[%s0 + $0x138] sm:$0xf]
  %v154 = vld [vmem:[%s0 + $0x13c] sm:$0xf]
  %v155 = vld [vmem:[%s0 + $0x140] sm:$0xf]
  %v156 = vld [vmem:[%s0 + $0x144] sm:$0xf]
  %v157 = vld [vmem:[%s0 + $0x148] sm:$0xf]
  %v158 = vld [vmem:[%s0 + $0x14c] sm:$0xf]
  %v159 = vld [vmem:[%s0 + $0x150] sm:$0xf]
  %v160 = vld [vmem:[%s0 + $0x154] sm:$0xf]
  %v161 = vld [vmem:[%s0 + $0x158] sm:$0xf]
  %v162 = vld [vmem:[%s0 + $0x15c] sm:$0xf]
  %v163 = vld [vmem:[%s0 + $0x160] sm:$0xf]
  %v164 = vld [vmem:[%s0 + $0x164] sm:$0xf]
  %v165 = vld [vmem:[%s0 + $0x168] sm:$0xf]
  %v166 = vld [vmem:[%s0 + $0x16c] sm:$0xf]
  %v167 = vld [vmem:[%s0 + $0x170] sm:$0xf]
  %v168 = vld [vmem:[%s0 + $0x174] sm:$0xf]
  %v169 = vld [vmem:[%s0 + $0x178] sm:$0xf]
  %v170 = vld [vmem:[%s0 + $0x17c] sm:$0xf]
  %v171 = vld [vmem:[%s0 + $0x180] sm:$0xf]
  %v172 = vld [vmem:[%s0 + $0x184] sm:$0xf]
  %v173 = vld [vmem:[%s0 + $0x188] sm:$0xf]
  %v174 = vld [vmem:[%s0 + $0x18c] sm:$0xf]
  %v175 = vld [vmem:[%s0 + $0x190] sm:$0xf]
  %v176 = vld [vmem:[%s0 + $0x194] sm:$0xf]
  %v177 = vld [vmem:[%s0 + $0x198] sm:$0xf]
  %v178 = vld [vmem:[%s0 + $0x19c] sm:$0xf]
  %v179 = vld [vmem:[%s0 + $0x1a0] sm:$0xf]
  %v180 = vld [vmem:[%s0 + $0x1a4] sm:$0xf]
  %v181 = vld [vmem:[%s0 + $0x1a8] sm:$0xf]
  %v182 = vld [vmem:[%s0 + $0x1ac] sm:$0xf]
  %v183 = vld [vmem:[%s0 + $0x1b0] sm:$0xf]
  %v184 = vld [vmem:[%s0 + $0x1b4] sm:$0xf]
  %v185 = vld [vmem:[%s0 + $0x1b8] sm:$0xf]
  %v186 = vld [vmem:[%s0 + $0x1bc] sm:$0xf]
  %v187 = vld [vmem:[%s0 + $0x1c0] sm:$0xf]
  %v188 = vld [vmem:[%s0 + $0x1c4] sm:$0xf]
  %v189 = vld [vmem:[%s0 + $0x1c8] sm:$0xf]
  %v190 = vld [vmem:[%s0 + $0x1cc] sm:$0xf]
  %v191 = vld [vmem:[%s0 + $0x1d0] sm:$0xf]
  %v192 = vld [vmem:[%s0 + $0x1d4] sm:$0xf]
  %v193 = vld [vmem:[%s0 + $0x1d8] sm:$0xf]
  %v194 = vld [vmem:[%s0 + $0x1dc] sm:$0xf]
  %v195 = vld [vmem:[%s0 + $0x1e0] sm:$0xf]
  %v196 = vld [vmem:[%s0 + $0x1e4] sm:$0xf]
  %v197 = vld [vmem:[%s0 + $0x1e8] sm:$0xf]
  %v198 = vld [vmem:[%s0 + $0x1ec] sm:$0xf]
  %v199 = vld [vmem:[%s0 + $0x1f0] sm:$0xf]
  %v200 = vld [vmem:[%s0 + $0x1f4] sm:$0xf]
  %v201 = vld [vmem:[%s0 + $0x1f8] sm:$0xf]
  %v202 = vld [vmem:[%s0 + $0x1fc] sm:$0xf]
  %v203 = vld [vmem:[%s0 + $0x200] sm:$0xf]
  %v204 = vld [vmem:[%s0 + $0x204] sm:$0xf]
  %v205 = vld [vmem:[%s0 + $0x208] sm:$0xf]
  %v206 = vld [vmem:[%s0 + $0x20c] sm:$0xf]
  %v207 = vld [vmem:[%s0 + $0x210] sm:$0xf]
  %v208 = vld [vmem:[%s0 + $0x214] sm:$0xf]
  %v209 = vld [vmem:[%s0 + $0x218] sm:$0xf]
  %v210 = vld [vmem:[%s0 + $0x21c] sm:$0xf]
  %v211 = vld [vmem:[%s0 + $0x220] sm:$0xf]
  %v212 = vld [vmem:[%s0 + $0x224] sm:$0xf]
  %v213 = vld [vmem:[%s0 + $0x228] sm:$0xf]
  %v214 = vld [vmem:[%s0 + $0x22c] sm:$0xf]
  %v215 = vld [vmem:[%s0 + $0x230] sm:$0xf]
  %v216 = vld [vmem:[%s0 + $0x234] sm:$0xf]
  %v217 = vld [vmem:[%s0 + $0x238] sm:$0xf]
  %v218 = vld [vmem:[%s0 + $0x23c] sm:$0xf]
  %v219 = vld [vmem:[%s0 + $0x240] sm:$0xf]
  %v220 = vld [vmem:[%s0 + $0x244] sm:$0xf]
  %v221 = vld [vmem:[%s0 + $0x248] sm:$0xf]
  %v222 = vld [vmem:[%s0 + $0x24c] sm:$0xf]
  %v223 = vld [vmem:[%s0 + $0x250] sm:$0xf]
  %v224 = vld [vmem:[%s0 + $0x254] sm:$0xf]
  %v225 = vld [vmem:[%s0 + $0x258] sm:$0xf]
  %v226 = vld [vmem:[%s0 + $0x25c] sm:$0xf]
  %v227 = vld [vmem:[%s0 + $0x260] sm:$0xf]
  %v228 = vld [vmem:[%s0 + $0x264] sm:$0xf]
  %v229 = vld [vmem:[%s0 + $0x268] sm:$0xf]
  %v230 = vld [vmem:[%s0 + $0x26c] sm:$0xf]
  %v231 = vld [vmem:[%s0 + $0x270] sm:$0xf]
  %v232 = vld [vmem:[%s0 + $0x274] sm:$0xf]
  %v233 = vld [vmem:[%s0 + $0x278] sm:$0xf]
  %v234 = vld [vmem:[%s0 + $0x27c] sm:$0xf]
  %v235 = vld [vmem:[%s0 + $0x280] sm:$0xf]
  %v236 = vld [vmem:[%s0 + $0x284] sm:$0xf]
  %v237 = vld [vmem:[%s0 + $0x288] sm:$0xf]
  %v238 = vld [vmem:[%s0 + $0x28c] sm:$0xf]
  %v239 = vld [vmem:[%s0 + $0x290] sm:$0xf]
  %v240 = vld [vmem:[%s0 + $0x294] sm:$0xf]
  %v241 = vld [vmem:[%s0 + $0x298] sm:$0xf]
  %v242 = vld [vmem:[%s0 + $0x29c] sm:$0xf]
  %v243 = vld [vmem:[%s0 + $0x2a0] sm:$0xf]
  %v244 = vld [vmem:[%s0 + $0x2a4] sm:$0xf]
  %v245 = vld [vmem:[%s0 + $0x2a8] sm:$0xf]
  %v246 = vld [vmem:[%s0 + $0x2ac] sm:$0xf]
  %v247 = vld [vmem:[%s0 + $0x2b0] sm:$0xf]
  %v248 = vld [vmem:[%s0 + $0x2b4] sm:$0xf]
  %v249 = vld [vmem:[%s0 + $0x2b8] sm:$0xf]
  %v250 = vld [vmem:[%s0 + $0x2bc] sm:$0xf]
  %v251 = vld [vmem:[%s0 + $0x2c0] sm:$0xf]
  %v252 = vld [vmem:[%s0 + $0x2c4] sm:$0xf]
  %v253 = vld [vmem:[%s0 + $0x2c8] sm:$0xf]
  %v254 = vld [vmem:[%s0 + $0x2cc] sm:$0xf]
  %v255 = vld [vmem:[%s0 + $0x2d0] sm:$0xf]
  %v256 = vld [vmem:[%s0 + $0x2d4] sm:$0xf]
  %v257 = vld [vmem:[%s0 + $0x2d8] sm:$0xf]
  %v258 = vld [vmem:[%s0 + $0x2dc] sm:$0xf]
  %v259 = vld [vmem:[%s0 + $0x2e0] sm:$0xf]
  %v260 = vld [vmem:[%s0 + $0x2e4] sm:$0xf]
  %v261 = vld [vmem:[%s0 + $0x2e8] sm:$0xf]
  %v262 = vld [vmem:[%s0 + $0x2ec] sm:$0xf]
  %v263 = vld [vmem:[%s0 + $0x2f0] sm:$0xf]
  %v264 = vld [vmem:[%s0 + $0x2f4] sm:$0xf]
  %v265 = vld [vmem:[%s0 + $0x2f8] sm:$0xf]
  %v266 = vld [vmem:[%s0 + $0x2fc] sm:$0xf]
  %v267 = vld [vmem:[%s0 + $0x300] sm:$0xf]
  %v268 = vld [vmem:[%s0 + $0x304] sm:$0xf]
  %v269 = vld [vmem:[%s0 + $0x308] sm:$0xf]
  %v270 = vld [vmem:[%s0 + $0x30c] sm:$0xf]
  %v271 = vld [vmem:[%s0 + $0x310] sm:$0xf]
  %v272 = vld [vmem:[%s0 + $0x314] sm:$0xf]
  %v273 = vld [vmem:[%s0 + $0x318] sm:$0xf]
  %v274 = vld [vmem:[%s0 + $0x31c] sm:$0xf]
  %v275 = vld [vmem:[%s0 + $0x320] sm:$0xf]
  %v276 = vld [vmem:[%s0 + $0x324] sm:$0xf]
  %v277 = vld [vmem:[%s0 + $0x328] sm:$0xf]
  %v278 = vld [vmem:[%s0 + $0x32c] sm:$0xf]
  %v279 = vld [vmem:[%s0 + $0x330] sm:$0xf]
  %v280 = vld [vmem:[%s0 + $0x334] sm:$0xf]
  %v281 = vld [vmem:[%s0 + $0x338] sm:$0xf]
  %v282 = vld [vmem:[%s0 + $0x33c] sm:$0xf]
  %v283 = vld [vmem:[%s0 + $0x340] sm:$0xf]
  %v284 = vld [vmem:[%s0 + $0x344] sm:$0xf]
  %v285 = vld [vmem:[%s0 + $0x348] sm:$0xf]
  %v286 = vld [vmem:[%s0 + $0x34c] sm:$0xf]
  %v287 = vld [vmem:[%s0 + $0x350] sm:$0xf]
  %v288 = vld [vmem:[%s0 + $0x354] sm:$0xf]
  %v289 = vld [vmem:[%s0 + $0x358] sm:$0xf]
  %v290 = vld [vmem:[%s0 + $0x35c] sm:$0xf]
  %v291 = vld [vmem:[%s0 + $0x360] sm:$0xf]
  %v292 = vld [vmem:[%s0 + $0x364] sm:$0xf]
  %v293 = vld [vmem:[%s0 + $0x368] sm:$0xf]
  %v294 = vld [vmem:[%s0 + $0x36c] sm:$0xf]
  %v295 = vld [vmem:[%s0 + $0x370] sm:$0xf]
  %v296 = vld [vmem:[%s0 + $0x374] sm:$0xf]
  %v297 = vld [vmem:[%s0 + $0x378] sm:$0xf]
  %v298 = vld [vmem:[%s0 + $0x37c] sm:$0xf]
  %v299 = vld [vmem:[%s0 + $0x380] sm:$0xf]
  %v300 = vld [vmem:[%s0 + $0x384] sm:$0xf]
  %v301 = vld [vmem:[%s0 + $0x388] sm:$0xf]
  %v302 = vld [vmem:[%s0 + $0x38c] sm:$0xf]
  %v303 = vld [vmem:[%s0 + $0x390] sm:$0xf]
  %v304 = vld [vmem:[%s0 + $0x394] sm:$0xf]
  %v305 = vld [vmem:[%s0 + $0x398] sm:$0xf]
  %v306 = vld [vmem:[%s0 + $0x39c] sm:$0xf]
  %v307 = vld [vmem:[%s0 + $0x3a0] sm:$0xf]
  %v308 = vld [vmem:[%s0 + $0x3a4] sm:$0xf]
  %v309 = vld [vmem:[%s0 + $0x3a8] sm:$0xf]
  %v310 = vld [vmem:[%s0 + $0x3ac] sm:$0xf]
  %v311 = vld [vmem:[%s0 + $0x3b0] sm:$0xf]
  %v312 = vld [vmem:[%s0 + $0x3b4] sm:$0xf]
  %v313 = vld [vmem:[%s0 + $0x3b8] sm:$0xf]
  %v314 = vld [vmem:[%s0 + $0x3bc] sm:$0xf]
  %v315 = vld [vmem:[%s0 + $0x3c0] sm:$0xf]
  %v316 = vld [vmem:[%s0 + $0x3c4] sm:$0xf]
  %v317 = vld [vmem:[%s0 + $0x3c8] sm:$0xf]
  %v318 = vld [vmem:[%s0 + $0x3cc] sm:$0xf]
  %v319 = vld [vmem:[%s0 + $0x3d0] sm:$0xf]
  %v320 = vld [vmem:[%s0 + $0x3d4] sm:$0xf]
  %v321 = vld [vmem:[%s0 + $0x3d8] sm:$0xf]
  %v322 = vld [vmem:[%s0 + $0x3dc] sm:$0xf]
  %v323 = vld [vmem:[%s0 + $0x3e0] sm:$0xf]
  %v324 = vld [vmem:[%s0 + $0x3e4] sm:$0xf]
  %v325 = vld [vmem:[%s0 + $0x3e8] sm:$0xf]
  %v326 = vld [vmem:[%s0 + $0x3ec] sm:$0xf]
  %v327 = vld [vmem:[%s0 + $0x3f0] sm:$0xf]
  %v328 = vld [vmem:[%s0 + $0x3f4] sm:$0xf]
  %v329 = vld [vmem:[%s0 + $0x3f8] sm:$0xf]
  %v330 = vld [vmem:[%s0 + $0x3fc] sm:$0xf]
  %v331 = vld [vmem:[%s1] sm:$0xf]
  %v332 = vld [vmem:[%s1 + $0x4] sm:$0x3]
  %v333 = vld [vmem:[%s2] sm:$0x1]
  %v335 = vlaneseq
  %v336 = vshrl.u32 %v335, 7
  %v337 = vsub.s32 0, %v336
  %v338 = vrot.slane %v333, %v337
  %v596 = vunpack.c.l.b16 %v75
  %v597 = vunpack.c.l.b16 %v76
  %v598 = vunpack.c.l.b16 %v77
  %v599 = vunpack.c.l.b16 %v78
  %v600 = vunpack.c.l.b16 %v79
  %v601 = vunpack.c.l.b16 %v80
  %v602 = vunpack.c.l.b16 %v81
  %v603 = vunpack.c.l.b16 %v82
  %v604 = vunpack.c.l.b16 %v83
  %v605 = vunpack.c.l.b16 %v84
  %v606 = vunpack.c.l.b16 %v85
  %v607 = vunpack.c.l.b16 %v86
  %v608 = vunpack.c.l.b16 %v87
  %v609 = vunpack.c.l.b16 %v88
  %v610 = vunpack.c.l.b16 %v89
  %v611 = vunpack.c.l.b16 %v90
  %v612 = vunpack.c.l.b16 %v91
  %v613 = vunpack.c.l.b16 %v92
  %v614 = vunpack.c.l.b16 %v93
  %v615 = vunpack.c.l.b16 %v94
  %v616 = vunpack.c.l.b16 %v95
  %v617 = vunpack.c.l.b16 %v96
  %v618 = vunpack.c.l.b16 %v97
  %v619 = vunpack.c.l.b16 %v98
  %v620 = vunpack.c.l.b16 %v99
  %v621 = vunpack.c.l.b16 %v100
  %v622 = vunpack.c.l.b16 %v101
  %v623 = vunpack.c.l.b16 %v102
  %v624 = vunpack.c.l.b16 %v103
  %v625 = vunpack.c.l.b16 %v104
  %v626 = vunpack.c.l.b16 %v105
  %v627 = vunpack.c.l.b16 %v106
  %v628 = vunpack.c.l.b16 %v107
  %v629 = vunpack.c.l.b16 %v108
  %v630 = vunpack.c.l.b16 %v109
  %v631 = vunpack.c.l.b16 %v110
  %v632 = vunpack.c.l.b16 %v111
  %v633 = vunpack.c.l.b16 %v112
  %v634 = vunpack.c.l.b16 %v113
  %v635 = vunpack.c.l.b16 %v114
  %v636 = vunpack.c.l.b16 %v115
  %v637 = vunpack.c.l.b16 %v116
  %v638 = vunpack.c.l.b16 %v117
  %v639 = vunpack.c.l.b16 %v118
  %v640 = vunpack.c.l.b16 %v119
  %v641 = vunpack.c.l.b16 %v120
  %v642 = vunpack.c.l.b16 %v121
  %v643 = vunpack.c.l.b16 %v122
  %v644 = vunpack.c.l.b16 %v123
  %v645 = vunpack.c.l.b16 %v124
  %v646 = vunpack.c.l.b16 %v125
  %v647 = vunpack.c.l.b16 %v126
  %v648 = vunpack.c.l.b16 %v127
  %v649 = vunpack.c.l.b16 %v128
  %v650 = vunpack.c.l.b16 %v129
  %v651 = vunpack.c.l.b16 %v130
  %v652 = vunpack.c.l.b16 %v131
  %v653 = vunpack.c.l.b16 %v132
  %v654 = vunpack.c.l.b16 %v133
  %v655 = vunpack.c.l.b16 %v134
  %v656 = vunpack.c.l.b16 %v135
  %v657 = vunpack.c.l.b16 %v136
  %v658 = vunpack.c.l.b16 %v137
  %v659 = vunpack.c.l.b16 %v138
  %v660 = vunpack.c.l.b16 %v139
  %v661 = vunpack.c.l.b16 %v140
  %v662 = vunpack.c.l.b16 %v141
  %v663 = vunpack.c.l.b16 %v142
  %v664 = vunpack.c.l.b16 %v143
  %v665 = vunpack.c.l.b16 %v144
  %v666 = vunpack.c.l.b16 %v145
  %v667 = vunpack.c.l.b16 %v146
  %v668 = vunpack.c.l.b16 %v147
  %v669 = vunpack.c.l.b16 %v148
  %v670 = vunpack.c.l.b16 %v149
  %v671 = vunpack.c.l.b16 %v150
  %v672 = vunpack.c.l.b16 %v151
  %v673 = vunpack.c.l.b16 %v152
  %v674 = vunpack.c.l.b16 %v153
  %v675 = vunpack.c.l.b16 %v154
  %v676 = vunpack.c.l.b16 %v155
  %v677 = vunpack.c.l.b16 %v156
  %v678 = vunpack.c.l.b16 %v157
  %v679 = vunpack.c.l.b16 %v158
  %v680 = vunpack.c.l.b16 %v159
  %v681 = vunpack.c.l.b16 %v160
  %v682 = vunpack.c.l.b16 %v161
  %v683 = vunpack.c.l.b16 %v162
  %v684 = vunpack.c.l.b16 %v163
  %v685 = vunpack.c.l.b16 %v164
  %v686 = vunpack.c.l.b16 %v165
  %v687 = vunpack.c.l.b16 %v166
  %v688 = vunpack.c.l.b16 %v167
  %v689 = vunpack.c.l.b16 %v168
  %v690 = vunpack.c.l.b16 %v169
  %v691 = vunpack.c.l.b16 %v170
  %v692 = vunpack.c.l.b16 %v171
  %v693 = vunpack.c.l.b16 %v172
  %v694 = vunpack.c.l.b16 %v173
  %v695 = vunpack.c.l.b16 %v174
  %v696 = vunpack.c.l.b16 %v175
  %v697 = vunpack.c.l.b16 %v176
  %v698 = vunpack.c.l.b16 %v177
  %v699 = vunpack.c.l.b16 %v178
  %v700 = vunpack.c.l.b16 %v179
  %v701 = vunpack.c.l.b16 %v180
  %v702 = vunpack.c.l.b16 %v181
  %v703 = vunpack.c.l.b16 %v182
  %v704 = vunpack.c.l.b16 %v183
  %v705 = vunpack.c.l.b16 %v184
  %v706 = vunpack.c.l.b16 %v185
  %v707 = vunpack.c.l.b16 %v186
  %v708 = vunpack.c.l.b16 %v187
  %v709 = vunpack.c.l.b16 %v188
  %v710 = vunpack.c.l.b16 %v189
  %v711 = vunpack.c.l.b16 %v190
  %v712 = vunpack.c.l.b16 %v191
  %v713 = vunpack.c.l.b16 %v192
  %v714 = vunpack.c.l.b16 %v193
  %v715 = vunpack.c.l.b16 %v194
  %v716 = vunpack.c.l.b16 %v195
  %v717 = vunpack.c.l.b16 %v196
  %v718 = vunpack.c.l.b16 %v197
  %v719 = vunpack.c.l.b16 %v198
  %v720 = vunpack.c.l.b16 %v199
  %v721 = vunpack.c.l.b16 %v200
  %v722 = vunpack.c.l.b16 %v201
  %v723 = vunpack.c.l.b16 %v202
  %v724 = vunpack.c.l.b16 %v203
  %v725 = vunpack.c.l.b16 %v204
  %v726 = vunpack.c.l.b16 %v205
  %v727 = vunpack.c.l.b16 %v206
  %v728 = vunpack.c.l.b16 %v207
  %v729 = vunpack.c.l.b16 %v208
  %v730 = vunpack.c.l.b16 %v209
  %v731 = vunpack.c.l.b16 %v210
  %v732 = vunpack.c.l.b16 %v211
  %v733 = vunpack.c.l.b16 %v212
  %v734 = vunpack.c.l.b16 %v213
  %v735 = vunpack.c.l.b16 %v214
  %v736 = vunpack.c.l.b16 %v215
  %v737 = vunpack.c.l.b16 %v216
  %v738 = vunpack.c.l.b16 %v217
  %v739 = vunpack.c.l.b16 %v218
  %v740 = vunpack.c.l.b16 %v219
  %v741 = vunpack.c.l.b16 %v220
  %v742 = vunpack.c.l.b16 %v221
  %v743 = vunpack.c.l.b16 %v222
  %v744 = vunpack.c.l.b16 %v223
  %v745 = vunpack.c.l.b16 %v224
  %v746 = vunpack.c.l.b16 %v225
  %v747 = vunpack.c.l.b16 %v226
  %v748 = vunpack.c.l.b16 %v227
  %v749 = vunpack.c.l.b16 %v228
  %v750 = vunpack.c.l.b16 %v229
  %v751 = vunpack.c.l.b16 %v230
  %v752 = vunpack.c.l.b16 %v231
  %v753 = vunpack.c.l.b16 %v232
  %v754 = vunpack.c.l.b16 %v233
  %v755 = vunpack.c.l.b16 %v234
  %v756 = vunpack.c.l.b16 %v235
  %v757 = vunpack.c.l.b16 %v236
  %v758 = vunpack.c.l.b16 %v237
  %v759 = vunpack.c.l.b16 %v238
  %v760 = vunpack.c.l.b16 %v239
  %v761 = vunpack.c.l.b16 %v240
  %v762 = vunpack.c.l.b16 %v241
  %v763 = vunpack.c.l.b16 %v242
  %v764 = vunpack.c.l.b16 %v243
  %v765 = vunpack.c.l.b16 %v244
  %v766 = vunpack.c.l.b16 %v245
  %v767 = vunpack.c.l.b16 %v246
  %v768 = vunpack.c.l.b16 %v247
  %v769 = vunpack.c.l.b16 %v248
  %v770 = vunpack.c.l.b16 %v249
  %v771 = vunpack.c.l.b16 %v250
  %v772 = vunpack.c.l.b16 %v251
  %v773 = vunpack.c.l.b16 %v252
  %v774 = vunpack.c.l.b16 %v253
  %v775 = vunpack.c.l.b16 %v254
  %v776 = vunpack.c.l.b16 %v255
  %v777 = vunpack.c.l.b16 %v256
  %v778 = vunpack.c.l.b16 %v257
  %v779 = vunpack.c.l.b16 %v258
  %v780 = vunpack.c.l.b16 %v259
  %v781 = vunpack.c.l.b16 %v260
  %v782 = vunpack.c.l.b16 %v261
  %v783 = vunpack.c.l.b16 %v262
  %v784 = vunpack.c.l.b16 %v263
  %v785 = vunpack.c.l.b16 %v264
  %v786 = vunpack.c.l.b16 %v265
  %v787 = vunpack.c.l.b16 %v266
  %v788 = vunpack.c.l.b16 %v267
  %v789 = vunpack.c.l.b16 %v268
  %v790 = vunpack.c.l.b16 %v269
  %v791 = vunpack.c.l.b16 %v270
  %v792 = vunpack.c.l.b16 %v271
  %v793 = vunpack.c.l.b16 %v272
  %v794 = vunpack.c.l.b16 %v273
  %v795 = vunpack.c.l.b16 %v274
  %v796 = vunpack.c.l.b16 %v275
  %v797 = vunpack.c.l.b16 %v276
  %v798 = vunpack.c.l.b16 %v277
  %v799 = vunpack.c.l.b16 %v278
  %v800 = vunpack.c.l.b16 %v279
  %v801 = vunpack.c.l.b16 %v280
  %v802 = vunpack.c.l.b16 %v281
  %v803 = vunpack.c.l.b16 %v282
  %v804 = vunpack.c.l.b16 %v283
  %v805 = vunpack.c.l.b16 %v284
  %v806 = vunpack.c.l.b16 %v285
  %v807 = vunpack.c.l.b16 %v286
  %v808 = vunpack.c.l.b16 %v287
  %v809 = vunpack.c.l.b16 %v288
  %v810 = vunpack.c.l.b16 %v289
  %v811 = vunpack.c.l.b16 %v290
  %v812 = vunpack.c.l.b16 %v291
  %v813 = vunpack.c.l.b16 %v292
  %v814 = vunpack.c.l.b16 %v293
  %v815 = vunpack.c.l.b16 %v294
  %v816 = vunpack.c.l.b16 %v295
  %v817 = vunpack.c.l.b16 %v296
  %v818 = vunpack.c.l.b16 %v297
  %v819 = vunpack.c.l.b16 %v298
  %v820 = vunpack.c.l.b16 %v299
  %v821 = vunpack.c.l.b16 %v300
  %v822 = vunpack.c.l.b16 %v301
  %v823 = vunpack.c.l.b16 %v302
  %v824 = vunpack.c.l.b16 %v303
  %v825 = vunpack.c.l.b16 %v304
  %v826 = vunpack.c.l.b16 %v305
  %v827 = vunpack.c.l.b16 %v306
  %v828 = vunpack.c.l.b16 %v307
  %v829 = vunpack.c.l.b16 %v308
  %v830 = vunpack.c.l.b16 %v309
  %v831 = vunpack.c.l.b16 %v310
  %v832 = vunpack.c.l.b16 %v311
  %v833 = vunpack.c.l.b16 %v312
  %v834 = vunpack.c.l.b16 %v313
  %v835 = vunpack.c.l.b16 %v314
  %v836 = vunpack.c.l.b16 %v315
  %v837 = vunpack.c.l.b16 %v316
  %v838 = vunpack.c.l.b16 %v317
  %v839 = vunpack.c.l.b16 %v318
  %v840 = vunpack.c.l.b16 %v319
  %v841 = vunpack.c.l.b16 %v320
  %v842 = vunpack.c.l.b16 %v321
  %v843 = vunpack.c.l.b16 %v322
  %v844 = vunpack.c.l.b16 %v323
  %v845 = vunpack.c.l.b16 %v324
  %v846 = vunpack.c.l.b16 %v325
  %v847 = vunpack.c.l.b16 %v326
  %v848 = vunpack.c.l.b16 %v327
  %v849 = vunpack.c.l.b16 %v328
  %v850 = vunpack.c.l.b16 %v329
  %v851 = vunpack.c.l.b16 %v330
  %v852 = vpack.c.b16 %v597, %v596
  %v853 = vpack.c.b16 %v599, %v598
  %v854 = vpack.c.b16 %v601, %v600
  %v855 = vpack.c.b16 %v603, %v602
  %v856 = vpack.c.b16 %v605, %v604
  %v857 = vpack.c.b16 %v607, %v606
  %v858 = vpack.c.b16 %v609, %v608
  %v859 = vpack.c.b16 %v611, %v610
  %v860 = vpack.c.b16 %v613, %v612
  %v861 = vpack.c.b16 %v615, %v614
  %v862 = vpack.c.b16 %v617, %v616
  %v863 = vpack.c.b16 %v619, %v618
  %v864 = vpack.c.b16 %v621, %v620
  %v865 = vpack.c.b16 %v623, %v622
  %v866 = vpack.c.b16 %v625, %v624
  %v867 = vpack.c.b16 %v627, %v626
  %v868 = vpack.c.b16 %v629, %v628
  %v869 = vpack.c.b16 %v631, %v630
  %v870 = vpack.c.b16 %v633, %v632
  %v871 = vpack.c.b16 %v635, %v634
  %v872 = vpack.c.b16 %v637, %v636
  %v873 = vpack.c.b16 %v639, %v638
  %v874 = vpack.c.b16 %v641, %v640
  %v875 = vpack.c.b16 %v643, %v642
  %v876 = vpack.c.b16 %v645, %v644
  %v877 = vpack.c.b16 %v647, %v646
  %v878 = vpack.c.b16 %v649, %v648
  %v879 = vpack.c.b16 %v651, %v650
  %v880 = vpack.c.b16 %v653, %v652
  %v881 = vpack.c.b16 %v655, %v654
  %v882 = vpack.c.b16 %v657, %v656
  %v883 = vpack.c.b16 %v659, %v658
  %v884 = vpack.c.b16 %v661, %v660
  %v885 = vpack.c.b16 %v663, %v662
  %v886 = vpack.c.b16 %v665, %v664
  %v887 = vpack.c.b16 %v667, %v666
  %v888 = vpack.c.b16 %v669, %v668
  %v889 = vpack.c.b16 %v671, %v670
  %v890 = vpack.c.b16 %v673, %v672
  %v891 = vpack.c.b16 %v675, %v674
  %v892 = vpack.c.b16 %v677, %v676
  %v893 = vpack.c.b16 %v679, %v678
  %v894 = vpack.c.b16 %v681, %v680
  %v895 = vpack.c.b16 %v683, %v682
  %v896 = vpack.c.b16 %v685, %v684
  %v897 = vpack.c.b16 %v687, %v686
  %v898 = vpack.c.b16 %v689, %v688
  %v899 = vpack.c.b16 %v691, %v690
  %v900 = vpack.c.b16 %v693, %v692
  %v901 = vpack.c.b16 %v695, %v694
  %v902 = vpack.c.b16 %v697, %v696
  %v903 = vpack.c.b16 %v699, %v698
  %v904 = vpack.c.b16 %v701, %v700
  %v905 = vpack.c.b16 %v703, %v702
  %v906 = vpack.c.b16 %v705, %v704
  %v907 = vpack.c.b16 %v707, %v706
  %v908 = vpack.c.b16 %v709, %v708
  %v909 = vpack.c.b16 %v711, %v710
  %v910 = vpack.c.b16 %v713, %v712
  %v911 = vpack.c.b16 %v715, %v714
  %v912 = vpack.c.b16 %v717, %v716
  %v913 = vpack.c.b16 %v719, %v718
  %v914 = vpack.c.b16 %v721, %v720
  %v915 = vpack.c.b16 %v723, %v722
  %v916 = vpack.c.b16 %v725, %v724
  %v917 = vpack.c.b16 %v727, %v726
  %v918 = vpack.c.b16 %v729, %v728
  %v919 = vpack.c.b16 %v731, %v730
  %v920 = vpack.c.b16 %v733, %v732
  %v921 = vpack.c.b16 %v735, %v734
  %v922 = vpack.c.b16 %v737, %v736
  %v923 = vpack.c.b16 %v739, %v738
  %v924 = vpack.c.b16 %v741, %v740
  %v925 = vpack.c.b16 %v743, %v742
  %v926 = vpack.c.b16 %v745, %v744
  %v927 = vpack.c.b16 %v747, %v746
  %v928 = vpack.c.b16 %v749, %v748
  %v929 = vpack.c.b16 %v751, %v750
  %v930 = vpack.c.b16 %v753, %v752
  %v931 = vpack.c.b16 %v755, %v754
  %v932 = vpack.c.b16 %v757, %v756
  %v933 = vpack.c.b16 %v759, %v758
  %v934 = vpack.c.b16 %v761, %v760
  %v935 = vpack.c.b16 %v763, %v762
  %v936 = vpack.c.b16 %v765, %v764
  %v937 = vpack.c.b16 %v767, %v766
  %v938 = vpack.c.b16 %v769, %v768
  %v939 = vpack.c.b16 %v771, %v770
  %v940 = vpack.c.b16 %v773, %v772
  %v941 = vpack.c.b16 %v775, %v774
  %v942 = vpack.c.b16 %v777, %v776
  %v943 = vpack.c.b16 %v779, %v778
  %v944 = vpack.c.b16 %v781, %v780
  %v945 = vpack.c.b16 %v783, %v782
  %v946 = vpack.c.b16 %v785, %v784
  %v947 = vpack.c.b16 %v787, %v786
  %v948 = vpack.c.b16 %v789, %v788
  %v949 = vpack.c.b16 %v791, %v790
  %v950 = vpack.c.b16 %v793, %v792
  %v951 = vpack.c.b16 %v795, %v794
  %v952 = vpack.c.b16 %v797, %v796
  %v953 = vpack.c.b16 %v799, %v798
  %v954 = vpack.c.b16 %v801, %v800
  %v955 = vpack.c.b16 %v803, %v802
  %v956 = vpack.c.b16 %v805, %v804
  %v957 = vpack.c.b16 %v807, %v806
  %v958 = vpack.c.b16 %v809, %v808
  %v959 = vpack.c.b16 %v811, %v810
  %v960 = vpack.c.b16 %v813, %v812
  %v961 = vpack.c.b16 %v815, %v814
  %v962 = vpack.c.b16 %v817, %v816
  %v963 = vpack.c.b16 %v819, %v818
  %v964 = vpack.c.b16 %v821, %v820
  %v965 = vpack.c.b16 %v823, %v822
  %v966 = vpack.c.b16 %v825, %v824
  %v967 = vpack.c.b16 %v827, %v826
  %v968 = vpack.c.b16 %v829, %v828
  %v969 = vpack.c.b16 %v831, %v830
  %v970 = vpack.c.b16 %v833, %v832
  %v971 = vpack.c.b16 %v835, %v834
  %v972 = vpack.c.b16 %v837, %v836
  %v973 = vpack.c.b16 %v839, %v838
  %v974 = vpack.c.b16 %v841, %v840
  %v975 = vpack.c.b16 %v843, %v842
  %v976 = vpack.c.b16 %v845, %v844
  %v977 = vpack.c.b16 %v847, %v846
  %v978 = vpack.c.b16 %v849, %v848
  %v979 = vpack.c.b16 %v851, %v850
  %v982 = vunpack.c.l.b16 %v331
  %v983 = vunpack.c.l.b16 %v332
  %v984 = vpack.c.b16 %v983, %v982
  %vm985 = vcmask 97280
  %v987 = vsel %vm985, %v852, 0
  %v990 = vsel %vm985, %v853, 0
  %v993 = vsel %vm985, %v854, 0
  %v996 = vsel %vm985, %v855, 0
  %v999 = vsel %vm985, %v856, 0
  %v1002 = vsel %vm985, %v857, 0
  %v1005 = vsel %vm985, %v858, 0
  %v1008 = vsel %vm985, %v859, 0
  %v1011 = vsel %vm985, %v860, 0
  %v1014 = vsel %vm985, %v861, 0
  %v1017 = vsel %vm985, %v862, 0
  %v1020 = vsel %vm985, %v863, 0
  %v1023 = vsel %vm985, %v864, 0
  %v1026 = vsel %vm985, %v865, 0
  %v1029 = vsel %vm985, %v866, 0
  %v1032 = vsel %vm985, %v867, 0
  %v1035 = vsel %vm985, %v868, 0
  %v1038 = vsel %vm985, %v869, 0
  %v1041 = vsel %vm985, %v870, 0
  %v1044 = vsel %vm985, %v871, 0
  %v1047 = vsel %vm985, %v872, 0
  %v1050 = vsel %vm985, %v873, 0
  %v1053 = vsel %vm985, %v874, 0
  %v1056 = vsel %vm985, %v875, 0
  %v1059 = vsel %vm985, %v876, 0
  %v1062 = vsel %vm985, %v877, 0
  %v1065 = vsel %vm985, %v878, 0
  %v1068 = vsel %vm985, %v879, 0
  %v1071 = vsel %vm985, %v880, 0
  %v1074 = vsel %vm985, %v881, 0
  %v1077 = vsel %vm985, %v882, 0
  %v1080 = vsel %vm985, %v883, 0
  %v1083 = vsel %vm985, %v884, 0
  %v1086 = vsel %vm985, %v885, 0
  %v1089 = vsel %vm985, %v886, 0
  %v1092 = vsel %vm985, %v887, 0
  %v1095 = vsel %vm985, %v888, 0
  %v1098 = vsel %vm985, %v889, 0
  %v1101 = vsel %vm985, %v890, 0
  %v1104 = vsel %vm985, %v891, 0
  %v1107 = vsel %vm985, %v892, 0
  %v1110 = vsel %vm985, %v893, 0
  %v1113 = vsel %vm985, %v894, 0
  %v1116 = vsel %vm985, %v895, 0
  %v1119 = vsel %vm985, %v896, 0
  %v1122 = vsel %vm985, %v897, 0
  %v1125 = vsel %vm985, %v898, 0
  %v1128 = vsel %vm985, %v899, 0
  %v1131 = vsel %vm985, %v900, 0
  %v1134 = vsel %vm985, %v901, 0
  %v1137 = vsel %vm985, %v902, 0
  %v1140 = vsel %vm985, %v903, 0
  %v1143 = vsel %vm985, %v904, 0
  %v1146 = vsel %vm985, %v905, 0
  %v1149 = vsel %vm985, %v906, 0
  %v1152 = vsel %vm985, %v907, 0
  %v1155 = vsel %vm985, %v908, 0
  %v1158 = vsel %vm985, %v909, 0
  %v1161 = vsel %vm985, %v910, 0
  %v1164 = vsel %vm985, %v911, 0
  %v1167 = vsel %vm985, %v912, 0
  %v1170 = vsel %vm985, %v913, 0
  %v1173 = vsel %vm985, %v914, 0
  %v1176 = vsel %vm985, %v915, 0
  %v1179 = vsel %vm985, %v916, 0
  %v1182 = vsel %vm985, %v917, 0
  %v1185 = vsel %vm985, %v918, 0
  %v1188 = vsel %vm985, %v919, 0
  %v1191 = vsel %vm985, %v920, 0
  %v1194 = vsel %vm985, %v921, 0
  %v1197 = vsel %vm985, %v922, 0
  %v1200 = vsel %vm985, %v923, 0
  %v1203 = vsel %vm985, %v924, 0
  %v1206 = vsel %vm985, %v925, 0
  %v1209 = vsel %vm985, %v926, 0
  %v1212 = vsel %vm985, %v927, 0
  %v1215 = vsel %vm985, %v928, 0
  %v1218 = vsel %vm985, %v929, 0
  %v1221 = vsel %vm985, %v930, 0
  %v1224 = vsel %vm985, %v931, 0
  %v1227 = vsel %vm985, %v932, 0
  %v1230 = vsel %vm985, %v933, 0
  %v1233 = vsel %vm985, %v934, 0
  %v1236 = vsel %vm985, %v935, 0
  %v1239 = vsel %vm985, %v936, 0
  %v1242 = vsel %vm985, %v937, 0
  %v1245 = vsel %vm985, %v938, 0
  %v1248 = vsel %vm985, %v939, 0
  %v1251 = vsel %vm985, %v940, 0
  %v1254 = vsel %vm985, %v941, 0
  %v1257 = vsel %vm985, %v942, 0
  %v1260 = vsel %vm985, %v943, 0
  %v1263 = vsel %vm985, %v944, 0
  %v1266 = vsel %vm985, %v945, 0
  %v1269 = vsel %vm985, %v946, 0
  %v1272 = vsel %vm985, %v947, 0
  %v1275 = vsel %vm985, %v948, 0
  %v1278 = vsel %vm985, %v949, 0
  %v1281 = vsel %vm985, %v950, 0
  %v1284 = vsel %vm985, %v951, 0
  %v1287 = vsel %vm985, %v952, 0
  %v1290 = vsel %vm985, %v953, 0
  %v1293 = vsel %vm985, %v954, 0
  %v1296 = vsel %vm985, %v955, 0
  %v1299 = vsel %vm985, %v956, 0
  %v1302 = vsel %vm985, %v957, 0
  %v1305 = vsel %vm985, %v958, 0
  %v1308 = vsel %vm985, %v959, 0
  %v1311 = vsel %vm985, %v960, 0
  %v1314 = vsel %vm985, %v961, 0
  %v1317 = vsel %vm985, %v962, 0
  %v1320 = vsel %vm985, %v963, 0
  %v1323 = vsel %vm985, %v964, 0
  %v1326 = vsel %vm985, %v965, 0
  %v1329 = vsel %vm985, %v966, 0
  %v1332 = vsel %vm985, %v967, 0
  %v1335 = vsel %vm985, %v968, 0
  %v1338 = vsel %vm985, %v969, 0
  %v1341 = vsel %vm985, %v970, 0
  %v1344 = vsel %vm985, %v971, 0
  %v1347 = vsel %vm985, %v972, 0
  %v1350 = vsel %vm985, %v973, 0
  %v1353 = vsel %vm985, %v974, 0
  %v1356 = vsel %vm985, %v975, 0
  %v1359 = vsel %vm985, %v976, 0
  %v1362 = vsel %vm985, %v977, 0
  %v1365 = vsel %vm985, %v978, 0
  %v1368 = vsel %vm985, %v979, 0
  %vm1370 = vcmask 1045504
  %v1372 = vsel %vm1370, %v984, 0
  %1374 = vmatprep.subr.bf16.mxu0 0
  %1375 = vmatpush1.bf16.msra.mxu0 %v1372
  %1376 = vmatprep.subr.bf16.mxu0 0
  %1377 = vmatpush1.bf16.msra.mxu0 0
  %1378 = vmatprep.subr.bf16.mxu0 0
  %1379 = vmatpush1.bf16.msra.mxu0 0
  %1380 = vmatprep.subr.bf16.mxu0 0
  %1381 = vmatpush1.bf16.msra.mxu0 0
  %1382 = vmatprep.subr.bf16.mxu0 0
  %1383 = vmatpush1.bf16.msra.mxu0 0
  %1384 = vmatprep.subr.bf16.mxu0 0
  %1385 = vmatpush1.bf16.msra.mxu0 0
  %1386 = vmatprep.subr.bf16.mxu0 0
  %1387 = vmatpush1.bf16.msra.mxu0 0
  %1388 = vmatprep.subr.bf16.mxu0 0
  %1389 = vmatpush1.bf16.msra.mxu0 0
  %1390 = vmatprep.subr.bf16.mxu0 0
  %1391 = vmatpush1.bf16.msra.mxu0 0
  %1392 = vmatprep.subr.bf16.mxu0 0
  %1393 = vmatpush1.bf16.msra.mxu0 0
  %1394 = vmatprep.subr.bf16.mxu0 0
  %1395 = vmatpush1.bf16.msra.mxu0 0
  %1396 = vmatprep.subr.bf16.mxu0 0
  %1397 = vmatpush1.bf16.msra.mxu0 0
  %1398 = vmatprep.subr.bf16.mxu0 0
  %1399 = vmatpush1.bf16.msra.mxu0 0
  %1400 = vmatprep.subr.bf16.mxu0 0
  %1401 = vmatpush1.bf16.msra.mxu0 0
  %1402 = vmatprep.subr.bf16.mxu0 0
  %1403 = vmatpush1.bf16.msra.mxu0 0
  %1404 = vmatprep.subr.bf16.mxu0 0
  %1405 = vmatpush1.bf16.msra.mxu0 0
  %1406 = vmatprep.mubr.bf16.mxu0 0
  %1407 = vmatmul.mubr.bf16.gmra.mrb[0].mxu0 %v987
  %v1408 = vpop.f32.mrb[0].mxu0
  %v1409 = vadd.f32 %v338, %v1408
  %v1410 = vpop.f32.mrb[0].mxu0
  %v1411 = vpop.f32.mrb[0].mxu0
  %v1412 = vadd.f32 %v338, %v1411
  %v1413 = vpop.f32.mrb[0].mxu0
  %1414 = vmatprep.mubr.bf16.mxu0 0
  %1415 = vmatmul.mubr.bf16.gmra.mrb[0].mxu0 %v990
  %v1416 = vpop.f32.mrb[0].mxu0
  %v1417 = vadd.f32 %v338, %v1416
  %v1418 = vpop.f32.mrb[0].mxu0
  %v1419 = vpop.f32.mrb[0].mxu0
  %v1420 = vadd.f32 %v338, %v1419
  %v1421 = vpop.f32.mrb[0].mxu0
  %1422 = vmatprep.mubr.bf16.mxu0 0
  %1423 = vmatmul.mubr.bf16.gmra.mrb[0].mxu0 %v993
  %v1424 = vpop.f32.mrb[0].mxu0
  %v1425 = vadd.f32 %v338, %v1424
  %v1426 = vpop.f32.mrb[0].mxu0
  %v1427 = vpop.f32.mrb[0].mxu0
  %v1428 = vadd.f32 %v338, %v1427
  %v1429 = vpop.f32.mrb[0].mxu0
  %1430 = vmatprep.mubr.bf16.mxu0 0
  %1431 = vmatmul.mubr.bf16.gmra.mrb[0].mxu0 %v996
  %v1432 = vpop.f32.mrb[0].mxu0
  %v1433 = vadd.f32 %v338, %v1432
  %v1434 = vpop.f32.mrb[0].mxu0
  %v1435 = vpop.f32.mrb[0].mxu0
  %v1436 = vadd.f32 %v338, %v1435
  %v1437 = vpop.f32.mrb[0].mxu0
  %1438 = vmatprep.mubr.bf16.mxu0 0
  %1439 = vmatmul.mubr.bf16.gmra.mrb[0].mxu0 %v999
  %v1440 = vpop.f32.mrb[0].mxu0
  %v1441 = vadd.f32 %v338, %v1440
  %v1442 = vpop.f32.mrb[0].mxu0
  %v1443 = vpop.f32.mrb[0].mxu0
  %v1444 = vadd.f32 %v338, %v1443
  %v1445 = vpop.f32.mrb[0].mxu0
  %1446 = vmatprep.mubr.bf16.mxu0 0
  %1447 = vmatmul.mubr.bf16.gmra.mrb[0].mxu0 %v1002
  %v1448 = vpop.f32.mrb[0].mxu0
  %v1449 = vadd.f32 %v338, %v1448
  %v1450 = vpop.f32.mrb[0].mxu0
  %v1451 = vpop.f32.mrb[0].mxu0
  %v1452 = vadd.f32 %v338, %v1451
  %v1453 = vpop.f32.mrb[0].mxu0
  %1454 = vmatprep.mubr.bf16.mxu0 0
  %1455 = vmatmul.mubr.bf16.gmra.mrb[0].mxu0 %v1005
  %v1456 = vpop.f32.mrb[0].mxu0
  %v1457 = vadd.f32 %v338, %v1456
  %v1458 = vpop.f32.mrb[0].mxu0
  %v1459 = vpop.f32.mrb[0].mxu0
  %v1460 = vadd.f32 %v338, %v1459
  %v1461 = vpop.f32.mrb[0].mxu0
  %1462 = vmatprep.mubr.bf16.mxu0 0
  %1463 = vmatmul.mubr.bf16.gmra.mrb[0].mxu0 %v1008
  %v1464 = vpop.f32.mrb[0].mxu0
  %v1465 = vadd.f32 %v338, %v1464
  %v1466 = vpop.f32.mrb[0].mxu0
  %v1467 = vpop.f32.mrb[0].mxu0
  %v1468 = vadd.f32 %v338, %v1467
  %v1469 = vpop.f32.mrb[0].mxu0
  %1470 = vmatprep.mubr.bf16.mxu0 0
  %1471 = vmatmul.mubr.bf16.gmra.mrb[0].mxu0 %v1011
  %v1472 = vpop.f32.mrb[0].mxu0
  %v1473 = vadd.f32 %v338, %v1472
  %v1474 = vpop.f32.mrb[0].mxu0
  %v1475 = vpop.f32.mrb[0].mxu0
  %v1476 = vadd.f32 %v338, %v1475
  %v1477 = vpop.f32.mrb[0].mxu0
  %1478 = vmatprep.mubr.bf16.mxu0 0
  %1479 = vmatmul.mubr.bf16.gmra.mrb[0].mxu0 %v1014
  %v1480 = vpop.f32.mrb[0].mxu0
  %v1481 = vadd.f32 %v338, %v1480
  %v1482 = vpop.f32.mrb[0].mxu0
  %v1483 = vpop.f32.mrb[0].mxu0
  %v1484 = vadd.f32 %v338, %v1483
  %v1485 = vpop.f32.mrb[0].mxu0
  %1486 = vmatprep.mubr.bf16.mxu0 0
  %1487 = vmatmul.mubr.bf16.gmra.mrb[0].mxu0 %v1017
  %v1488 = vpop.f32.mrb[0].mxu0
  %v1489 = vadd.f32 %v338, %v1488
  %v1490 = vpop.f32.mrb[0].mxu0
  %v1491 = vpop.f32.mrb[0].mxu0
  %v1492 = vadd.f32 %v338, %v1491
  %v1493 = vpop.f32.mrb[0].mxu0
  %1494 = vmatprep.mubr.bf16.mxu0 0
  %1495 = vmatmul.mubr.bf16.gmra.mrb[0].mxu0 %v1020
  %v1496 = vpop.f32.mrb[0].mxu0
  %v1497 = vadd.f32 %v338, %v1496
  %v1498 = vpop.f32.mrb[0].mxu0
  %v1499 = vpop.f32.mrb[0].mxu0
  %v1500 = vadd.f32 %v338, %v1499
  %v1501 = vpop.f32.mrb[0].mxu0
  %1502 = vmatprep.mubr.bf16.mxu0 0
  %1503 = vmatmul.mubr.bf16.gmra.mrb[0].mxu0 %v1023
  %v1504 = vpop.f32.mrb[0].mxu0
  %v1505 = vadd.f32 %v338, %v1504
  %v1506 = vpop.f32.mrb[0].mxu0
  %v1507 = vpop.f32.mrb[0].mxu0
  %v1508 = vadd.f32 %v338, %v1507
  %v1509 = vpop.f32.mrb[0].mxu0
  %1510 = vmatprep.mubr.bf16.mxu0 0
  %1511 = vmatmul.mubr.bf16.gmra.mrb[0].mxu0 %v1026
  %v1512 = vpop.f32.mrb[0].mxu0
  %v1513 = vadd.f32 %v338, %v1512
  %v1514 = vpop.f32.mrb[0].mxu0
  %v1515 = vpop.f32.mrb[0].mxu0
  %v1516 = vadd.f32 %v338, %v1515
  %v1517 = vpop.f32.mrb[0].mxu0
  %1518 = vmatprep.mubr.bf16.mxu0 0
  %1519 = vmatmul.mubr.bf16.gmra.mrb[0].mxu0 %v1029
  %v1520 = vpop.f32.mrb[0].mxu0
  %v1521 = vadd.f32 %v338, %v1520
  %v1522 = vpop.f32.mrb[0].mxu0
  %v1523 = vpop.f32.mrb[0].mxu0
  %v1524 = vadd.f32 %v338, %v1523
  %v1525 = vpop.f32.mrb[0].mxu0
  %1526 = vmatprep.mubr.bf16.mxu0 0
  %1527 = vmatmul.mubr.bf16.gmra.mrb[0].mxu0 %v1032
  %v1528 = vpop.f32.mrb[0].mxu0
  %v1529 = vadd.f32 %v338, %v1528
  %v1530 = vpop.f32.mrb[0].mxu0
  %v1531 = vpop.f32.mrb[0].mxu0
  %v1532 = vadd.f32 %v338, %v1531
  %v1533 = vpop.f32.mrb[0].mxu0
  %1534 = vmatprep.mubr.bf16.mxu0 0
  %1535 = vmatmul.mubr.bf16.gmra.mrb[0].mxu0 %v1035
  %v1536 = vpop.f32.mrb[0].mxu0
  %v1537 = vadd.f32 %v338, %v1536
  %v1538 = vpop.f32.mrb[0].mxu0
  %v1539 = vpop.f32.mrb[0].mxu0
  %v1540 = vadd.f32 %v338, %v1539
  %v1541 = vpop.f32.mrb[0].mxu0
  %1542 = vmatprep.mubr.bf16.mxu0 0
  %1543 = vmatmul.mubr.bf16.gmra.mrb[0].mxu0 %v1038
  %v1544 = vpop.f32.mrb[0].mxu0
  %v1545 = vadd.f32 %v338, %v1544
  %v1546 = vpop.f32.mrb[0].mxu0
  %v1547 = vpop.f32.mrb[0].mxu0
  %v1548 = vadd.f32 %v338, %v1547
  %v1549 = vpop.f32.mrb[0].mxu0
  %1550 = vmatprep.mubr.bf16.mxu0 0
  %1551 = vmatmul.mubr.bf16.gmra.mrb[0].mxu0 %v1041
  %v1552 = vpop.f32.mrb[0].mxu0
  %v1553 = vadd.f32 %v338, %v1552
  %v1554 = vpop.f32.mrb[0].mxu0
  %v1555 = vpop.f32.mrb[0].mxu0
  %v1556 = vadd.f32 %v338, %v1555
  %v1557 = vpop.f32.mrb[0].mxu0
  %1558 = vmatprep.mubr.bf16.mxu0 0
  %1559 = vmatmul.mubr.bf16.gmra.mrb[0].mxu0 %v1044
  %v1560 = vpop.f32.mrb[0].mxu0
  %v1561 = vadd.f32 %v338, %v1560
  %v1562 = vpop.f32.mrb[0].mxu0
  %v1563 = vpop.f32.mrb[0].mxu0
  %v1564 = vadd.f32 %v338, %v1563
  %v1565 = vpop.f32.mrb[0].mxu0
  %1566 = vmatprep.mubr.bf16.mxu0 0
  %1567 = vmatmul.mubr.bf16.gmra.mrb[0].mxu0 %v1047
  %v1568 = vpop.f32.mrb[0].mxu0
  %v1569 = vadd.f32 %v338, %v1568
  %v1570 = vpop.f32.mrb[0].mxu0
  %v1571 = vpop.f32.mrb[0].mxu0
  %v1572 = vadd.f32 %v338, %v1571
  %v1573 = vpop.f32.mrb[0].mxu0
  %1574 = vmatprep.mubr.bf16.mxu0 0
  %1575 = vmatmul.mubr.bf16.gmra.mrb[0].mxu0 %v1050
  %v1576 = vpop.f32.mrb[0].mxu0
  %v1577 = vadd.f32 %v338, %v1576
  %v1578 = vpop.f32.mrb[0].mxu0
  %v1579 = vpop.f32.mrb[0].mxu0
  %v1580 = vadd.f32 %v338, %v1579
  %v1581 = vpop.f32.mrb[0].mxu0
  %1582 = vmatprep.mubr.bf16.mxu0 0
  %1583 = vmatmul.mubr.bf16.gmra.mrb[0].mxu0 %v1053
  %v1584 = vpop.f32.mrb[0].mxu0
  %v1585 = vadd.f32 %v338, %v1584
  %v1586 = vpop.f32.mrb[0].mxu0
  %v1587 = vpop.f32.mrb[0].mxu0
  %v1588 = vadd.f32 %v338, %v1587
  %v1589 = vpop.f32.mrb[0].mxu0
  %1590 = vmatprep.mubr.bf16.mxu0 0
  %1591 = vmatmul.mubr.bf16.gmra.mrb[0].mxu0 %v1056
  %v1592 = vpop.f32.mrb[0].mxu0
  %v1593 = vadd.f32 %v338, %v1592
  %v1594 = vpop.f32.mrb[0].mxu0
  %v1595 = vpop.f32.mrb[0].mxu0
  %v1596 = vadd.f32 %v338, %v1595
  %v1597 = vpop.f32.mrb[0].mxu0
  %1598 = vmatprep.mubr.bf16.mxu0 0
  %1599 = vmatmul.mubr.bf16.gmra.mrb[0].mxu0 %v1059
  %v1600 = vpop.f32.mrb[0].mxu0
  %v1601 = vadd.f32 %v338, %v1600
  %v1602 = vpop.f32.mrb[0].mxu0
  %v1603 = vpop.f32.mrb[0].mxu0
  %v1604 = vadd.f32 %v338, %v1603
  %v1605 = vpop.f32.mrb[0].mxu0
  %1606 = vmatprep.mubr.bf16.mxu0 0
  %1607 = vmatmul.mubr.bf16.gmra.mrb[0].mxu0 %v1062
  %v1608 = vpop.f32.mrb[0].mxu0
  %v1609 = vadd.f32 %v338, %v1608
  %v1610 = vpop.f32.mrb[0].mxu0
  %v1611 = vpop.f32.mrb[0].mxu0
  %v1612 = vadd.f32 %v338, %v1611
  %v1613 = vpop.f32.mrb[0].mxu0
  %1614 = vmatprep.mubr.bf16.mxu0 0
  %1615 = vmatmul.mubr.bf16.gmra.mrb[0].mxu0 %v1065
  %v1616 = vpop.f32.mrb[0].mxu0
  %v1617 = vadd.f32 %v338, %v1616
  %v1618 = vpop.f32.mrb[0].mxu0
  %v1619 = vpop.f32.mrb[0].mxu0
  %v1620 = vadd.f32 %v338, %v1619
  %v1621 = vpop.f32.mrb[0].mxu0
  %1622 = vmatprep.mubr.bf16.mxu0 0
  %1623 = vmatmul.mubr.bf16.gmra.mrb[0].mxu0 %v1068
  %v1624 = vpop.f32.mrb[0].mxu0
  %v1625 = vadd.f32 %v338, %v1624
  %v1626 = vpop.f32.mrb[0].mxu0
  %v1627 = vpop.f32.mrb[0].mxu0
  %v1628 = vadd.f32 %v338, %v1627
  %v1629 = vpop.f32.mrb[0].mxu0
  %1630 = vmatprep.mubr.bf16.mxu0 0
  %1631 = vmatmul.mubr.bf16.gmra.mrb[0].mxu0 %v1071
  %v1632 = vpop.f32.mrb[0].mxu0
  %v1633 = vadd.f32 %v338, %v1632
  %v1634 = vpop.f32.mrb[0].mxu0
  %v1635 = vpop.f32.mrb[0].mxu0
  %v1636 = vadd.f32 %v338, %v1635
  %v1637 = vpop.f32.mrb[0].mxu0
  %1638 = vmatprep.mubr.bf16.mxu0 0
  %1639 = vmatmul.mubr.bf16.gmra.mrb[0].mxu0 %v1074
  %v1640 = vpop.f32.mrb[0].mxu0
  %v1641 = vadd.f32 %v338, %v1640
  %v1642 = vpop.f32.mrb[0].mxu0
  %v1643 = vpop.f32.mrb[0].mxu0
  %v1644 = vadd.f32 %v338, %v1643
  %v1645 = vpop.f32.mrb[0].mxu0
  %1646 = vmatprep.mubr.bf16.mxu0 0
  %1647 = vmatmul.mubr.bf16.gmra.mrb[0].mxu0 %v1077
  %v1648 = vpop.f32.mrb[0].mxu0
  %v1649 = vadd.f32 %v338, %v1648
  %v1650 = vpop.f32.mrb[0].mxu0
  %v1651 = vpop.f32.mrb[0].mxu0
  %v1652 = vadd.f32 %v338, %v1651
  %v1653 = vpop.f32.mrb[0].mxu0
  %1654 = vmatprep.mubr.bf16.mxu0 0
  %1655 = vmatmul.mubr.bf16.gmra.mrb[0].mxu0 %v1080
  %v1656 = vpop.f32.mrb[0].mxu0
  %v1657 = vadd.f32 %v338, %v1656
  %v1658 = vpop.f32.mrb[0].mxu0
  %v1659 = vpop.f32.mrb[0].mxu0
  %v1660 = vadd.f32 %v338, %v1659
  %v1661 = vpop.f32.mrb[0].mxu0
  %1662 = vmatprep.mubr.bf16.mxu0 0
  %1663 = vmatmul.mubr.bf16.gmra.mrb[0].mxu0 %v1083
  %v1664 = vpop.f32.mrb[0].mxu0
  %v1665 = vadd.f32 %v338, %v1664
  %v1666 = vpop.f32.mrb[0].mxu0
  %v1667 = vpop.f32.mrb[0].mxu0
  %v1668 = vadd.f32 %v338, %v1667
  %v1669 = vpop.f32.mrb[0].mxu0
  %1670 = vmatprep.mubr.bf16.mxu0 0
  %1671 = vmatmul.mubr.bf16.gmra.mrb[0].mxu0 %v1086
  %v1672 = vpop.f32.mrb[0].mxu0
  %v1673 = vadd.f32 %v338, %v1672
  %v1674 = vpop.f32.mrb[0].mxu0
  %v1675 = vpop.f32.mrb[0].mxu0
  %v1676 = vadd.f32 %v338, %v1675
  %v1677 = vpop.f32.mrb[0].mxu0
  %1678 = vmatprep.mubr.bf16.mxu0 0
  %1679 = vmatmul.mubr.bf16.gmra.mrb[0].mxu0 %v1089
  %v1680 = vpop.f32.mrb[0].mxu0
  %v1681 = vadd.f32 %v338, %v1680
  %v1682 = vpop.f32.mrb[0].mxu0
  %v1683 = vpop.f32.mrb[0].mxu0
  %v1684 = vadd.f32 %v338, %v1683
  %v1685 = vpop.f32.mrb[0].mxu0
  %1686 = vmatprep.mubr.bf16.mxu0 0
  %1687 = vmatmul.mubr.bf16.gmra.mrb[0].mxu0 %v1092
  %v1688 = vpop.f32.mrb[0].mxu0
  %v1689 = vadd.f32 %v338, %v1688
  %v1690 = vpop.f32.mrb[0].mxu0
  %v1691 = vpop.f32.mrb[0].mxu0
  %v1692 = vadd.f32 %v338, %v1691
  %v1693 = vpop.f32.mrb[0].mxu0
  %1694 = vmatprep.mubr.bf16.mxu0 0
  %1695 = vmatmul.mubr.bf16.gmra.mrb[0].mxu0 %v1095
  %v1696 = vpop.f32.mrb[0].mxu0
  %v1697 = vadd.f32 %v338, %v1696
  %v1698 = vpop.f32.mrb[0].mxu0
  %v1699 = vpop.f32.mrb[0].mxu0
  %v1700 = vadd.f32 %v338, %v1699
  %v1701 = vpop.f32.mrb[0].mxu0
  %1702 = vmatprep.mubr.bf16.mxu0 0
  %1703 = vmatmul.mubr.bf16.gmra.mrb[0].mxu0 %v1098
  %v1704 = vpop.f32.mrb[0].mxu0
  %v1705 = vadd.f32 %v338, %v1704
  %v1706 = vpop.f32.mrb[0].mxu0
  %v1707 = vpop.f32.mrb[0].mxu0
  %v1708 = vadd.f32 %v338, %v1707
  %v1709 = vpop.f32.mrb[0].mxu0
  %1710 = vmatprep.mubr.bf16.mxu0 0
  %1711 = vmatmul.mubr.bf16.gmra.mrb[0].mxu0 %v1101
  %v1712 = vpop.f32.mrb[0].mxu0
  %v1713 = vadd.f32 %v338, %v1712
  %v1714 = vpop.f32.mrb[0].mxu0
  %v1715 = vpop.f32.mrb[0].mxu0
  %v1716 = vadd.f32 %v338, %v1715
  %v1717 = vpop.f32.mrb[0].mxu0
  %1718 = vmatprep.mubr.bf16.mxu0 0
  %1719 = vmatmul.mubr.bf16.gmra.mrb[0].mxu0 %v1104
  %v1720 = vpop.f32.mrb[0].mxu0
  %v1721 = vadd.f32 %v338, %v1720
  %v1722 = vpop.f32.mrb[0].mxu0
  %v1723 = vpop.f32.mrb[0].mxu0
  %v1724 = vadd.f32 %v338, %v1723
  %v1725 = vpop.f32.mrb[0].mxu0
  %1726 = vmatprep.mubr.bf16.mxu0 0
  %1727 = vmatmul.mubr.bf16.gmra.mrb[0].mxu0 %v1107
  %v1728 = vpop.f32.mrb[0].mxu0
  %v1729 = vadd.f32 %v338, %v1728
  %v1730 = vpop.f32.mrb[0].mxu0
  %v1731 = vpop.f32.mrb[0].mxu0
  %v1732 = vadd.f32 %v338, %v1731
  %v1733 = vpop.f32.mrb[0].mxu0
  %1734 = vmatprep.mubr.bf16.mxu0 0
  %1735 = vmatmul.mubr.bf16.gmra.mrb[0].mxu0 %v1110
  %v1736 = vpop.f32.mrb[0].mxu0
  %v1737 = vadd.f32 %v338, %v1736
  %v1738 = vpop.f32.mrb[0].mxu0
  %v1739 = vpop.f32.mrb[0].mxu0
  %v1740 = vadd.f32 %v338, %v1739
  %v1741 = vpop.f32.mrb[0].mxu0
  %1742 = vmatprep.mubr.bf16.mxu0 0
  %1743 = vmatmul.mubr.bf16.gmra.mrb[0].mxu0 %v1113
  %v1744 = vpop.f32.mrb[0].mxu0
  %v1745 = vadd.f32 %v338, %v1744
  %v1746 = vpop.f32.mrb[0].mxu0
  %v1747 = vpop.f32.mrb[0].mxu0
  %v1748 = vadd.f32 %v338, %v1747
  %v1749 = vpop.f32.mrb[0].mxu0
  %1750 = vmatprep.mubr.bf16.mxu0 0
  %1751 = vmatmul.mubr.bf16.gmra.mrb[0].mxu0 %v1116
  %v1752 = vpop.f32.mrb[0].mxu0
  %v1753 = vadd.f32 %v338, %v1752
  %v1754 = vpop.f32.mrb[0].mxu0
  %v1755 = vpop.f32.mrb[0].mxu0
  %v1756 = vadd.f32 %v338, %v1755
  %v1757 = vpop.f32.mrb[0].mxu0
  %1758 = vmatprep.mubr.bf16.mxu0 0
  %1759 = vmatmul.mubr.bf16.gmra.mrb[0].mxu0 %v1119
  %v1760 = vpop.f32.mrb[0].mxu0
  %v1761 = vadd.f32 %v338, %v1760
  %v1762 = vpop.f32.mrb[0].mxu0
  %v1763 = vpop.f32.mrb[0].mxu0
  %v1764 = vadd.f32 %v338, %v1763
  %v1765 = vpop.f32.mrb[0].mxu0
  %1766 = vmatprep.mubr.bf16.mxu0 0
  %1767 = vmatmul.mubr.bf16.gmra.mrb[0].mxu0 %v1122
  %v1768 = vpop.f32.mrb[0].mxu0
  %v1769 = vadd.f32 %v338, %v1768
  %v1770 = vpop.f32.mrb[0].mxu0
  %v1771 = vpop.f32.mrb[0].mxu0
  %v1772 = vadd.f32 %v338, %v1771
  %v1773 = vpop.f32.mrb[0].mxu0
  %1774 = vmatprep.mubr.bf16.mxu0 0
  %1775 = vmatmul.mubr.bf16.gmra.mrb[0].mxu0 %v1125
  %v1776 = vpop.f32.mrb[0].mxu0
  %v1777 = vadd.f32 %v338, %v1776
  %v1778 = vpop.f32.mrb[0].mxu0
  %v1779 = vpop.f32.mrb[0].mxu0
  %v1780 = vadd.f32 %v338, %v1779
  %v1781 = vpop.f32.mrb[0].mxu0
  %1782 = vmatprep.mubr.bf16.mxu0 0
  %1783 = vmatmul.mubr.bf16.gmra.mrb[0].mxu0 %v1128
  %v1784 = vpop.f32.mrb[0].mxu0
  %v1785 = vadd.f32 %v338, %v1784
  %v1786 = vpop.f32.mrb[0].mxu0
  %v1787 = vpop.f32.mrb[0].mxu0
  %v1788 = vadd.f32 %v338, %v1787
  %v1789 = vpop.f32.mrb[0].mxu0
  %1790 = vmatprep.mubr.bf16.mxu0 0
  %1791 = vmatmul.mubr.bf16.gmra.mrb[0].mxu0 %v1131
  %v1792 = vpop.f32.mrb[0].mxu0
  %v1793 = vadd.f32 %v338, %v1792
  %v1794 = vpop.f32.mrb[0].mxu0
  %v1795 = vpop.f32.mrb[0].mxu0
  %v1796 = vadd.f32 %v338, %v1795
  %v1797 = vpop.f32.mrb[0].mxu0
  %1798 = vmatprep.mubr.bf16.mxu0 0
  %1799 = vmatmul.mubr.bf16.gmra.mrb[0].mxu0 %v1134
  %v1800 = vpop.f32.mrb[0].mxu0
  %v1801 = vadd.f32 %v338, %v1800
  %v1802 = vpop.f32.mrb[0].mxu0
  %v1803 = vpop.f32.mrb[0].mxu0
  %v1804 = vadd.f32 %v338, %v1803
  %v1805 = vpop.f32.mrb[0].mxu0
  %1806 = vmatprep.mubr.bf16.mxu0 0
  %1807 = vmatmul.mubr.bf16.gmra.mrb[0].mxu0 %v1137
  %v1808 = vpop.f32.mrb[0].mxu0
  %v1809 = vadd.f32 %v338, %v1808
  %v1810 = vpop.f32.mrb[0].mxu0
  %v1811 = vpop.f32.mrb[0].mxu0
  %v1812 = vadd.f32 %v338, %v1811
  %v1813 = vpop.f32.mrb[0].mxu0
  %1814 = vmatprep.mubr.bf16.mxu0 0
  %1815 = vmatmul.mubr.bf16.gmra.mrb[0].mxu0 %v1140
  %v1816 = vpop.f32.mrb[0].mxu0
  %v1817 = vadd.f32 %v338, %v1816
  %v1818 = vpop.f32.mrb[0].mxu0
  %v1819 = vpop.f32.mrb[0].mxu0
  %v1820 = vadd.f32 %v338, %v1819
  %v1821 = vpop.f32.mrb[0].mxu0
  %1822 = vmatprep.mubr.bf16.mxu0 0
  %1823 = vmatmul.mubr.bf16.gmra.mrb[0].mxu0 %v1143
  %v1824 = vpop.f32.mrb[0].mxu0
  %v1825 = vadd.f32 %v338, %v1824
  %v1826 = vpop.f32.mrb[0].mxu0
  %v1827 = vpop.f32.mrb[0].mxu0
  %v1828 = vadd.f32 %v338, %v1827
  %v1829 = vpop.f32.mrb[0].mxu0
  %1830 = vmatprep.mubr.bf16.mxu0 0
  %1831 = vmatmul.mubr.bf16.gmra.mrb[0].mxu0 %v1146
  %v1832 = vpop.f32.mrb[0].mxu0
  %v1833 = vadd.f32 %v338, %v1832
  %v1834 = vpop.f32.mrb[0].mxu0
  %v1835 = vpop.f32.mrb[0].mxu0
  %v1836 = vadd.f32 %v338, %v1835
  %v1837 = vpop.f32.mrb[0].mxu0
  %1838 = vmatprep.mubr.bf16.mxu0 0
  %1839 = vmatmul.mubr.bf16.gmra.mrb[0].mxu0 %v1149
  %v1840 = vpop.f32.mrb[0].mxu0
  %v1841 = vadd.f32 %v338, %v1840
  %v1842 = vpop.f32.mrb[0].mxu0
  %v1843 = vpop.f32.mrb[0].mxu0
  %v1844 = vadd.f32 %v338, %v1843
  %v1845 = vpop.f32.mrb[0].mxu0
  %1846 = vmatprep.mubr.bf16.mxu0 0
  %1847 = vmatmul.mubr.bf16.gmra.mrb[0].mxu0 %v1152
  %v1848 = vpop.f32.mrb[0].mxu0
  %v1849 = vadd.f32 %v338, %v1848
  %v1850 = vpop.f32.mrb[0].mxu0
  %v1851 = vpop.f32.mrb[0].mxu0
  %v1852 = vadd.f32 %v338, %v1851
  %v1853 = vpop.f32.mrb[0].mxu0
  %1854 = vmatprep.mubr.bf16.mxu0 0
  %1855 = vmatmul.mubr.bf16.gmra.mrb[0].mxu0 %v1155
  %v1856 = vpop.f32.mrb[0].mxu0
  %v1857 = vadd.f32 %v338, %v1856
  %v1858 = vpop.f32.mrb[0].mxu0
  %v1859 = vpop.f32.mrb[0].mxu0
  %v1860 = vadd.f32 %v338, %v1859
  %v1861 = vpop.f32.mrb[0].mxu0
  %1862 = vmatprep.mubr.bf16.mxu0 0
  %1863 = vmatmul.mubr.bf16.gmra.mrb[0].mxu0 %v1158
  %v1864 = vpop.f32.mrb[0].mxu0
  %v1865 = vadd.f32 %v338, %v1864
  %v1866 = vpop.f32.mrb[0].mxu0
  %v1867 = vpop.f32.mrb[0].mxu0
  %v1868 = vadd.f32 %v338, %v1867
  %v1869 = vpop.f32.mrb[0].mxu0
  %1870 = vmatprep.mubr.bf16.mxu0 0
  %1871 = vmatmul.mubr.bf16.gmra.mrb[0].mxu0 %v1161
  %v1872 = vpop.f32.mrb[0].mxu0
  %v1873 = vadd.f32 %v338, %v1872
  %v1874 = vpop.f32.mrb[0].mxu0
  %v1875 = vpop.f32.mrb[0].mxu0
  %v1876 = vadd.f32 %v338, %v1875
  %v1877 = vpop.f32.mrb[0].mxu0
  %1878 = vmatprep.mubr.bf16.mxu0 0
  %1879 = vmatmul.mubr.bf16.gmra.mrb[0].mxu0 %v1164
  %v1880 = vpop.f32.mrb[0].mxu0
  %v1881 = vadd.f32 %v338, %v1880
  %v1882 = vpop.f32.mrb[0].mxu0
  %v1883 = vpop.f32.mrb[0].mxu0
  %v1884 = vadd.f32 %v338, %v1883
  %v1885 = vpop.f32.mrb[0].mxu0
  %1886 = vmatprep.mubr.bf16.mxu0 0
  %1887 = vmatmul.mubr.bf16.gmra.mrb[0].mxu0 %v1167
  %v1888 = vpop.f32.mrb[0].mxu0
  %v1889 = vadd.f32 %v338, %v1888
  %v1890 = vpop.f32.mrb[0].mxu0
  %v1891 = vpop.f32.mrb[0].mxu0
  %v1892 = vadd.f32 %v338, %v1891
  %v1893 = vpop.f32.mrb[0].mxu0
  %1894 = vmatprep.mubr.bf16.mxu0 0
  %1895 = vmatmul.mubr.bf16.gmra.mrb[0].mxu0 %v1170
  %v1896 = vpop.f32.mrb[0].mxu0
  %v1897 = vadd.f32 %v338, %v1896
  %v1898 = vpop.f32.mrb[0].mxu0
  %v1899 = vpop.f32.mrb[0].mxu0
  %v1900 = vadd.f32 %v338, %v1899
  %v1901 = vpop.f32.mrb[0].mxu0
  %1902 = vmatprep.mubr.bf16.mxu0 0
  %1903 = vmatmul.mubr.bf16.gmra.mrb[0].mxu0 %v1173
  %v1904 = vpop.f32.mrb[0].mxu0
  %v1905 = vadd.f32 %v338, %v1904
  %v1906 = vpop.f32.mrb[0].mxu0
  %v1907 = vpop.f32.mrb[0].mxu0
  %v1908 = vadd.f32 %v338, %v1907
  %v1909 = vpop.f32.mrb[0].mxu0
  %1910 = vmatprep.mubr.bf16.mxu0 0
  %1911 = vmatmul.mubr.bf16.gmra.mrb[0].mxu0 %v1176
  %v1912 = vpop.f32.mrb[0].mxu0
  %v1913 = vadd.f32 %v338, %v1912
  %v1914 = vpop.f32.mrb[0].mxu0
  %v1915 = vpop.f32.mrb[0].mxu0
  %v1916 = vadd.f32 %v338, %v1915
  %v1917 = vpop.f32.mrb[0].mxu0
  %1918 = vmatprep.mubr.bf16.mxu0 0
  %1919 = vmatmul.mubr.bf16.gmra.mrb[0].mxu0 %v1179
  %v1920 = vpop.f32.mrb[0].mxu0
  %v1921 = vadd.f32 %v338, %v1920
  %v1922 = vpop.f32.mrb[0].mxu0
  %v1923 = vpop.f32.mrb[0].mxu0
  %v1924 = vadd.f32 %v338, %v1923
  %v1925 = vpop.f32.mrb[0].mxu0
  %1926 = vmatprep.mubr.bf16.mxu0 0
  %1927 = vmatmul.mubr.bf16.gmra.mrb[0].mxu0 %v1182
  %v1928 = vpop.f32.mrb[0].mxu0
  %v1929 = vadd.f32 %v338, %v1928
  %v1930 = vpop.f32.mrb[0].mxu0
  %v1931 = vpop.f32.mrb[0].mxu0
  %v1932 = vadd.f32 %v338, %v1931
  %v1933 = vpop.f32.mrb[0].mxu0
  %1934 = vmatprep.mubr.bf16.mxu0 0
  %1935 = vmatmul.mubr.bf16.gmra.mrb[0].mxu0 %v1185
  %v1936 = vpop.f32.mrb[0].mxu0
  %v1937 = vadd.f32 %v338, %v1936
  %v1938 = vpop.f32.mrb[0].mxu0
  %v1939 = vpop.f32.mrb[0].mxu0
  %v1940 = vadd.f32 %v338, %v1939
  %v1941 = vpop.f32.mrb[0].mxu0
  %1942 = vmatprep.mubr.bf16.mxu0 0
  %1943 = vmatmul.mubr.bf16.gmra.mrb[0].mxu0 %v1188
  %v1944 = vpop.f32.mrb[0].mxu0
  %v1945 = vadd.f32 %v338, %v1944
  %v1946 = vpop.f32.mrb[0].mxu0
  %v1947 = vpop.f32.mrb[0].mxu0
  %v1948 = vadd.f32 %v338, %v1947
  %v1949 = vpop.f32.mrb[0].mxu0
  %1950 = vmatprep.mubr.bf16.mxu0 0
  %1951 = vmatmul.mubr.bf16.gmra.mrb[0].mxu0 %v1191
  %v1952 = vpop.f32.mrb[0].mxu0
  %v1953 = vadd.f32 %v338, %v1952
  %v1954 = vpop.f32.mrb[0].mxu0
  %v1955 = vpop.f32.mrb[0].mxu0
  %v1956 = vadd.f32 %v338, %v1955
  %v1957 = vpop.f32.mrb[0].mxu0
  %1958 = vmatprep.mubr.bf16.mxu0 0
  %1959 = vmatmul.mubr.bf16.gmra.mrb[0].mxu0 %v1194
  %v1960 = vpop.f32.mrb[0].mxu0
  %v1961 = vadd.f32 %v338, %v1960
  %v1962 = vpop.f32.mrb[0].mxu0
  %v1963 = vpop.f32.mrb[0].mxu0
  %v1964 = vadd.f32 %v338, %v1963
  %v1965 = vpop.f32.mrb[0].mxu0
  %1966 = vmatprep.mubr.bf16.mxu0 0
  %1967 = vmatmul.mubr.bf16.gmra.mrb[0].mxu0 %v1197
  %v1968 = vpop.f32.mrb[0].mxu0
  %v1969 = vadd.f32 %v338, %v1968
  %v1970 = vpop.f32.mrb[0].mxu0
  %v1971 = vpop.f32.mrb[0].mxu0
  %v1972 = vadd.f32 %v338, %v1971
  %v1973 = vpop.f32.mrb[0].mxu0
  %1974 = vmatprep.mubr.bf16.mxu0 0
  %1975 = vmatmul.mubr.bf16.gmra.mrb[0].mxu0 %v1200
  %v1976 = vpop.f32.mrb[0].mxu0
  %v1977 = vadd.f32 %v338, %v1976
  %v1978 = vpop.f32.mrb[0].mxu0
  %v1979 = vpop.f32.mrb[0].mxu0
  %v1980 = vadd.f32 %v338, %v1979
  %v1981 = vpop.f32.mrb[0].mxu0
  %1982 = vmatprep.mubr.bf16.mxu0 0
  %1983 = vmatmul.mubr.bf16.gmra.mrb[0].mxu0 %v1203
  %v1984 = vpop.f32.mrb[0].mxu0
  %v1985 = vadd.f32 %v338, %v1984
  %v1986 = vpop.f32.mrb[0].mxu0
  %v1987 = vpop.f32.mrb[0].mxu0
  %v1988 = vadd.f32 %v338, %v1987
  %v1989 = vpop.f32.mrb[0].mxu0
  %1990 = vmatprep.mubr.bf16.mxu0 0
  %1991 = vmatmul.mubr.bf16.gmra.mrb[0].mxu0 %v1206
  %v1992 = vpop.f32.mrb[0].mxu0
  %v1993 = vadd.f32 %v338, %v1992
  %v1994 = vpop.f32.mrb[0].mxu0
  %v1995 = vpop.f32.mrb[0].mxu0
  %v1996 = vadd.f32 %v338, %v1995
  %v1997 = vpop.f32.mrb[0].mxu0
  %1998 = vmatprep.mubr.bf16.mxu0 0
  %1999 = vmatmul.mubr.bf16.gmra.mrb[0].mxu0 %v1209
  %v2000 = vpop.f32.mrb[0].mxu0
  %v2001 = vadd.f32 %v338, %v2000
  %v2002 = vpop.f32.mrb[0].mxu0
  %v2003 = vpop.f32.mrb[0].mxu0
  %v2004 = vadd.f32 %v338, %v2003
  %v2005 = vpop.f32.mrb[0].mxu0
  %2006 = vmatprep.mubr.bf16.mxu0 0
  %2007 = vmatmul.mubr.bf16.gmra.mrb[0].mxu0 %v1212
  %v2008 = vpop.f32.mrb[0].mxu0
  %v2009 = vadd.f32 %v338, %v2008
  %v2010 = vpop.f32.mrb[0].mxu0
  %v2011 = vpop.f32.mrb[0].mxu0
  %v2012 = vadd.f32 %v338, %v2011
  %v2013 = vpop.f32.mrb[0].mxu0
  %2014 = vmatprep.mubr.bf16.mxu0 0
  %2015 = vmatmul.mubr.bf16.gmra.mrb[0].mxu0 %v1215
  %v2016 = vpop.f32.mrb[0].mxu0
  %v2017 = vadd.f32 %v338, %v2016
  %v2018 = vpop.f32.mrb[0].mxu0
  %v2019 = vpop.f32.mrb[0].mxu0
  %v2020 = vadd.f32 %v338, %v2019
  %v2021 = vpop.f32.mrb[0].mxu0
  %2022 = vmatprep.mubr.bf16.mxu0 0
  %2023 = vmatmul.mubr.bf16.gmra.mrb[0].mxu0 %v1218
  %v2024 = vpop.f32.mrb[0].mxu0
  %v2025 = vadd.f32 %v338, %v2024
  %v2026 = vpop.f32.mrb[0].mxu0
  %v2027 = vpop.f32.mrb[0].mxu0
  %v2028 = vadd.f32 %v338, %v2027
  %v2029 = vpop.f32.mrb[0].mxu0
  %2030 = vmatprep.mubr.bf16.mxu0 0
  %2031 = vmatmul.mubr.bf16.gmra.mrb[0].mxu0 %v1221
  %v2032 = vpop.f32.mrb[0].mxu0
  %v2033 = vadd.f32 %v338, %v2032
  %v2034 = vpop.f32.mrb[0].mxu0
  %v2035 = vpop.f32.mrb[0].mxu0
  %v2036 = vadd.f32 %v338, %v2035
  %v2037 = vpop.f32.mrb[0].mxu0
  %2038 = vmatprep.mubr.bf16.mxu0 0
  %2039 = vmatmul.mubr.bf16.gmra.mrb[0].mxu0 %v1224
  %v2040 = vpop.f32.mrb[0].mxu0
  %v2041 = vadd.f32 %v338, %v2040
  %v2042 = vpop.f32.mrb[0].mxu0
  %v2043 = vpop.f32.mrb[0].mxu0
  %v2044 = vadd.f32 %v338, %v2043
  %v2045 = vpop.f32.mrb[0].mxu0
  %2046 = vmatprep.mubr.bf16.mxu0 0
  %2047 = vmatmul.mubr.bf16.gmra.mrb[0].mxu0 %v1227
  %v2048 = vpop.f32.mrb[0].mxu0
  %v2049 = vadd.f32 %v338, %v2048
  %v2050 = vpop.f32.mrb[0].mxu0
  %v2051 = vpop.f32.mrb[0].mxu0
  %v2052 = vadd.f32 %v338, %v2051
  %v2053 = vpop.f32.mrb[0].mxu0
  %2054 = vmatprep.mubr.bf16.mxu0 0
  %2055 = vmatmul.mubr.bf16.gmra.mrb[0].mxu0 %v1230
  %v2056 = vpop.f32.mrb[0].mxu0
  %v2057 = vadd.f32 %v338, %v2056
  %v2058 = vpop.f32.mrb[0].mxu0
  %v2059 = vpop.f32.mrb[0].mxu0
  %v2060 = vadd.f32 %v338, %v2059
  %v2061 = vpop.f32.mrb[0].mxu0
  %2062 = vmatprep.mubr.bf16.mxu0 0
  %2063 = vmatmul.mubr.bf16.gmra.mrb[0].mxu0 %v1233
  %v2064 = vpop.f32.mrb[0].mxu0
  %v2065 = vadd.f32 %v338, %v2064
  %v2066 = vpop.f32.mrb[0].mxu0
  %v2067 = vpop.f32.mrb[0].mxu0
  %v2068 = vadd.f32 %v338, %v2067
  %v2069 = vpop.f32.mrb[0].mxu0
  %2070 = vmatprep.mubr.bf16.mxu0 0
  %2071 = vmatmul.mubr.bf16.gmra.mrb[0].mxu0 %v1236
  %v2072 = vpop.f32.mrb[0].mxu0
  %v2073 = vadd.f32 %v338, %v2072
  %v2074 = vpop.f32.mrb[0].mxu0
  %v2075 = vpop.f32.mrb[0].mxu0
  %v2076 = vadd.f32 %v338, %v2075
  %v2077 = vpop.f32.mrb[0].mxu0
  %2078 = vmatprep.mubr.bf16.mxu0 0
  %2079 = vmatmul.mubr.bf16.gmra.mrb[0].mxu0 %v1239
  %v2080 = vpop.f32.mrb[0].mxu0
  %v2081 = vadd.f32 %v338, %v2080
  %v2082 = vpop.f32.mrb[0].mxu0
  %v2083 = vpop.f32.mrb[0].mxu0
  %v2084 = vadd.f32 %v338, %v2083
  %v2085 = vpop.f32.mrb[0].mxu0
  %2086 = vmatprep.mubr.bf16.mxu0 0
  %2087 = vmatmul.mubr.bf16.gmra.mrb[0].mxu0 %v1242
  %v2088 = vpop.f32.mrb[0].mxu0
  %v2089 = vadd.f32 %v338, %v2088
  %v2090 = vpop.f32.mrb[0].mxu0
  %v2091 = vpop.f32.mrb[0].mxu0
  %v2092 = vadd.f32 %v338, %v2091
  %v2093 = vpop.f32.mrb[0].mxu0
  %2094 = vmatprep.mubr.bf16.mxu0 0
  %2095 = vmatmul.mubr.bf16.gmra.mrb[0].mxu0 %v1245
  %v2096 = vpop.f32.mrb[0].mxu0
  %v2097 = vadd.f32 %v338, %v2096
  %v2098 = vpop.f32.mrb[0].mxu0
  %v2099 = vpop.f32.mrb[0].mxu0
  %v2100 = vadd.f32 %v338, %v2099
  %v2101 = vpop.f32.mrb[0].mxu0
  %2102 = vmatprep.mubr.bf16.mxu0 0
  %2103 = vmatmul.mubr.bf16.gmra.mrb[0].mxu0 %v1248
  %v2104 = vpop.f32.mrb[0].mxu0
  %v2105 = vadd.f32 %v338, %v2104
  %v2106 = vpop.f32.mrb[0].mxu0
  %v2107 = vpop.f32.mrb[0].mxu0
  %v2108 = vadd.f32 %v338, %v2107
  %v2109 = vpop.f32.mrb[0].mxu0
  %2110 = vmatprep.mubr.bf16.mxu0 0
  %2111 = vmatmul.mubr.bf16.gmra.mrb[0].mxu0 %v1251
  %v2112 = vpop.f32.mrb[0].mxu0
  %v2113 = vadd.f32 %v338, %v2112
  %v2114 = vpop.f32.mrb[0].mxu0
  %v2115 = vpop.f32.mrb[0].mxu0
  %v2116 = vadd.f32 %v338, %v2115
  %v2117 = vpop.f32.mrb[0].mxu0
  %2118 = vmatprep.mubr.bf16.mxu0 0
  %2119 = vmatmul.mubr.bf16.gmra.mrb[0].mxu0 %v1254
  %v2120 = vpop.f32.mrb[0].mxu0
  %v2121 = vadd.f32 %v338, %v2120
  %v2122 = vpop.f32.mrb[0].mxu0
  %v2123 = vpop.f32.mrb[0].mxu0
  %v2124 = vadd.f32 %v338, %v2123
  %v2125 = vpop.f32.mrb[0].mxu0
  %2126 = vmatprep.mubr.bf16.mxu0 0
  %2127 = vmatmul.mubr.bf16.gmra.mrb[0].mxu0 %v1257
  %v2128 = vpop.f32.mrb[0].mxu0
  %v2129 = vadd.f32 %v338, %v2128
  %v2130 = vpop.f32.mrb[0].mxu0
  %v2131 = vpop.f32.mrb[0].mxu0
  %v2132 = vadd.f32 %v338, %v2131
  %v2133 = vpop.f32.mrb[0].mxu0
  %2134 = vmatprep.mubr.bf16.mxu0 0
  %2135 = vmatmul.mubr.bf16.gmra.mrb[0].mxu0 %v1260
  %v2136 = vpop.f32.mrb[0].mxu0
  %v2137 = vadd.f32 %v338, %v2136
  %v2138 = vpop.f32.mrb[0].mxu0
  %v2139 = vpop.f32.mrb[0].mxu0
  %v2140 = vadd.f32 %v338, %v2139
  %v2141 = vpop.f32.mrb[0].mxu0
  %2142 = vmatprep.mubr.bf16.mxu0 0
  %2143 = vmatmul.mubr.bf16.gmra.mrb[0].mxu0 %v1263
  %v2144 = vpop.f32.mrb[0].mxu0
  %v2145 = vadd.f32 %v338, %v2144
  %v2146 = vpop.f32.mrb[0].mxu0
  %v2147 = vpop.f32.mrb[0].mxu0
  %v2148 = vadd.f32 %v338, %v2147
  %v2149 = vpop.f32.mrb[0].mxu0
  %2150 = vmatprep.mubr.bf16.mxu0 0
  %2151 = vmatmul.mubr.bf16.gmra.mrb[0].mxu0 %v1266
  %v2152 = vpop.f32.mrb[0].mxu0
  %v2153 = vadd.f32 %v338, %v2152
  %v2154 = vpop.f32.mrb[0].mxu0
  %v2155 = vpop.f32.mrb[0].mxu0
  %v2156 = vadd.f32 %v338, %v2155
  %v2157 = vpop.f32.mrb[0].mxu0
  %2158 = vmatprep.mubr.bf16.mxu0 0
  %2159 = vmatmul.mubr.bf16.gmra.mrb[0].mxu0 %v1269
  %v2160 = vpop.f32.mrb[0].mxu0
  %v2161 = vadd.f32 %v338, %v2160
  %v2162 = vpop.f32.mrb[0].mxu0
  %v2163 = vpop.f32.mrb[0].mxu0
  %v2164 = vadd.f32 %v338, %v2163
  %v2165 = vpop.f32.mrb[0].mxu0
  %2166 = vmatprep.mubr.bf16.mxu0 0
  %2167 = vmatmul.mubr.bf16.gmra.mrb[0].mxu0 %v1272
  %v2168 = vpop.f32.mrb[0].mxu0
  %v2169 = vadd.f32 %v338, %v2168
  %v2170 = vpop.f32.mrb[0].mxu0
  %v2171 = vpop.f32.mrb[0].mxu0
  %v2172 = vadd.f32 %v338, %v2171
  %v2173 = vpop.f32.mrb[0].mxu0
  %2174 = vmatprep.mubr.bf16.mxu0 0
  %2175 = vmatmul.mubr.bf16.gmra.mrb[0].mxu0 %v1275
  %v2176 = vpop.f32.mrb[0].mxu0
  %v2177 = vadd.f32 %v338, %v2176
  %v2178 = vpop.f32.mrb[0].mxu0
  %v2179 = vpop.f32.mrb[0].mxu0
  %v2180 = vadd.f32 %v338, %v2179
  %v2181 = vpop.f32.mrb[0].mxu0
  %2182 = vmatprep.mubr.bf16.mxu0 0
  %2183 = vmatmul.mubr.bf16.gmra.mrb[0].mxu0 %v1278
  %v2184 = vpop.f32.mrb[0].mxu0
  %v2185 = vadd.f32 %v338, %v2184
  %v2186 = vpop.f32.mrb[0].mxu0
  %v2187 = vpop.f32.mrb[0].mxu0
  %v2188 = vadd.f32 %v338, %v2187
  %v2189 = vpop.f32.mrb[0].mxu0
  %2190 = vmatprep.mubr.bf16.mxu0 0
  %2191 = vmatmul.mubr.bf16.gmra.mrb[0].mxu0 %v1281
  %v2192 = vpop.f32.mrb[0].mxu0
  %v2193 = vadd.f32 %v338, %v2192
  %v2194 = vpop.f32.mrb[0].mxu0
  %v2195 = vpop.f32.mrb[0].mxu0
  %v2196 = vadd.f32 %v338, %v2195
  %v2197 = vpop.f32.mrb[0].mxu0
  %2198 = vmatprep.mubr.bf16.mxu0 0
  %2199 = vmatmul.mubr.bf16.gmra.mrb[0].mxu0 %v1284
  %v2200 = vpop.f32.mrb[0].mxu0
  %v2201 = vadd.f32 %v338, %v2200
  %v2202 = vpop.f32.mrb[0].mxu0
  %v2203 = vpop.f32.mrb[0].mxu0
  %v2204 = vadd.f32 %v338, %v2203
  %v2205 = vpop.f32.mrb[0].mxu0
  %2206 = vmatprep.mubr.bf16.mxu0 0
  %2207 = vmatmul.mubr.bf16.gmra.mrb[0].mxu0 %v1287
  %v2208 = vpop.f32.mrb[0].mxu0
  %v2209 = vadd.f32 %v338, %v2208
  %v2210 = vpop.f32.mrb[0].mxu0
  %v2211 = vpop.f32.mrb[0].mxu0
  %v2212 = vadd.f32 %v338, %v2211
  %v2213 = vpop.f32.mrb[0].mxu0
  %2214 = vmatprep.mubr.bf16.mxu0 0
  %2215 = vmatmul.mubr.bf16.gmra.mrb[0].mxu0 %v1290
  %v2216 = vpop.f32.mrb[0].mxu0
  %v2217 = vadd.f32 %v338, %v2216
  %v2218 = vpop.f32.mrb[0].mxu0
  %v2219 = vpop.f32.mrb[0].mxu0
  %v2220 = vadd.f32 %v338, %v2219
  %v2221 = vpop.f32.mrb[0].mxu0
  %2222 = vmatprep.mubr.bf16.mxu0 0
  %2223 = vmatmul.mubr.bf16.gmra.mrb[0].mxu0 %v1293
  %v2224 = vpop.f32.mrb[0].mxu0
  %v2225 = vadd.f32 %v338, %v2224
  %v2226 = vpop.f32.mrb[0].mxu0
  %v2227 = vpop.f32.mrb[0].mxu0
  %v2228 = vadd.f32 %v338, %v2227
  %v2229 = vpop.f32.mrb[0].mxu0
  %2230 = vmatprep.mubr.bf16.mxu0 0
  %2231 = vmatmul.mubr.bf16.gmra.mrb[0].mxu0 %v1296
  %v2232 = vpop.f32.mrb[0].mxu0
  %v2233 = vadd.f32 %v338, %v2232
  %v2234 = vpop.f32.mrb[0].mxu0
  %v2235 = vpop.f32.mrb[0].mxu0
  %v2236 = vadd.f32 %v338, %v2235
  %v2237 = vpop.f32.mrb[0].mxu0
  %2238 = vmatprep.mubr.bf16.mxu0 0
  %2239 = vmatmul.mubr.bf16.gmra.mrb[0].mxu0 %v1299
  %v2240 = vpop.f32.mrb[0].mxu0
  %v2241 = vadd.f32 %v338, %v2240
  %v2242 = vpop.f32.mrb[0].mxu0
  %v2243 = vpop.f32.mrb[0].mxu0
  %v2244 = vadd.f32 %v338, %v2243
  %v2245 = vpop.f32.mrb[0].mxu0
  %2246 = vmatprep.mubr.bf16.mxu0 0
  %2247 = vmatmul.mubr.bf16.gmra.mrb[0].mxu0 %v1302
  %v2248 = vpop.f32.mrb[0].mxu0
  %v2249 = vadd.f32 %v338, %v2248
  %v2250 = vpop.f32.mrb[0].mxu0
  %v2251 = vpop.f32.mrb[0].mxu0
  %v2252 = vadd.f32 %v338, %v2251
  %v2253 = vpop.f32.mrb[0].mxu0
  %2254 = vmatprep.mubr.bf16.mxu0 0
  %2255 = vmatmul.mubr.bf16.gmra.mrb[0].mxu0 %v1305
  %v2256 = vpop.f32.mrb[0].mxu0
  %v2257 = vadd.f32 %v338, %v2256
  %v2258 = vpop.f32.mrb[0].mxu0
  %v2259 = vpop.f32.mrb[0].mxu0
  %v2260 = vadd.f32 %v338, %v2259
  %v2261 = vpop.f32.mrb[0].mxu0
  %2262 = vmatprep.mubr.bf16.mxu0 0
  %2263 = vmatmul.mubr.bf16.gmra.mrb[0].mxu0 %v1308
  %v2264 = vpop.f32.mrb[0].mxu0
  %v2265 = vadd.f32 %v338, %v2264
  %v2266 = vpop.f32.mrb[0].mxu0
  %v2267 = vpop.f32.mrb[0].mxu0
  %v2268 = vadd.f32 %v338, %v2267
  %v2269 = vpop.f32.mrb[0].mxu0
  %2270 = vmatprep.mubr.bf16.mxu0 0
  %2271 = vmatmul.mubr.bf16.gmra.mrb[0].mxu0 %v1311
  %v2272 = vpop.f32.mrb[0].mxu0
  %v2273 = vadd.f32 %v338, %v2272
  %v2274 = vpop.f32.mrb[0].mxu0
  %v2275 = vpop.f32.mrb[0].mxu0
  %v2276 = vadd.f32 %v338, %v2275
  %v2277 = vpop.f32.mrb[0].mxu0
  %2278 = vmatprep.mubr.bf16.mxu0 0
  %2279 = vmatmul.mubr.bf16.gmra.mrb[0].mxu0 %v1314
  %v2280 = vpop.f32.mrb[0].mxu0
  %v2281 = vadd.f32 %v338, %v2280
  %v2282 = vpop.f32.mrb[0].mxu0
  %v2283 = vpop.f32.mrb[0].mxu0
  %v2284 = vadd.f32 %v338, %v2283
  %v2285 = vpop.f32.mrb[0].mxu0
  %2286 = vmatprep.mubr.bf16.mxu0 0
  %2287 = vmatmul.mubr.bf16.gmra.mrb[0].mxu0 %v1317
  %v2288 = vpop.f32.mrb[0].mxu0
  %v2289 = vadd.f32 %v338, %v2288
  %v2290 = vpop.f32.mrb[0].mxu0
  %v2291 = vpop.f32.mrb[0].mxu0
  %v2292 = vadd.f32 %v338, %v2291
  %v2293 = vpop.f32.mrb[0].mxu0
  %2294 = vmatprep.mubr.bf16.mxu0 0
  %2295 = vmatmul.mubr.bf16.gmra.mrb[0].mxu0 %v1320
  %v2296 = vpop.f32.mrb[0].mxu0
  %v2297 = vadd.f32 %v338, %v2296
  %v2298 = vpop.f32.mrb[0].mxu0
  %v2299 = vpop.f32.mrb[0].mxu0
  %v2300 = vadd.f32 %v338, %v2299
  %v2301 = vpop.f32.mrb[0].mxu0
  %2302 = vmatprep.mubr.bf16.mxu0 0
  %2303 = vmatmul.mubr.bf16.gmra.mrb[0].mxu0 %v1323
  %v2304 = vpop.f32.mrb[0].mxu0
  %v2305 = vadd.f32 %v338, %v2304
  %v2306 = vpop.f32.mrb[0].mxu0
  %v2307 = vpop.f32.mrb[0].mxu0
  %v2308 = vadd.f32 %v338, %v2307
  %v2309 = vpop.f32.mrb[0].mxu0
  %2310 = vmatprep.mubr.bf16.mxu0 0
  %2311 = vmatmul.mubr.bf16.gmra.mrb[0].mxu0 %v1326
  %v2312 = vpop.f32.mrb[0].mxu0
  %v2313 = vadd.f32 %v338, %v2312
  %v2314 = vpop.f32.mrb[0].mxu0
  %v2315 = vpop.f32.mrb[0].mxu0
  %v2316 = vadd.f32 %v338, %v2315
  %v2317 = vpop.f32.mrb[0].mxu0
  %2318 = vmatprep.mubr.bf16.mxu0 0
  %2319 = vmatmul.mubr.bf16.gmra.mrb[0].mxu0 %v1329
  %v2320 = vpop.f32.mrb[0].mxu0
  %v2321 = vadd.f32 %v338, %v2320
  %v2322 = vpop.f32.mrb[0].mxu0
  %v2323 = vpop.f32.mrb[0].mxu0
  %v2324 = vadd.f32 %v338, %v2323
  %v2325 = vpop.f32.mrb[0].mxu0
  %2326 = vmatprep.mubr.bf16.mxu0 0
  %2327 = vmatmul.mubr.bf16.gmra.mrb[0].mxu0 %v1332
  %v2328 = vpop.f32.mrb[0].mxu0
  %v2329 = vadd.f32 %v338, %v2328
  %v2330 = vpop.f32.mrb[0].mxu0
  %v2331 = vpop.f32.mrb[0].mxu0
  %v2332 = vadd.f32 %v338, %v2331
  %v2333 = vpop.f32.mrb[0].mxu0
  %2334 = vmatprep.mubr.bf16.mxu0 0
  %2335 = vmatmul.mubr.bf16.gmra.mrb[0].mxu0 %v1335
  %v2336 = vpop.f32.mrb[0].mxu0
  %v2337 = vadd.f32 %v338, %v2336
  %v2338 = vpop.f32.mrb[0].mxu0
  %v2339 = vpop.f32.mrb[0].mxu0
  %v2340 = vadd.f32 %v338, %v2339
  %v2341 = vpop.f32.mrb[0].mxu0
  %2342 = vmatprep.mubr.bf16.mxu0 0
  %2343 = vmatmul.mubr.bf16.gmra.mrb[0].mxu0 %v1338
  %v2344 = vpop.f32.mrb[0].mxu0
  %v2345 = vadd.f32 %v338, %v2344
  %v2346 = vpop.f32.mrb[0].mxu0
  %v2347 = vpop.f32.mrb[0].mxu0
  %v2348 = vadd.f32 %v338, %v2347
  %v2349 = vpop.f32.mrb[0].mxu0
  %2350 = vmatprep.mubr.bf16.mxu0 0
  %2351 = vmatmul.mubr.bf16.gmra.mrb[0].mxu0 %v1341
  %v2352 = vpop.f32.mrb[0].mxu0
  %v2353 = vadd.f32 %v338, %v2352
  %v2354 = vpop.f32.mrb[0].mxu0
  %v2355 = vpop.f32.mrb[0].mxu0
  %v2356 = vadd.f32 %v338, %v2355
  %v2357 = vpop.f32.mrb[0].mxu0
  %2358 = vmatprep.mubr.bf16.mxu0 0
  %2359 = vmatmul.mubr.bf16.gmra.mrb[0].mxu0 %v1344
  %v2360 = vpop.f32.mrb[0].mxu0
  %v2361 = vadd.f32 %v338, %v2360
  %v2362 = vpop.f32.mrb[0].mxu0
  %v2363 = vpop.f32.mrb[0].mxu0
  %v2364 = vadd.f32 %v338, %v2363
  %v2365 = vpop.f32.mrb[0].mxu0
  %2366 = vmatprep.mubr.bf16.mxu0 0
  %2367 = vmatmul.mubr.bf16.gmra.mrb[0].mxu0 %v1347
  %v2368 = vpop.f32.mrb[0].mxu0
  %v2369 = vadd.f32 %v338, %v2368
  %v2370 = vpop.f32.mrb[0].mxu0
  %v2371 = vpop.f32.mrb[0].mxu0
  %v2372 = vadd.f32 %v338, %v2371
  %v2373 = vpop.f32.mrb[0].mxu0
  %2374 = vmatprep.mubr.bf16.mxu0 0
  %2375 = vmatmul.mubr.bf16.gmra.mrb[0].mxu0 %v1350
  %v2376 = vpop.f32.mrb[0].mxu0
  %v2377 = vadd.f32 %v338, %v2376
  %v2378 = vpop.f32.mrb[0].mxu0
  %v2379 = vpop.f32.mrb[0].mxu0
  %v2380 = vadd.f32 %v338, %v2379
  %v2381 = vpop.f32.mrb[0].mxu0
  %2382 = vmatprep.mubr.bf16.mxu0 0
  %2383 = vmatmul.mubr.bf16.gmra.mrb[0].mxu0 %v1353
  %v2384 = vpop.f32.mrb[0].mxu0
  %v2385 = vadd.f32 %v338, %v2384
  %v2386 = vpop.f32.mrb[0].mxu0
  %v2387 = vpop.f32.mrb[0].mxu0
  %v2388 = vadd.f32 %v338, %v2387
  %v2389 = vpop.f32.mrb[0].mxu0
  %2390 = vmatprep.mubr.bf16.mxu0 0
  %2391 = vmatmul.mubr.bf16.gmra.mrb[0].mxu0 %v1356
  %v2392 = vpop.f32.mrb[0].mxu0
  %v2393 = vadd.f32 %v338, %v2392
  %v2394 = vpop.f32.mrb[0].mxu0
  %v2395 = vpop.f32.mrb[0].mxu0
  %v2396 = vadd.f32 %v338, %v2395
  %v2397 = vpop.f32.mrb[0].mxu0
  %2398 = vmatprep.mubr.bf16.mxu0 0
  %2399 = vmatmul.mubr.bf16.gmra.mrb[0].mxu0 %v1359
  %v2400 = vpop.f32.mrb[0].mxu0
  %v2401 = vadd.f32 %v338, %v2400
  %v2402 = vpop.f32.mrb[0].mxu0
  %v2403 = vpop.f32.mrb[0].mxu0
  %v2404 = vadd.f32 %v338, %v2403
  %v2405 = vpop.f32.mrb[0].mxu0
  %2406 = vmatprep.mubr.bf16.mxu0 0
  %2407 = vmatmul.mubr.bf16.gmra.mrb[0].mxu0 %v1362
  %v2408 = vpop.f32.mrb[0].mxu0
  %v2409 = vadd.f32 %v338, %v2408
  %v2410 = vpop.f32.mrb[0].mxu0
  %v2411 = vpop.f32.mrb[0].mxu0
  %v2412 = vadd.f32 %v338, %v2411
  %v2413 = vpop.f32.mrb[0].mxu0
  %2414 = vmatprep.mubr.bf16.mxu0 0
  %2415 = vmatmul.mubr.bf16.gmra.mrb[0].mxu0 %v1365
  %v2416 = vpop.f32.mrb[0].mxu0
  %v2417 = vadd.f32 %v338, %v2416
  %v2418 = vpop.f32.mrb[0].mxu0
  %v2419 = vpop.f32.mrb[0].mxu0
  %v2420 = vadd.f32 %v338, %v2419
  %v2421 = vpop.f32.mrb[0].mxu0
  %2422 = vmatprep.mubr.bf16.mxu0 0
  %2423 = vmatmul.mubr.bf16.gmra.mrb[0].mxu0 %v1368
  %v2424 = vpop.f32.mrb[0].mxu0
  %v2425 = vadd.f32 %v338, %v2424
  %v2426 = vpop.f32.mrb[0].mxu0
  %v2427 = vpop.f32.mrb[0].mxu0
  %v2428 = vadd.f32 %v338, %v2427
  %v2429 = vpop.f32.mrb[0].mxu0
  %2430 = vdwg.mxu0
  %v2431 = vsub.f32 0.0, %v1409
  %v2432 = vsub.f32 0.0, %v1412
  %v2433 = vsub.f32 0.0, %v1417
  %v2434 = vsub.f32 0.0, %v1420
  %v2435 = vsub.f32 0.0, %v1425
  %v2436 = vsub.f32 0.0, %v1428
  %v2437 = vsub.f32 0.0, %v1433
  %v2438 = vsub.f32 0.0, %v1436
  %v2439 = vsub.f32 0.0, %v1441
  %v2440 = vsub.f32 0.0, %v1444
  %v2441 = vsub.f32 0.0, %v1449
  %v2442 = vsub.f32 0.0, %v1452
  %v2443 = vsub.f32 0.0, %v1457
  %v2444 = vsub.f32 0.0, %v1460
  %v2445 = vsub.f32 0.0, %v1465
  %v2446 = vsub.f32 0.0, %v1468
  %v2447 = vsub.f32 0.0, %v1473
  %v2448 = vsub.f32 0.0, %v1476
  %v2449 = vsub.f32 0.0, %v1481
  %v2450 = vsub.f32 0.0, %v1484
  %v2451 = vsub.f32 0.0, %v1489
  %v2452 = vsub.f32 0.0, %v1492
  %v2453 = vsub.f32 0.0, %v1497
  %v2454 = vsub.f32 0.0, %v1500
  %v2455 = vsub.f32 0.0, %v1505
  %v2456 = vsub.f32 0.0, %v1508
  %v2457 = vsub.f32 0.0, %v1513
  %v2458 = vsub.f32 0.0, %v1516
  %v2459 = vsub.f32 0.0, %v1521
  %v2460 = vsub.f32 0.0, %v1524
  %v2461 = vsub.f32 0.0, %v1529
  %v2462 = vsub.f32 0.0, %v1532
  %v2463 = vsub.f32 0.0, %v1537
  %v2464 = vsub.f32 0.0, %v1540
  %v2465 = vsub.f32 0.0, %v1545
  %v2466 = vsub.f32 0.0, %v1548
  %v2467 = vsub.f32 0.0, %v1553
  %v2468 = vsub.f32 0.0, %v1556
  %v2469 = vsub.f32 0.0, %v1561
  %v2470 = vsub.f32 0.0, %v1564
  %v2471 = vsub.f32 0.0, %v1569
  %v2472 = vsub.f32 0.0, %v1572
  %v2473 = vsub.f32 0.0, %v1577
  %v2474 = vsub.f32 0.0, %v1580
  %v2475 = vsub.f32 0.0, %v1585
  %v2476 = vsub.f32 0.0, %v1588
  %v2477 = vsub.f32 0.0, %v1593
  %v2478 = vsub.f32 0.0, %v1596
  %v2479 = vsub.f32 0.0, %v1601
  %v2480 = vsub.f32 0.0, %v1604
  %v2481 = vsub.f32 0.0, %v1609
  %v2482 = vsub.f32 0.0, %v1612
  %v2483 = vsub.f32 0.0, %v1617
  %v2484 = vsub.f32 0.0, %v1620
  %v2485 = vsub.f32 0.0, %v1625
  %v2486 = vsub.f32 0.0, %v1628
  %v2487 = vsub.f32 0.0, %v1633
  %v2488 = vsub.f32 0.0, %v1636
  %v2489 = vsub.f32 0.0, %v1641
  %v2490 = vsub.f32 0.0, %v1644
  %v2491 = vsub.f32 0.0, %v1649
  %v2492 = vsub.f32 0.0, %v1652
  %v2493 = vsub.f32 0.0, %v1657
  %v2494 = vsub.f32 0.0, %v1660
  %v2495 = vsub.f32 0.0, %v1665
  %v2496 = vsub.f32 0.0, %v1668
  %v2497 = vsub.f32 0.0, %v1673
  %v2498 = vsub.f32 0.0, %v1676
  %v2499 = vsub.f32 0.0, %v1681
  %v2500 = vsub.f32 0.0, %v1684
  %v2501 = vsub.f32 0.0, %v1689
  %v2502 = vsub.f32 0.0, %v1692
  %v2503 = vsub.f32 0.0, %v1697
  %v2504 = vsub.f32 0.0, %v1700
  %v2505 = vsub.f32 0.0, %v1705
  %v2506 = vsub.f32 0.0, %v1708
  %v2507 = vsub.f32 0.0, %v1713
  %v2508 = vsub.f32 0.0, %v1716
  %v2509 = vsub.f32 0.0, %v1721
  %v2510 = vsub.f32 0.0, %v1724
  %v2511 = vsub.f32 0.0, %v1729
  %v2512 = vsub.f32 0.0, %v1732
  %v2513 = vsub.f32 0.0, %v1737
  %v2514 = vsub.f32 0.0, %v1740
  %v2515 = vsub.f32 0.0, %v1745
  %v2516 = vsub.f32 0.0, %v1748
  %v2517 = vsub.f32 0.0, %v1753
  %v2518 = vsub.f32 0.0, %v1756
  %v2519 = vsub.f32 0.0, %v1761
  %v2520 = vsub.f32 0.0, %v1764
  %v2521 = vsub.f32 0.0, %v1769
  %v2522 = vsub.f32 0.0, %v1772
  %v2523 = vsub.f32 0.0, %v1777
  %v2524 = vsub.f32 0.0, %v1780
  %v2525 = vsub.f32 0.0, %v1785
  %v2526 = vsub.f32 0.0, %v1788
  %v2527 = vsub.f32 0.0, %v1793
  %v2528 = vsub.f32 0.0, %v1796
  %v2529 = vsub.f32 0.0, %v1801
  %v2530 = vsub.f32 0.0, %v1804
  %v2531 = vsub.f32 0.0, %v1809
  %v2532 = vsub.f32 0.0, %v1812
  %v2533 = vsub.f32 0.0, %v1817
  %v2534 = vsub.f32 0.0, %v1820
  %v2535 = vsub.f32 0.0, %v1825
  %v2536 = vsub.f32 0.0, %v1828
  %v2537 = vsub.f32 0.0, %v1833
  %v2538 = vsub.f32 0.0, %v1836
  %v2539 = vsub.f32 0.0, %v1841
  %v2540 = vsub.f32 0.0, %v1844
  %v2541 = vsub.f32 0.0, %v1849
  %v2542 = vsub.f32 0.0, %v1852
  %v2543 = vsub.f32 0.0, %v1857
  %v2544 = vsub.f32 0.0, %v1860
  %v2545 = vsub.f32 0.0, %v1865
  %v2546 = vsub.f32 0.0, %v1868
  %v2547 = vsub.f32 0.0, %v1873
  %v2548 = vsub.f32 0.0, %v1876
  %v2549 = vsub.f32 0.0, %v1881
  %v2550 = vsub.f32 0.0, %v1884
  %v2551 = vsub.f32 0.0, %v1889
  %v2552 = vsub.f32 0.0, %v1892
  %v2553 = vsub.f32 0.0, %v1897
  %v2554 = vsub.f32 0.0, %v1900
  %v2555 = vsub.f32 0.0, %v1905
  %v2556 = vsub.f32 0.0, %v1908
  %v2557 = vsub.f32 0.0, %v1913
  %v2558 = vsub.f32 0.0, %v1916
  %v2559 = vsub.f32 0.0, %v1921
  %v2560 = vsub.f32 0.0, %v1924
  %v2561 = vsub.f32 0.0, %v1929
  %v2562 = vsub.f32 0.0, %v1932
  %v2563 = vsub.f32 0.0, %v1937
  %v2564 = vsub.f32 0.0, %v1940
  %v2565 = vsub.f32 0.0, %v1945
  %v2566 = vsub.f32 0.0, %v1948
  %v2567 = vsub.f32 0.0, %v1953
  %v2568 = vsub.f32 0.0, %v1956
  %v2569 = vsub.f32 0.0, %v1961
  %v2570 = vsub.f32 0.0, %v1964
  %v2571 = vsub.f32 0.0, %v1969
  %v2572 = vsub.f32 0.0, %v1972
  %v2573 = vsub.f32 0.0, %v1977
  %v2574 = vsub.f32 0.0, %v1980
  %v2575 = vsub.f32 0.0, %v1985
  %v2576 = vsub.f32 0.0, %v1988
  %v2577 = vsub.f32 0.0, %v1993
  %v2578 = vsub.f32 0.0, %v1996
  %v2579 = vsub.f32 0.0, %v2001
  %v2580 = vsub.f32 0.0, %v2004
  %v2581 = vsub.f32 0.0, %v2009
  %v2582 = vsub.f32 0.0, %v2012
  %v2583 = vsub.f32 0.0, %v2017
  %v2584 = vsub.f32 0.0, %v2020
  %v2585 = vsub.f32 0.0, %v2025
  %v2586 = vsub.f32 0.0, %v2028
  %v2587 = vsub.f32 0.0, %v2033
  %v2588 = vsub.f32 0.0, %v2036
  %v2589 = vsub.f32 0.0, %v2041
  %v2590 = vsub.f32 0.0, %v2044
  %v2591 = vsub.f32 0.0, %v2049
  %v2592 = vsub.f32 0.0, %v2052
  %v2593 = vsub.f32 0.0, %v2057
  %v2594 = vsub.f32 0.0, %v2060
  %v2595 = vsub.f32 0.0, %v2065
  %v2596 = vsub.f32 0.0, %v2068
  %v2597 = vsub.f32 0.0, %v2073
  %v2598 = vsub.f32 0.0, %v2076
  %v2599 = vsub.f32 0.0, %v2081
  %v2600 = vsub.f32 0.0, %v2084
  %v2601 = vsub.f32 0.0, %v2089
  %v2602 = vsub.f32 0.0, %v2092
  %v2603 = vsub.f32 0.0, %v2097
  %v2604 = vsub.f32 0.0, %v2100
  %v2605 = vsub.f32 0.0, %v2105
  %v2606 = vsub.f32 0.0, %v2108
  %v2607 = vsub.f32 0.0, %v2113
  %v2608 = vsub.f32 0.0, %v2116
  %v2609 = vsub.f32 0.0, %v2121
  %v2610 = vsub.f32 0.0, %v2124
  %v2611 = vsub.f32 0.0, %v2129
  %v2612 = vsub.f32 0.0, %v2132
  %v2613 = vsub.f32 0.0, %v2137
  %v2614 = vsub.f32 0.0, %v2140
  %v2615 = vsub.f32 0.0, %v2145
  %v2616 = vsub.f32 0.0, %v2148
  %v2617 = vsub.f32 0.0, %v2153
  %v2618 = vsub.f32 0.0, %v2156
  %v2619 = vsub.f32 0.0, %v2161
  %v2620 = vsub.f32 0.0, %v2164
  %v2621 = vsub.f32 0.0, %v2169
  %v2622 = vsub.f32 0.0, %v2172
  %v2623 = vsub.f32 0.0, %v2177
  %v2624 = vsub.f32 0.0, %v2180
  %v2625 = vsub.f32 0.0, %v2185
  %v2626 = vsub.f32 0.0, %v2188
  %v2627 = vsub.f32 0.0, %v2193
  %v2628 = vsub.f32 0.0, %v2196
  %v2629 = vsub.f32 0.0, %v2201
  %v2630 = vsub.f32 0.0, %v2204
  %v2631 = vsub.f32 0.0, %v2209
  %v2632 = vsub.f32 0.0, %v2212
  %v2633 = vsub.f32 0.0, %v2217
  %v2634 = vsub.f32 0.0, %v2220
  %v2635 = vsub.f32 0.0, %v2225
  %v2636 = vsub.f32 0.0, %v2228
  %v2637 = vsub.f32 0.0, %v2233
  %v2638 = vsub.f32 0.0, %v2236
  %v2639 = vsub.f32 0.0, %v2241
  %v2640 = vsub.f32 0.0, %v2244
  %v2641 = vsub.f32 0.0, %v2249
  %v2642 = vsub.f32 0.0, %v2252
  %v2643 = vsub.f32 0.0, %v2257
  %v2644 = vsub.f32 0.0, %v2260
  %v2645 = vsub.f32 0.0, %v2265
  %v2646 = vsub.f32 0.0, %v2268
  %v2647 = vsub.f32 0.0, %v2273
  %v2648 = vsub.f32 0.0, %v2276
  %v2649 = vsub.f32 0.0, %v2281
  %v2650 = vsub.f32 0.0, %v2284
  %v2651 = vsub.f32 0.0, %v2289
  %v2652 = vsub.f32 0.0, %v2292
  %v2653 = vsub.f32 0.0, %v2297
  %v2654 = vsub.f32 0.0, %v2300
  %v2655 = vsub.f32 0.0, %v2305
  %v2656 = vsub.f32 0.0, %v2308
  %v2657 = vsub.f32 0.0, %v2313
  %v2658 = vsub.f32 0.0, %v2316
  %v2659 = vsub.f32 0.0, %v2321
  %v2660 = vsub.f32 0.0, %v2324
  %v2661 = vsub.f32 0.0, %v2329
  %v2662 = vsub.f32 0.0, %v2332
  %v2663 = vsub.f32 0.0, %v2337
  %v2664 = vsub.f32 0.0, %v2340
  %v2665 = vsub.f32 0.0, %v2345
  %v2666 = vsub.f32 0.0, %v2348
  %v2667 = vsub.f32 0.0, %v2353
  %v2668 = vsub.f32 0.0, %v2356
  %v2669 = vsub.f32 0.0, %v2361
  %v2670 = vsub.f32 0.0, %v2364
  %v2671 = vsub.f32 0.0, %v2369
  %v2672 = vsub.f32 0.0, %v2372
  %v2673 = vsub.f32 0.0, %v2377
  %v2674 = vsub.f32 0.0, %v2380
  %v2675 = vsub.f32 0.0, %v2385
  %v2676 = vsub.f32 0.0, %v2388
  %v2677 = vsub.f32 0.0, %v2393
  %v2678 = vsub.f32 0.0, %v2396
  %v2679 = vsub.f32 0.0, %v2401
  %v2680 = vsub.f32 0.0, %v2404
  %v2681 = vsub.f32 0.0, %v2409
  %v2682 = vsub.f32 0.0, %v2412
  %v2683 = vsub.f32 0.0, %v2417
  %v2684 = vsub.f32 0.0, %v2420
  %v2685 = vsub.f32 0.0, %v2425
  %v2686 = vsub.f32 0.0, %v2428
  %v2687 = vmul.f32 %v2431, 1.442695
  %v2688 = vpow.pop %v2687
  %v2689 = vmul.f32 %v2432, 1.442695
  %v2690 = vpow.pop %v2689
  %v2691 = vmul.f32 %v2433, 1.442695
  %v2692 = vpow.pop %v2691
  %v2693 = vmul.f32 %v2434, 1.442695
  %v2694 = vpow.pop %v2693
  %v2695 = vmul.f32 %v2435, 1.442695
  %v2696 = vpow.pop %v2695
  %v2697 = vmul.f32 %v2436, 1.442695
  %v2698 = vpow.pop %v2697
  %v2699 = vmul.f32 %v2437, 1.442695
  %v2700 = vpow.pop %v2699
  %v2701 = vmul.f32 %v2438, 1.442695
  %v2702 = vpow.pop %v2701
  %v2703 = vmul.f32 %v2439, 1.442695
  %v2704 = vpow.pop %v2703
  %v2705 = vmul.f32 %v2440, 1.442695
  %v2706 = vpow.pop %v2705
  %v2707 = vmul.f32 %v2441, 1.442695
  %v2708 = vpow.pop %v2707
  %v2709 = vmul.f32 %v2442, 1.442695
  %v2710 = vpow.pop %v2709
  %v2711 = vmul.f32 %v2443, 1.442695
  %v2712 = vpow.pop %v2711
  %v2713 = vmul.f32 %v2444, 1.442695
  %v2714 = vpow.pop %v2713
  %v2715 = vmul.f32 %v2445, 1.442695
  %v2716 = vpow.pop %v2715
  %v2717 = vmul.f32 %v2446, 1.442695
  %v2718 = vpow.pop %v2717
  %v2719 = vmul.f32 %v2447, 1.442695
  %v2720 = vpow.pop %v2719
  %v2721 = vmul.f32 %v2448, 1.442695
  %v2722 = vpow.pop %v2721
  %v2723 = vmul.f32 %v2449, 1.442695
  %v2724 = vpow.pop %v2723
  %v2725 = vmul.f32 %v2450, 1.442695
  %v2726 = vpow.pop %v2725
  %v2727 = vmul.f32 %v2451, 1.442695
  %v2728 = vpow.pop %v2727
  %v2729 = vmul.f32 %v2452, 1.442695
  %v2730 = vpow.pop %v2729
  %v2731 = vmul.f32 %v2453, 1.442695
  %v2732 = vpow.pop %v2731
  %v2733 = vmul.f32 %v2454, 1.442695
  %v2734 = vpow.pop %v2733
  %v2735 = vmul.f32 %v2455, 1.442695
  %v2736 = vpow.pop %v2735
  %v2737 = vmul.f32 %v2456, 1.442695
  %v2738 = vpow.pop %v2737
  %v2739 = vmul.f32 %v2457, 1.442695
  %v2740 = vpow.pop %v2739
  %v2741 = vmul.f32 %v2458, 1.442695
  %v2742 = vpow.pop %v2741
  %v2743 = vmul.f32 %v2459, 1.442695
  %v2744 = vpow.pop %v2743
  %v2745 = vmul.f32 %v2460, 1.442695
  %v2746 = vpow.pop %v2745
  %v2747 = vmul.f32 %v2461, 1.442695
  %v2748 = vpow.pop %v2747
  %v2749 = vmul.f32 %v2462, 1.442695
  %v2750 = vpow.pop %v2749
  %v2751 = vmul.f32 %v2463, 1.442695
  %v2752 = vpow.pop %v2751
  %v2753 = vmul.f32 %v2464, 1.442695
  %v2754 = vpow.pop %v2753
  %v2755 = vmul.f32 %v2465, 1.442695
  %v2756 = vpow.pop %v2755
  %v2757 = vmul.f32 %v2466, 1.442695
  %v2758 = vpow.pop %v2757
  %v2759 = vmul.f32 %v2467, 1.442695
  %v2760 = vpow.pop %v2759
  %v2761 = vmul.f32 %v2468, 1.442695
  %v2762 = vpow.pop %v2761
  %v2763 = vmul.f32 %v2469, 1.442695
  %v2764 = vpow.pop %v2763
  %v2765 = vmul.f32 %v2470, 1.442695
  %v2766 = vpow.pop %v2765
  %v2767 = vmul.f32 %v2471, 1.442695
  %v2768 = vpow.pop %v2767
  %v2769 = vmul.f32 %v2472, 1.442695
  %v2770 = vpow.pop %v2769
  %v2771 = vmul.f32 %v2473, 1.442695
  %v2772 = vpow.pop %v2771
  %v2773 = vmul.f32 %v2474, 1.442695
  %v2774 = vpow.pop %v2773
  %v2775 = vmul.f32 %v2475, 1.442695
  %v2776 = vpow.pop %v2775
  %v2777 = vmul.f32 %v2476, 1.442695
  %v2778 = vpow.pop %v2777
  %v2779 = vmul.f32 %v2477, 1.442695
  %v2780 = vpow.pop %v2779
  %v2781 = vmul.f32 %v2478, 1.442695
  %v2782 = vpow.pop %v2781
  %v2783 = vmul.f32 %v2479, 1.442695
  %v2784 = vpow.pop %v2783
  %v2785 = vmul.f32 %v2480, 1.442695
  %v2786 = vpow.pop %v2785
  %v2787 = vmul.f32 %v2481, 1.442695
  %v2788 = vpow.pop %v2787
  %v2789 = vmul.f32 %v2482, 1.442695
  %v2790 = vpow.pop %v2789
  %v2791 = vmul.f32 %v2483, 1.442695
  %v2792 = vpow.pop %v2791
  %v2793 = vmul.f32 %v2484, 1.442695
  %v2794 = vpow.pop %v2793
  %v2795 = vmul.f32 %v2485, 1.442695
  %v2796 = vpow.pop %v2795
  %v2797 = vmul.f32 %v2486, 1.442695
  %v2798 = vpow.pop %v2797
  %v2799 = vmul.f32 %v2487, 1.442695
  %v2800 = vpow.pop %v2799
  %v2801 = vmul.f32 %v2488, 1.442695
  %v2802 = vpow.pop %v2801
  %v2803 = vmul.f32 %v2489, 1.442695
  %v2804 = vpow.pop %v2803
  %v2805 = vmul.f32 %v2490, 1.442695
  %v2806 = vpow.pop %v2805
  %v2807 = vmul.f32 %v2491, 1.442695
  %v2808 = vpow.pop %v2807
  %v2809 = vmul.f32 %v2492, 1.442695
  %v2810 = vpow.pop %v2809
  %v2811 = vmul.f32 %v2493, 1.442695
  %v2812 = vpow.pop %v2811
  %v2813 = vmul.f32 %v2494, 1.442695
  %v2814 = vpow.pop %v2813
  %v2815 = vmul.f32 %v2495, 1.442695
  %v2816 = vpow.pop %v2815
  %v2817 = vmul.f32 %v2496, 1.442695
  %v2818 = vpow.pop %v2817
  %v2819 = vmul.f32 %v2497, 1.442695
  %v2820 = vpow.pop %v2819
  %v2821 = vmul.f32 %v2498, 1.442695
  %v2822 = vpow.pop %v2821
  %v2823 = vmul.f32 %v2499, 1.442695
  %v2824 = vpow.pop %v2823
  %v2825 = vmul.f32 %v2500, 1.442695
  %v2826 = vpow.pop %v2825
  %v2827 = vmul.f32 %v2501, 1.442695
  %v2828 = vpow.pop %v2827
  %v2829 = vmul.f32 %v2502, 1.442695
  %v2830 = vpow.pop %v2829
  %v2831 = vmul.f32 %v2503, 1.442695
  %v2832 = vpow.pop %v2831
  %v2833 = vmul.f32 %v2504, 1.442695
  %v2834 = vpow.pop %v2833
  %v2835 = vmul.f32 %v2505, 1.442695
  %v2836 = vpow.pop %v2835
  %v2837 = vmul.f32 %v2506, 1.442695
  %v2838 = vpow.pop %v2837
  %v2839 = vmul.f32 %v2507, 1.442695
  %v2840 = vpow.pop %v2839
  %v2841 = vmul.f32 %v2508, 1.442695
  %v2842 = vpow.pop %v2841
  %v2843 = vmul.f32 %v2509, 1.442695
  %v2844 = vpow.pop %v2843
  %v2845 = vmul.f32 %v2510, 1.442695
  %v2846 = vpow.pop %v2845
  %v2847 = vmul.f32 %v2511, 1.442695
  %v2848 = vpow.pop %v2847
  %v2849 = vmul.f32 %v2512, 1.442695
  %v2850 = vpow.pop %v2849
  %v2851 = vmul.f32 %v2513, 1.442695
  %v2852 = vpow.pop %v2851
  %v2853 = vmul.f32 %v2514, 1.442695
  %v2854 = vpow.pop %v2853
  %v2855 = vmul.f32 %v2515, 1.442695
  %v2856 = vpow.pop %v2855
  %v2857 = vmul.f32 %v2516, 1.442695
  %v2858 = vpow.pop %v2857
  %v2859 = vmul.f32 %v2517, 1.442695
  %v2860 = vpow.pop %v2859
  %v2861 = vmul.f32 %v2518, 1.442695
  %v2862 = vpow.pop %v2861
  %v2863 = vmul.f32 %v2519, 1.442695
  %v2864 = vpow.pop %v2863
  %v2865 = vmul.f32 %v2520, 1.442695
  %v2866 = vpow.pop %v2865
  %v2867 = vmul.f32 %v2521, 1.442695
  %v2868 = vpow.pop %v2867
  %v2869 = vmul.f32 %v2522, 1.442695
  %v2870 = vpow.pop %v2869
  %v2871 = vmul.f32 %v2523, 1.442695
  %v2872 = vpow.pop %v2871
  %v2873 = vmul.f32 %v2524, 1.442695
  %v2874 = vpow.pop %v2873
  %v2875 = vmul.f32 %v2525, 1.442695
  %v2876 = vpow.pop %v2875
  %v2877 = vmul.f32 %v2526, 1.442695
  %v2878 = vpow.pop %v2877
  %v2879 = vmul.f32 %v2527, 1.442695
  %v2880 = vpow.pop %v2879
  %v2881 = vmul.f32 %v2528, 1.442695
  %v2882 = vpow.pop %v2881
  %v2883 = vmul.f32 %v2529, 1.442695
  %v2884 = vpow.pop %v2883
  %v2885 = vmul.f32 %v2530, 1.442695
  %v2886 = vpow.pop %v2885
  %v2887 = vmul.f32 %v2531, 1.442695
  %v2888 = vpow.pop %v2887
  %v2889 = vmul.f32 %v2532, 1.442695
  %v2890 = vpow.pop %v2889
  %v2891 = vmul.f32 %v2533, 1.442695
  %v2892 = vpow.pop %v2891
  %v2893 = vmul.f32 %v2534, 1.442695
  %v2894 = vpow.pop %v2893
  %v2895 = vmul.f32 %v2535, 1.442695
  %v2896 = vpow.pop %v2895
  %v2897 = vmul.f32 %v2536, 1.442695
  %v2898 = vpow.pop %v2897
  %v2899 = vmul.f32 %v2537, 1.442695
  %v2900 = vpow.pop %v2899
  %v2901 = vmul.f32 %v2538, 1.442695
  %v2902 = vpow.pop %v2901
  %v2903 = vmul.f32 %v2539, 1.442695
  %v2904 = vpow.pop %v2903
  %v2905 = vmul.f32 %v2540, 1.442695
  %v2906 = vpow.pop %v2905
  %v2907 = vmul.f32 %v2541, 1.442695
  %v2908 = vpow.pop %v2907
  %v2909 = vmul.f32 %v2542, 1.442695
  %v2910 = vpow.pop %v2909
  %v2911 = vmul.f32 %v2543, 1.442695
  %v2912 = vpow.pop %v2911
  %v2913 = vmul.f32 %v2544, 1.442695
  %v2914 = vpow.pop %v2913
  %v2915 = vmul.f32 %v2545, 1.442695
  %v2916 = vpow.pop %v2915
  %v2917 = vmul.f32 %v2546, 1.442695
  %v2918 = vpow.pop %v2917
  %v2919 = vmul.f32 %v2547, 1.442695
  %v2920 = vpow.pop %v2919
  %v2921 = vmul.f32 %v2548, 1.442695
  %v2922 = vpow.pop %v2921
  %v2923 = vmul.f32 %v2549, 1.442695
  %v2924 = vpow.pop %v2923
  %v2925 = vmul.f32 %v2550, 1.442695
  %v2926 = vpow.pop %v2925
  %v2927 = vmul.f32 %v2551, 1.442695
  %v2928 = vpow.pop %v2927
  %v2929 = vmul.f32 %v2552, 1.442695
  %v2930 = vpow.pop %v2929
  %v2931 = vmul.f32 %v2553, 1.442695
  %v2932 = vpow.pop %v2931
  %v2933 = vmul.f32 %v2554, 1.442695
  %v2934 = vpow.pop %v2933
  %v2935 = vmul.f32 %v2555, 1.442695
  %v2936 = vpow.pop %v2935
  %v2937 = vmul.f32 %v2556, 1.442695
  %v2938 = vpow.pop %v2937
  %v2939 = vmul.f32 %v2557, 1.442695
  %v2940 = vpow.pop %v2939
  %v2941 = vmul.f32 %v2558, 1.442695
  %v2942 = vpow.pop %v2941
  %v2943 = vmul.f32 %v2559, 1.442695
  %v2944 = vpow.pop %v2943
  %v2945 = vmul.f32 %v2560, 1.442695
  %v2946 = vpow.pop %v2945
  %v2947 = vmul.f32 %v2561, 1.442695
  %v2948 = vpow.pop %v2947
  %v2949 = vmul.f32 %v2562, 1.442695
  %v2950 = vpow.pop %v2949
  %v2951 = vmul.f32 %v2563, 1.442695
  %v2952 = vpow.pop %v2951
  %v2953 = vmul.f32 %v2564, 1.442695
  %v2954 = vpow.pop %v2953
  %v2955 = vmul.f32 %v2565, 1.442695
  %v2956 = vpow.pop %v2955
  %v2957 = vmul.f32 %v2566, 1.442695
  %v2958 = vpow.pop %v2957
  %v2959 = vmul.f32 %v2567, 1.442695
  %v2960 = vpow.pop %v2959
  %v2961 = vmul.f32 %v2568, 1.442695
  %v2962 = vpow.pop %v2961
  %v2963 = vmul.f32 %v2569, 1.442695
  %v2964 = vpow.pop %v2963
  %v2965 = vmul.f32 %v2570, 1.442695
  %v2966 = vpow.pop %v2965
  %v2967 = vmul.f32 %v2571, 1.442695
  %v2968 = vpow.pop %v2967
  %v2969 = vmul.f32 %v2572, 1.442695
  %v2970 = vpow.pop %v2969
  %v2971 = vmul.f32 %v2573, 1.442695
  %v2972 = vpow.pop %v2971
  %v2973 = vmul.f32 %v2574, 1.442695
  %v2974 = vpow.pop %v2973
  %v2975 = vmul.f32 %v2575, 1.442695
  %v2976 = vpow.pop %v2975
  %v2977 = vmul.f32 %v2576, 1.442695
  %v2978 = vpow.pop %v2977
  %v2979 = vmul.f32 %v2577, 1.442695
  %v2980 = vpow.pop %v2979
  %v2981 = vmul.f32 %v2578, 1.442695
  %v2982 = vpow.pop %v2981
  %v2983 = vmul.f32 %v2579, 1.442695
  %v2984 = vpow.pop %v2983
  %v2985 = vmul.f32 %v2580, 1.442695
  %v2986 = vpow.pop %v2985
  %v2987 = vmul.f32 %v2581, 1.442695
  %v2988 = vpow.pop %v2987
  %v2989 = vmul.f32 %v2582, 1.442695
  %v2990 = vpow.pop %v2989
  %v2991 = vmul.f32 %v2583, 1.442695
  %v2992 = vpow.pop %v2991
  %v2993 = vmul.f32 %v2584, 1.442695
  %v2994 = vpow.pop %v2993
  %v2995 = vmul.f32 %v2585, 1.442695
  %v2996 = vpow.pop %v2995
  %v2997 = vmul.f32 %v2586, 1.442695
  %v2998 = vpow.pop %v2997
  %v2999 = vmul.f32 %v2587, 1.442695
  %v3000 = vpow.pop %v2999
  %v3001 = vmul.f32 %v2588, 1.442695
  %v3002 = vpow.pop %v3001
  %v3003 = vmul.f32 %v2589, 1.442695
  %v3004 = vpow.pop %v3003
  %v3005 = vmul.f32 %v2590, 1.442695
  %v3006 = vpow.pop %v3005
  %v3007 = vmul.f32 %v2591, 1.442695
  %v3008 = vpow.pop %v3007
  %v3009 = vmul.f32 %v2592, 1.442695
  %v3010 = vpow.pop %v3009
  %v3011 = vmul.f32 %v2593, 1.442695
  %v3012 = vpow.pop %v3011
  %v3013 = vmul.f32 %v2594, 1.442695
  %v3014 = vpow.pop %v3013
  %v3015 = vmul.f32 %v2595, 1.442695
  %v3016 = vpow.pop %v3015
  %v3017 = vmul.f32 %v2596, 1.442695
  %v3018 = vpow.pop %v3017
  %v3019 = vmul.f32 %v2597, 1.442695
  %v3020 = vpow.pop %v3019
  %v3021 = vmul.f32 %v2598, 1.442695
  %v3022 = vpow.pop %v3021
  %v3023 = vmul.f32 %v2599, 1.442695
  %v3024 = vpow.pop %v3023
  %v3025 = vmul.f32 %v2600, 1.442695
  %v3026 = vpow.pop %v3025
  %v3027 = vmul.f32 %v2601, 1.442695
  %v3028 = vpow.pop %v3027
  %v3029 = vmul.f32 %v2602, 1.442695
  %v3030 = vpow.pop %v3029
  %v3031 = vmul.f32 %v2603, 1.442695
  %v3032 = vpow.pop %v3031
  %v3033 = vmul.f32 %v2604, 1.442695
  %v3034 = vpow.pop %v3033
  %v3035 = vmul.f32 %v2605, 1.442695
  %v3036 = vpow.pop %v3035
  %v3037 = vmul.f32 %v2606, 1.442695
  %v3038 = vpow.pop %v3037
  %v3039 = vmul.f32 %v2607, 1.442695
  %v3040 = vpow.pop %v3039
  %v3041 = vmul.f32 %v2608, 1.442695
  %v3042 = vpow.pop %v3041
  %v3043 = vmul.f32 %v2609, 1.442695
  %v3044 = vpow.pop %v3043
  %v3045 = vmul.f32 %v2610, 1.442695
  %v3046 = vpow.pop %v3045
  %v3047 = vmul.f32 %v2611, 1.442695
  %v3048 = vpow.pop %v3047
  %v3049 = vmul.f32 %v2612, 1.442695
  %v3050 = vpow.pop %v3049
  %v3051 = vmul.f32 %v2613, 1.442695
  %v3052 = vpow.pop %v3051
  %v3053 = vmul.f32 %v2614, 1.442695
  %v3054 = vpow.pop %v3053
  %v3055 = vmul.f32 %v2615, 1.442695
  %v3056 = vpow.pop %v3055
  %v3057 = vmul.f32 %v2616, 1.442695
  %v3058 = vpow.pop %v3057
  %v3059 = vmul.f32 %v2617, 1.442695
  %v3060 = vpow.pop %v3059
  %v3061 = vmul.f32 %v2618, 1.442695
  %v3062 = vpow.pop %v3061
  %v3063 = vmul.f32 %v2619, 1.442695
  %v3064 = vpow.pop %v3063
  %v3065 = vmul.f32 %v2620, 1.442695
  %v3066 = vpow.pop %v3065
  %v3067 = vmul.f32 %v2621, 1.442695
  %v3068 = vpow.pop %v3067
  %v3069 = vmul.f32 %v2622, 1.442695
  %v3070 = vpow.pop %v3069
  %v3071 = vmul.f32 %v2623, 1.442695
  %v3072 = vpow.pop %v3071
  %v3073 = vmul.f32 %v2624, 1.442695
  %v3074 = vpow.pop %v3073
  %v3075 = vmul.f32 %v2625, 1.442695
  %v3076 = vpow.pop %v3075
  %v3077 = vmul.f32 %v2626, 1.442695
  %v3078 = vpow.pop %v3077
  %v3079 = vmul.f32 %v2627, 1.442695
  %v3080 = vpow.pop %v3079
  %v3081 = vmul.f32 %v2628, 1.442695
  %v3082 = vpow.pop %v3081
  %v3083 = vmul.f32 %v2629, 1.442695
  %v3084 = vpow.pop %v3083
  %v3085 = vmul.f32 %v2630, 1.442695
  %v3086 = vpow.pop %v3085
  %v3087 = vmul.f32 %v2631, 1.442695
  %v3088 = vpow.pop %v3087
  %v3089 = vmul.f32 %v2632, 1.442695
  %v3090 = vpow.pop %v3089
  %v3091 = vmul.f32 %v2633, 1.442695
  %v3092 = vpow.pop %v3091
  %v3093 = vmul.f32 %v2634, 1.442695
  %v3094 = vpow.pop %v3093
  %v3095 = vmul.f32 %v2635, 1.442695
  %v3096 = vpow.pop %v3095
  %v3097 = vmul.f32 %v2636, 1.442695
  %v3098 = vpow.pop %v3097
  %v3099 = vmul.f32 %v2637, 1.442695
  %v3100 = vpow.pop %v3099
  %v3101 = vmul.f32 %v2638, 1.442695
  %v3102 = vpow.pop %v3101
  %v3103 = vmul.f32 %v2639, 1.442695
  %v3104 = vpow.pop %v3103
  %v3105 = vmul.f32 %v2640, 1.442695
  %v3106 = vpow.pop %v3105
  %v3107 = vmul.f32 %v2641, 1.442695
  %v3108 = vpow.pop %v3107
  %v3109 = vmul.f32 %v2642, 1.442695
  %v3110 = vpow.pop %v3109
  %v3111 = vmul.f32 %v2643, 1.442695
  %v3112 = vpow.pop %v3111
  %v3113 = vmul.f32 %v2644, 1.442695
  %v3114 = vpow.pop %v3113
  %v3115 = vmul.f32 %v2645, 1.442695
  %v3116 = vpow.pop %v3115
  %v3117 = vmul.f32 %v2646, 1.442695
  %v3118 = vpow.pop %v3117
  %v3119 = vmul.f32 %v2647, 1.442695
  %v3120 = vpow.pop %v3119
  %v3121 = vmul.f32 %v2648, 1.442695
  %v3122 = vpow.pop %v3121
  %v3123 = vmul.f32 %v2649, 1.442695
  %v3124 = vpow.pop %v3123
  %v3125 = vmul.f32 %v2650, 1.442695
  %v3126 = vpow.pop %v3125
  %v3127 = vmul.f32 %v2651, 1.442695
  %v3128 = vpow.pop %v3127
  %v3129 = vmul.f32 %v2652, 1.442695
  %v3130 = vpow.pop %v3129
  %v3131 = vmul.f32 %v2653, 1.442695
  %v3132 = vpow.pop %v3131
  %v3133 = vmul.f32 %v2654, 1.442695
  %v3134 = vpow.pop %v3133
  %v3135 = vmul.f32 %v2655, 1.442695
  %v3136 = vpow.pop %v3135
  %v3137 = vmul.f32 %v2656, 1.442695
  %v3138 = vpow.pop %v3137
  %v3139 = vmul.f32 %v2657, 1.442695
  %v3140 = vpow.pop %v3139
  %v3141 = vmul.f32 %v2658, 1.442695
  %v3142 = vpow.pop %v3141
  %v3143 = vmul.f32 %v2659, 1.442695
  %v3144 = vpow.pop %v3143
  %v3145 = vmul.f32 %v2660, 1.442695
  %v3146 = vpow.pop %v3145
  %v3147 = vmul.f32 %v2661, 1.442695
  %v3148 = vpow.pop %v3147
  %v3149 = vmul.f32 %v2662, 1.442695
  %v3150 = vpow.pop %v3149
  %v3151 = vmul.f32 %v2663, 1.442695
  %v3152 = vpow.pop %v3151
  %v3153 = vmul.f32 %v2664, 1.442695
  %v3154 = vpow.pop %v3153
  %v3155 = vmul.f32 %v2665, 1.442695
  %v3156 = vpow.pop %v3155
  %v3157 = vmul.f32 %v2666, 1.442695
  %v3158 = vpow.pop %v3157
  %v3159 = vmul.f32 %v2667, 1.442695
  %v3160 = vpow.pop %v3159
  %v3161 = vmul.f32 %v2668, 1.442695
  %v3162 = vpow.pop %v3161
  %v3163 = vmul.f32 %v2669, 1.442695
  %v3164 = vpow.pop %v3163
  %v3165 = vmul.f32 %v2670, 1.442695
  %v3166 = vpow.pop %v3165
  %v3167 = vmul.f32 %v2671, 1.442695
  %v3168 = vpow.pop %v3167
  %v3169 = vmul.f32 %v2672, 1.442695
  %v3170 = vpow.pop %v3169
  %v3171 = vmul.f32 %v2673, 1.442695
  %v3172 = vpow.pop %v3171
  %v3173 = vmul.f32 %v2674, 1.442695
  %v3174 = vpow.pop %v3173
  %v3175 = vmul.f32 %v2675, 1.442695
  %v3176 = vpow.pop %v3175
  %v3177 = vmul.f32 %v2676, 1.442695
  %v3178 = vpow.pop %v3177
  %v3179 = vmul.f32 %v2677, 1.442695
  %v3180 = vpow.pop %v3179
  %v3181 = vmul.f32 %v2678, 1.442695
  %v3182 = vpow.pop %v3181
  %v3183 = vmul.f32 %v2679, 1.442695
  %v3184 = vpow.pop %v3183
  %v3185 = vmul.f32 %v2680, 1.442695
  %v3186 = vpow.pop %v3185
  %v3187 = vmul.f32 %v2681, 1.442695
  %v3188 = vpow.pop %v3187
  %v3189 = vmul.f32 %v2682, 1.442695
  %v3190 = vpow.pop %v3189
  %v3191 = vmul.f32 %v2683, 1.442695
  %v3192 = vpow.pop %v3191
  %v3193 = vmul.f32 %v2684, 1.442695
  %v3194 = vpow.pop %v3193
  %v3195 = vmul.f32 %v2685, 1.442695
  %v3196 = vpow.pop %v3195
  %v3197 = vmul.f32 %v2686, 1.442695
  %v3198 = vpow.pop %v3197
  %v3199 = vadd.f32 %v2688, 1.0
  %v3200 = vadd.f32 %v2690, 1.0
  %v3201 = vadd.f32 %v2692, 1.0
  %v3202 = vadd.f32 %v2694, 1.0
  %v3203 = vadd.f32 %v2696, 1.0
  %v3204 = vadd.f32 %v2698, 1.0
  %v3205 = vadd.f32 %v2700, 1.0
  %v3206 = vadd.f32 %v2702, 1.0
  %v3207 = vadd.f32 %v2704, 1.0
  %v3208 = vadd.f32 %v2706, 1.0
  %v3209 = vadd.f32 %v2708, 1.0
  %v3210 = vadd.f32 %v2710, 1.0
  %v3211 = vadd.f32 %v2712, 1.0
  %v3212 = vadd.f32 %v2714, 1.0
  %v3213 = vadd.f32 %v2716, 1.0
  %v3214 = vadd.f32 %v2718, 1.0
  %v3215 = vadd.f32 %v2720, 1.0
  %v3216 = vadd.f32 %v2722, 1.0
  %v3217 = vadd.f32 %v2724, 1.0
  %v3218 = vadd.f32 %v2726, 1.0
  %v3219 = vadd.f32 %v2728, 1.0
  %v3220 = vadd.f32 %v2730, 1.0
  %v3221 = vadd.f32 %v2732, 1.0
  %v3222 = vadd.f32 %v2734, 1.0
  %v3223 = vadd.f32 %v2736, 1.0
  %v3224 = vadd.f32 %v2738, 1.0
  %v3225 = vadd.f32 %v2740, 1.0
  %v3226 = vadd.f32 %v2742, 1.0
  %v3227 = vadd.f32 %v2744, 1.0
  %v3228 = vadd.f32 %v2746, 1.0
  %v3229 = vadd.f32 %v2748, 1.0
  %v3230 = vadd.f32 %v2750, 1.0
  %v3231 = vadd.f32 %v2752, 1.0
  %v3232 = vadd.f32 %v2754, 1.0
  %v3233 = vadd.f32 %v2756, 1.0
  %v3234 = vadd.f32 %v2758, 1.0
  %v3235 = vadd.f32 %v2760, 1.0
  %v3236 = vadd.f32 %v2762, 1.0
  %v3237 = vadd.f32 %v2764, 1.0
  %v3238 = vadd.f32 %v2766, 1.0
  %v3239 = vadd.f32 %v2768, 1.0
  %v3240 = vadd.f32 %v2770, 1.0
  %v3241 = vadd.f32 %v2772, 1.0
  %v3242 = vadd.f32 %v2774, 1.0
  %v3243 = vadd.f32 %v2776, 1.0
  %v3244 = vadd.f32 %v2778, 1.0
  %v3245 = vadd.f32 %v2780, 1.0
  %v3246 = vadd.f32 %v2782, 1.0
  %v3247 = vadd.f32 %v2784, 1.0
  %v3248 = vadd.f32 %v2786, 1.0
  %v3249 = vadd.f32 %v2788, 1.0
  %v3250 = vadd.f32 %v2790, 1.0
  %v3251 = vadd.f32 %v2792, 1.0
  %v3252 = vadd.f32 %v2794, 1.0
  %v3253 = vadd.f32 %v2796, 1.0
  %v3254 = vadd.f32 %v2798, 1.0
  %v3255 = vadd.f32 %v2800, 1.0
  %v3256 = vadd.f32 %v2802, 1.0
  %v3257 = vadd.f32 %v2804, 1.0
  %v3258 = vadd.f32 %v2806, 1.0
  %v3259 = vadd.f32 %v2808, 1.0
  %v3260 = vadd.f32 %v2810, 1.0
  %v3261 = vadd.f32 %v2812, 1.0
  %v3262 = vadd.f32 %v2814, 1.0
  %v3263 = vadd.f32 %v2816, 1.0
  %v3264 = vadd.f32 %v2818, 1.0
  %v3265 = vadd.f32 %v2820, 1.0
  %v3266 = vadd.f32 %v2822, 1.0
  %v3267 = vadd.f32 %v2824, 1.0
  %v3268 = vadd.f32 %v2826, 1.0
  %v3269 = vadd.f32 %v2828, 1.0
  %v3270 = vadd.f32 %v2830, 1.0
  %v3271 = vadd.f32 %v2832, 1.0
  %v3272 = vadd.f32 %v2834, 1.0
  %v3273 = vadd.f32 %v2836, 1.0
  %v3274 = vadd.f32 %v2838, 1.0
  %v3275 = vadd.f32 %v2840, 1.0
  %v3276 = vadd.f32 %v2842, 1.0
  %v3277 = vadd.f32 %v2844, 1.0
  %v3278 = vadd.f32 %v2846, 1.0
  %v3279 = vadd.f32 %v2848, 1.0
  %v3280 = vadd.f32 %v2850, 1.0
  %v3281 = vadd.f32 %v2852, 1.0
  %v3282 = vadd.f32 %v2854, 1.0
  %v3283 = vadd.f32 %v2856, 1.0
  %v3284 = vadd.f32 %v2858, 1.0
  %v3285 = vadd.f32 %v2860, 1.0
  %v3286 = vadd.f32 %v2862, 1.0
  %v3287 = vadd.f32 %v2864, 1.0
  %v3288 = vadd.f32 %v2866, 1.0
  %v3289 = vadd.f32 %v2868, 1.0
  %v3290 = vadd.f32 %v2870, 1.0
  %v3291 = vadd.f32 %v2872, 1.0
  %v3292 = vadd.f32 %v2874, 1.0
  %v3293 = vadd.f32 %v2876, 1.0
  %v3294 = vadd.f32 %v2878, 1.0
  %v3295 = vadd.f32 %v2880, 1.0
  %v3296 = vadd.f32 %v2882, 1.0
  %v3297 = vadd.f32 %v2884, 1.0
  %v3298 = vadd.f32 %v2886, 1.0
  %v3299 = vadd.f32 %v2888, 1.0
  %v3300 = vadd.f32 %v2890, 1.0
  %v3301 = vadd.f32 %v2892, 1.0
  %v3302 = vadd.f32 %v2894, 1.0
  %v3303 = vadd.f32 %v2896, 1.0
  %v3304 = vadd.f32 %v2898, 1.0
  %v3305 = vadd.f32 %v2900, 1.0
  %v3306 = vadd.f32 %v2902, 1.0
  %v3307 = vadd.f32 %v2904, 1.0
  %v3308 = vadd.f32 %v2906, 1.0
  %v3309 = vadd.f32 %v2908, 1.0
  %v3310 = vadd.f32 %v2910, 1.0
  %v3311 = vadd.f32 %v2912, 1.0
  %v3312 = vadd.f32 %v2914, 1.0
  %v3313 = vadd.f32 %v2916, 1.0
  %v3314 = vadd.f32 %v2918, 1.0
  %v3315 = vadd.f32 %v2920, 1.0
  %v3316 = vadd.f32 %v2922, 1.0
  %v3317 = vadd.f32 %v2924, 1.0
  %v3318 = vadd.f32 %v2926, 1.0
  %v3319 = vadd.f32 %v2928, 1.0
  %v3320 = vadd.f32 %v2930, 1.0
  %v3321 = vadd.f32 %v2932, 1.0
  %v3322 = vadd.f32 %v2934, 1.0
  %v3323 = vadd.f32 %v2936, 1.0
  %v3324 = vadd.f32 %v2938, 1.0
  %v3325 = vadd.f32 %v2940, 1.0
  %v3326 = vadd.f32 %v2942, 1.0
  %v3327 = vadd.f32 %v2944, 1.0
  %v3328 = vadd.f32 %v2946, 1.0
  %v3329 = vadd.f32 %v2948, 1.0
  %v3330 = vadd.f32 %v2950, 1.0
  %v3331 = vadd.f32 %v2952, 1.0
  %v3332 = vadd.f32 %v2954, 1.0
  %v3333 = vadd.f32 %v2956, 1.0
  %v3334 = vadd.f32 %v2958, 1.0
  %v3335 = vadd.f32 %v2960, 1.0
  %v3336 = vadd.f32 %v2962, 1.0
  %v3337 = vadd.f32 %v2964, 1.0
  %v3338 = vadd.f32 %v2966, 1.0
  %v3339 = vadd.f32 %v2968, 1.0
  %v3340 = vadd.f32 %v2970, 1.0
  %v3341 = vadd.f32 %v2972, 1.0
  %v3342 = vadd.f32 %v2974, 1.0
  %v3343 = vadd.f32 %v2976, 1.0
  %v3344 = vadd.f32 %v2978, 1.0
  %v3345 = vadd.f32 %v2980, 1.0
  %v3346 = vadd.f32 %v2982, 1.0
  %v3347 = vadd.f32 %v2984, 1.0
  %v3348 = vadd.f32 %v2986, 1.0
  %v3349 = vadd.f32 %v2988, 1.0
  %v3350 = vadd.f32 %v2990, 1.0
  %v3351 = vadd.f32 %v2992, 1.0
  %v3352 = vadd.f32 %v2994, 1.0
  %v3353 = vadd.f32 %v2996, 1.0
  %v3354 = vadd.f32 %v2998, 1.0
  %v3355 = vadd.f32 %v3000, 1.0
  %v3356 = vadd.f32 %v3002, 1.0
  %v3357 = vadd.f32 %v3004, 1.0
  %v3358 = vadd.f32 %v3006, 1.0
  %v3359 = vadd.f32 %v3008, 1.0
  %v3360 = vadd.f32 %v3010, 1.0
  %v3361 = vadd.f32 %v3012, 1.0
  %v3362 = vadd.f32 %v3014, 1.0
  %v3363 = vadd.f32 %v3016, 1.0
  %v3364 = vadd.f32 %v3018, 1.0
  %v3365 = vadd.f32 %v3020, 1.0
  %v3366 = vadd.f32 %v3022, 1.0
  %v3367 = vadd.f32 %v3024, 1.0
  %v3368 = vadd.f32 %v3026, 1.0
  %v3369 = vadd.f32 %v3028, 1.0
  %v3370 = vadd.f32 %v3030, 1.0
  %v3371 = vadd.f32 %v3032, 1.0
  %v3372 = vadd.f32 %v3034, 1.0
  %v3373 = vadd.f32 %v3036, 1.0
  %v3374 = vadd.f32 %v3038, 1.0
  %v3375 = vadd.f32 %v3040, 1.0
  %v3376 = vadd.f32 %v3042, 1.0
  %v3377 = vadd.f32 %v3044, 1.0
  %v3378 = vadd.f32 %v3046, 1.0
  %v3379 = vadd.f32 %v3048, 1.0
  %v3380 = vadd.f32 %v3050, 1.0
  %v3381 = vadd.f32 %v3052, 1.0
  %v3382 = vadd.f32 %v3054, 1.0
  %v3383 = vadd.f32 %v3056, 1.0
  %v3384 = vadd.f32 %v3058, 1.0
  %v3385 = vadd.f32 %v3060, 1.0
  %v3386 = vadd.f32 %v3062, 1.0
  %v3387 = vadd.f32 %v3064, 1.0
  %v3388 = vadd.f32 %v3066, 1.0
  %v3389 = vadd.f32 %v3068, 1.0
  %v3390 = vadd.f32 %v3070, 1.0
  %v3391 = vadd.f32 %v3072, 1.0
  %v3392 = vadd.f32 %v3074, 1.0
  %v3393 = vadd.f32 %v3076, 1.0
  %v3394 = vadd.f32 %v3078, 1.0
  %v3395 = vadd.f32 %v3080, 1.0
  %v3396 = vadd.f32 %v3082, 1.0
  %v3397 = vadd.f32 %v3084, 1.0
  %v3398 = vadd.f32 %v3086, 1.0
  %v3399 = vadd.f32 %v3088, 1.0
  %v3400 = vadd.f32 %v3090, 1.0
  %v3401 = vadd.f32 %v3092, 1.0
  %v3402 = vadd.f32 %v3094, 1.0
  %v3403 = vadd.f32 %v3096, 1.0
  %v3404 = vadd.f32 %v3098, 1.0
  %v3405 = vadd.f32 %v3100, 1.0
  %v3406 = vadd.f32 %v3102, 1.0
  %v3407 = vadd.f32 %v3104, 1.0
  %v3408 = vadd.f32 %v3106, 1.0
  %v3409 = vadd.f32 %v3108, 1.0
  %v3410 = vadd.f32 %v3110, 1.0
  %v3411 = vadd.f32 %v3112, 1.0
  %v3412 = vadd.f32 %v3114, 1.0
  %v3413 = vadd.f32 %v3116, 1.0
  %v3414 = vadd.f32 %v3118, 1.0
  %v3415 = vadd.f32 %v3120, 1.0
  %v3416 = vadd.f32 %v3122, 1.0
  %v3417 = vadd.f32 %v3124, 1.0
  %v3418 = vadd.f32 %v3126, 1.0
  %v3419 = vadd.f32 %v3128, 1.0
  %v3420 = vadd.f32 %v3130, 1.0
  %v3421 = vadd.f32 %v3132, 1.0
  %v3422 = vadd.f32 %v3134, 1.0
  %v3423 = vadd.f32 %v3136, 1.0
  %v3424 = vadd.f32 %v3138, 1.0
  %v3425 = vadd.f32 %v3140, 1.0
  %v3426 = vadd.f32 %v3142, 1.0
  %v3427 = vadd.f32 %v3144, 1.0
  %v3428 = vadd.f32 %v3146, 1.0
  %v3429 = vadd.f32 %v3148, 1.0
  %v3430 = vadd.f32 %v3150, 1.0
  %v3431 = vadd.f32 %v3152, 1.0
  %v3432 = vadd.f32 %v3154, 1.0
  %v3433 = vadd.f32 %v3156, 1.0
  %v3434 = vadd.f32 %v3158, 1.0
  %v3435 = vadd.f32 %v3160, 1.0
  %v3436 = vadd.f32 %v3162, 1.0
  %v3437 = vadd.f32 %v3164, 1.0
  %v3438 = vadd.f32 %v3166, 1.0
  %v3439 = vadd.f32 %v3168, 1.0
  %v3440 = vadd.f32 %v3170, 1.0
  %v3441 = vadd.f32 %v3172, 1.0
  %v3442 = vadd.f32 %v3174, 1.0
  %v3443 = vadd.f32 %v3176, 1.0
  %v3444 = vadd.f32 %v3178, 1.0
  %v3445 = vadd.f32 %v3180, 1.0
  %v3446 = vadd.f32 %v3182, 1.0
  %v3447 = vadd.f32 %v3184, 1.0
  %v3448 = vadd.f32 %v3186, 1.0
  %v3449 = vadd.f32 %v3188, 1.0
  %v3450 = vadd.f32 %v3190, 1.0
  %v3451 = vadd.f32 %v3192, 1.0
  %v3452 = vadd.f32 %v3194, 1.0
  %v3453 = vadd.f32 %v3196, 1.0
  %v3454 = vadd.f32 %v3198, 1.0
  %v3455 = vrcp.pop %v3199
  %v3456 = vrcp.pop %v3200
  %v3457 = vrcp.pop %v3201
  %v3458 = vrcp.pop %v3202
  %v3459 = vrcp.pop %v3203
  %v3460 = vrcp.pop %v3204
  %v3461 = vrcp.pop %v3205
  %v3462 = vrcp.pop %v3206
  %v3463 = vrcp.pop %v3207
  %v3464 = vrcp.pop %v3208
  %v3465 = vrcp.pop %v3209
  %v3466 = vrcp.pop %v3210
  %v3467 = vrcp.pop %v3211
  %v3468 = vrcp.pop %v3212
  %v3469 = vrcp.pop %v3213
  %v3470 = vrcp.pop %v3214
  %v3471 = vrcp.pop %v3215
  %v3472 = vrcp.pop %v3216
  %v3473 = vrcp.pop %v3217
  %v3474 = vrcp.pop %v3218
  %v3475 = vrcp.pop %v3219
  %v3476 = vrcp.pop %v3220
  %v3477 = vrcp.pop %v3221
  %v3478 = vrcp.pop %v3222
  %v3479 = vrcp.pop %v3223
  %v3480 = vrcp.pop %v3224
  %v3481 = vrcp.pop %v3225
  %v3482 = vrcp.pop %v3226
  %v3483 = vrcp.pop %v3227
  %v3484 = vrcp.pop %v3228
  %v3485 = vrcp.pop %v3229
  %v3486 = vrcp.pop %v3230
  %v3487 = vrcp.pop %v3231
  %v3488 = vrcp.pop %v3232
  %v3489 = vrcp.pop %v3233
  %v3490 = vrcp.pop %v3234
  %v3491 = vrcp.pop %v3235
  %v3492 = vrcp.pop %v3236
  %v3493 = vrcp.pop %v3237
  %v3494 = vrcp.pop %v3238
  %v3495 = vrcp.pop %v3239
  %v3496 = vrcp.pop %v3240
  %v3497 = vrcp.pop %v3241
  %v3498 = vrcp.pop %v3242
  %v3499 = vrcp.pop %v3243
  %v3500 = vrcp.pop %v3244
  %v3501 = vrcp.pop %v3245
  %v3502 = vrcp.pop %v3246
  %v3503 = vrcp.pop %v3247
  %v3504 = vrcp.pop %v3248
  %v3505 = vrcp.pop %v3249
  %v3506 = vrcp.pop %v3250
  %v3507 = vrcp.pop %v3251
  %v3508 = vrcp.pop %v3252
  %v3509 = vrcp.pop %v3253
  %v3510 = vrcp.pop %v3254
  %v3511 = vrcp.pop %v3255
  %v3512 = vrcp.pop %v3256
  %v3513 = vrcp.pop %v3257
  %v3514 = vrcp.pop %v3258
  %v3515 = vrcp.pop %v3259
  %v3516 = vrcp.pop %v3260
  %v3517 = vrcp.pop %v3261
  %v3518 = vrcp.pop %v3262
  %v3519 = vrcp.pop %v3263
  %v3520 = vrcp.pop %v3264
  %v3521 = vrcp.pop %v3265
  %v3522 = vrcp.pop %v3266
  %v3523 = vrcp.pop %v3267
  %v3524 = vrcp.pop %v3268
  %v3525 = vrcp.pop %v3269
  %v3526 = vrcp.pop %v3270
  %v3527 = vrcp.pop %v3271
  %v3528 = vrcp.pop %v3272
  %v3529 = vrcp.pop %v3273
  %v3530 = vrcp.pop %v3274
  %v3531 = vrcp.pop %v3275
  %v3532 = vrcp.pop %v3276
  %v3533 = vrcp.pop %v3277
  %v3534 = vrcp.pop %v3278
  %v3535 = vrcp.pop %v3279
  %v3536 = vrcp.pop %v3280
  %v3537 = vrcp.pop %v3281
  %v3538 = vrcp.pop %v3282
  %v3539 = vrcp.pop %v3283
  %v3540 = vrcp.pop %v3284
  %v3541 = vrcp.pop %v3285
  %v3542 = vrcp.pop %v3286
  %v3543 = vrcp.pop %v3287
  %v3544 = vrcp.pop %v3288
  %v3545 = vrcp.pop %v3289
  %v3546 = vrcp.pop %v3290
  %v3547 = vrcp.pop %v3291
  %v3548 = vrcp.pop %v3292
  %v3549 = vrcp.pop %v3293
  %v3550 = vrcp.pop %v3294
  %v3551 = vrcp.pop %v3295
  %v3552 = vrcp.pop %v3296
  %v3553 = vrcp.pop %v3297
  %v3554 = vrcp.pop %v3298
  %v3555 = vrcp.pop %v3299
  %v3556 = vrcp.pop %v3300
  %v3557 = vrcp.pop %v3301
  %v3558 = vrcp.pop %v3302
  %v3559 = vrcp.pop %v3303
  %v3560 = vrcp.pop %v3304
  %v3561 = vrcp.pop %v3305
  %v3562 = vrcp.pop %v3306
  %v3563 = vrcp.pop %v3307
  %v3564 = vrcp.pop %v3308
  %v3565 = vrcp.pop %v3309
  %v3566 = vrcp.pop %v3310
  %v3567 = vrcp.pop %v3311
  %v3568 = vrcp.pop %v3312
  %v3569 = vrcp.pop %v3313
  %v3570 = vrcp.pop %v3314
  %v3571 = vrcp.pop %v3315
  %v3572 = vrcp.pop %v3316
  %v3573 = vrcp.pop %v3317
  %v3574 = vrcp.pop %v3318
  %v3575 = vrcp.pop %v3319
  %v3576 = vrcp.pop %v3320
  %v3577 = vrcp.pop %v3321
  %v3578 = vrcp.pop %v3322
  %v3579 = vrcp.pop %v3323
  %v3580 = vrcp.pop %v3324
  %v3581 = vrcp.pop %v3325
  %v3582 = vrcp.pop %v3326
  %v3583 = vrcp.pop %v3327
  %v3584 = vrcp.pop %v3328
  %v3585 = vrcp.pop %v3329
  %v3586 = vrcp.pop %v3330
  %v3587 = vrcp.pop %v3331
  %v3588 = vrcp.pop %v3332
  %v3589 = vrcp.pop %v3333
  %v3590 = vrcp.pop %v3334
  %v3591 = vrcp.pop %v3335
  %v3592 = vrcp.pop %v3336
  %v3593 = vrcp.pop %v3337
  %v3594 = vrcp.pop %v3338
  %v3595 = vrcp.pop %v3339
  %v3596 = vrcp.pop %v3340
  %v3597 = vrcp.pop %v3341
  %v3598 = vrcp.pop %v3342
  %v3599 = vrcp.pop %v3343
  %v3600 = vrcp.pop %v3344
  %v3601 = vrcp.pop %v3345
  %v3602 = vrcp.pop %v3346
  %v3603 = vrcp.pop %v3347
  %v3604 = vrcp.pop %v3348
  %v3605 = vrcp.pop %v3349
  %v3606 = vrcp.pop %v3350
  %v3607 = vrcp.pop %v3351
  %v3608 = vrcp.pop %v3352
  %v3609 = vrcp.pop %v3353
  %v3610 = vrcp.pop %v3354
  %v3611 = vrcp.pop %v3355
  %v3612 = vrcp.pop %v3356
  %v3613 = vrcp.pop %v3357
  %v3614 = vrcp.pop %v3358
  %v3615 = vrcp.pop %v3359
  %v3616 = vrcp.pop %v3360
  %v3617 = vrcp.pop %v3361
  %v3618 = vrcp.pop %v3362
  %v3619 = vrcp.pop %v3363
  %v3620 = vrcp.pop %v3364
  %v3621 = vrcp.pop %v3365
  %v3622 = vrcp.pop %v3366
  %v3623 = vrcp.pop %v3367
  %v3624 = vrcp.pop %v3368
  %v3625 = vrcp.pop %v3369
  %v3626 = vrcp.pop %v3370
  %v3627 = vrcp.pop %v3371
  %v3628 = vrcp.pop %v3372
  %v3629 = vrcp.pop %v3373
  %v3630 = vrcp.pop %v3374
  %v3631 = vrcp.pop %v3375
  %v3632 = vrcp.pop %v3376
  %v3633 = vrcp.pop %v3377
  %v3634 = vrcp.pop %v3378
  %v3635 = vrcp.pop %v3379
  %v3636 = vrcp.pop %v3380
  %v3637 = vrcp.pop %v3381
  %v3638 = vrcp.pop %v3382
  %v3639 = vrcp.pop %v3383
  %v3640 = vrcp.pop %v3384
  %v3641 = vrcp.pop %v3385
  %v3642 = vrcp.pop %v3386
  %v3643 = vrcp.pop %v3387
  %v3644 = vrcp.pop %v3388
  %v3645 = vrcp.pop %v3389
  %v3646 = vrcp.pop %v3390
  %v3647 = vrcp.pop %v3391
  %v3648 = vrcp.pop %v3392
  %v3649 = vrcp.pop %v3393
  %v3650 = vrcp.pop %v3394
  %v3651 = vrcp.pop %v3395
  %v3652 = vrcp.pop %v3396
  %v3653 = vrcp.pop %v3397
  %v3654 = vrcp.pop %v3398
  %v3655 = vrcp.pop %v3399
  %v3656 = vrcp.pop %v3400
  %v3657 = vrcp.pop %v3401
  %v3658 = vrcp.pop %v3402
  %v3659 = vrcp.pop %v3403
  %v3660 = vrcp.pop %v3404
  %v3661 = vrcp.pop %v3405
  %v3662 = vrcp.pop %v3406
  %v3663 = vrcp.pop %v3407
  %v3664 = vrcp.pop %v3408
  %v3665 = vrcp.pop %v3409
  %v3666 = vrcp.pop %v3410
  %v3667 = vrcp.pop %v3411
  %v3668 = vrcp.pop %v3412
  %v3669 = vrcp.pop %v3413
  %v3670 = vrcp.pop %v3414
  %v3671 = vrcp.pop %v3415
  %v3672 = vrcp.pop %v3416
  %v3673 = vrcp.pop %v3417
  %v3674 = vrcp.pop %v3418
  %v3675 = vrcp.pop %v3419
  %v3676 = vrcp.pop %v3420
  %v3677 = vrcp.pop %v3421
  %v3678 = vrcp.pop %v3422
  %v3679 = vrcp.pop %v3423
  %v3680 = vrcp.pop %v3424
  %v3681 = vrcp.pop %v3425
  %v3682 = vrcp.pop %v3426
  %v3683 = vrcp.pop %v3427
  %v3684 = vrcp.pop %v3428
  %v3685 = vrcp.pop %v3429
  %v3686 = vrcp.pop %v3430
  %v3687 = vrcp.pop %v3431
  %v3688 = vrcp.pop %v3432
  %v3689 = vrcp.pop %v3433
  %v3690 = vrcp.pop %v3434
  %v3691 = vrcp.pop %v3435
  %v3692 = vrcp.pop %v3436
  %v3693 = vrcp.pop %v3437
  %v3694 = vrcp.pop %v3438
  %v3695 = vrcp.pop %v3439
  %v3696 = vrcp.pop %v3440
  %v3697 = vrcp.pop %v3441
  %v3698 = vrcp.pop %v3442
  %v3699 = vrcp.pop %v3443
  %v3700 = vrcp.pop %v3444
  %v3701 = vrcp.pop %v3445
  %v3702 = vrcp.pop %v3446
  %v3703 = vrcp.pop %v3447
  %v3704 = vrcp.pop %v3448
  %v3705 = vrcp.pop %v3449
  %v3706 = vrcp.pop %v3450
  %v3707 = vrcp.pop %v3451
  %v3708 = vrcp.pop %v3452
  %v3709 = vrcp.pop %v3453
  %v3710 = vrcp.pop %v3454
  %v3711 = vmul.f32 %v1409, %v3455
  %v3712 = vmul.f32 %v1412, %v3456
  %v3713 = vmul.f32 %v1417, %v3457
  %v3714 = vmul.f32 %v1420, %v3458
  %v3715 = vmul.f32 %v1425, %v3459
  %v3716 = vmul.f32 %v1428, %v3460
  %v3717 = vmul.f32 %v1433, %v3461
  %v3718 = vmul.f32 %v1436, %v3462
  %v3719 = vmul.f32 %v1441, %v3463
  %v3720 = vmul.f32 %v1444, %v3464
  %v3721 = vmul.f32 %v1449, %v3465
  %v3722 = vmul.f32 %v1452, %v3466
  %v3723 = vmul.f32 %v1457, %v3467
  %v3724 = vmul.f32 %v1460, %v3468
  %v3725 = vmul.f32 %v1465, %v3469
  %v3726 = vmul.f32 %v1468, %v3470
  %v3727 = vmul.f32 %v1473, %v3471
  %v3728 = vmul.f32 %v1476, %v3472
  %v3729 = vmul.f32 %v1481, %v3473
  %v3730 = vmul.f32 %v1484, %v3474
  %v3731 = vmul.f32 %v1489, %v3475
  %v3732 = vmul.f32 %v1492, %v3476
  %v3733 = vmul.f32 %v1497, %v3477
  %v3734 = vmul.f32 %v1500, %v3478
  %v3735 = vmul.f32 %v1505, %v3479
  %v3736 = vmul.f32 %v1508, %v3480
  %v3737 = vmul.f32 %v1513, %v3481
  %v3738 = vmul.f32 %v1516, %v3482
  %v3739 = vmul.f32 %v1521, %v3483
  %v3740 = vmul.f32 %v1524, %v3484
  %v3741 = vmul.f32 %v1529, %v3485
  %v3742 = vmul.f32 %v1532, %v3486
  %v3743 = vmul.f32 %v1537, %v3487
  %v3744 = vmul.f32 %v1540, %v3488
  %v3745 = vmul.f32 %v1545, %v3489
  %v3746 = vmul.f32 %v1548, %v3490
  %v3747 = vmul.f32 %v1553, %v3491
  %v3748 = vmul.f32 %v1556, %v3492
  %v3749 = vmul.f32 %v1561, %v3493
  %v3750 = vmul.f32 %v1564, %v3494
  %v3751 = vmul.f32 %v1569, %v3495
  %v3752 = vmul.f32 %v1572, %v3496
  %v3753 = vmul.f32 %v1577, %v3497
  %v3754 = vmul.f32 %v1580, %v3498
  %v3755 = vmul.f32 %v1585, %v3499
  %v3756 = vmul.f32 %v1588, %v3500
  %v3757 = vmul.f32 %v1593, %v3501
  %v3758 = vmul.f32 %v1596, %v3502
  %v3759 = vmul.f32 %v1601, %v3503
  %v3760 = vmul.f32 %v1604, %v3504
  %v3761 = vmul.f32 %v1609, %v3505
  %v3762 = vmul.f32 %v1612, %v3506
  %v3763 = vmul.f32 %v1617, %v3507
  %v3764 = vmul.f32 %v1620, %v3508
  %v3765 = vmul.f32 %v1625, %v3509
  %v3766 = vmul.f32 %v1628, %v3510
  %v3767 = vmul.f32 %v1633, %v3511
  %v3768 = vmul.f32 %v1636, %v3512
  %v3769 = vmul.f32 %v1641, %v3513
  %v3770 = vmul.f32 %v1644, %v3514
  %v3771 = vmul.f32 %v1649, %v3515
  %v3772 = vmul.f32 %v1652, %v3516
  %v3773 = vmul.f32 %v1657, %v3517
  %v3774 = vmul.f32 %v1660, %v3518
  %v3775 = vmul.f32 %v1665, %v3519
  %v3776 = vmul.f32 %v1668, %v3520
  %v3777 = vmul.f32 %v1673, %v3521
  %v3778 = vmul.f32 %v1676, %v3522
  %v3779 = vmul.f32 %v1681, %v3523
  %v3780 = vmul.f32 %v1684, %v3524
  %v3781 = vmul.f32 %v1689, %v3525
  %v3782 = vmul.f32 %v1692, %v3526
  %v3783 = vmul.f32 %v1697, %v3527
  %v3784 = vmul.f32 %v1700, %v3528
  %v3785 = vmul.f32 %v1705, %v3529
  %v3786 = vmul.f32 %v1708, %v3530
  %v3787 = vmul.f32 %v1713, %v3531
  %v3788 = vmul.f32 %v1716, %v3532
  %v3789 = vmul.f32 %v1721, %v3533
  %v3790 = vmul.f32 %v1724, %v3534
  %v3791 = vmul.f32 %v1729, %v3535
  %v3792 = vmul.f32 %v1732, %v3536
  %v3793 = vmul.f32 %v1737, %v3537
  %v3794 = vmul.f32 %v1740, %v3538
  %v3795 = vmul.f32 %v1745, %v3539
  %v3796 = vmul.f32 %v1748, %v3540
  %v3797 = vmul.f32 %v1753, %v3541
  %v3798 = vmul.f32 %v1756, %v3542
  %v3799 = vmul.f32 %v1761, %v3543
  %v3800 = vmul.f32 %v1764, %v3544
  %v3801 = vmul.f32 %v1769, %v3545
  %v3802 = vmul.f32 %v1772, %v3546
  %v3803 = vmul.f32 %v1777, %v3547
  %v3804 = vmul.f32 %v1780, %v3548
  %v3805 = vmul.f32 %v1785, %v3549
  %v3806 = vmul.f32 %v1788, %v3550
  %v3807 = vmul.f32 %v1793, %v3551
  %v3808 = vmul.f32 %v1796, %v3552
  %v3809 = vmul.f32 %v1801, %v3553
  %v3810 = vmul.f32 %v1804, %v3554
  %v3811 = vmul.f32 %v1809, %v3555
  %v3812 = vmul.f32 %v1812, %v3556
  %v3813 = vmul.f32 %v1817, %v3557
  %v3814 = vmul.f32 %v1820, %v3558
  %v3815 = vmul.f32 %v1825, %v3559
  %v3816 = vmul.f32 %v1828, %v3560
  %v3817 = vmul.f32 %v1833, %v3561
  %v3818 = vmul.f32 %v1836, %v3562
  %v3819 = vmul.f32 %v1841, %v3563
  %v3820 = vmul.f32 %v1844, %v3564
  %v3821 = vmul.f32 %v1849, %v3565
  %v3822 = vmul.f32 %v1852, %v3566
  %v3823 = vmul.f32 %v1857, %v3567
  %v3824 = vmul.f32 %v1860, %v3568
  %v3825 = vmul.f32 %v1865, %v3569
  %v3826 = vmul.f32 %v1868, %v3570
  %v3827 = vmul.f32 %v1873, %v3571
  %v3828 = vmul.f32 %v1876, %v3572
  %v3829 = vmul.f32 %v1881, %v3573
  %v3830 = vmul.f32 %v1884, %v3574
  %v3831 = vmul.f32 %v1889, %v3575
  %v3832 = vmul.f32 %v1892, %v3576
  %v3833 = vmul.f32 %v1897, %v3577
  %v3834 = vmul.f32 %v1900, %v3578
  %v3835 = vmul.f32 %v1905, %v3579
  %v3836 = vmul.f32 %v1908, %v3580
  %v3837 = vmul.f32 %v1913, %v3581
  %v3838 = vmul.f32 %v1916, %v3582
  %v3839 = vmul.f32 %v1921, %v3583
  %v3840 = vmul.f32 %v1924, %v3584
  %v3841 = vmul.f32 %v1929, %v3585
  %v3842 = vmul.f32 %v1932, %v3586
  %v3843 = vmul.f32 %v1937, %v3587
  %v3844 = vmul.f32 %v1940, %v3588
  %v3845 = vmul.f32 %v1945, %v3589
  %v3846 = vmul.f32 %v1948, %v3590
  %v3847 = vmul.f32 %v1953, %v3591
  %v3848 = vmul.f32 %v1956, %v3592
  %v3849 = vmul.f32 %v1961, %v3593
  %v3850 = vmul.f32 %v1964, %v3594
  %v3851 = vmul.f32 %v1969, %v3595
  %v3852 = vmul.f32 %v1972, %v3596
  %v3853 = vmul.f32 %v1977, %v3597
  %v3854 = vmul.f32 %v1980, %v3598
  %v3855 = vmul.f32 %v1985, %v3599
  %v3856 = vmul.f32 %v1988, %v3600
  %v3857 = vmul.f32 %v1993, %v3601
  %v3858 = vmul.f32 %v1996, %v3602
  %v3859 = vmul.f32 %v2001, %v3603
  %v3860 = vmul.f32 %v2004, %v3604
  %v3861 = vmul.f32 %v2009, %v3605
  %v3862 = vmul.f32 %v2012, %v3606
  %v3863 = vmul.f32 %v2017, %v3607
  %v3864 = vmul.f32 %v2020, %v3608
  %v3865 = vmul.f32 %v2025, %v3609
  %v3866 = vmul.f32 %v2028, %v3610
  %v3867 = vmul.f32 %v2033, %v3611
  %v3868 = vmul.f32 %v2036, %v3612
  %v3869 = vmul.f32 %v2041, %v3613
  %v3870 = vmul.f32 %v2044, %v3614
  %v3871 = vmul.f32 %v2049, %v3615
  %v3872 = vmul.f32 %v2052, %v3616
  %v3873 = vmul.f32 %v2057, %v3617
  %v3874 = vmul.f32 %v2060, %v3618
  %v3875 = vmul.f32 %v2065, %v3619
  %v3876 = vmul.f32 %v2068, %v3620
  %v3877 = vmul.f32 %v2073, %v3621
  %v3878 = vmul.f32 %v2076, %v3622
  %v3879 = vmul.f32 %v2081, %v3623
  %v3880 = vmul.f32 %v2084, %v3624
  %v3881 = vmul.f32 %v2089, %v3625
  %v3882 = vmul.f32 %v2092, %v3626
  %v3883 = vmul.f32 %v2097, %v3627
  %v3884 = vmul.f32 %v2100, %v3628
  %v3885 = vmul.f32 %v2105, %v3629
  %v3886 = vmul.f32 %v2108, %v3630
  %v3887 = vmul.f32 %v2113, %v3631
  %v3888 = vmul.f32 %v2116, %v3632
  %v3889 = vmul.f32 %v2121, %v3633
  %v3890 = vmul.f32 %v2124, %v3634
  %v3891 = vmul.f32 %v2129, %v3635
  %v3892 = vmul.f32 %v2132, %v3636
  %v3893 = vmul.f32 %v2137, %v3637
  %v3894 = vmul.f32 %v2140, %v3638
  %v3895 = vmul.f32 %v2145, %v3639
  %v3896 = vmul.f32 %v2148, %v3640
  %v3897 = vmul.f32 %v2153, %v3641
  %v3898 = vmul.f32 %v2156, %v3642
  %v3899 = vmul.f32 %v2161, %v3643
  %v3900 = vmul.f32 %v2164, %v3644
  %v3901 = vmul.f32 %v2169, %v3645
  %v3902 = vmul.f32 %v2172, %v3646
  %v3903 = vmul.f32 %v2177, %v3647
  %v3904 = vmul.f32 %v2180, %v3648
  %v3905 = vmul.f32 %v2185, %v3649
  %v3906 = vmul.f32 %v2188, %v3650
  %v3907 = vmul.f32 %v2193, %v3651
  %v3908 = vmul.f32 %v2196, %v3652
  %v3909 = vmul.f32 %v2201, %v3653
  %v3910 = vmul.f32 %v2204, %v3654
  %v3911 = vmul.f32 %v2209, %v3655
  %v3912 = vmul.f32 %v2212, %v3656
  %v3913 = vmul.f32 %v2217, %v3657
  %v3914 = vmul.f32 %v2220, %v3658
  %v3915 = vmul.f32 %v2225, %v3659
  %v3916 = vmul.f32 %v2228, %v3660
  %v3917 = vmul.f32 %v2233, %v3661
  %v3918 = vmul.f32 %v2236, %v3662
  %v3919 = vmul.f32 %v2241, %v3663
  %v3920 = vmul.f32 %v2244, %v3664
  %v3921 = vmul.f32 %v2249, %v3665
  %v3922 = vmul.f32 %v2252, %v3666
  %v3923 = vmul.f32 %v2257, %v3667
  %v3924 = vmul.f32 %v2260, %v3668
  %v3925 = vmul.f32 %v2265, %v3669
  %v3926 = vmul.f32 %v2268, %v3670
  %v3927 = vmul.f32 %v2273, %v3671
  %v3928 = vmul.f32 %v2276, %v3672
  %v3929 = vmul.f32 %v2281, %v3673
  %v3930 = vmul.f32 %v2284, %v3674
  %v3931 = vmul.f32 %v2289, %v3675
  %v3932 = vmul.f32 %v2292, %v3676
  %v3933 = vmul.f32 %v2297, %v3677
  %v3934 = vmul.f32 %v2300, %v3678
  %v3935 = vmul.f32 %v2305, %v3679
  %v3936 = vmul.f32 %v2308, %v3680
  %v3937 = vmul.f32 %v2313, %v3681
  %v3938 = vmul.f32 %v2316, %v3682
  %v3939 = vmul.f32 %v2321, %v3683
  %v3940 = vmul.f32 %v2324, %v3684
  %v3941 = vmul.f32 %v2329, %v3685
  %v3942 = vmul.f32 %v2332, %v3686
  %v3943 = vmul.f32 %v2337, %v3687
  %v3944 = vmul.f32 %v2340, %v3688
  %v3945 = vmul.f32 %v2345, %v3689
  %v3946 = vmul.f32 %v2348, %v3690
  %v3947 = vmul.f32 %v2353, %v3691
  %v3948 = vmul.f32 %v2356, %v3692
  %v3949 = vmul.f32 %v2361, %v3693
  %v3950 = vmul.f32 %v2364, %v3694
  %v3951 = vmul.f32 %v2369, %v3695
  %v3952 = vmul.f32 %v2372, %v3696
  %v3953 = vmul.f32 %v2377, %v3697
  %v3954 = vmul.f32 %v2380, %v3698
  %v3955 = vmul.f32 %v2385, %v3699
  %v3956 = vmul.f32 %v2388, %v3700
  %v3957 = vmul.f32 %v2393, %v3701
  %v3958 = vmul.f32 %v2396, %v3702
  %v3959 = vmul.f32 %v2401, %v3703
  %v3960 = vmul.f32 %v2404, %v3704
  %v3961 = vmul.f32 %v2409, %v3705
  %v3962 = vmul.f32 %v2412, %v3706
  %v3963 = vmul.f32 %v2417, %v3707
  %v3964 = vmul.f32 %v2420, %v3708
  %v3965 = vmul.f32 %v2425, %v3709
  %v3966 = vmul.f32 %v2428, %v3710
  %v3967 = vpack.c.bf16 %v3712, %v3711
  %v3968 = vpack.c.bf16 %v3714, %v3713
  %v3969 = vpack.c.bf16 %v3716, %v3715
  %v3970 = vpack.c.bf16 %v3718, %v3717
  %v3971 = vpack.c.bf16 %v3720, %v3719
  %v3972 = vpack.c.bf16 %v3722, %v3721
  %v3973 = vpack.c.bf16 %v3724, %v3723
  %v3974 = vpack.c.bf16 %v3726, %v3725
  %v3975 = vpack.c.bf16 %v3728, %v3727
  %v3976 = vpack.c.bf16 %v3730, %v3729
  %v3977 = vpack.c.bf16 %v3732, %v3731
  %v3978 = vpack.c.bf16 %v3734, %v3733
  %v3979 = vpack.c.bf16 %v3736, %v3735
  %v3980 = vpack.c.bf16 %v3738, %v3737
  %v3981 = vpack.c.bf16 %v3740, %v3739
  %v3982 = vpack.c.bf16 %v3742, %v3741
  %v3983 = vpack.c.bf16 %v3744, %v3743
  %v3984 = vpack.c.bf16 %v3746, %v3745
  %v3985 = vpack.c.bf16 %v3748, %v3747
  %v3986 = vpack.c.bf16 %v3750, %v3749
  %v3987 = vpack.c.bf16 %v3752, %v3751
  %v3988 = vpack.c.bf16 %v3754, %v3753
  %v3989 = vpack.c.bf16 %v3756, %v3755
  %v3990 = vpack.c.bf16 %v3758, %v3757
  %v3991 = vpack.c.bf16 %v3760, %v3759
  %v3992 = vpack.c.bf16 %v3762, %v3761
  %v3993 = vpack.c.bf16 %v3764, %v3763
  %v3994 = vpack.c.bf16 %v3766, %v3765
  %v3995 = vpack.c.bf16 %v3768, %v3767
  %v3996 = vpack.c.bf16 %v3770, %v3769
  %v3997 = vpack.c.bf16 %v3772, %v3771
  %v3998 = vpack.c.bf16 %v3774, %v3773
  %v3999 = vpack.c.bf16 %v3776, %v3775
  %v4000 = vpack.c.bf16 %v3778, %v3777
  %v4001 = vpack.c.bf16 %v3780, %v3779
  %v4002 = vpack.c.bf16 %v3782, %v3781
  %v4003 = vpack.c.bf16 %v3784, %v3783
  %v4004 = vpack.c.bf16 %v3786, %v3785
  %v4005 = vpack.c.bf16 %v3788, %v3787
  %v4006 = vpack.c.bf16 %v3790, %v3789
  %v4007 = vpack.c.bf16 %v3792, %v3791
  %v4008 = vpack.c.bf16 %v3794, %v3793
  %v4009 = vpack.c.bf16 %v3796, %v3795
  %v4010 = vpack.c.bf16 %v3798, %v3797
  %v4011 = vpack.c.bf16 %v3800, %v3799
  %v4012 = vpack.c.bf16 %v3802, %v3801
  %v4013 = vpack.c.bf16 %v3804, %v3803
  %v4014 = vpack.c.bf16 %v3806, %v3805
  %v4015 = vpack.c.bf16 %v3808, %v3807
  %v4016 = vpack.c.bf16 %v3810, %v3809
  %v4017 = vpack.c.bf16 %v3812, %v3811
  %v4018 = vpack.c.bf16 %v3814, %v3813
  %v4019 = vpack.c.bf16 %v3816, %v3815
  %v4020 = vpack.c.bf16 %v3818, %v3817
  %v4021 = vpack.c.bf16 %v3820, %v3819
  %v4022 = vpack.c.bf16 %v3822, %v3821
  %v4023 = vpack.c.bf16 %v3824, %v3823
  %v4024 = vpack.c.bf16 %v3826, %v3825
  %v4025 = vpack.c.bf16 %v3828, %v3827
  %v4026 = vpack.c.bf16 %v3830, %v3829
  %v4027 = vpack.c.bf16 %v3832, %v3831
  %v4028 = vpack.c.bf16 %v3834, %v3833
  %v4029 = vpack.c.bf16 %v3836, %v3835
  %v4030 = vpack.c.bf16 %v3838, %v3837
  %v4031 = vpack.c.bf16 %v3840, %v3839
  %v4032 = vpack.c.bf16 %v3842, %v3841
  %v4033 = vpack.c.bf16 %v3844, %v3843
  %v4034 = vpack.c.bf16 %v3846, %v3845
  %v4035 = vpack.c.bf16 %v3848, %v3847
  %v4036 = vpack.c.bf16 %v3850, %v3849
  %v4037 = vpack.c.bf16 %v3852, %v3851
  %v4038 = vpack.c.bf16 %v3854, %v3853
  %v4039 = vpack.c.bf16 %v3856, %v3855
  %v4040 = vpack.c.bf16 %v3858, %v3857
  %v4041 = vpack.c.bf16 %v3860, %v3859
  %v4042 = vpack.c.bf16 %v3862, %v3861
  %v4043 = vpack.c.bf16 %v3864, %v3863
  %v4044 = vpack.c.bf16 %v3866, %v3865
  %v4045 = vpack.c.bf16 %v3868, %v3867
  %v4046 = vpack.c.bf16 %v3870, %v3869
  %v4047 = vpack.c.bf16 %v3872, %v3871
  %v4048 = vpack.c.bf16 %v3874, %v3873
  %v4049 = vpack.c.bf16 %v3876, %v3875
  %v4050 = vpack.c.bf16 %v3878, %v3877
  %v4051 = vpack.c.bf16 %v3880, %v3879
  %v4052 = vpack.c.bf16 %v3882, %v3881
  %v4053 = vpack.c.bf16 %v3884, %v3883
  %v4054 = vpack.c.bf16 %v3886, %v3885
  %v4055 = vpack.c.bf16 %v3888, %v3887
  %v4056 = vpack.c.bf16 %v3890, %v3889
  %v4057 = vpack.c.bf16 %v3892, %v3891
  %v4058 = vpack.c.bf16 %v3894, %v3893
  %v4059 = vpack.c.bf16 %v3896, %v3895
  %v4060 = vpack.c.bf16 %v3898, %v3897
  %v4061 = vpack.c.bf16 %v3900, %v3899
  %v4062 = vpack.c.bf16 %v3902, %v3901
  %v4063 = vpack.c.bf16 %v3904, %v3903
  %v4064 = vpack.c.bf16 %v3906, %v3905
  %v4065 = vpack.c.bf16 %v3908, %v3907
  %v4066 = vpack.c.bf16 %v3910, %v3909
  %v4067 = vpack.c.bf16 %v3912, %v3911
  %v4068 = vpack.c.bf16 %v3914, %v3913
  %v4069 = vpack.c.bf16 %v3916, %v3915
  %v4070 = vpack.c.bf16 %v3918, %v3917
  %v4071 = vpack.c.bf16 %v3920, %v3919
  %v4072 = vpack.c.bf16 %v3922, %v3921
  %v4073 = vpack.c.bf16 %v3924, %v3923
  %v4074 = vpack.c.bf16 %v3926, %v3925
  %v4075 = vpack.c.bf16 %v3928, %v3927
  %v4076 = vpack.c.bf16 %v3930, %v3929
  %v4077 = vpack.c.bf16 %v3932, %v3931
  %v4078 = vpack.c.bf16 %v3934, %v3933
  %v4079 = vpack.c.bf16 %v3936, %v3935
  %v4080 = vpack.c.bf16 %v3938, %v3937
  %v4081 = vpack.c.bf16 %v3940, %v3939
  %v4082 = vpack.c.bf16 %v3942, %v3941
  %v4083 = vpack.c.bf16 %v3944, %v3943
  %v4084 = vpack.c.bf16 %v3946, %v3945
  %v4085 = vpack.c.bf16 %v3948, %v3947
  %v4086 = vpack.c.bf16 %v3950, %v3949
  %v4087 = vpack.c.bf16 %v3952, %v3951
  %v4088 = vpack.c.bf16 %v3954, %v3953
  %v4089 = vpack.c.bf16 %v3956, %v3955
  %v4090 = vpack.c.bf16 %v3958, %v3957
  %v4091 = vpack.c.bf16 %v3960, %v3959
  %v4092 = vpack.c.bf16 %v3962, %v3961
  %v4093 = vpack.c.bf16 %v3964, %v3963
  %v4094 = vpack.c.bf16 %v3966, %v3965
  %v4095 = vld [vmem:[%s3] sm:$0xf]
  %v4096 = vld [vmem:[%s3 + $0x4] sm:$0xf]
  %v4097 = vld [vmem:[%s4] sm:$0x1]
  %v4099 = vlaneseq
  %v4100 = vshrl.u32 %v4099, 7
  %v4101 = vsub.s32 0, %v4100
  %v4102 = vrot.slane %v4097, %v4101
  %v4106 = vunpack.c.l.b16 %v4095
  %v4107 = vunpack.c.l.b16 %v4096
  %v4108 = vpack.c.b16 %v4107, %v4106
  %vm4110 = vcmask 130048
  %v4112 = vsel %vm4110, %v3967, 0
  %v4115 = vsel %vm4110, %v3968, 0
  %v4118 = vsel %vm4110, %v3969, 0
  %v4121 = vsel %vm4110, %v3970, 0
  %v4124 = vsel %vm4110, %v3971, 0
  %v4127 = vsel %vm4110, %v3972, 0
  %v4130 = vsel %vm4110, %v3973, 0
  %v4133 = vsel %vm4110, %v3974, 0
  %v4136 = vsel %vm4110, %v3975, 0
  %v4139 = vsel %vm4110, %v3976, 0
  %v4142 = vsel %vm4110, %v3977, 0
  %v4145 = vsel %vm4110, %v3978, 0
  %v4148 = vsel %vm4110, %v3979, 0
  %v4151 = vsel %vm4110, %v3980, 0
  %v4154 = vsel %vm4110, %v3981, 0
  %v4157 = vsel %vm4110, %v3982, 0
  %v4160 = vsel %vm4110, %v3983, 0
  %v4163 = vsel %vm4110, %v3984, 0
  %v4166 = vsel %vm4110, %v3985, 0
  %v4169 = vsel %vm4110, %v3986, 0
  %v4172 = vsel %vm4110, %v3987, 0
  %v4175 = vsel %vm4110, %v3988, 0
  %v4178 = vsel %vm4110, %v3989, 0
  %v4181 = vsel %vm4110, %v3990, 0
  %v4184 = vsel %vm4110, %v3991, 0
  %v4187 = vsel %vm4110, %v3992, 0
  %v4190 = vsel %vm4110, %v3993, 0
  %v4193 = vsel %vm4110, %v3994, 0
  %v4196 = vsel %vm4110, %v3995, 0
  %v4199 = vsel %vm4110, %v3996, 0
  %v4202 = vsel %vm4110, %v3997, 0
  %v4205 = vsel %vm4110, %v3998, 0
  %4207 = vmatprep.subr.bf16.mxu0 0
  %4208 = vmatpush1.bf16.msra.mxu0 %v4108
  %4209 = vmatprep.subr.bf16.mxu0 0
  %4210 = vmatpush1.bf16.msra.mxu0 0
  %4211 = vmatprep.subr.bf16.mxu0 0
  %4212 = vmatpush1.bf16.msra.mxu0 0
  %4213 = vmatprep.subr.bf16.mxu0 0
  %4214 = vmatpush1.bf16.msra.mxu0 0
  %4215 = vmatprep.subr.bf16.mxu0 0
  %4216 = vmatpush1.bf16.msra.mxu0 0
  %4217 = vmatprep.subr.bf16.mxu0 0
  %4218 = vmatpush1.bf16.msra.mxu0 0
  %4219 = vmatprep.subr.bf16.mxu0 0
  %4220 = vmatpush1.bf16.msra.mxu0 0
  %4221 = vmatprep.subr.bf16.mxu0 0
  %4222 = vmatpush1.bf16.msra.mxu0 0
  %4223 = vmatprep.subr.bf16.mxu0 0
  %4224 = vmatpush1.bf16.msra.mxu0 0
  %4225 = vmatprep.subr.bf16.mxu0 0
  %4226 = vmatpush1.bf16.msra.mxu0 0
  %4227 = vmatprep.subr.bf16.mxu0 0
  %4228 = vmatpush1.bf16.msra.mxu0 0
  %4229 = vmatprep.subr.bf16.mxu0 0
  %4230 = vmatpush1.bf16.msra.mxu0 0
  %4231 = vmatprep.subr.bf16.mxu0 0
  %4232 = vmatpush1.bf16.msra.mxu0 0
  %4233 = vmatprep.subr.bf16.mxu0 0
  %4234 = vmatpush1.bf16.msra.mxu0 0
  %4235 = vmatprep.subr.bf16.mxu0 0
  %4236 = vmatpush1.bf16.msra.mxu0 0
  %4237 = vmatprep.subr.bf16.mxu0 0
  %4238 = vmatpush1.bf16.msra.mxu0 0
  %4239 = vmatprep.mubr.bf16.mxu0 0
  %4240 = vmatmul.mubr.bf16.gmra.mrb[0].mxu0 %v4112
  %v4241 = vpop.f32.mrb[0].mxu0
  %v4242 = vadd.f32 %v4102, %v4241
  %v4243 = vpop.f32.mrb[0].mxu0
  %v4244 = vpop.f32.mrb[0].mxu0
  %v4245 = vadd.f32 %v4102, %v4244
  %v4246 = vpop.f32.mrb[0].mxu0
  %4247 = vmatprep.mubr.bf16.mxu0 0
  %4248 = vmatmul.mubr.bf16.gmra.mrb[0].mxu0 %v4115
  %v4249 = vpop.f32.mrb[0].mxu0
  %v4250 = vadd.f32 %v4102, %v4249
  %v4251 = vpop.f32.mrb[0].mxu0
  %v4252 = vpop.f32.mrb[0].mxu0
  %v4253 = vadd.f32 %v4102, %v4252
  %v4254 = vpop.f32.mrb[0].mxu0
  %4255 = vmatprep.mubr.bf16.mxu0 0
  %4256 = vmatmul.mubr.bf16.gmra.mrb[0].mxu0 %v4118
  %v4257 = vpop.f32.mrb[0].mxu0
  %v4258 = vadd.f32 %v4102, %v4257
  %v4259 = vpop.f32.mrb[0].mxu0
  %v4260 = vpop.f32.mrb[0].mxu0
  %v4261 = vadd.f32 %v4102, %v4260
  %v4262 = vpop.f32.mrb[0].mxu0
  %4263 = vmatprep.mubr.bf16.mxu0 0
  %4264 = vmatmul.mubr.bf16.gmra.mrb[0].mxu0 %v4121
  %v4265 = vpop.f32.mrb[0].mxu0
  %v4266 = vadd.f32 %v4102, %v4265
  %v4267 = vpop.f32.mrb[0].mxu0
  %v4268 = vpop.f32.mrb[0].mxu0
  %v4269 = vadd.f32 %v4102, %v4268
  %v4270 = vpop.f32.mrb[0].mxu0
  %4271 = vmatprep.mubr.bf16.mxu0 0
  %4272 = vmatmul.mubr.bf16.gmra.mrb[0].mxu0 %v4124
  %v4273 = vpop.f32.mrb[0].mxu0
  %v4274 = vadd.f32 %v4102, %v4273
  %v4275 = vpop.f32.mrb[0].mxu0
  %v4276 = vpop.f32.mrb[0].mxu0
  %v4277 = vadd.f32 %v4102, %v4276
  %v4278 = vpop.f32.mrb[0].mxu0
  %4279 = vmatprep.mubr.bf16.mxu0 0
  %4280 = vmatmul.mubr.bf16.gmra.mrb[0].mxu0 %v4127
  %v4281 = vpop.f32.mrb[0].mxu0
  %v4282 = vadd.f32 %v4102, %v4281
  %v4283 = vpop.f32.mrb[0].mxu0
  %v4284 = vpop.f32.mrb[0].mxu0
  %v4285 = vadd.f32 %v4102, %v4284
  %v4286 = vpop.f32.mrb[0].mxu0
  %4287 = vmatprep.mubr.bf16.mxu0 0
  %4288 = vmatmul.mubr.bf16.gmra.mrb[0].mxu0 %v4130
  %v4289 = vpop.f32.mrb[0].mxu0
  %v4290 = vadd.f32 %v4102, %v4289
  %v4291 = vpop.f32.mrb[0].mxu0
  %v4292 = vpop.f32.mrb[0].mxu0
  %v4293 = vadd.f32 %v4102, %v4292
  %v4294 = vpop.f32.mrb[0].mxu0
  %4295 = vmatprep.mubr.bf16.mxu0 0
  %4296 = vmatmul.mubr.bf16.gmra.mrb[0].mxu0 %v4133
  %v4297 = vpop.f32.mrb[0].mxu0
  %v4298 = vadd.f32 %v4102, %v4297
  %v4299 = vpop.f32.mrb[0].mxu0
  %v4300 = vpop.f32.mrb[0].mxu0
  %v4301 = vadd.f32 %v4102, %v4300
  %v4302 = vpop.f32.mrb[0].mxu0
  %4303 = vmatprep.mubr.bf16.mxu0 0
  %4304 = vmatmul.mubr.bf16.gmra.mrb[0].mxu0 %v4136
  %v4305 = vpop.f32.mrb[0].mxu0
  %v4306 = vadd.f32 %v4102, %v4305
  %v4307 = vpop.f32.mrb[0].mxu0
  %v4308 = vpop.f32.mrb[0].mxu0
  %v4309 = vadd.f32 %v4102, %v4308
  %v4310 = vpop.f32.mrb[0].mxu0
  %4311 = vmatprep.mubr.bf16.mxu0 0
  %4312 = vmatmul.mubr.bf16.gmra.mrb[0].mxu0 %v4139
  %v4313 = vpop.f32.mrb[0].mxu0
  %v4314 = vadd.f32 %v4102, %v4313
  %v4315 = vpop.f32.mrb[0].mxu0
  %v4316 = vpop.f32.mrb[0].mxu0
  %v4317 = vadd.f32 %v4102, %v4316
  %v4318 = vpop.f32.mrb[0].mxu0
  %4319 = vmatprep.mubr.bf16.mxu0 0
  %4320 = vmatmul.mubr.bf16.gmra.mrb[0].mxu0 %v4142
  %v4321 = vpop.f32.mrb[0].mxu0
  %v4322 = vadd.f32 %v4102, %v4321
  %v4323 = vpop.f32.mrb[0].mxu0
  %v4324 = vpop.f32.mrb[0].mxu0
  %v4325 = vadd.f32 %v4102, %v4324
  %v4326 = vpop.f32.mrb[0].mxu0
  %4327 = vmatprep.mubr.bf16.mxu0 0
  %4328 = vmatmul.mubr.bf16.gmra.mrb[0].mxu0 %v4145
  %v4329 = vpop.f32.mrb[0].mxu0
  %v4330 = vadd.f32 %v4102, %v4329
  %v4331 = vpop.f32.mrb[0].mxu0
  %v4332 = vpop.f32.mrb[0].mxu0
  %v4333 = vadd.f32 %v4102, %v4332
  %v4334 = vpop.f32.mrb[0].mxu0
  %4335 = vmatprep.mubr.bf16.mxu0 0
  %4336 = vmatmul.mubr.bf16.gmra.mrb[0].mxu0 %v4148
  %v4337 = vpop.f32.mrb[0].mxu0
  %v4338 = vadd.f32 %v4102, %v4337
  %v4339 = vpop.f32.mrb[0].mxu0
  %v4340 = vpop.f32.mrb[0].mxu0
  %v4341 = vadd.f32 %v4102, %v4340
  %v4342 = vpop.f32.mrb[0].mxu0
  %4343 = vmatprep.mubr.bf16.mxu0 0
  %4344 = vmatmul.mubr.bf16.gmra.mrb[0].mxu0 %v4151
  %v4345 = vpop.f32.mrb[0].mxu0
  %v4346 = vadd.f32 %v4102, %v4345
  %v4347 = vpop.f32.mrb[0].mxu0
  %v4348 = vpop.f32.mrb[0].mxu0
  %v4349 = vadd.f32 %v4102, %v4348
  %v4350 = vpop.f32.mrb[0].mxu0
  %4351 = vmatprep.mubr.bf16.mxu0 0
  %4352 = vmatmul.mubr.bf16.gmra.mrb[0].mxu0 %v4154
  %v4353 = vpop.f32.mrb[0].mxu0
  %v4354 = vadd.f32 %v4102, %v4353
  %v4355 = vpop.f32.mrb[0].mxu0
  %v4356 = vpop.f32.mrb[0].mxu0
  %v4357 = vadd.f32 %v4102, %v4356
  %v4358 = vpop.f32.mrb[0].mxu0
  %4359 = vmatprep.mubr.bf16.mxu0 0
  %4360 = vmatmul.mubr.bf16.gmra.mrb[0].mxu0 %v4157
  %v4361 = vpop.f32.mrb[0].mxu0
  %v4362 = vadd.f32 %v4102, %v4361
  %v4363 = vpop.f32.mrb[0].mxu0
  %v4364 = vpop.f32.mrb[0].mxu0
  %v4365 = vadd.f32 %v4102, %v4364
  %v4366 = vpop.f32.mrb[0].mxu0
  %4367 = vmatprep.mubr.bf16.mxu0 0
  %4368 = vmatmul.mubr.bf16.gmra.mrb[0].mxu0 %v4160
  %v4369 = vpop.f32.mrb[0].mxu0
  %v4370 = vadd.f32 %v4102, %v4369
  %v4371 = vpop.f32.mrb[0].mxu0
  %v4372 = vpop.f32.mrb[0].mxu0
  %v4373 = vadd.f32 %v4102, %v4372
  %v4374 = vpop.f32.mrb[0].mxu0
  %4375 = vmatprep.mubr.bf16.mxu0 0
  %4376 = vmatmul.mubr.bf16.gmra.mrb[0].mxu0 %v4163
  %v4377 = vpop.f32.mrb[0].mxu0
  %v4378 = vadd.f32 %v4102, %v4377
  %v4379 = vpop.f32.mrb[0].mxu0
  %v4380 = vpop.f32.mrb[0].mxu0
  %v4381 = vadd.f32 %v4102, %v4380
  %v4382 = vpop.f32.mrb[0].mxu0
  %4383 = vmatprep.mubr.bf16.mxu0 0
  %4384 = vmatmul.mubr.bf16.gmra.mrb[0].mxu0 %v4166
  %v4385 = vpop.f32.mrb[0].mxu0
  %v4386 = vadd.f32 %v4102, %v4385
  %v4387 = vpop.f32.mrb[0].mxu0
  %v4388 = vpop.f32.mrb[0].mxu0
  %v4389 = vadd.f32 %v4102, %v4388
  %v4390 = vpop.f32.mrb[0].mxu0
  %4391 = vmatprep.mubr.bf16.mxu0 0
  %4392 = vmatmul.mubr.bf16.gmra.mrb[0].mxu0 %v4169
  %v4393 = vpop.f32.mrb[0].mxu0
  %v4394 = vadd.f32 %v4102, %v4393
  %v4395 = vpop.f32.mrb[0].mxu0
  %v4396 = vpop.f32.mrb[0].mxu0
  %v4397 = vadd.f32 %v4102, %v4396
  %v4398 = vpop.f32.mrb[0].mxu0
  %4399 = vmatprep.mubr.bf16.mxu0 0
  %4400 = vmatmul.mubr.bf16.gmra.mrb[0].mxu0 %v4172
  %v4401 = vpop.f32.mrb[0].mxu0
  %v4402 = vadd.f32 %v4102, %v4401
  %v4403 = vpop.f32.mrb[0].mxu0
  %v4404 = vpop.f32.mrb[0].mxu0
  %v4405 = vadd.f32 %v4102, %v4404
  %v4406 = vpop.f32.mrb[0].mxu0
  %4407 = vmatprep.mubr.bf16.mxu0 0
  %4408 = vmatmul.mubr.bf16.gmra.mrb[0].mxu0 %v4175
  %v4409 = vpop.f32.mrb[0].mxu0
  %v4410 = vadd.f32 %v4102, %v4409
  %v4411 = vpop.f32.mrb[0].mxu0
  %v4412 = vpop.f32.mrb[0].mxu0
  %v4413 = vadd.f32 %v4102, %v4412
  %v4414 = vpop.f32.mrb[0].mxu0
  %4415 = vmatprep.mubr.bf16.mxu0 0
  %4416 = vmatmul.mubr.bf16.gmra.mrb[0].mxu0 %v4178
  %v4417 = vpop.f32.mrb[0].mxu0
  %v4418 = vadd.f32 %v4102, %v4417
  %v4419 = vpop.f32.mrb[0].mxu0
  %v4420 = vpop.f32.mrb[0].mxu0
  %v4421 = vadd.f32 %v4102, %v4420
  %v4422 = vpop.f32.mrb[0].mxu0
  %4423 = vmatprep.mubr.bf16.mxu0 0
  %4424 = vmatmul.mubr.bf16.gmra.mrb[0].mxu0 %v4181
  %v4425 = vpop.f32.mrb[0].mxu0
  %v4426 = vadd.f32 %v4102, %v4425
  %v4427 = vpop.f32.mrb[0].mxu0
  %v4428 = vpop.f32.mrb[0].mxu0
  %v4429 = vadd.f32 %v4102, %v4428
  %v4430 = vpop.f32.mrb[0].mxu0
  %4431 = vmatprep.mubr.bf16.mxu0 0
  %4432 = vmatmul.mubr.bf16.gmra.mrb[0].mxu0 %v4184
  %v4433 = vpop.f32.mrb[0].mxu0
  %v4434 = vadd.f32 %v4102, %v4433
  %v4435 = vpop.f32.mrb[0].mxu0
  %v4436 = vpop.f32.mrb[0].mxu0
  %v4437 = vadd.f32 %v4102, %v4436
  %v4438 = vpop.f32.mrb[0].mxu0
  %4439 = vmatprep.mubr.bf16.mxu0 0
  %4440 = vmatmul.mubr.bf16.gmra.mrb[0].mxu0 %v4187
  %v4441 = vpop.f32.mrb[0].mxu0
  %v4442 = vadd.f32 %v4102, %v4441
  %v4443 = vpop.f32.mrb[0].mxu0
  %v4444 = vpop.f32.mrb[0].mxu0
  %v4445 = vadd.f32 %v4102, %v4444
  %v4446 = vpop.f32.mrb[0].mxu0
  %4447 = vmatprep.mubr.bf16.mxu0 0
  %4448 = vmatmul.mubr.bf16.gmra.mrb[0].mxu0 %v4190
  %v4449 = vpop.f32.mrb[0].mxu0
  %v4450 = vadd.f32 %v4102, %v4449
  %v4451 = vpop.f32.mrb[0].mxu0
  %v4452 = vpop.f32.mrb[0].mxu0
  %v4453 = vadd.f32 %v4102, %v4452
  %v4454 = vpop.f32.mrb[0].mxu0
  %4455 = vmatprep.mubr.bf16.mxu0 0
  %4456 = vmatmul.mubr.bf16.gmra.mrb[0].mxu0 %v4193
  %v4457 = vpop.f32.mrb[0].mxu0
  %v4458 = vadd.f32 %v4102, %v4457
  %v4459 = vpop.f32.mrb[0].mxu0
  %v4460 = vpop.f32.mrb[0].mxu0
  %v4461 = vadd.f32 %v4102, %v4460
  %v4462 = vpop.f32.mrb[0].mxu0
  %4463 = vmatprep.mubr.bf16.mxu0 0
  %4464 = vmatmul.mubr.bf16.gmra.mrb[0].mxu0 %v4196
  %v4465 = vpop.f32.mrb[0].mxu0
  %v4466 = vadd.f32 %v4102, %v4465
  %v4467 = vpop.f32.mrb[0].mxu0
  %v4468 = vpop.f32.mrb[0].mxu0
  %v4469 = vadd.f32 %v4102, %v4468
  %v4470 = vpop.f32.mrb[0].mxu0
  %4471 = vmatprep.mubr.bf16.mxu0 0
  %4472 = vmatmul.mubr.bf16.gmra.mrb[0].mxu0 %v4199
  %v4473 = vpop.f32.mrb[0].mxu0
  %v4474 = vadd.f32 %v4102, %v4473
  %v4475 = vpop.f32.mrb[0].mxu0
  %v4476 = vpop.f32.mrb[0].mxu0
  %v4477 = vadd.f32 %v4102, %v4476
  %v4478 = vpop.f32.mrb[0].mxu0
  %4479 = vmatprep.mubr.bf16.mxu0 0
  %4480 = vmatmul.mubr.bf16.gmra.mrb[0].mxu0 %v4202
  %v4481 = vpop.f32.mrb[0].mxu0
  %v4482 = vadd.f32 %v4102, %v4481
  %v4483 = vpop.f32.mrb[0].mxu0
  %v4484 = vpop.f32.mrb[0].mxu0
  %v4485 = vadd.f32 %v4102, %v4484
  %v4486 = vpop.f32.mrb[0].mxu0
  %4487 = vmatprep.mubr.bf16.mxu0 0
  %4488 = vmatmul.mubr.bf16.gmra.mrb[0].mxu0 %v4205
  %v4489 = vpop.f32.mrb[0].mxu0
  %v4490 = vadd.f32 %v4102, %v4489
  %v4491 = vpop.f32.mrb[0].mxu0
  %v4492 = vpop.f32.mrb[0].mxu0
  %v4493 = vadd.f32 %v4102, %v4492
  %v4494 = vpop.f32.mrb[0].mxu0
  %4495 = vdwg.mxu0
  %s4496 = scalar_lea.vmem %s3, 8
  %v4497 = vld [vmem:[%s4496] sm:$0xf]
  %v4498 = vld [vmem:[%s4496 + $0x4] sm:$0xf]
  %v4501 = vunpack.c.l.b16 %v4497
  %v4502 = vunpack.c.l.b16 %v4498
  %v4503 = vpack.c.b16 %v4502, %v4501
  %v4506 = vsel %vm4110, %v3999, 0
  %v4509 = vsel %vm4110, %v4000, 0
  %v4512 = vsel %vm4110, %v4001, 0
  %v4515 = vsel %vm4110, %v4002, 0
  %v4518 = vsel %vm4110, %v4003, 0
  %v4521 = vsel %vm4110, %v4004, 0
  %v4524 = vsel %vm4110, %v4005, 0
  %v4527 = vsel %vm4110, %v4006, 0
  %v4530 = vsel %vm4110, %v4007, 0
  %v4533 = vsel %vm4110, %v4008, 0
  %v4536 = vsel %vm4110, %v4009, 0
  %v4539 = vsel %vm4110, %v4010, 0
  %v4542 = vsel %vm4110, %v4011, 0
  %v4545 = vsel %vm4110, %v4012, 0
  %v4548 = vsel %vm4110, %v4013, 0
  %v4551 = vsel %vm4110, %v4014, 0
  %v4554 = vsel %vm4110, %v4015, 0
  %v4557 = vsel %vm4110, %v4016, 0
  %v4560 = vsel %vm4110, %v4017, 0
  %v4563 = vsel %vm4110, %v4018, 0
  %v4566 = vsel %vm4110, %v4019, 0
  %v4569 = vsel %vm4110, %v4020, 0
  %v4572 = vsel %vm4110, %v4021, 0
  %v4575 = vsel %vm4110, %v4022, 0
  %v4578 = vsel %vm4110, %v4023, 0
  %v4581 = vsel %vm4110, %v4024, 0
  %v4584 = vsel %vm4110, %v4025, 0
  %v4587 = vsel %vm4110, %v4026, 0
  %v4590 = vsel %vm4110, %v4027, 0
  %v4593 = vsel %vm4110, %v4028, 0
  %v4596 = vsel %vm4110, %v4029, 0
  %v4599 = vsel %vm4110, %v4030, 0
  %4601 = vmatprep.subr.bf16.mxu0 0
  %4602 = vmatpush1.bf16.msra.mxu0 %v4503
  %4603 = vmatprep.subr.bf16.mxu0 0
  %4604 = vmatpush1.bf16.msra.mxu0 0
  %4605 = vmatprep.subr.bf16.mxu0 0
  %4606 = vmatpush1.bf16.msra.mxu0 0
  %4607 = vmatprep.subr.bf16.mxu0 0
  %4608 = vmatpush1.bf16.msra.mxu0 0
  %4609 = vmatprep.subr.bf16.mxu0 0
  %4610 = vmatpush1.bf16.msra.mxu0 0
  %4611 = vmatprep.subr.bf16.mxu0 0
  %4612 = vmatpush1.bf16.msra.mxu0 0
  %4613 = vmatprep.subr.bf16.mxu0 0
  %4614 = vmatpush1.bf16.msra.mxu0 0
  %4615 = vmatprep.subr.bf16.mxu0 0
  %4616 = vmatpush1.bf16.msra.mxu0 0
  %4617 = vmatprep.subr.bf16.mxu0 0
  %4618 = vmatpush1.bf16.msra.mxu0 0
  %4619 = vmatprep.subr.bf16.mxu0 0
  %4620 = vmatpush1.bf16.msra.mxu0 0
  %4621 = vmatprep.subr.bf16.mxu0 0
  %4622 = vmatpush1.bf16.msra.mxu0 0
  %4623 = vmatprep.subr.bf16.mxu0 0
  %4624 = vmatpush1.bf16.msra.mxu0 0
  %4625 = vmatprep.subr.bf16.mxu0 0
  %4626 = vmatpush1.bf16.msra.mxu0 0
  %4627 = vmatprep.subr.bf16.mxu0 0
  %4628 = vmatpush1.bf16.msra.mxu0 0
  %4629 = vmatprep.subr.bf16.mxu0 0
  %4630 = vmatpush1.bf16.msra.mxu0 0
  %4631 = vmatprep.subr.bf16.mxu0 0
  %4632 = vmatpush1.bf16.msra.mxu0 0
  %4633 = vmatprep.mubr.bf16.mxu0 0
  %4634 = vmatmul.mubr.bf16.gmra.mrb[0].mxu0 %v4506
  %v4635 = vpop.f32.mrb[0].mxu0
  %v4636 = vadd.f32 0.0, %v4635
  %v4637 = vpop.f32.mrb[0].mxu0
  %v4638 = vpop.f32.mrb[0].mxu0
  %v4639 = vadd.f32 0.0, %v4638
  %v4640 = vpop.f32.mrb[0].mxu0
  %4641 = vmatprep.mubr.bf16.mxu0 0
  %4642 = vmatmul.mubr.bf16.gmra.mrb[0].mxu0 %v4509
  %v4643 = vpop.f32.mrb[0].mxu0
  %v4644 = vadd.f32 0.0, %v4643
  %v4645 = vpop.f32.mrb[0].mxu0
  %v4646 = vpop.f32.mrb[0].mxu0
  %v4647 = vadd.f32 0.0, %v4646
  %v4648 = vpop.f32.mrb[0].mxu0
  %4649 = vmatprep.mubr.bf16.mxu0 0
  %4650 = vmatmul.mubr.bf16.gmra.mrb[0].mxu0 %v4512
  %v4651 = vpop.f32.mrb[0].mxu0
  %v4652 = vadd.f32 0.0, %v4651
  %v4653 = vpop.f32.mrb[0].mxu0
  %v4654 = vpop.f32.mrb[0].mxu0
  %v4655 = vadd.f32 0.0, %v4654
  %v4656 = vpop.f32.mrb[0].mxu0
  %4657 = vmatprep.mubr.bf16.mxu0 0
  %4658 = vmatmul.mubr.bf16.gmra.mrb[0].mxu0 %v4515
  %v4659 = vpop.f32.mrb[0].mxu0
  %v4660 = vadd.f32 0.0, %v4659
  %v4661 = vpop.f32.mrb[0].mxu0
  %v4662 = vpop.f32.mrb[0].mxu0
  %v4663 = vadd.f32 0.0, %v4662
  %v4664 = vpop.f32.mrb[0].mxu0
  %4665 = vmatprep.mubr.bf16.mxu0 0
  %4666 = vmatmul.mubr.bf16.gmra.mrb[0].mxu0 %v4518
  %v4667 = vpop.f32.mrb[0].mxu0
  %v4668 = vadd.f32 0.0, %v4667
  %v4669 = vpop.f32.mrb[0].mxu0
  %v4670 = vpop.f32.mrb[0].mxu0
  %v4671 = vadd.f32 0.0, %v4670
  %v4672 = vpop.f32.mrb[0].mxu0
  %4673 = vmatprep.mubr.bf16.mxu0 0
  %4674 = vmatmul.mubr.bf16.gmra.mrb[0].mxu0 %v4521
  %v4675 = vpop.f32.mrb[0].mxu0
  %v4676 = vadd.f32 0.0, %v4675
  %v4677 = vpop.f32.mrb[0].mxu0
  %v4678 = vpop.f32.mrb[0].mxu0
  %v4679 = vadd.f32 0.0, %v4678
  %v4680 = vpop.f32.mrb[0].mxu0
  %4681 = vmatprep.mubr.bf16.mxu0 0
  %4682 = vmatmul.mubr.bf16.gmra.mrb[0].mxu0 %v4524
  %v4683 = vpop.f32.mrb[0].mxu0
  %v4684 = vadd.f32 0.0, %v4683
  %v4685 = vpop.f32.mrb[0].mxu0
  %v4686 = vpop.f32.mrb[0].mxu0
  %v4687 = vadd.f32 0.0, %v4686
  %v4688 = vpop.f32.mrb[0].mxu0
  %4689 = vmatprep.mubr.bf16.mxu0 0
  %4690 = vmatmul.mubr.bf16.gmra.mrb[0].mxu0 %v4527
  %v4691 = vpop.f32.mrb[0].mxu0
  %v4692 = vadd.f32 0.0, %v4691
  %v4693 = vpop.f32.mrb[0].mxu0
  %v4694 = vpop.f32.mrb[0].mxu0
  %v4695 = vadd.f32 0.0, %v4694
  %v4696 = vpop.f32.mrb[0].mxu0
  %4697 = vmatprep.mubr.bf16.mxu0 0
  %4698 = vmatmul.mubr.bf16.gmra.mrb[0].mxu0 %v4530
  %v4699 = vpop.f32.mrb[0].mxu0
  %v4700 = vadd.f32 0.0, %v4699
  %v4701 = vpop.f32.mrb[0].mxu0
  %v4702 = vpop.f32.mrb[0].mxu0
  %v4703 = vadd.f32 0.0, %v4702
  %v4704 = vpop.f32.mrb[0].mxu0
  %4705 = vmatprep.mubr.bf16.mxu0 0
  %4706 = vmatmul.mubr.bf16.gmra.mrb[0].mxu0 %v4533
  %v4707 = vpop.f32.mrb[0].mxu0
  %v4708 = vadd.f32 0.0, %v4707
  %v4709 = vpop.f32.mrb[0].mxu0
  %v4710 = vpop.f32.mrb[0].mxu0
  %v4711 = vadd.f32 0.0, %v4710
  %v4712 = vpop.f32.mrb[0].mxu0
  %4713 = vmatprep.mubr.bf16.mxu0 0
  %4714 = vmatmul.mubr.bf16.gmra.mrb[0].mxu0 %v4536
  %v4715 = vpop.f32.mrb[0].mxu0
  %v4716 = vadd.f32 0.0, %v4715
  %v4717 = vpop.f32.mrb[0].mxu0
  %v4718 = vpop.f32.mrb[0].mxu0
  %v4719 = vadd.f32 0.0, %v4718
  %v4720 = vpop.f32.mrb[0].mxu0
  %4721 = vmatprep.mubr.bf16.mxu0 0
  %4722 = vmatmul.mubr.bf16.gmra.mrb[0].mxu0 %v4539
  %v4723 = vpop.f32.mrb[0].mxu0
  %v4724 = vadd.f32 0.0, %v4723
  %v4725 = vpop.f32.mrb[0].mxu0
  %v4726 = vpop.f32.mrb[0].mxu0
  %v4727 = vadd.f32 0.0, %v4726
  %v4728 = vpop.f32.mrb[0].mxu0
  %4729 = vmatprep.mubr.bf16.mxu0 0
  %4730 = vmatmul.mubr.bf16.gmra.mrb[0].mxu0 %v4542
  %v4731 = vpop.f32.mrb[0].mxu0
  %v4732 = vadd.f32 0.0, %v4731
  %v4733 = vpop.f32.mrb[0].mxu0
  %v4734 = vpop.f32.mrb[0].mxu0
  %v4735 = vadd.f32 0.0, %v4734
  %v4736 = vpop.f32.mrb[0].mxu0
  %4737 = vmatprep.mubr.bf16.mxu0 0
  %4738 = vmatmul.mubr.bf16.gmra.mrb[0].mxu0 %v4545
  %v4739 = vpop.f32.mrb[0].mxu0
  %v4740 = vadd.f32 0.0, %v4739
  %v4741 = vpop.f32.mrb[0].mxu0
  %v4742 = vpop.f32.mrb[0].mxu0
  %v4743 = vadd.f32 0.0, %v4742
  %v4744 = vpop.f32.mrb[0].mxu0
  %4745 = vmatprep.mubr.bf16.mxu0 0
  %4746 = vmatmul.mubr.bf16.gmra.mrb[0].mxu0 %v4548
  %v4747 = vpop.f32.mrb[0].mxu0
  %v4748 = vadd.f32 0.0, %v4747
  %v4749 = vpop.f32.mrb[0].mxu0
  %v4750 = vpop.f32.mrb[0].mxu0
  %v4751 = vadd.f32 0.0, %v4750
  %v4752 = vpop.f32.mrb[0].mxu0
  %4753 = vmatprep.mubr.bf16.mxu0 0
  %4754 = vmatmul.mubr.bf16.gmra.mrb[0].mxu0 %v4551
  %v4755 = vpop.f32.mrb[0].mxu0
  %v4756 = vadd.f32 0.0, %v4755
  %v4757 = vpop.f32.mrb[0].mxu0
  %v4758 = vpop.f32.mrb[0].mxu0
  %v4759 = vadd.f32 0.0, %v4758
  %v4760 = vpop.f32.mrb[0].mxu0
  %4761 = vmatprep.mubr.bf16.mxu0 0
  %4762 = vmatmul.mubr.bf16.gmra.mrb[0].mxu0 %v4554
  %v4763 = vpop.f32.mrb[0].mxu0
  %v4764 = vadd.f32 0.0, %v4763
  %v4765 = vpop.f32.mrb[0].mxu0
  %v4766 = vpop.f32.mrb[0].mxu0
  %v4767 = vadd.f32 0.0, %v4766
  %v4768 = vpop.f32.mrb[0].mxu0
  %4769 = vmatprep.mubr.bf16.mxu0 0
  %4770 = vmatmul.mubr.bf16.gmra.mrb[0].mxu0 %v4557
  %v4771 = vpop.f32.mrb[0].mxu0
  %v4772 = vadd.f32 0.0, %v4771
  %v4773 = vpop.f32.mrb[0].mxu0
  %v4774 = vpop.f32.mrb[0].mxu0
  %v4775 = vadd.f32 0.0, %v4774
  %v4776 = vpop.f32.mrb[0].mxu0
  %4777 = vmatprep.mubr.bf16.mxu0 0
  %4778 = vmatmul.mubr.bf16.gmra.mrb[0].mxu0 %v4560
  %v4779 = vpop.f32.mrb[0].mxu0
  %v4780 = vadd.f32 0.0, %v4779
  %v4781 = vpop.f32.mrb[0].mxu0
  %v4782 = vpop.f32.mrb[0].mxu0
  %v4783 = vadd.f32 0.0, %v4782
  %v4784 = vpop.f32.mrb[0].mxu0
  %4785 = vmatprep.mubr.bf16.mxu0 0
  %4786 = vmatmul.mubr.bf16.gmra.mrb[0].mxu0 %v4563
  %v4787 = vpop.f32.mrb[0].mxu0
  %v4788 = vadd.f32 0.0, %v4787
  %v4789 = vpop.f32.mrb[0].mxu0
  %v4790 = vpop.f32.mrb[0].mxu0
  %v4791 = vadd.f32 0.0, %v4790
  %v4792 = vpop.f32.mrb[0].mxu0
  %4793 = vmatprep.mubr.bf16.mxu0 0
  %4794 = vmatmul.mubr.bf16.gmra.mrb[0].mxu0 %v4566
  %v4795 = vpop.f32.mrb[0].mxu0
  %v4796 = vadd.f32 0.0, %v4795
  %v4797 = vpop.f32.mrb[0].mxu0
  %v4798 = vpop.f32.mrb[0].mxu0
  %v4799 = vadd.f32 0.0, %v4798
  %v4800 = vpop.f32.mrb[0].mxu0
  %4801 = vmatprep.mubr.bf16.mxu0 0
  %4802 = vmatmul.mubr.bf16.gmra.mrb[0].mxu0 %v4569
  %v4803 = vpop.f32.mrb[0].mxu0
  %v4804 = vadd.f32 0.0, %v4803
  %v4805 = vpop.f32.mrb[0].mxu0
  %v4806 = vpop.f32.mrb[0].mxu0
  %v4807 = vadd.f32 0.0, %v4806
  %v4808 = vpop.f32.mrb[0].mxu0
  %4809 = vmatprep.mubr.bf16.mxu0 0
  %4810 = vmatmul.mubr.bf16.gmra.mrb[0].mxu0 %v4572
  %v4811 = vpop.f32.mrb[0].mxu0
  %v4812 = vadd.f32 0.0, %v4811
  %v4813 = vpop.f32.mrb[0].mxu0
  %v4814 = vpop.f32.mrb[0].mxu0
  %v4815 = vadd.f32 0.0, %v4814
  %v4816 = vpop.f32.mrb[0].mxu0
  %4817 = vmatprep.mubr.bf16.mxu0 0
  %4818 = vmatmul.mubr.bf16.gmra.mrb[0].mxu0 %v4575
  %v4819 = vpop.f32.mrb[0].mxu0
  %v4820 = vadd.f32 0.0, %v4819
  %v4821 = vpop.f32.mrb[0].mxu0
  %v4822 = vpop.f32.mrb[0].mxu0
  %v4823 = vadd.f32 0.0, %v4822
  %v4824 = vpop.f32.mrb[0].mxu0
  %4825 = vmatprep.mubr.bf16.mxu0 0
  %4826 = vmatmul.mubr.bf16.gmra.mrb[0].mxu0 %v4578
  %v4827 = vpop.f32.mrb[0].mxu0
  %v4828 = vadd.f32 0.0, %v4827
  %v4829 = vpop.f32.mrb[0].mxu0
  %v4830 = vpop.f32.mrb[0].mxu0
  %v4831 = vadd.f32 0.0, %v4830
  %v4832 = vpop.f32.mrb[0].mxu0
  %4833 = vmatprep.mubr.bf16.mxu0 0
  %4834 = vmatmul.mubr.bf16.gmra.mrb[0].mxu0 %v4581
  %v4835 = vpop.f32.mrb[0].mxu0
  %v4836 = vadd.f32 0.0, %v4835
  %v4837 = vpop.f32.mrb[0].mxu0
  %v4838 = vpop.f32.mrb[0].mxu0
  %v4839 = vadd.f32 0.0, %v4838
  %v4840 = vpop.f32.mrb[0].mxu0
  %4841 = vmatprep.mubr.bf16.mxu0 0
  %4842 = vmatmul.mubr.bf16.gmra.mrb[0].mxu0 %v4584
  %v4843 = vpop.f32.mrb[0].mxu0
  %v4844 = vadd.f32 0.0, %v4843
  %v4845 = vpop.f32.mrb[0].mxu0
  %v4846 = vpop.f32.mrb[0].mxu0
  %v4847 = vadd.f32 0.0, %v4846
  %v4848 = vpop.f32.mrb[0].mxu0
  %4849 = vmatprep.mubr.bf16.mxu0 0
  %4850 = vmatmul.mubr.bf16.gmra.mrb[0].mxu0 %v4587
  %v4851 = vpop.f32.mrb[0].mxu0
  %v4852 = vadd.f32 0.0, %v4851
  %v4853 = vpop.f32.mrb[0].mxu0
  %v4854 = vpop.f32.mrb[0].mxu0
  %v4855 = vadd.f32 0.0, %v4854
  %v4856 = vpop.f32.mrb[0].mxu0
  %4857 = vmatprep.mubr.bf16.mxu0 0
  %4858 = vmatmul.mubr.bf16.gmra.mrb[0].mxu0 %v4590
  %v4859 = vpop.f32.mrb[0].mxu0
  %v4860 = vadd.f32 0.0, %v4859
  %v4861 = vpop.f32.mrb[0].mxu0
  %v4862 = vpop.f32.mrb[0].mxu0
  %v4863 = vadd.f32 0.0, %v4862
  %v4864 = vpop.f32.mrb[0].mxu0
  %4865 = vmatprep.mubr.bf16.mxu0 0
  %4866 = vmatmul.mubr.bf16.gmra.mrb[0].mxu0 %v4593
  %v4867 = vpop.f32.mrb[0].mxu0
  %v4868 = vadd.f32 0.0, %v4867
  %v4869 = vpop.f32.mrb[0].mxu0
  %v4870 = vpop.f32.mrb[0].mxu0
  %v4871 = vadd.f32 0.0, %v4870
  %v4872 = vpop.f32.mrb[0].mxu0
  %4873 = vmatprep.mubr.bf16.mxu0 0
  %4874 = vmatmul.mubr.bf16.gmra.mrb[0].mxu0 %v4596
  %v4875 = vpop.f32.mrb[0].mxu0
  %v4876 = vadd.f32 0.0, %v4875
  %v4877 = vpop.f32.mrb[0].mxu0
  %v4878 = vpop.f32.mrb[0].mxu0
  %v4879 = vadd.f32 0.0, %v4878
  %v4880 = vpop.f32.mrb[0].mxu0
  %4881 = vmatprep.mubr.bf16.mxu0 0
  %4882 = vmatmul.mubr.bf16.gmra.mrb[0].mxu0 %v4599
  %v4883 = vpop.f32.mrb[0].mxu0
  %v4884 = vadd.f32 0.0, %v4883
  %v4885 = vpop.f32.mrb[0].mxu0
  %v4886 = vpop.f32.mrb[0].mxu0
  %v4887 = vadd.f32 0.0, %v4886
  %v4888 = vpop.f32.mrb[0].mxu0
  %4889 = vdwg.mxu0
  %v4890 = vadd.f32 %v4242, %v4636
  %v4891 = vadd.f32 %v4245, %v4639
  %v4892 = vadd.f32 %v4250, %v4644
  %v4893 = vadd.f32 %v4253, %v4647
  %v4894 = vadd.f32 %v4258, %v4652
  %v4895 = vadd.f32 %v4261, %v4655
  %v4896 = vadd.f32 %v4266, %v4660
  %v4897 = vadd.f32 %v4269, %v4663
  %v4898 = vadd.f32 %v4274, %v4668
  %v4899 = vadd.f32 %v4277, %v4671
  %v4900 = vadd.f32 %v4282, %v4676
  %v4901 = vadd.f32 %v4285, %v4679
  %v4902 = vadd.f32 %v4290, %v4684
  %v4903 = vadd.f32 %v4293, %v4687
  %v4904 = vadd.f32 %v4298, %v4692
  %v4905 = vadd.f32 %v4301, %v4695
  %v4906 = vadd.f32 %v4306, %v4700
  %v4907 = vadd.f32 %v4309, %v4703
  %v4908 = vadd.f32 %v4314, %v4708
  %v4909 = vadd.f32 %v4317, %v4711
  %v4910 = vadd.f32 %v4322, %v4716
  %v4911 = vadd.f32 %v4325, %v4719
  %v4912 = vadd.f32 %v4330, %v4724
  %v4913 = vadd.f32 %v4333, %v4727
  %v4914 = vadd.f32 %v4338, %v4732
  %v4915 = vadd.f32 %v4341, %v4735
  %v4916 = vadd.f32 %v4346, %v4740
  %v4917 = vadd.f32 %v4349, %v4743
  %v4918 = vadd.f32 %v4354, %v4748
  %v4919 = vadd.f32 %v4357, %v4751
  %v4920 = vadd.f32 %v4362, %v4756
  %v4921 = vadd.f32 %v4365, %v4759
  %v4922 = vadd.f32 %v4370, %v4764
  %v4923 = vadd.f32 %v4373, %v4767
  %v4924 = vadd.f32 %v4378, %v4772
  %v4925 = vadd.f32 %v4381, %v4775
  %v4926 = vadd.f32 %v4386, %v4780
  %v4927 = vadd.f32 %v4389, %v4783
  %v4928 = vadd.f32 %v4394, %v4788
  %v4929 = vadd.f32 %v4397, %v4791
  %v4930 = vadd.f32 %v4402, %v4796
  %v4931 = vadd.f32 %v4405, %v4799
  %v4932 = vadd.f32 %v4410, %v4804
  %v4933 = vadd.f32 %v4413, %v4807
  %v4934 = vadd.f32 %v4418, %v4812
  %v4935 = vadd.f32 %v4421, %v4815
  %v4936 = vadd.f32 %v4426, %v4820
  %v4937 = vadd.f32 %v4429, %v4823
  %v4938 = vadd.f32 %v4434, %v4828
  %v4939 = vadd.f32 %v4437, %v4831
  %v4940 = vadd.f32 %v4442, %v4836
  %v4941 = vadd.f32 %v4445, %v4839
  %v4942 = vadd.f32 %v4450, %v4844
  %v4943 = vadd.f32 %v4453, %v4847
  %v4944 = vadd.f32 %v4458, %v4852
  %v4945 = vadd.f32 %v4461, %v4855
  %v4946 = vadd.f32 %v4466, %v4860
  %v4947 = vadd.f32 %v4469, %v4863
  %v4948 = vadd.f32 %v4474, %v4868
  %v4949 = vadd.f32 %v4477, %v4871
  %v4950 = vadd.f32 %v4482, %v4876
  %v4951 = vadd.f32 %v4485, %v4879
  %v4952 = vadd.f32 %v4490, %v4884
  %v4953 = vadd.f32 %v4493, %v4887
  %s4954 = scalar_lea.vmem %s3, 16
  %v4955 = vld [vmem:[%s4954] sm:$0xf]
  %v4956 = vld [vmem:[%s4954 + $0x4] sm:$0xf]
  %v4959 = vunpack.c.l.b16 %v4955
  %v4960 = vunpack.c.l.b16 %v4956
  %v4961 = vpack.c.b16 %v4960, %v4959
  %v4964 = vsel %vm4110, %v4031, 0
  %v4967 = vsel %vm4110, %v4032, 0
  %v4970 = vsel %vm4110, %v4033, 0
  %v4973 = vsel %vm4110, %v4034, 0
  %v4976 = vsel %vm4110, %v4035, 0
  %v4979 = vsel %vm4110, %v4036, 0
  %v4982 = vsel %vm4110, %v4037, 0
  %v4985 = vsel %vm4110, %v4038, 0
  %v4988 = vsel %vm4110, %v4039, 0
  %v4991 = vsel %vm4110, %v4040, 0
  %v4994 = vsel %vm4110, %v4041, 0
  %v4997 = vsel %vm4110, %v4042, 0
  %v5000 = vsel %vm4110, %v4043, 0
  %v5003 = vsel %vm4110, %v4044, 0
  %v5006 = vsel %vm4110, %v4045, 0
  %v5009 = vsel %vm4110, %v4046, 0
  %v5012 = vsel %vm4110, %v4047, 0
  %v5015 = vsel %vm4110, %v4048, 0
  %v5018 = vsel %vm4110, %v4049, 0
  %v5021 = vsel %vm4110, %v4050, 0
  %v5024 = vsel %vm4110, %v4051, 0
  %v5027 = vsel %vm4110, %v4052, 0
  %v5030 = vsel %vm4110, %v4053, 0
  %v5033 = vsel %vm4110, %v4054, 0
  %v5036 = vsel %vm4110, %v4055, 0
  %v5039 = vsel %vm4110, %v4056, 0
  %v5042 = vsel %vm4110, %v4057, 0
  %v5045 = vsel %vm4110, %v4058, 0
  %v5048 = vsel %vm4110, %v4059, 0
  %v5051 = vsel %vm4110, %v4060, 0
  %v5054 = vsel %vm4110, %v4061, 0
  %v5057 = vsel %vm4110, %v4062, 0
  %5059 = vmatprep.subr.bf16.mxu0 0
  %5060 = vmatpush1.bf16.msra.mxu0 %v4961
  %5061 = vmatprep.subr.bf16.mxu0 0
  %5062 = vmatpush1.bf16.msra.mxu0 0
  %5063 = vmatprep.subr.bf16.mxu0 0
  %5064 = vmatpush1.bf16.msra.mxu0 0
  %5065 = vmatprep.subr.bf16.mxu0 0
  %5066 = vmatpush1.bf16.msra.mxu0 0
  %5067 = vmatprep.subr.bf16.mxu0 0
  %5068 = vmatpush1.bf16.msra.mxu0 0
  %5069 = vmatprep.subr.bf16.mxu0 0
  %5070 = vmatpush1.bf16.msra.mxu0 0
  %5071 = vmatprep.subr.bf16.mxu0 0
  %5072 = vmatpush1.bf16.msra.mxu0 0
  %5073 = vmatprep.subr.bf16.mxu0 0
  %5074 = vmatpush1.bf16.msra.mxu0 0
  %5075 = vmatprep.subr.bf16.mxu0 0
  %5076 = vmatpush1.bf16.msra.mxu0 0
  %5077 = vmatprep.subr.bf16.mxu0 0
  %5078 = vmatpush1.bf16.msra.mxu0 0
  %5079 = vmatprep.subr.bf16.mxu0 0
  %5080 = vmatpush1.bf16.msra.mxu0 0
  %5081 = vmatprep.subr.bf16.mxu0 0
  %5082 = vmatpush1.bf16.msra.mxu0 0
  %5083 = vmatprep.subr.bf16.mxu0 0
  %5084 = vmatpush1.bf16.msra.mxu0 0
  %5085 = vmatprep.subr.bf16.mxu0 0
  %5086 = vmatpush1.bf16.msra.mxu0 0
  %5087 = vmatprep.subr.bf16.mxu0 0
  %5088 = vmatpush1.bf16.msra.mxu0 0
  %5089 = vmatprep.subr.bf16.mxu0 0
  %5090 = vmatpush1.bf16.msra.mxu0 0
  %5091 = vmatprep.mubr.bf16.mxu0 0
  %5092 = vmatmul.mubr.bf16.gmra.mrb[0].mxu0 %v4964
  %v5093 = vpop.f32.mrb[0].mxu0
  %v5094 = vadd.f32 0.0, %v5093
  %v5095 = vpop.f32.mrb[0].mxu0
  %v5096 = vpop.f32.mrb[0].mxu0
  %v5097 = vadd.f32 0.0, %v5096
  %v5098 = vpop.f32.mrb[0].mxu0
  %5099 = vmatprep.mubr.bf16.mxu0 0
  %5100 = vmatmul.mubr.bf16.gmra.mrb[0].mxu0 %v4967
  %v5101 = vpop.f32.mrb[0].mxu0
  %v5102 = vadd.f32 0.0, %v5101
  %v5103 = vpop.f32.mrb[0].mxu0
  %v5104 = vpop.f32.mrb[0].mxu0
  %v5105 = vadd.f32 0.0, %v5104
  %v5106 = vpop.f32.mrb[0].mxu0
  %5107 = vmatprep.mubr.bf16.mxu0 0
  %5108 = vmatmul.mubr.bf16.gmra.mrb[0].mxu0 %v4970
  %v5109 = vpop.f32.mrb[0].mxu0
  %v5110 = vadd.f32 0.0, %v5109
  %v5111 = vpop.f32.mrb[0].mxu0
  %v5112 = vpop.f32.mrb[0].mxu0
  %v5113 = vadd.f32 0.0, %v5112
  %v5114 = vpop.f32.mrb[0].mxu0
  %5115 = vmatprep.mubr.bf16.mxu0 0
  %5116 = vmatmul.mubr.bf16.gmra.mrb[0].mxu0 %v4973
  %v5117 = vpop.f32.mrb[0].mxu0
  %v5118 = vadd.f32 0.0, %v5117
  %v5119 = vpop.f32.mrb[0].mxu0
  %v5120 = vpop.f32.mrb[0].mxu0
  %v5121 = vadd.f32 0.0, %v5120
  %v5122 = vpop.f32.mrb[0].mxu0
  %5123 = vmatprep.mubr.bf16.mxu0 0
  %5124 = vmatmul.mubr.bf16.gmra.mrb[0].mxu0 %v4976
  %v5125 = vpop.f32.mrb[0].mxu0
  %v5126 = vadd.f32 0.0, %v5125
  %v5127 = vpop.f32.mrb[0].mxu0
  %v5128 = vpop.f32.mrb[0].mxu0
  %v5129 = vadd.f32 0.0, %v5128
  %v5130 = vpop.f32.mrb[0].mxu0
  %5131 = vmatprep.mubr.bf16.mxu0 0
  %5132 = vmatmul.mubr.bf16.gmra.mrb[0].mxu0 %v4979
  %v5133 = vpop.f32.mrb[0].mxu0
  %v5134 = vadd.f32 0.0, %v5133
  %v5135 = vpop.f32.mrb[0].mxu0
  %v5136 = vpop.f32.mrb[0].mxu0
  %v5137 = vadd.f32 0.0, %v5136
  %v5138 = vpop.f32.mrb[0].mxu0
  %5139 = vmatprep.mubr.bf16.mxu0 0
  %5140 = vmatmul.mubr.bf16.gmra.mrb[0].mxu0 %v4982
  %v5141 = vpop.f32.mrb[0].mxu0
  %v5142 = vadd.f32 0.0, %v5141
  %v5143 = vpop.f32.mrb[0].mxu0
  %v5144 = vpop.f32.mrb[0].mxu0
  %v5145 = vadd.f32 0.0, %v5144
  %v5146 = vpop.f32.mrb[0].mxu0
  %5147 = vmatprep.mubr.bf16.mxu0 0
  %5148 = vmatmul.mubr.bf16.gmra.mrb[0].mxu0 %v4985
  %v5149 = vpop.f32.mrb[0].mxu0
  %v5150 = vadd.f32 0.0, %v5149
  %v5151 = vpop.f32.mrb[0].mxu0
  %v5152 = vpop.f32.mrb[0].mxu0
  %v5153 = vadd.f32 0.0, %v5152
  %v5154 = vpop.f32.mrb[0].mxu0
  %5155 = vmatprep.mubr.bf16.mxu0 0
  %5156 = vmatmul.mubr.bf16.gmra.mrb[0].mxu0 %v4988
  %v5157 = vpop.f32.mrb[0].mxu0
  %v5158 = vadd.f32 0.0, %v5157
  %v5159 = vpop.f32.mrb[0].mxu0
  %v5160 = vpop.f32.mrb[0].mxu0
  %v5161 = vadd.f32 0.0, %v5160
  %v5162 = vpop.f32.mrb[0].mxu0
  %5163 = vmatprep.mubr.bf16.mxu0 0
  %5164 = vmatmul.mubr.bf16.gmra.mrb[0].mxu0 %v4991
  %v5165 = vpop.f32.mrb[0].mxu0
  %v5166 = vadd.f32 0.0, %v5165
  %v5167 = vpop.f32.mrb[0].mxu0
  %v5168 = vpop.f32.mrb[0].mxu0
  %v5169 = vadd.f32 0.0, %v5168
  %v5170 = vpop.f32.mrb[0].mxu0
  %5171 = vmatprep.mubr.bf16.mxu0 0
  %5172 = vmatmul.mubr.bf16.gmra.mrb[0].mxu0 %v4994
  %v5173 = vpop.f32.mrb[0].mxu0
  %v5174 = vadd.f32 0.0, %v5173
  %v5175 = vpop.f32.mrb[0].mxu0
  %v5176 = vpop.f32.mrb[0].mxu0
  %v5177 = vadd.f32 0.0, %v5176
  %v5178 = vpop.f32.mrb[0].mxu0
  %5179 = vmatprep.mubr.bf16.mxu0 0
  %5180 = vmatmul.mubr.bf16.gmra.mrb[0].mxu0 %v4997
  %v5181 = vpop.f32.mrb[0].mxu0
  %v5182 = vadd.f32 0.0, %v5181
  %v5183 = vpop.f32.mrb[0].mxu0
  %v5184 = vpop.f32.mrb[0].mxu0
  %v5185 = vadd.f32 0.0, %v5184
  %v5186 = vpop.f32.mrb[0].mxu0
  %5187 = vmatprep.mubr.bf16.mxu0 0
  %5188 = vmatmul.mubr.bf16.gmra.mrb[0].mxu0 %v5000
  %v5189 = vpop.f32.mrb[0].mxu0
  %v5190 = vadd.f32 0.0, %v5189
  %v5191 = vpop.f32.mrb[0].mxu0
  %v5192 = vpop.f32.mrb[0].mxu0
  %v5193 = vadd.f32 0.0, %v5192
  %v5194 = vpop.f32.mrb[0].mxu0
  %5195 = vmatprep.mubr.bf16.mxu0 0
  %5196 = vmatmul.mubr.bf16.gmra.mrb[0].mxu0 %v5003
  %v5197 = vpop.f32.mrb[0].mxu0
  %v5198 = vadd.f32 0.0, %v5197
  %v5199 = vpop.f32.mrb[0].mxu0
  %v5200 = vpop.f32.mrb[0].mxu0
  %v5201 = vadd.f32 0.0, %v5200
  %v5202 = vpop.f32.mrb[0].mxu0
  %5203 = vmatprep.mubr.bf16.mxu0 0
  %5204 = vmatmul.mubr.bf16.gmra.mrb[0].mxu0 %v5006
  %v5205 = vpop.f32.mrb[0].mxu0
  %v5206 = vadd.f32 0.0, %v5205
  %v5207 = vpop.f32.mrb[0].mxu0
  %v5208 = vpop.f32.mrb[0].mxu0
  %v5209 = vadd.f32 0.0, %v5208
  %v5210 = vpop.f32.mrb[0].mxu0
  %5211 = vmatprep.mubr.bf16.mxu0 0
  %5212 = vmatmul.mubr.bf16.gmra.mrb[0].mxu0 %v5009
  %v5213 = vpop.f32.mrb[0].mxu0
  %v5214 = vadd.f32 0.0, %v5213
  %v5215 = vpop.f32.mrb[0].mxu0
  %v5216 = vpop.f32.mrb[0].mxu0
  %v5217 = vadd.f32 0.0, %v5216
  %v5218 = vpop.f32.mrb[0].mxu0
  %5219 = vmatprep.mubr.bf16.mxu0 0
  %5220 = vmatmul.mubr.bf16.gmra.mrb[0].mxu0 %v5012
  %v5221 = vpop.f32.mrb[0].mxu0
  %v5222 = vadd.f32 0.0, %v5221
  %v5223 = vpop.f32.mrb[0].mxu0
  %v5224 = vpop.f32.mrb[0].mxu0
  %v5225 = vadd.f32 0.0, %v5224
  %v5226 = vpop.f32.mrb[0].mxu0
  %5227 = vmatprep.mubr.bf16.mxu0 0
  %5228 = vmatmul.mubr.bf16.gmra.mrb[0].mxu0 %v5015
  %v5229 = vpop.f32.mrb[0].mxu0
  %v5230 = vadd.f32 0.0, %v5229
  %v5231 = vpop.f32.mrb[0].mxu0
  %v5232 = vpop.f32.mrb[0].mxu0
  %v5233 = vadd.f32 0.0, %v5232
  %v5234 = vpop.f32.mrb[0].mxu0
  %5235 = vmatprep.mubr.bf16.mxu0 0
  %5236 = vmatmul.mubr.bf16.gmra.mrb[0].mxu0 %v5018
  %v5237 = vpop.f32.mrb[0].mxu0
  %v5238 = vadd.f32 0.0, %v5237
  %v5239 = vpop.f32.mrb[0].mxu0
  %v5240 = vpop.f32.mrb[0].mxu0
  %v5241 = vadd.f32 0.0, %v5240
  %v5242 = vpop.f32.mrb[0].mxu0
  %5243 = vmatprep.mubr.bf16.mxu0 0
  %5244 = vmatmul.mubr.bf16.gmra.mrb[0].mxu0 %v5021
  %v5245 = vpop.f32.mrb[0].mxu0
  %v5246 = vadd.f32 0.0, %v5245
  %v5247 = vpop.f32.mrb[0].mxu0
  %v5248 = vpop.f32.mrb[0].mxu0
  %v5249 = vadd.f32 0.0, %v5248
  %v5250 = vpop.f32.mrb[0].mxu0
  %5251 = vmatprep.mubr.bf16.mxu0 0
  %5252 = vmatmul.mubr.bf16.gmra.mrb[0].mxu0 %v5024
  %v5253 = vpop.f32.mrb[0].mxu0
  %v5254 = vadd.f32 0.0, %v5253
  %v5255 = vpop.f32.mrb[0].mxu0
  %v5256 = vpop.f32.mrb[0].mxu0
  %v5257 = vadd.f32 0.0, %v5256
  %v5258 = vpop.f32.mrb[0].mxu0
  %5259 = vmatprep.mubr.bf16.mxu0 0
  %5260 = vmatmul.mubr.bf16.gmra.mrb[0].mxu0 %v5027
  %v5261 = vpop.f32.mrb[0].mxu0
  %v5262 = vadd.f32 0.0, %v5261
  %v5263 = vpop.f32.mrb[0].mxu0
  %v5264 = vpop.f32.mrb[0].mxu0
  %v5265 = vadd.f32 0.0, %v5264
  %v5266 = vpop.f32.mrb[0].mxu0
  %5267 = vmatprep.mubr.bf16.mxu0 0
  %5268 = vmatmul.mubr.bf16.gmra.mrb[0].mxu0 %v5030
  %v5269 = vpop.f32.mrb[0].mxu0
  %v5270 = vadd.f32 0.0, %v5269
  %v5271 = vpop.f32.mrb[0].mxu0
  %v5272 = vpop.f32.mrb[0].mxu0
  %v5273 = vadd.f32 0.0, %v5272
  %v5274 = vpop.f32.mrb[0].mxu0
  %5275 = vmatprep.mubr.bf16.mxu0 0
  %5276 = vmatmul.mubr.bf16.gmra.mrb[0].mxu0 %v5033
  %v5277 = vpop.f32.mrb[0].mxu0
  %v5278 = vadd.f32 0.0, %v5277
  %v5279 = vpop.f32.mrb[0].mxu0
  %v5280 = vpop.f32.mrb[0].mxu0
  %v5281 = vadd.f32 0.0, %v5280
  %v5282 = vpop.f32.mrb[0].mxu0
  %5283 = vmatprep.mubr.bf16.mxu0 0
  %5284 = vmatmul.mubr.bf16.gmra.mrb[0].mxu0 %v5036
  %v5285 = vpop.f32.mrb[0].mxu0
  %v5286 = vadd.f32 0.0, %v5285
  %v5287 = vpop.f32.mrb[0].mxu0
  %v5288 = vpop.f32.mrb[0].mxu0
  %v5289 = vadd.f32 0.0, %v5288
  %v5290 = vpop.f32.mrb[0].mxu0
  %5291 = vmatprep.mubr.bf16.mxu0 0
  %5292 = vmatmul.mubr.bf16.gmra.mrb[0].mxu0 %v5039
  %v5293 = vpop.f32.mrb[0].mxu0
  %v5294 = vadd.f32 0.0, %v5293
  %v5295 = vpop.f32.mrb[0].mxu0
  %v5296 = vpop.f32.mrb[0].mxu0
  %v5297 = vadd.f32 0.0, %v5296
  %v5298 = vpop.f32.mrb[0].mxu0
  %5299 = vmatprep.mubr.bf16.mxu0 0
  %5300 = vmatmul.mubr.bf16.gmra.mrb[0].mxu0 %v5042
  %v5301 = vpop.f32.mrb[0].mxu0
  %v5302 = vadd.f32 0.0, %v5301
  %v5303 = vpop.f32.mrb[0].mxu0
  %v5304 = vpop.f32.mrb[0].mxu0
  %v5305 = vadd.f32 0.0, %v5304
  %v5306 = vpop.f32.mrb[0].mxu0
  %5307 = vmatprep.mubr.bf16.mxu0 0
  %5308 = vmatmul.mubr.bf16.gmra.mrb[0].mxu0 %v5045
  %v5309 = vpop.f32.mrb[0].mxu0
  %v5310 = vadd.f32 0.0, %v5309
  %v5311 = vpop.f32.mrb[0].mxu0
  %v5312 = vpop.f32.mrb[0].mxu0
  %v5313 = vadd.f32 0.0, %v5312
  %v5314 = vpop.f32.mrb[0].mxu0
  %5315 = vmatprep.mubr.bf16.mxu0 0
  %5316 = vmatmul.mubr.bf16.gmra.mrb[0].mxu0 %v5048
  %v5317 = vpop.f32.mrb[0].mxu0
  %v5318 = vadd.f32 0.0, %v5317
  %v5319 = vpop.f32.mrb[0].mxu0
  %v5320 = vpop.f32.mrb[0].mxu0
  %v5321 = vadd.f32 0.0, %v5320
  %v5322 = vpop.f32.mrb[0].mxu0
  %5323 = vmatprep.mubr.bf16.mxu0 0
  %5324 = vmatmul.mubr.bf16.gmra.mrb[0].mxu0 %v5051
  %v5325 = vpop.f32.mrb[0].mxu0
  %v5326 = vadd.f32 0.0, %v5325
  %v5327 = vpop.f32.mrb[0].mxu0
  %v5328 = vpop.f32.mrb[0].mxu0
  %v5329 = vadd.f32 0.0, %v5328
  %v5330 = vpop.f32.mrb[0].mxu0
  %5331 = vmatprep.mubr.bf16.mxu0 0
  %5332 = vmatmul.mubr.bf16.gmra.mrb[0].mxu0 %v5054
  %v5333 = vpop.f32.mrb[0].mxu0
  %v5334 = vadd.f32 0.0, %v5333
  %v5335 = vpop.f32.mrb[0].mxu0
  %v5336 = vpop.f32.mrb[0].mxu0
  %v5337 = vadd.f32 0.0, %v5336
  %v5338 = vpop.f32.mrb[0].mxu0
  %5339 = vmatprep.mubr.bf16.mxu0 0
  %5340 = vmatmul.mubr.bf16.gmra.mrb[0].mxu0 %v5057
  %v5341 = vpop.f32.mrb[0].mxu0
  %v5342 = vadd.f32 0.0, %v5341
  %v5343 = vpop.f32.mrb[0].mxu0
  %v5344 = vpop.f32.mrb[0].mxu0
  %v5345 = vadd.f32 0.0, %v5344
  %v5346 = vpop.f32.mrb[0].mxu0
  %5347 = vdwg.mxu0
  %v5348 = vadd.f32 %v4890, %v5094
  %v5349 = vadd.f32 %v4891, %v5097
  %v5350 = vadd.f32 %v4892, %v5102
  %v5351 = vadd.f32 %v4893, %v5105
  %v5352 = vadd.f32 %v4894, %v5110
  %v5353 = vadd.f32 %v4895, %v5113
  %v5354 = vadd.f32 %v4896, %v5118
  %v5355 = vadd.f32 %v4897, %v5121
  %v5356 = vadd.f32 %v4898, %v5126
  %v5357 = vadd.f32 %v4899, %v5129
  %v5358 = vadd.f32 %v4900, %v5134
  %v5359 = vadd.f32 %v4901, %v5137
  %v5360 = vadd.f32 %v4902, %v5142
  %v5361 = vadd.f32 %v4903, %v5145
  %v5362 = vadd.f32 %v4904, %v5150
  %v5363 = vadd.f32 %v4905, %v5153
  %v5364 = vadd.f32 %v4906, %v5158
  %v5365 = vadd.f32 %v4907, %v5161
  %v5366 = vadd.f32 %v4908, %v5166
  %v5367 = vadd.f32 %v4909, %v5169
  %v5368 = vadd.f32 %v4910, %v5174
  %v5369 = vadd.f32 %v4911, %v5177
  %v5370 = vadd.f32 %v4912, %v5182
  %v5371 = vadd.f32 %v4913, %v5185
  %v5372 = vadd.f32 %v4914, %v5190
  %v5373 = vadd.f32 %v4915, %v5193
  %v5374 = vadd.f32 %v4916, %v5198
  %v5375 = vadd.f32 %v4917, %v5201
  %v5376 = vadd.f32 %v4918, %v5206
  %v5377 = vadd.f32 %v4919, %v5209
  %v5378 = vadd.f32 %v4920, %v5214
  %v5379 = vadd.f32 %v4921, %v5217
  %v5380 = vadd.f32 %v4922, %v5222
  %v5381 = vadd.f32 %v4923, %v5225
  %v5382 = vadd.f32 %v4924, %v5230
  %v5383 = vadd.f32 %v4925, %v5233
  %v5384 = vadd.f32 %v4926, %v5238
  %v5385 = vadd.f32 %v4927, %v5241
  %v5386 = vadd.f32 %v4928, %v5246
  %v5387 = vadd.f32 %v4929, %v5249
  %v5388 = vadd.f32 %v4930, %v5254
  %v5389 = vadd.f32 %v4931, %v5257
  %v5390 = vadd.f32 %v4932, %v5262
  %v5391 = vadd.f32 %v4933, %v5265
  %v5392 = vadd.f32 %v4934, %v5270
  %v5393 = vadd.f32 %v4935, %v5273
  %v5394 = vadd.f32 %v4936, %v5278
  %v5395 = vadd.f32 %v4937, %v5281
  %v5396 = vadd.f32 %v4938, %v5286
  %v5397 = vadd.f32 %v4939, %v5289
  %v5398 = vadd.f32 %v4940, %v5294
  %v5399 = vadd.f32 %v4941, %v5297
  %v5400 = vadd.f32 %v4942, %v5302
  %v5401 = vadd.f32 %v4943, %v5305
  %v5402 = vadd.f32 %v4944, %v5310
  %v5403 = vadd.f32 %v4945, %v5313
  %v5404 = vadd.f32 %v4946, %v5318
  %v5405 = vadd.f32 %v4947, %v5321
  %v5406 = vadd.f32 %v4948, %v5326
  %v5407 = vadd.f32 %v4949, %v5329
  %v5408 = vadd.f32 %v4950, %v5334
  %v5409 = vadd.f32 %v4951, %v5337
  %v5410 = vadd.f32 %v4952, %v5342
  %v5411 = vadd.f32 %v4953, %v5345
  %s5412 = scalar_lea.vmem %s3, 24
  %v5413 = vld [vmem:[%s5412] sm:$0xf]
  %v5414 = vld [vmem:[%s5412 + $0x4] sm:$0xf]
  %v5417 = vunpack.c.l.b16 %v5413
  %v5418 = vunpack.c.l.b16 %v5414
  %v5419 = vpack.c.b16 %v5418, %v5417
  %v5422 = vsel %vm4110, %v4063, 0
  %v5425 = vsel %vm4110, %v4064, 0
  %v5428 = vsel %vm4110, %v4065, 0
  %v5431 = vsel %vm4110, %v4066, 0
  %v5434 = vsel %vm4110, %v4067, 0
  %v5437 = vsel %vm4110, %v4068, 0
  %v5440 = vsel %vm4110, %v4069, 0
  %v5443 = vsel %vm4110, %v4070, 0
  %v5446 = vsel %vm4110, %v4071, 0
  %v5449 = vsel %vm4110, %v4072, 0
  %v5452 = vsel %vm4110, %v4073, 0
  %v5455 = vsel %vm4110, %v4074, 0
  %v5458 = vsel %vm4110, %v4075, 0
  %v5461 = vsel %vm4110, %v4076, 0
  %v5464 = vsel %vm4110, %v4077, 0
  %v5467 = vsel %vm4110, %v4078, 0
  %v5470 = vsel %vm4110, %v4079, 0
  %v5473 = vsel %vm4110, %v4080, 0
  %v5476 = vsel %vm4110, %v4081, 0
  %v5479 = vsel %vm4110, %v4082, 0
  %v5482 = vsel %vm4110, %v4083, 0
  %v5485 = vsel %vm4110, %v4084, 0
  %v5488 = vsel %vm4110, %v4085, 0
  %v5491 = vsel %vm4110, %v4086, 0
  %v5494 = vsel %vm4110, %v4087, 0
  %v5497 = vsel %vm4110, %v4088, 0
  %v5500 = vsel %vm4110, %v4089, 0
  %v5503 = vsel %vm4110, %v4090, 0
  %v5506 = vsel %vm4110, %v4091, 0
  %v5509 = vsel %vm4110, %v4092, 0
  %v5512 = vsel %vm4110, %v4093, 0
  %v5515 = vsel %vm4110, %v4094, 0
  %5517 = vmatprep.subr.bf16.mxu0 0
  %5518 = vmatpush1.bf16.msra.mxu0 %v5419
  %5519 = vmatprep.subr.bf16.mxu0 0
  %5520 = vmatpush1.bf16.msra.mxu0 0
  %5521 = vmatprep.subr.bf16.mxu0 0
  %5522 = vmatpush1.bf16.msra.mxu0 0
  %5523 = vmatprep.subr.bf16.mxu0 0
  %5524 = vmatpush1.bf16.msra.mxu0 0
  %5525 = vmatprep.subr.bf16.mxu0 0
  %5526 = vmatpush1.bf16.msra.mxu0 0
  %5527 = vmatprep.subr.bf16.mxu0 0
  %5528 = vmatpush1.bf16.msra.mxu0 0
  %5529 = vmatprep.subr.bf16.mxu0 0
  %5530 = vmatpush1.bf16.msra.mxu0 0
  %5531 = vmatprep.subr.bf16.mxu0 0
  %5532 = vmatpush1.bf16.msra.mxu0 0
  %5533 = vmatprep.subr.bf16.mxu0 0
  %5534 = vmatpush1.bf16.msra.mxu0 0
  %5535 = vmatprep.subr.bf16.mxu0 0
  %5536 = vmatpush1.bf16.msra.mxu0 0
  %5537 = vmatprep.subr.bf16.mxu0 0
  %5538 = vmatpush1.bf16.msra.mxu0 0
  %5539 = vmatprep.subr.bf16.mxu0 0
  %5540 = vmatpush1.bf16.msra.mxu0 0
  %5541 = vmatprep.subr.bf16.mxu0 0
  %5542 = vmatpush1.bf16.msra.mxu0 0
  %5543 = vmatprep.subr.bf16.mxu0 0
  %5544 = vmatpush1.bf16.msra.mxu0 0
  %5545 = vmatprep.subr.bf16.mxu0 0
  %5546 = vmatpush1.bf16.msra.mxu0 0
  %5547 = vmatprep.subr.bf16.mxu0 0
  %5548 = vmatpush1.bf16.msra.mxu0 0
  %5549 = vmatprep.mubr.bf16.mxu0 0
  %5550 = vmatmul.mubr.bf16.gmra.mrb[0].mxu0 %v5422
  %v5551 = vpop.f32.mrb[0].mxu0
  %v5552 = vadd.f32 0.0, %v5551
  %v5553 = vpop.f32.mrb[0].mxu0
  %v5554 = vpop.f32.mrb[0].mxu0
  %v5555 = vadd.f32 0.0, %v5554
  %v5556 = vpop.f32.mrb[0].mxu0
  %5557 = vmatprep.mubr.bf16.mxu0 0
  %5558 = vmatmul.mubr.bf16.gmra.mrb[0].mxu0 %v5425
  %v5559 = vpop.f32.mrb[0].mxu0
  %v5560 = vadd.f32 0.0, %v5559
  %v5561 = vpop.f32.mrb[0].mxu0
  %v5562 = vpop.f32.mrb[0].mxu0
  %v5563 = vadd.f32 0.0, %v5562
  %v5564 = vpop.f32.mrb[0].mxu0
  %5565 = vmatprep.mubr.bf16.mxu0 0
  %5566 = vmatmul.mubr.bf16.gmra.mrb[0].mxu0 %v5428
  %v5567 = vpop.f32.mrb[0].mxu0
  %v5568 = vadd.f32 0.0, %v5567
  %v5569 = vpop.f32.mrb[0].mxu0
  %v5570 = vpop.f32.mrb[0].mxu0
  %v5571 = vadd.f32 0.0, %v5570
  %v5572 = vpop.f32.mrb[0].mxu0
  %5573 = vmatprep.mubr.bf16.mxu0 0
  %5574 = vmatmul.mubr.bf16.gmra.mrb[0].mxu0 %v5431
  %v5575 = vpop.f32.mrb[0].mxu0
  %v5576 = vadd.f32 0.0, %v5575
  %v5577 = vpop.f32.mrb[0].mxu0
  %v5578 = vpop.f32.mrb[0].mxu0
  %v5579 = vadd.f32 0.0, %v5578
  %v5580 = vpop.f32.mrb[0].mxu0
  %5581 = vmatprep.mubr.bf16.mxu0 0
  %5582 = vmatmul.mubr.bf16.gmra.mrb[0].mxu0 %v5434
  %v5583 = vpop.f32.mrb[0].mxu0
  %v5584 = vadd.f32 0.0, %v5583
  %v5585 = vpop.f32.mrb[0].mxu0
  %v5586 = vpop.f32.mrb[0].mxu0
  %v5587 = vadd.f32 0.0, %v5586
  %v5588 = vpop.f32.mrb[0].mxu0
  %5589 = vmatprep.mubr.bf16.mxu0 0
  %5590 = vmatmul.mubr.bf16.gmra.mrb[0].mxu0 %v5437
  %v5591 = vpop.f32.mrb[0].mxu0
  %v5592 = vadd.f32 0.0, %v5591
  %v5593 = vpop.f32.mrb[0].mxu0
  %v5594 = vpop.f32.mrb[0].mxu0
  %v5595 = vadd.f32 0.0, %v5594
  %v5596 = vpop.f32.mrb[0].mxu0
  %5597 = vmatprep.mubr.bf16.mxu0 0
  %5598 = vmatmul.mubr.bf16.gmra.mrb[0].mxu0 %v5440
  %v5599 = vpop.f32.mrb[0].mxu0
  %v5600 = vadd.f32 0.0, %v5599
  %v5601 = vpop.f32.mrb[0].mxu0
  %v5602 = vpop.f32.mrb[0].mxu0
  %v5603 = vadd.f32 0.0, %v5602
  %v5604 = vpop.f32.mrb[0].mxu0
  %5605 = vmatprep.mubr.bf16.mxu0 0
  %5606 = vmatmul.mubr.bf16.gmra.mrb[0].mxu0 %v5443
  %v5607 = vpop.f32.mrb[0].mxu0
  %v5608 = vadd.f32 0.0, %v5607
  %v5609 = vpop.f32.mrb[0].mxu0
  %v5610 = vpop.f32.mrb[0].mxu0
  %v5611 = vadd.f32 0.0, %v5610
  %v5612 = vpop.f32.mrb[0].mxu0
  %5613 = vmatprep.mubr.bf16.mxu0 0
  %5614 = vmatmul.mubr.bf16.gmra.mrb[0].mxu0 %v5446
  %v5615 = vpop.f32.mrb[0].mxu0
  %v5616 = vadd.f32 0.0, %v5615
  %v5617 = vpop.f32.mrb[0].mxu0
  %v5618 = vpop.f32.mrb[0].mxu0
  %v5619 = vadd.f32 0.0, %v5618
  %v5620 = vpop.f32.mrb[0].mxu0
  %5621 = vmatprep.mubr.bf16.mxu0 0
  %5622 = vmatmul.mubr.bf16.gmra.mrb[0].mxu0 %v5449
  %v5623 = vpop.f32.mrb[0].mxu0
  %v5624 = vadd.f32 0.0, %v5623
  %v5625 = vpop.f32.mrb[0].mxu0
  %v5626 = vpop.f32.mrb[0].mxu0
  %v5627 = vadd.f32 0.0, %v5626
  %v5628 = vpop.f32.mrb[0].mxu0
  %5629 = vmatprep.mubr.bf16.mxu0 0
  %5630 = vmatmul.mubr.bf16.gmra.mrb[0].mxu0 %v5452
  %v5631 = vpop.f32.mrb[0].mxu0
  %v5632 = vadd.f32 0.0, %v5631
  %v5633 = vpop.f32.mrb[0].mxu0
  %v5634 = vpop.f32.mrb[0].mxu0
  %v5635 = vadd.f32 0.0, %v5634
  %v5636 = vpop.f32.mrb[0].mxu0
  %5637 = vmatprep.mubr.bf16.mxu0 0
  %5638 = vmatmul.mubr.bf16.gmra.mrb[0].mxu0 %v5455
  %v5639 = vpop.f32.mrb[0].mxu0
  %v5640 = vadd.f32 0.0, %v5639
  %v5641 = vpop.f32.mrb[0].mxu0
  %v5642 = vpop.f32.mrb[0].mxu0
  %v5643 = vadd.f32 0.0, %v5642
  %v5644 = vpop.f32.mrb[0].mxu0
  %5645 = vmatprep.mubr.bf16.mxu0 0
  %5646 = vmatmul.mubr.bf16.gmra.mrb[0].mxu0 %v5458
  %v5647 = vpop.f32.mrb[0].mxu0
  %v5648 = vadd.f32 0.0, %v5647
  %v5649 = vpop.f32.mrb[0].mxu0
  %v5650 = vpop.f32.mrb[0].mxu0
  %v5651 = vadd.f32 0.0, %v5650
  %v5652 = vpop.f32.mrb[0].mxu0
  %5653 = vmatprep.mubr.bf16.mxu0 0
  %5654 = vmatmul.mubr.bf16.gmra.mrb[0].mxu0 %v5461
  %v5655 = vpop.f32.mrb[0].mxu0
  %v5656 = vadd.f32 0.0, %v5655
  %v5657 = vpop.f32.mrb[0].mxu0
  %v5658 = vpop.f32.mrb[0].mxu0
  %v5659 = vadd.f32 0.0, %v5658
  %v5660 = vpop.f32.mrb[0].mxu0
  %5661 = vmatprep.mubr.bf16.mxu0 0
  %5662 = vmatmul.mubr.bf16.gmra.mrb[0].mxu0 %v5464
  %v5663 = vpop.f32.mrb[0].mxu0
  %v5664 = vadd.f32 0.0, %v5663
  %v5665 = vpop.f32.mrb[0].mxu0
  %v5666 = vpop.f32.mrb[0].mxu0
  %v5667 = vadd.f32 0.0, %v5666
  %v5668 = vpop.f32.mrb[0].mxu0
  %5669 = vmatprep.mubr.bf16.mxu0 0
  %5670 = vmatmul.mubr.bf16.gmra.mrb[0].mxu0 %v5467
  %v5671 = vpop.f32.mrb[0].mxu0
  %v5672 = vadd.f32 0.0, %v5671
  %v5673 = vpop.f32.mrb[0].mxu0
  %v5674 = vpop.f32.mrb[0].mxu0
  %v5675 = vadd.f32 0.0, %v5674
  %v5676 = vpop.f32.mrb[0].mxu0
  %5677 = vmatprep.mubr.bf16.mxu0 0
  %5678 = vmatmul.mubr.bf16.gmra.mrb[0].mxu0 %v5470
  %v5679 = vpop.f32.mrb[0].mxu0
  %v5680 = vadd.f32 0.0, %v5679
  %v5681 = vpop.f32.mrb[0].mxu0
  %v5682 = vpop.f32.mrb[0].mxu0
  %v5683 = vadd.f32 0.0, %v5682
  %v5684 = vpop.f32.mrb[0].mxu0
  %5685 = vmatprep.mubr.bf16.mxu0 0
  %5686 = vmatmul.mubr.bf16.gmra.mrb[0].mxu0 %v5473
  %v5687 = vpop.f32.mrb[0].mxu0
  %v5688 = vadd.f32 0.0, %v5687
  %v5689 = vpop.f32.mrb[0].mxu0
  %v5690 = vpop.f32.mrb[0].mxu0
  %v5691 = vadd.f32 0.0, %v5690
  %v5692 = vpop.f32.mrb[0].mxu0
  %5693 = vmatprep.mubr.bf16.mxu0 0
  %5694 = vmatmul.mubr.bf16.gmra.mrb[0].mxu0 %v5476
  %v5695 = vpop.f32.mrb[0].mxu0
  %v5696 = vadd.f32 0.0, %v5695
  %v5697 = vpop.f32.mrb[0].mxu0
  %v5698 = vpop.f32.mrb[0].mxu0
  %v5699 = vadd.f32 0.0, %v5698
  %v5700 = vpop.f32.mrb[0].mxu0
  %5701 = vmatprep.mubr.bf16.mxu0 0
  %5702 = vmatmul.mubr.bf16.gmra.mrb[0].mxu0 %v5479
  %v5703 = vpop.f32.mrb[0].mxu0
  %v5704 = vadd.f32 0.0, %v5703
  %v5705 = vpop.f32.mrb[0].mxu0
  %v5706 = vpop.f32.mrb[0].mxu0
  %v5707 = vadd.f32 0.0, %v5706
  %v5708 = vpop.f32.mrb[0].mxu0
  %5709 = vmatprep.mubr.bf16.mxu0 0
  %5710 = vmatmul.mubr.bf16.gmra.mrb[0].mxu0 %v5482
  %v5711 = vpop.f32.mrb[0].mxu0
  %v5712 = vadd.f32 0.0, %v5711
  %v5713 = vpop.f32.mrb[0].mxu0
  %v5714 = vpop.f32.mrb[0].mxu0
  %v5715 = vadd.f32 0.0, %v5714
  %v5716 = vpop.f32.mrb[0].mxu0
  %5717 = vmatprep.mubr.bf16.mxu0 0
  %5718 = vmatmul.mubr.bf16.gmra.mrb[0].mxu0 %v5485
  %v5719 = vpop.f32.mrb[0].mxu0
  %v5720 = vadd.f32 0.0, %v5719
  %v5721 = vpop.f32.mrb[0].mxu0
  %v5722 = vpop.f32.mrb[0].mxu0
  %v5723 = vadd.f32 0.0, %v5722
  %v5724 = vpop.f32.mrb[0].mxu0
  %5725 = vmatprep.mubr.bf16.mxu0 0
  %5726 = vmatmul.mubr.bf16.gmra.mrb[0].mxu0 %v5488
  %v5727 = vpop.f32.mrb[0].mxu0
  %v5728 = vadd.f32 0.0, %v5727
  %v5729 = vpop.f32.mrb[0].mxu0
  %v5730 = vpop.f32.mrb[0].mxu0
  %v5731 = vadd.f32 0.0, %v5730
  %v5732 = vpop.f32.mrb[0].mxu0
  %5733 = vmatprep.mubr.bf16.mxu0 0
  %5734 = vmatmul.mubr.bf16.gmra.mrb[0].mxu0 %v5491
  %v5735 = vpop.f32.mrb[0].mxu0
  %v5736 = vadd.f32 0.0, %v5735
  %v5737 = vpop.f32.mrb[0].mxu0
  %v5738 = vpop.f32.mrb[0].mxu0
  %v5739 = vadd.f32 0.0, %v5738
  %v5740 = vpop.f32.mrb[0].mxu0
  %5741 = vmatprep.mubr.bf16.mxu0 0
  %5742 = vmatmul.mubr.bf16.gmra.mrb[0].mxu0 %v5494
  %v5743 = vpop.f32.mrb[0].mxu0
  %v5744 = vadd.f32 0.0, %v5743
  %v5745 = vpop.f32.mrb[0].mxu0
  %v5746 = vpop.f32.mrb[0].mxu0
  %v5747 = vadd.f32 0.0, %v5746
  %v5748 = vpop.f32.mrb[0].mxu0
  %5749 = vmatprep.mubr.bf16.mxu0 0
  %5750 = vmatmul.mubr.bf16.gmra.mrb[0].mxu0 %v5497
  %v5751 = vpop.f32.mrb[0].mxu0
  %v5752 = vadd.f32 0.0, %v5751
  %v5753 = vpop.f32.mrb[0].mxu0
  %v5754 = vpop.f32.mrb[0].mxu0
  %v5755 = vadd.f32 0.0, %v5754
  %v5756 = vpop.f32.mrb[0].mxu0
  %5757 = vmatprep.mubr.bf16.mxu0 0
  %5758 = vmatmul.mubr.bf16.gmra.mrb[0].mxu0 %v5500
  %v5759 = vpop.f32.mrb[0].mxu0
  %v5760 = vadd.f32 0.0, %v5759
  %v5761 = vpop.f32.mrb[0].mxu0
  %v5762 = vpop.f32.mrb[0].mxu0
  %v5763 = vadd.f32 0.0, %v5762
  %v5764 = vpop.f32.mrb[0].mxu0
  %5765 = vmatprep.mubr.bf16.mxu0 0
  %5766 = vmatmul.mubr.bf16.gmra.mrb[0].mxu0 %v5503
  %v5767 = vpop.f32.mrb[0].mxu0
  %v5768 = vadd.f32 0.0, %v5767
  %v5769 = vpop.f32.mrb[0].mxu0
  %v5770 = vpop.f32.mrb[0].mxu0
  %v5771 = vadd.f32 0.0, %v5770
  %v5772 = vpop.f32.mrb[0].mxu0
  %5773 = vmatprep.mubr.bf16.mxu0 0
  %5774 = vmatmul.mubr.bf16.gmra.mrb[0].mxu0 %v5506
  %v5775 = vpop.f32.mrb[0].mxu0
  %v5776 = vadd.f32 0.0, %v5775
  %v5777 = vpop.f32.mrb[0].mxu0
  %v5778 = vpop.f32.mrb[0].mxu0
  %v5779 = vadd.f32 0.0, %v5778
  %v5780 = vpop.f32.mrb[0].mxu0
  %5781 = vmatprep.mubr.bf16.mxu0 0
  %5782 = vmatmul.mubr.bf16.gmra.mrb[0].mxu0 %v5509
  %v5783 = vpop.f32.mrb[0].mxu0
  %v5784 = vadd.f32 0.0, %v5783
  %v5785 = vpop.f32.mrb[0].mxu0
  %v5786 = vpop.f32.mrb[0].mxu0
  %v5787 = vadd.f32 0.0, %v5786
  %v5788 = vpop.f32.mrb[0].mxu0
  %5789 = vmatprep.mubr.bf16.mxu0 0
  %5790 = vmatmul.mubr.bf16.gmra.mrb[0].mxu0 %v5512
  %v5791 = vpop.f32.mrb[0].mxu0
  %v5792 = vadd.f32 0.0, %v5791
  %v5793 = vpop.f32.mrb[0].mxu0
  %v5794 = vpop.f32.mrb[0].mxu0
  %v5795 = vadd.f32 0.0, %v5794
  %v5796 = vpop.f32.mrb[0].mxu0
  %5797 = vmatprep.mubr.bf16.mxu0 0
  %5798 = vmatmul.mubr.bf16.gmra.mrb[0].mxu0 %v5515
  %v5799 = vpop.f32.mrb[0].mxu0
  %v5800 = vadd.f32 0.0, %v5799
  %v5801 = vpop.f32.mrb[0].mxu0
  %v5802 = vpop.f32.mrb[0].mxu0
  %v5803 = vadd.f32 0.0, %v5802
  %v5804 = vpop.f32.mrb[0].mxu0
  %5805 = vdwg.mxu0
  %v5806 = vadd.f32 %v5348, %v5552
  %v5807 = vadd.f32 %v5349, %v5555
  %v5808 = vadd.f32 %v5350, %v5560
  %v5809 = vadd.f32 %v5351, %v5563
  %v5810 = vadd.f32 %v5352, %v5568
  %v5811 = vadd.f32 %v5353, %v5571
  %v5812 = vadd.f32 %v5354, %v5576
  %v5813 = vadd.f32 %v5355, %v5579
  %v5814 = vadd.f32 %v5356, %v5584
  %v5815 = vadd.f32 %v5357, %v5587
  %v5816 = vadd.f32 %v5358, %v5592
  %v5817 = vadd.f32 %v5359, %v5595
  %v5818 = vadd.f32 %v5360, %v5600
  %v5819 = vadd.f32 %v5361, %v5603
  %v5820 = vadd.f32 %v5362, %v5608
  %v5821 = vadd.f32 %v5363, %v5611
  %v5822 = vadd.f32 %v5364, %v5616
  %v5823 = vadd.f32 %v5365, %v5619
  %v5824 = vadd.f32 %v5366, %v5624
  %v5825 = vadd.f32 %v5367, %v5627
  %v5826 = vadd.f32 %v5368, %v5632
  %v5827 = vadd.f32 %v5369, %v5635
  %v5828 = vadd.f32 %v5370, %v5640
  %v5829 = vadd.f32 %v5371, %v5643
  %v5830 = vadd.f32 %v5372, %v5648
  %v5831 = vadd.f32 %v5373, %v5651
  %v5832 = vadd.f32 %v5374, %v5656
  %v5833 = vadd.f32 %v5375, %v5659
  %v5834 = vadd.f32 %v5376, %v5664
  %v5835 = vadd.f32 %v5377, %v5667
  %v5836 = vadd.f32 %v5378, %v5672
  %v5837 = vadd.f32 %v5379, %v5675
  %v5838 = vadd.f32 %v5380, %v5680
  %v5839 = vadd.f32 %v5381, %v5683
  %v5840 = vadd.f32 %v5382, %v5688
  %v5841 = vadd.f32 %v5383, %v5691
  %v5842 = vadd.f32 %v5384, %v5696
  %v5843 = vadd.f32 %v5385, %v5699
  %v5844 = vadd.f32 %v5386, %v5704
  %v5845 = vadd.f32 %v5387, %v5707
  %v5846 = vadd.f32 %v5388, %v5712
  %v5847 = vadd.f32 %v5389, %v5715
  %v5848 = vadd.f32 %v5390, %v5720
  %v5849 = vadd.f32 %v5391, %v5723
  %v5850 = vadd.f32 %v5392, %v5728
  %v5851 = vadd.f32 %v5393, %v5731
  %v5852 = vadd.f32 %v5394, %v5736
  %v5853 = vadd.f32 %v5395, %v5739
  %v5854 = vadd.f32 %v5396, %v5744
  %v5855 = vadd.f32 %v5397, %v5747
  %v5856 = vadd.f32 %v5398, %v5752
  %v5857 = vadd.f32 %v5399, %v5755
  %v5858 = vadd.f32 %v5400, %v5760
  %v5859 = vadd.f32 %v5401, %v5763
  %v5860 = vadd.f32 %v5402, %v5768
  %v5861 = vadd.f32 %v5403, %v5771
  %v5862 = vadd.f32 %v5404, %v5776
  %v5863 = vadd.f32 %v5405, %v5779
  %v5864 = vadd.f32 %v5406, %v5784
  %v5865 = vadd.f32 %v5407, %v5787
  %v5866 = vadd.f32 %v5408, %v5792
  %v5867 = vadd.f32 %v5409, %v5795
  %v5868 = vadd.f32 %v5410, %v5800
  %v5869 = vadd.f32 %v5411, %v5803
  %v5870 = vsub.f32 0.0, %v5806
  %v5871 = vsub.f32 0.0, %v5807
  %v5872 = vsub.f32 0.0, %v5808
  %v5873 = vsub.f32 0.0, %v5809
  %v5874 = vsub.f32 0.0, %v5810
  %v5875 = vsub.f32 0.0, %v5811
  %v5876 = vsub.f32 0.0, %v5812
  %v5877 = vsub.f32 0.0, %v5813
  %v5878 = vsub.f32 0.0, %v5814
  %v5879 = vsub.f32 0.0, %v5815
  %v5880 = vsub.f32 0.0, %v5816
  %v5881 = vsub.f32 0.0, %v5817
  %v5882 = vsub.f32 0.0, %v5818
  %v5883 = vsub.f32 0.0, %v5819
  %v5884 = vsub.f32 0.0, %v5820
  %v5885 = vsub.f32 0.0, %v5821
  %v5886 = vsub.f32 0.0, %v5822
  %v5887 = vsub.f32 0.0, %v5823
  %v5888 = vsub.f32 0.0, %v5824
  %v5889 = vsub.f32 0.0, %v5825
  %v5890 = vsub.f32 0.0, %v5826
  %v5891 = vsub.f32 0.0, %v5827
  %v5892 = vsub.f32 0.0, %v5828
  %v5893 = vsub.f32 0.0, %v5829
  %v5894 = vsub.f32 0.0, %v5830
  %v5895 = vsub.f32 0.0, %v5831
  %v5896 = vsub.f32 0.0, %v5832
  %v5897 = vsub.f32 0.0, %v5833
  %v5898 = vsub.f32 0.0, %v5834
  %v5899 = vsub.f32 0.0, %v5835
  %v5900 = vsub.f32 0.0, %v5836
  %v5901 = vsub.f32 0.0, %v5837
  %v5902 = vsub.f32 0.0, %v5838
  %v5903 = vsub.f32 0.0, %v5839
  %v5904 = vsub.f32 0.0, %v5840
  %v5905 = vsub.f32 0.0, %v5841
  %v5906 = vsub.f32 0.0, %v5842
  %v5907 = vsub.f32 0.0, %v5843
  %v5908 = vsub.f32 0.0, %v5844
  %v5909 = vsub.f32 0.0, %v5845
  %v5910 = vsub.f32 0.0, %v5846
  %v5911 = vsub.f32 0.0, %v5847
  %v5912 = vsub.f32 0.0, %v5848
  %v5913 = vsub.f32 0.0, %v5849
  %v5914 = vsub.f32 0.0, %v5850
  %v5915 = vsub.f32 0.0, %v5851
  %v5916 = vsub.f32 0.0, %v5852
  %v5917 = vsub.f32 0.0, %v5853
  %v5918 = vsub.f32 0.0, %v5854
  %v5919 = vsub.f32 0.0, %v5855
  %v5920 = vsub.f32 0.0, %v5856
  %v5921 = vsub.f32 0.0, %v5857
  %v5922 = vsub.f32 0.0, %v5858
  %v5923 = vsub.f32 0.0, %v5859
  %v5924 = vsub.f32 0.0, %v5860
  %v5925 = vsub.f32 0.0, %v5861
  %v5926 = vsub.f32 0.0, %v5862
  %v5927 = vsub.f32 0.0, %v5863
  %v5928 = vsub.f32 0.0, %v5864
  %v5929 = vsub.f32 0.0, %v5865
  %v5930 = vsub.f32 0.0, %v5866
  %v5931 = vsub.f32 0.0, %v5867
  %v5932 = vsub.f32 0.0, %v5868
  %v5933 = vsub.f32 0.0, %v5869
  %v5934 = vmul.f32 %v5870, 1.442695
  %v5935 = vpow.pop %v5934
  %v5936 = vmul.f32 %v5871, 1.442695
  %v5937 = vpow.pop %v5936
  %v5938 = vmul.f32 %v5872, 1.442695
  %v5939 = vpow.pop %v5938
  %v5940 = vmul.f32 %v5873, 1.442695
  %v5941 = vpow.pop %v5940
  %v5942 = vmul.f32 %v5874, 1.442695
  %v5943 = vpow.pop %v5942
  %v5944 = vmul.f32 %v5875, 1.442695
  %v5945 = vpow.pop %v5944
  %v5946 = vmul.f32 %v5876, 1.442695
  %v5947 = vpow.pop %v5946
  %v5948 = vmul.f32 %v5877, 1.442695
  %v5949 = vpow.pop %v5948
  %v5950 = vmul.f32 %v5878, 1.442695
  %v5951 = vpow.pop %v5950
  %v5952 = vmul.f32 %v5879, 1.442695
  %v5953 = vpow.pop %v5952
  %v5954 = vmul.f32 %v5880, 1.442695
  %v5955 = vpow.pop %v5954
  %v5956 = vmul.f32 %v5881, 1.442695
  %v5957 = vpow.pop %v5956
  %v5958 = vmul.f32 %v5882, 1.442695
  %v5959 = vpow.pop %v5958
  %v5960 = vmul.f32 %v5883, 1.442695
  %v5961 = vpow.pop %v5960
  %v5962 = vmul.f32 %v5884, 1.442695
  %v5963 = vpow.pop %v5962
  %v5964 = vmul.f32 %v5885, 1.442695
  %v5965 = vpow.pop %v5964
  %v5966 = vmul.f32 %v5886, 1.442695
  %v5967 = vpow.pop %v5966
  %v5968 = vmul.f32 %v5887, 1.442695
  %v5969 = vpow.pop %v5968
  %v5970 = vmul.f32 %v5888, 1.442695
  %v5971 = vpow.pop %v5970
  %v5972 = vmul.f32 %v5889, 1.442695
  %v5973 = vpow.pop %v5972
  %v5974 = vmul.f32 %v5890, 1.442695
  %v5975 = vpow.pop %v5974
  %v5976 = vmul.f32 %v5891, 1.442695
  %v5977 = vpow.pop %v5976
  %v5978 = vmul.f32 %v5892, 1.442695
  %v5979 = vpow.pop %v5978
  %v5980 = vmul.f32 %v5893, 1.442695
  %v5981 = vpow.pop %v5980
  %v5982 = vmul.f32 %v5894, 1.442695
  %v5983 = vpow.pop %v5982
  %v5984 = vmul.f32 %v5895, 1.442695
  %v5985 = vpow.pop %v5984
  %v5986 = vmul.f32 %v5896, 1.442695
  %v5987 = vpow.pop %v5986
  %v5988 = vmul.f32 %v5897, 1.442695
  %v5989 = vpow.pop %v5988
  %v5990 = vmul.f32 %v5898, 1.442695
  %v5991 = vpow.pop %v5990
  %v5992 = vmul.f32 %v5899, 1.442695
  %v5993 = vpow.pop %v5992
  %v5994 = vmul.f32 %v5900, 1.442695
  %v5995 = vpow.pop %v5994
  %v5996 = vmul.f32 %v5901, 1.442695
  %v5997 = vpow.pop %v5996
  %v5998 = vmul.f32 %v5902, 1.442695
  %v5999 = vpow.pop %v5998
  %v6000 = vmul.f32 %v5903, 1.442695
  %v6001 = vpow.pop %v6000
  %v6002 = vmul.f32 %v5904, 1.442695
  %v6003 = vpow.pop %v6002
  %v6004 = vmul.f32 %v5905, 1.442695
  %v6005 = vpow.pop %v6004
  %v6006 = vmul.f32 %v5906, 1.442695
  %v6007 = vpow.pop %v6006
  %v6008 = vmul.f32 %v5907, 1.442695
  %v6009 = vpow.pop %v6008
  %v6010 = vmul.f32 %v5908, 1.442695
  %v6011 = vpow.pop %v6010
  %v6012 = vmul.f32 %v5909, 1.442695
  %v6013 = vpow.pop %v6012
  %v6014 = vmul.f32 %v5910, 1.442695
  %v6015 = vpow.pop %v6014
  %v6016 = vmul.f32 %v5911, 1.442695
  %v6017 = vpow.pop %v6016
  %v6018 = vmul.f32 %v5912, 1.442695
  %v6019 = vpow.pop %v6018
  %v6020 = vmul.f32 %v5913, 1.442695
  %v6021 = vpow.pop %v6020
  %v6022 = vmul.f32 %v5914, 1.442695
  %v6023 = vpow.pop %v6022
  %v6024 = vmul.f32 %v5915, 1.442695
  %v6025 = vpow.pop %v6024
  %v6026 = vmul.f32 %v5916, 1.442695
  %v6027 = vpow.pop %v6026
  %v6028 = vmul.f32 %v5917, 1.442695
  %v6029 = vpow.pop %v6028
  %v6030 = vmul.f32 %v5918, 1.442695
  %v6031 = vpow.pop %v6030
  %v6032 = vmul.f32 %v5919, 1.442695
  %v6033 = vpow.pop %v6032
  %v6034 = vmul.f32 %v5920, 1.442695
  %v6035 = vpow.pop %v6034
  %v6036 = vmul.f32 %v5921, 1.442695
  %v6037 = vpow.pop %v6036
  %v6038 = vmul.f32 %v5922, 1.442695
  %v6039 = vpow.pop %v6038
  %v6040 = vmul.f32 %v5923, 1.442695
  %v6041 = vpow.pop %v6040
  %v6042 = vmul.f32 %v5924, 1.442695
  %v6043 = vpow.pop %v6042
  %v6044 = vmul.f32 %v5925, 1.442695
  %v6045 = vpow.pop %v6044
  %v6046 = vmul.f32 %v5926, 1.442695
  %v6047 = vpow.pop %v6046
  %v6048 = vmul.f32 %v5927, 1.442695
  %v6049 = vpow.pop %v6048
  %v6050 = vmul.f32 %v5928, 1.442695
  %v6051 = vpow.pop %v6050
  %v6052 = vmul.f32 %v5929, 1.442695
  %v6053 = vpow.pop %v6052
  %v6054 = vmul.f32 %v5930, 1.442695
  %v6055 = vpow.pop %v6054
  %v6056 = vmul.f32 %v5931, 1.442695
  %v6057 = vpow.pop %v6056
  %v6058 = vmul.f32 %v5932, 1.442695
  %v6059 = vpow.pop %v6058
  %v6060 = vmul.f32 %v5933, 1.442695
  %v6061 = vpow.pop %v6060
  %v6062 = vadd.f32 %v5935, 1.0
  %v6063 = vadd.f32 %v5937, 1.0
  %v6064 = vadd.f32 %v5939, 1.0
  %v6065 = vadd.f32 %v5941, 1.0
  %v6066 = vadd.f32 %v5943, 1.0
  %v6067 = vadd.f32 %v5945, 1.0
  %v6068 = vadd.f32 %v5947, 1.0
  %v6069 = vadd.f32 %v5949, 1.0
  %v6070 = vadd.f32 %v5951, 1.0
  %v6071 = vadd.f32 %v5953, 1.0
  %v6072 = vadd.f32 %v5955, 1.0
  %v6073 = vadd.f32 %v5957, 1.0
  %v6074 = vadd.f32 %v5959, 1.0
  %v6075 = vadd.f32 %v5961, 1.0
  %v6076 = vadd.f32 %v5963, 1.0
  %v6077 = vadd.f32 %v5965, 1.0
  %v6078 = vadd.f32 %v5967, 1.0
  %v6079 = vadd.f32 %v5969, 1.0
  %v6080 = vadd.f32 %v5971, 1.0
  %v6081 = vadd.f32 %v5973, 1.0
  %v6082 = vadd.f32 %v5975, 1.0
  %v6083 = vadd.f32 %v5977, 1.0
  %v6084 = vadd.f32 %v5979, 1.0
  %v6085 = vadd.f32 %v5981, 1.0
  %v6086 = vadd.f32 %v5983, 1.0
  %v6087 = vadd.f32 %v5985, 1.0
  %v6088 = vadd.f32 %v5987, 1.0
  %v6089 = vadd.f32 %v5989, 1.0
  %v6090 = vadd.f32 %v5991, 1.0
  %v6091 = vadd.f32 %v5993, 1.0
  %v6092 = vadd.f32 %v5995, 1.0
  %v6093 = vadd.f32 %v5997, 1.0
  %v6094 = vadd.f32 %v5999, 1.0
  %v6095 = vadd.f32 %v6001, 1.0
  %v6096 = vadd.f32 %v6003, 1.0
  %v6097 = vadd.f32 %v6005, 1.0
  %v6098 = vadd.f32 %v6007, 1.0
  %v6099 = vadd.f32 %v6009, 1.0
  %v6100 = vadd.f32 %v6011, 1.0
  %v6101 = vadd.f32 %v6013, 1.0
  %v6102 = vadd.f32 %v6015, 1.0
  %v6103 = vadd.f32 %v6017, 1.0
  %v6104 = vadd.f32 %v6019, 1.0
  %v6105 = vadd.f32 %v6021, 1.0
  %v6106 = vadd.f32 %v6023, 1.0
  %v6107 = vadd.f32 %v6025, 1.0
  %v6108 = vadd.f32 %v6027, 1.0
  %v6109 = vadd.f32 %v6029, 1.0
  %v6110 = vadd.f32 %v6031, 1.0
  %v6111 = vadd.f32 %v6033, 1.0
  %v6112 = vadd.f32 %v6035, 1.0
  %v6113 = vadd.f32 %v6037, 1.0
  %v6114 = vadd.f32 %v6039, 1.0
  %v6115 = vadd.f32 %v6041, 1.0
  %v6116 = vadd.f32 %v6043, 1.0
  %v6117 = vadd.f32 %v6045, 1.0
  %v6118 = vadd.f32 %v6047, 1.0
  %v6119 = vadd.f32 %v6049, 1.0
  %v6120 = vadd.f32 %v6051, 1.0
  %v6121 = vadd.f32 %v6053, 1.0
  %v6122 = vadd.f32 %v6055, 1.0
  %v6123 = vadd.f32 %v6057, 1.0
  %v6124 = vadd.f32 %v6059, 1.0
  %v6125 = vadd.f32 %v6061, 1.0
  %v6126 = vrcp.pop %v6062
  %v6127 = vrcp.pop %v6063
  %v6128 = vrcp.pop %v6064
  %v6129 = vrcp.pop %v6065
  %v6130 = vrcp.pop %v6066
  %v6131 = vrcp.pop %v6067
  %v6132 = vrcp.pop %v6068
  %v6133 = vrcp.pop %v6069
  %v6134 = vrcp.pop %v6070
  %v6135 = vrcp.pop %v6071
  %v6136 = vrcp.pop %v6072
  %v6137 = vrcp.pop %v6073
  %v6138 = vrcp.pop %v6074
  %v6139 = vrcp.pop %v6075
  %v6140 = vrcp.pop %v6076
  %v6141 = vrcp.pop %v6077
  %v6142 = vrcp.pop %v6078
  %v6143 = vrcp.pop %v6079
  %v6144 = vrcp.pop %v6080
  %v6145 = vrcp.pop %v6081
  %v6146 = vrcp.pop %v6082
  %v6147 = vrcp.pop %v6083
  %v6148 = vrcp.pop %v6084
  %v6149 = vrcp.pop %v6085
  %v6150 = vrcp.pop %v6086
  %v6151 = vrcp.pop %v6087
  %v6152 = vrcp.pop %v6088
  %v6153 = vrcp.pop %v6089
  %v6154 = vrcp.pop %v6090
  %v6155 = vrcp.pop %v6091
  %v6156 = vrcp.pop %v6092
  %v6157 = vrcp.pop %v6093
  %v6158 = vrcp.pop %v6094
  %v6159 = vrcp.pop %v6095
  %v6160 = vrcp.pop %v6096
  %v6161 = vrcp.pop %v6097
  %v6162 = vrcp.pop %v6098
  %v6163 = vrcp.pop %v6099
  %v6164 = vrcp.pop %v6100
  %v6165 = vrcp.pop %v6101
  %v6166 = vrcp.pop %v6102
  %v6167 = vrcp.pop %v6103
  %v6168 = vrcp.pop %v6104
  %v6169 = vrcp.pop %v6105
  %v6170 = vrcp.pop %v6106
  %v6171 = vrcp.pop %v6107
  %v6172 = vrcp.pop %v6108
  %v6173 = vrcp.pop %v6109
  %v6174 = vrcp.pop %v6110
  %v6175 = vrcp.pop %v6111
  %v6176 = vrcp.pop %v6112
  %v6177 = vrcp.pop %v6113
  %v6178 = vrcp.pop %v6114
  %v6179 = vrcp.pop %v6115
  %v6180 = vrcp.pop %v6116
  %v6181 = vrcp.pop %v6117
  %v6182 = vrcp.pop %v6118
  %v6183 = vrcp.pop %v6119
  %v6184 = vrcp.pop %v6120
  %v6185 = vrcp.pop %v6121
  %v6186 = vrcp.pop %v6122
  %v6187 = vrcp.pop %v6123
  %v6188 = vrcp.pop %v6124
  %v6189 = vrcp.pop %v6125
  %v6190 = vmul.f32 %v5806, %v6126
  %v6191 = vmul.f32 %v5807, %v6127
  %v6192 = vmul.f32 %v5808, %v6128
  %v6193 = vmul.f32 %v5809, %v6129
  %v6194 = vmul.f32 %v5810, %v6130
  %v6195 = vmul.f32 %v5811, %v6131
  %v6196 = vmul.f32 %v5812, %v6132
  %v6197 = vmul.f32 %v5813, %v6133
  %v6198 = vmul.f32 %v5814, %v6134
  %v6199 = vmul.f32 %v5815, %v6135
  %v6200 = vmul.f32 %v5816, %v6136
  %v6201 = vmul.f32 %v5817, %v6137
  %v6202 = vmul.f32 %v5818, %v6138
  %v6203 = vmul.f32 %v5819, %v6139
  %v6204 = vmul.f32 %v5820, %v6140
  %v6205 = vmul.f32 %v5821, %v6141
  %v6206 = vmul.f32 %v5822, %v6142
  %v6207 = vmul.f32 %v5823, %v6143
  %v6208 = vmul.f32 %v5824, %v6144
  %v6209 = vmul.f32 %v5825, %v6145
  %v6210 = vmul.f32 %v5826, %v6146
  %v6211 = vmul.f32 %v5827, %v6147
  %v6212 = vmul.f32 %v5828, %v6148
  %v6213 = vmul.f32 %v5829, %v6149
  %v6214 = vmul.f32 %v5830, %v6150
  %v6215 = vmul.f32 %v5831, %v6151
  %v6216 = vmul.f32 %v5832, %v6152
  %v6217 = vmul.f32 %v5833, %v6153
  %v6218 = vmul.f32 %v5834, %v6154
  %v6219 = vmul.f32 %v5835, %v6155
  %v6220 = vmul.f32 %v5836, %v6156
  %v6221 = vmul.f32 %v5837, %v6157
  %v6222 = vmul.f32 %v5838, %v6158
  %v6223 = vmul.f32 %v5839, %v6159
  %v6224 = vmul.f32 %v5840, %v6160
  %v6225 = vmul.f32 %v5841, %v6161
  %v6226 = vmul.f32 %v5842, %v6162
  %v6227 = vmul.f32 %v5843, %v6163
  %v6228 = vmul.f32 %v5844, %v6164
  %v6229 = vmul.f32 %v5845, %v6165
  %v6230 = vmul.f32 %v5846, %v6166
  %v6231 = vmul.f32 %v5847, %v6167
  %v6232 = vmul.f32 %v5848, %v6168
  %v6233 = vmul.f32 %v5849, %v6169
  %v6234 = vmul.f32 %v5850, %v6170
  %v6235 = vmul.f32 %v5851, %v6171
  %v6236 = vmul.f32 %v5852, %v6172
  %v6237 = vmul.f32 %v5853, %v6173
  %v6238 = vmul.f32 %v5854, %v6174
  %v6239 = vmul.f32 %v5855, %v6175
  %v6240 = vmul.f32 %v5856, %v6176
  %v6241 = vmul.f32 %v5857, %v6177
  %v6242 = vmul.f32 %v5858, %v6178
  %v6243 = vmul.f32 %v5859, %v6179
  %v6244 = vmul.f32 %v5860, %v6180
  %v6245 = vmul.f32 %v5861, %v6181
  %v6246 = vmul.f32 %v5862, %v6182
  %v6247 = vmul.f32 %v5863, %v6183
  %v6248 = vmul.f32 %v5864, %v6184
  %v6249 = vmul.f32 %v5865, %v6185
  %v6250 = vmul.f32 %v5866, %v6186
  %v6251 = vmul.f32 %v5867, %v6187
  %v6252 = vmul.f32 %v5868, %v6188
  %v6253 = vmul.f32 %v5869, %v6189
  %v6254 = vpack.c.bf16 %v6191, %v6190
  %v6255 = vpack.c.bf16 %v6193, %v6192
  %v6256 = vpack.c.bf16 %v6195, %v6194
  %v6257 = vpack.c.bf16 %v6197, %v6196
  %v6258 = vpack.c.bf16 %v6199, %v6198
  %v6259 = vpack.c.bf16 %v6201, %v6200
  %v6260 = vpack.c.bf16 %v6203, %v6202
  %v6261 = vpack.c.bf16 %v6205, %v6204
  %v6262 = vpack.c.bf16 %v6207, %v6206
  %v6263 = vpack.c.bf16 %v6209, %v6208
  %v6264 = vpack.c.bf16 %v6211, %v6210
  %v6265 = vpack.c.bf16 %v6213, %v6212
  %v6266 = vpack.c.bf16 %v6215, %v6214
  %v6267 = vpack.c.bf16 %v6217, %v6216
  %v6268 = vpack.c.bf16 %v6219, %v6218
  %v6269 = vpack.c.bf16 %v6221, %v6220
  %v6270 = vpack.c.bf16 %v6223, %v6222
  %v6271 = vpack.c.bf16 %v6225, %v6224
  %v6272 = vpack.c.bf16 %v6227, %v6226
  %v6273 = vpack.c.bf16 %v6229, %v6228
  %v6274 = vpack.c.bf16 %v6231, %v6230
  %v6275 = vpack.c.bf16 %v6233, %v6232
  %v6276 = vpack.c.bf16 %v6235, %v6234
  %v6277 = vpack.c.bf16 %v6237, %v6236
  %v6278 = vpack.c.bf16 %v6239, %v6238
  %v6279 = vpack.c.bf16 %v6241, %v6240
  %v6280 = vpack.c.bf16 %v6243, %v6242
  %v6281 = vpack.c.bf16 %v6245, %v6244
  %v6282 = vpack.c.bf16 %v6247, %v6246
  %v6283 = vpack.c.bf16 %v6249, %v6248
  %v6284 = vpack.c.bf16 %v6251, %v6250
  %v6285 = vpack.c.bf16 %v6253, %v6252
  %v6286 = vld [vmem:[%s5] sm:$0xf]
  %v6287 = vld [vmem:[%s5 + $0x4] sm:$0xf]
  %v6288 = vld [vmem:[%s5 + $0x8] sm:$0xf]
  %v6289 = vld [vmem:[%s6] sm:$0x1]
  %v6291 = vlaneseq
  %v6292 = vshrl.u32 %v6291, 7
  %v6293 = vsub.s32 0, %v6292
  %v6294 = vrot.slane %v6289, %v6293
  %v6299 = vunpack.c.l.b16 %v6286
  %v6300 = vunpack.c.l.b16 %v6287
  %v6301 = vunpack.c.l.b16 %v6288
  %v6302 = vpack.c.b16 %v6300, %v6299
  %v6303 = vpack.c.b16 %v6301, %v6301
  %vm6305 = vcmask 195584
  %v6307 = vsel %vm6305, %v6254, 0
  %v6310 = vsel %vm6305, %v6255, 0
  %v6313 = vsel %vm6305, %v6256, 0
  %v6316 = vsel %vm6305, %v6257, 0
  %v6319 = vsel %vm6305, %v6258, 0
  %v6322 = vsel %vm6305, %v6259, 0
  %v6325 = vsel %vm6305, %v6260, 0
  %v6328 = vsel %vm6305, %v6261, 0
  %vm6330 = vcmask 1043456
  %v6332 = vsel %vm6330, %v6303, 0
  %6334 = vmatprep.subr.bf16.mxu0 0
  %6335 = vmatpush1.bf16.msra.mxu0 %v6302
  %6336 = vmatprep.subr.bf16.mxu0 0
  %6337 = vmatpush1.bf16.msra.mxu0 %v6332
  %6338 = vmatprep.subr.bf16.mxu0 0
  %6339 = vmatpush1.bf16.msra.mxu0 0
  %6340 = vmatprep.subr.bf16.mxu0 0
  %6341 = vmatpush1.bf16.msra.mxu0 0
  %6342 = vmatprep.subr.bf16.mxu0 0
  %6343 = vmatpush1.bf16.msra.mxu0 0
  %6344 = vmatprep.subr.bf16.mxu0 0
  %6345 = vmatpush1.bf16.msra.mxu0 0
  %6346 = vmatprep.subr.bf16.mxu0 0
  %6347 = vmatpush1.bf16.msra.mxu0 0
  %6348 = vmatprep.subr.bf16.mxu0 0
  %6349 = vmatpush1.bf16.msra.mxu0 0
  %6350 = vmatprep.subr.bf16.mxu0 0
  %6351 = vmatpush1.bf16.msra.mxu0 0
  %6352 = vmatprep.subr.bf16.mxu0 0
  %6353 = vmatpush1.bf16.msra.mxu0 0
  %6354 = vmatprep.subr.bf16.mxu0 0
  %6355 = vmatpush1.bf16.msra.mxu0 0
  %6356 = vmatprep.subr.bf16.mxu0 0
  %6357 = vmatpush1.bf16.msra.mxu0 0
  %6358 = vmatprep.subr.bf16.mxu0 0
  %6359 = vmatpush1.bf16.msra.mxu0 0
  %6360 = vmatprep.subr.bf16.mxu0 0
  %6361 = vmatpush1.bf16.msra.mxu0 0
  %6362 = vmatprep.subr.bf16.mxu0 0
  %6363 = vmatpush1.bf16.msra.mxu0 0
  %6364 = vmatprep.subr.bf16.mxu0 0
  %6365 = vmatpush1.bf16.msra.mxu0 0
  %6366 = vmatprep.mubr.bf16.mxu0 0
  %6367 = vmatmul.mubr.bf16.gmra.mrb[0].mxu0 %v6307
  %v6368 = vpop.f32.mrb[0].mxu0
  %v6369 = vadd.f32 %v6294, %v6368
  %v6370 = vpop.f32.mrb[0].mxu0
  %v6371 = vpop.f32.mrb[0].mxu0
  %v6372 = vadd.f32 %v6294, %v6371
  %v6373 = vpop.f32.mrb[0].mxu0
  %6374 = vmatprep.mubr.bf16.mxu0 0
  %6375 = vmatmul.mubr.bf16.gmra.mrb[0].mxu0 %v6310
  %v6376 = vpop.f32.mrb[0].mxu0
  %v6377 = vadd.f32 %v6294, %v6376
  %v6378 = vpop.f32.mrb[0].mxu0
  %v6379 = vpop.f32.mrb[0].mxu0
  %v6380 = vadd.f32 %v6294, %v6379
  %v6381 = vpop.f32.mrb[0].mxu0
  %6382 = vmatprep.mubr.bf16.mxu0 0
  %6383 = vmatmul.mubr.bf16.gmra.mrb[0].mxu0 %v6313
  %v6384 = vpop.f32.mrb[0].mxu0
  %v6385 = vadd.f32 %v6294, %v6384
  %v6386 = vpop.f32.mrb[0].mxu0
  %v6387 = vpop.f32.mrb[0].mxu0
  %v6388 = vadd.f32 %v6294, %v6387
  %v6389 = vpop.f32.mrb[0].mxu0
  %6390 = vmatprep.mubr.bf16.mxu0 0
  %6391 = vmatmul.mubr.bf16.gmra.mrb[0].mxu0 %v6316
  %v6392 = vpop.f32.mrb[0].mxu0
  %v6393 = vadd.f32 %v6294, %v6392
  %v6394 = vpop.f32.mrb[0].mxu0
  %v6395 = vpop.f32.mrb[0].mxu0
  %v6396 = vadd.f32 %v6294, %v6395
  %v6397 = vpop.f32.mrb[0].mxu0
  %6398 = vmatprep.mubr.bf16.mxu0 0
  %6399 = vmatmul.mubr.bf16.gmra.mrb[0].mxu0 %v6319
  %v6400 = vpop.f32.mrb[0].mxu0
  %v6401 = vadd.f32 %v6294, %v6400
  %v6402 = vpop.f32.mrb[0].mxu0
  %v6403 = vpop.f32.mrb[0].mxu0
  %v6404 = vadd.f32 %v6294, %v6403
  %v6405 = vpop.f32.mrb[0].mxu0
  %6406 = vmatprep.mubr.bf16.mxu0 0
  %6407 = vmatmul.mubr.bf16.gmra.mrb[0].mxu0 %v6322
  %v6408 = vpop.f32.mrb[0].mxu0
  %v6409 = vadd.f32 %v6294, %v6408
  %v6410 = vpop.f32.mrb[0].mxu0
  %v6411 = vpop.f32.mrb[0].mxu0
  %v6412 = vadd.f32 %v6294, %v6411
  %v6413 = vpop.f32.mrb[0].mxu0
  %6414 = vmatprep.mubr.bf16.mxu0 0
  %6415 = vmatmul.mubr.bf16.gmra.mrb[0].mxu0 %v6325
  %v6416 = vpop.f32.mrb[0].mxu0
  %v6417 = vadd.f32 %v6294, %v6416
  %v6418 = vpop.f32.mrb[0].mxu0
  %v6419 = vpop.f32.mrb[0].mxu0
  %v6420 = vadd.f32 %v6294, %v6419
  %v6421 = vpop.f32.mrb[0].mxu0
  %6422 = vmatprep.mubr.bf16.mxu0 0
  %6423 = vmatmul.mubr.bf16.gmra.mrb[0].mxu0 %v6328
  %v6424 = vpop.f32.mrb[0].mxu0
  %v6425 = vadd.f32 %v6294, %v6424
  %v6426 = vpop.f32.mrb[0].mxu0
  %v6427 = vpop.f32.mrb[0].mxu0
  %v6428 = vadd.f32 %v6294, %v6427
  %v6429 = vpop.f32.mrb[0].mxu0
  %6430 = vdwg.mxu0
  %s6431 = scalar_lea.vmem %s5, 12
  %v6432 = vld [vmem:[%s6431] sm:$0xf]
  %v6433 = vld [vmem:[%s6431 + $0x4] sm:$0xf]
  %v6434 = vld [vmem:[%s6431 + $0x8] sm:$0xf]
  %v6438 = vunpack.c.l.b16 %v6432
  %v6439 = vunpack.c.l.b16 %v6433
  %v6440 = vunpack.c.l.b16 %v6434
  %v6441 = vpack.c.b16 %v6439, %v6438
  %v6442 = vpack.c.b16 %v6440, %v6440
  %v6445 = vsel %vm6305, %v6262, 0
  %v6448 = vsel %vm6305, %v6263, 0
  %v6451 = vsel %vm6305, %v6264, 0
  %v6454 = vsel %vm6305, %v6265, 0
  %v6457 = vsel %vm6305, %v6266, 0
  %v6460 = vsel %vm6305, %v6267, 0
  %v6463 = vsel %vm6305, %v6268, 0
  %v6466 = vsel %vm6305, %v6269, 0
  %v6469 = vsel %vm6330, %v6442, 0
  %6471 = vmatprep.subr.bf16.mxu0 0
  %6472 = vmatpush1.bf16.msra.mxu0 %v6441
  %6473 = vmatprep.subr.bf16.mxu0 0
  %6474 = vmatpush1.bf16.msra.mxu0 %v6469
  %6475 = vmatprep.subr.bf16.mxu0 0
  %6476 = vmatpush1.bf16.msra.mxu0 0
  %6477 = vmatprep.subr.bf16.mxu0 0
  %6478 = vmatpush1.bf16.msra.mxu0 0
  %6479 = vmatprep.subr.bf16.mxu0 0
  %6480 = vmatpush1.bf16.msra.mxu0 0
  %6481 = vmatprep.subr.bf16.mxu0 0
  %6482 = vmatpush1.bf16.msra.mxu0 0
  %6483 = vmatprep.subr.bf16.mxu0 0
  %6484 = vmatpush1.bf16.msra.mxu0 0
  %6485 = vmatprep.subr.bf16.mxu0 0
  %6486 = vmatpush1.bf16.msra.mxu0 0
  %6487 = vmatprep.subr.bf16.mxu0 0
  %6488 = vmatpush1.bf16.msra.mxu0 0
  %6489 = vmatprep.subr.bf16.mxu0 0
  %6490 = vmatpush1.bf16.msra.mxu0 0
  %6491 = vmatprep.subr.bf16.mxu0 0
  %6492 = vmatpush1.bf16.msra.mxu0 0
  %6493 = vmatprep.subr.bf16.mxu0 0
  %6494 = vmatpush1.bf16.msra.mxu0 0
  %6495 = vmatprep.subr.bf16.mxu0 0
  %6496 = vmatpush1.bf16.msra.mxu0 0
  %6497 = vmatprep.subr.bf16.mxu0 0
  %6498 = vmatpush1.bf16.msra.mxu0 0
  %6499 = vmatprep.subr.bf16.mxu0 0
  %6500 = vmatpush1.bf16.msra.mxu0 0
  %6501 = vmatprep.subr.bf16.mxu0 0
  %6502 = vmatpush1.bf16.msra.mxu0 0
  %6503 = vmatprep.mubr.bf16.mxu0 0
  %6504 = vmatmul.mubr.bf16.gmra.mrb[0].mxu0 %v6445
  %v6505 = vpop.f32.mrb[0].mxu0
  %v6506 = vadd.f32 0.0, %v6505
  %v6507 = vpop.f32.mrb[0].mxu0
  %v6508 = vpop.f32.mrb[0].mxu0
  %v6509 = vadd.f32 0.0, %v6508
  %v6510 = vpop.f32.mrb[0].mxu0
  %6511 = vmatprep.mubr.bf16.mxu0 0
  %6512 = vmatmul.mubr.bf16.gmra.mrb[0].mxu0 %v6448
  %v6513 = vpop.f32.mrb[0].mxu0
  %v6514 = vadd.f32 0.0, %v6513
  %v6515 = vpop.f32.mrb[0].mxu0
  %v6516 = vpop.f32.mrb[0].mxu0
  %v6517 = vadd.f32 0.0, %v6516
  %v6518 = vpop.f32.mrb[0].mxu0
  %6519 = vmatprep.mubr.bf16.mxu0 0
  %6520 = vmatmul.mubr.bf16.gmra.mrb[0].mxu0 %v6451
  %v6521 = vpop.f32.mrb[0].mxu0
  %v6522 = vadd.f32 0.0, %v6521
  %v6523 = vpop.f32.mrb[0].mxu0
  %v6524 = vpop.f32.mrb[0].mxu0
  %v6525 = vadd.f32 0.0, %v6524
  %v6526 = vpop.f32.mrb[0].mxu0
  %6527 = vmatprep.mubr.bf16.mxu0 0
  %6528 = vmatmul.mubr.bf16.gmra.mrb[0].mxu0 %v6454
  %v6529 = vpop.f32.mrb[0].mxu0
  %v6530 = vadd.f32 0.0, %v6529
  %v6531 = vpop.f32.mrb[0].mxu0
  %v6532 = vpop.f32.mrb[0].mxu0
  %v6533 = vadd.f32 0.0, %v6532
  %v6534 = vpop.f32.mrb[0].mxu0
  %6535 = vmatprep.mubr.bf16.mxu0 0
  %6536 = vmatmul.mubr.bf16.gmra.mrb[0].mxu0 %v6457
  %v6537 = vpop.f32.mrb[0].mxu0
  %v6538 = vadd.f32 0.0, %v6537
  %v6539 = vpop.f32.mrb[0].mxu0
  %v6540 = vpop.f32.mrb[0].mxu0
  %v6541 = vadd.f32 0.0, %v6540
  %v6542 = vpop.f32.mrb[0].mxu0
  %6543 = vmatprep.mubr.bf16.mxu0 0
  %6544 = vmatmul.mubr.bf16.gmra.mrb[0].mxu0 %v6460
  %v6545 = vpop.f32.mrb[0].mxu0
  %v6546 = vadd.f32 0.0, %v6545
  %v6547 = vpop.f32.mrb[0].mxu0
  %v6548 = vpop.f32.mrb[0].mxu0
  %v6549 = vadd.f32 0.0, %v6548
  %v6550 = vpop.f32.mrb[0].mxu0
  %6551 = vmatprep.mubr.bf16.mxu0 0
  %6552 = vmatmul.mubr.bf16.gmra.mrb[0].mxu0 %v6463
  %v6553 = vpop.f32.mrb[0].mxu0
  %v6554 = vadd.f32 0.0, %v6553
  %v6555 = vpop.f32.mrb[0].mxu0
  %v6556 = vpop.f32.mrb[0].mxu0
  %v6557 = vadd.f32 0.0, %v6556
  %v6558 = vpop.f32.mrb[0].mxu0
  %6559 = vmatprep.mubr.bf16.mxu0 0
  %6560 = vmatmul.mubr.bf16.gmra.mrb[0].mxu0 %v6466
  %v6561 = vpop.f32.mrb[0].mxu0
  %v6562 = vadd.f32 0.0, %v6561
  %v6563 = vpop.f32.mrb[0].mxu0
  %v6564 = vpop.f32.mrb[0].mxu0
  %v6565 = vadd.f32 0.0, %v6564
  %v6566 = vpop.f32.mrb[0].mxu0
  %6567 = vdwg.mxu0
  %v6568 = vadd.f32 %v6369, %v6506
  %v6569 = vadd.f32 %v6372, %v6509
  %v6570 = vadd.f32 %v6377, %v6514
  %v6571 = vadd.f32 %v6380, %v6517
  %v6572 = vadd.f32 %v6385, %v6522
  %v6573 = vadd.f32 %v6388, %v6525
  %v6574 = vadd.f32 %v6393, %v6530
  %v6575 = vadd.f32 %v6396, %v6533
  %v6576 = vadd.f32 %v6401, %v6538
  %v6577 = vadd.f32 %v6404, %v6541
  %v6578 = vadd.f32 %v6409, %v6546
  %v6579 = vadd.f32 %v6412, %v6549
  %v6580 = vadd.f32 %v6417, %v6554
  %v6581 = vadd.f32 %v6420, %v6557
  %v6582 = vadd.f32 %v6425, %v6562
  %v6583 = vadd.f32 %v6428, %v6565
  %s6584 = scalar_lea.vmem %s5, 24
  %v6585 = vld [vmem:[%s6584] sm:$0xf]
  %v6586 = vld [vmem:[%s6584 + $0x4] sm:$0xf]
  %v6587 = vld [vmem:[%s6584 + $0x8] sm:$0xf]
  %v6591 = vunpack.c.l.b16 %v6585
  %v6592 = vunpack.c.l.b16 %v6586
  %v6593 = vunpack.c.l.b16 %v6587
  %v6594 = vpack.c.b16 %v6592, %v6591
  %v6595 = vpack.c.b16 %v6593, %v6593
  %v6598 = vsel %vm6305, %v6270, 0
  %v6601 = vsel %vm6305, %v6271, 0
  %v6604 = vsel %vm6305, %v6272, 0
  %v6607 = vsel %vm6305, %v6273, 0
  %v6610 = vsel %vm6305, %v6274, 0
  %v6613 = vsel %vm6305, %v6275, 0
  %v6616 = vsel %vm6305, %v6276, 0
  %v6619 = vsel %vm6305, %v6277, 0
  %v6622 = vsel %vm6330, %v6595, 0
  %6624 = vmatprep.subr.bf16.mxu0 0
  %6625 = vmatpush1.bf16.msra.mxu0 %v6594
  %6626 = vmatprep.subr.bf16.mxu0 0
  %6627 = vmatpush1.bf16.msra.mxu0 %v6622
  %6628 = vmatprep.subr.bf16.mxu0 0
  %6629 = vmatpush1.bf16.msra.mxu0 0
  %6630 = vmatprep.subr.bf16.mxu0 0
  %6631 = vmatpush1.bf16.msra.mxu0 0
  %6632 = vmatprep.subr.bf16.mxu0 0
  %6633 = vmatpush1.bf16.msra.mxu0 0
  %6634 = vmatprep.subr.bf16.mxu0 0
  %6635 = vmatpush1.bf16.msra.mxu0 0
  %6636 = vmatprep.subr.bf16.mxu0 0
  %6637 = vmatpush1.bf16.msra.mxu0 0
  %6638 = vmatprep.subr.bf16.mxu0 0
  %6639 = vmatpush1.bf16.msra.mxu0 0
  %6640 = vmatprep.subr.bf16.mxu0 0
  %6641 = vmatpush1.bf16.msra.mxu0 0
  %6642 = vmatprep.subr.bf16.mxu0 0
  %6643 = vmatpush1.bf16.msra.mxu0 0
  %6644 = vmatprep.subr.bf16.mxu0 0
  %6645 = vmatpush1.bf16.msra.mxu0 0
  %6646 = vmatprep.subr.bf16.mxu0 0
  %6647 = vmatpush1.bf16.msra.mxu0 0
  %6648 = vmatprep.subr.bf16.mxu0 0
  %6649 = vmatpush1.bf16.msra.mxu0 0
  %6650 = vmatprep.subr.bf16.mxu0 0
  %6651 = vmatpush1.bf16.msra.mxu0 0
  %6652 = vmatprep.subr.bf16.mxu0 0
  %6653 = vmatpush1.bf16.msra.mxu0 0
  %6654 = vmatprep.subr.bf16.mxu0 0
  %6655 = vmatpush1.bf16.msra.mxu0 0
  %6656 = vmatprep.mubr.bf16.mxu0 0
  %6657 = vmatmul.mubr.bf16.gmra.mrb[0].mxu0 %v6598
  %v6658 = vpop.f32.mrb[0].mxu0
  %v6659 = vadd.f32 0.0, %v6658
  %v6660 = vpop.f32.mrb[0].mxu0
  %v6661 = vpop.f32.mrb[0].mxu0
  %v6662 = vadd.f32 0.0, %v6661
  %v6663 = vpop.f32.mrb[0].mxu0
  %6664 = vmatprep.mubr.bf16.mxu0 0
  %6665 = vmatmul.mubr.bf16.gmra.mrb[0].mxu0 %v6601
  %v6666 = vpop.f32.mrb[0].mxu0
  %v6667 = vadd.f32 0.0, %v6666
  %v6668 = vpop.f32.mrb[0].mxu0
  %v6669 = vpop.f32.mrb[0].mxu0
  %v6670 = vadd.f32 0.0, %v6669
  %v6671 = vpop.f32.mrb[0].mxu0
  %6672 = vmatprep.mubr.bf16.mxu0 0
  %6673 = vmatmul.mubr.bf16.gmra.mrb[0].mxu0 %v6604
  %v6674 = vpop.f32.mrb[0].mxu0
  %v6675 = vadd.f32 0.0, %v6674
  %v6676 = vpop.f32.mrb[0].mxu0
  %v6677 = vpop.f32.mrb[0].mxu0
  %v6678 = vadd.f32 0.0, %v6677
  %v6679 = vpop.f32.mrb[0].mxu0
  %6680 = vmatprep.mubr.bf16.mxu0 0
  %6681 = vmatmul.mubr.bf16.gmra.mrb[0].mxu0 %v6607
  %v6682 = vpop.f32.mrb[0].mxu0
  %v6683 = vadd.f32 0.0, %v6682
  %v6684 = vpop.f32.mrb[0].mxu0
  %v6685 = vpop.f32.mrb[0].mxu0
  %v6686 = vadd.f32 0.0, %v6685
  %v6687 = vpop.f32.mrb[0].mxu0
  %6688 = vmatprep.mubr.bf16.mxu0 0
  %6689 = vmatmul.mubr.bf16.gmra.mrb[0].mxu0 %v6610
  %v6690 = vpop.f32.mrb[0].mxu0
  %v6691 = vadd.f32 0.0, %v6690
  %v6692 = vpop.f32.mrb[0].mxu0
  %v6693 = vpop.f32.mrb[0].mxu0
  %v6694 = vadd.f32 0.0, %v6693
  %v6695 = vpop.f32.mrb[0].mxu0
  %6696 = vmatprep.mubr.bf16.mxu0 0
  %6697 = vmatmul.mubr.bf16.gmra.mrb[0].mxu0 %v6613
  %v6698 = vpop.f32.mrb[0].mxu0
  %v6699 = vadd.f32 0.0, %v6698
  %v6700 = vpop.f32.mrb[0].mxu0
  %v6701 = vpop.f32.mrb[0].mxu0
  %v6702 = vadd.f32 0.0, %v6701
  %v6703 = vpop.f32.mrb[0].mxu0
  %6704 = vmatprep.mubr.bf16.mxu0 0
  %6705 = vmatmul.mubr.bf16.gmra.mrb[0].mxu0 %v6616
  %v6706 = vpop.f32.mrb[0].mxu0
  %v6707 = vadd.f32 0.0, %v6706
  %v6708 = vpop.f32.mrb[0].mxu0
  %v6709 = vpop.f32.mrb[0].mxu0
  %v6710 = vadd.f32 0.0, %v6709
  %v6711 = vpop.f32.mrb[0].mxu0
  %6712 = vmatprep.mubr.bf16.mxu0 0
  %6713 = vmatmul.mubr.bf16.gmra.mrb[0].mxu0 %v6619
  %v6714 = vpop.f32.mrb[0].mxu0
  %v6715 = vadd.f32 0.0, %v6714
  %v6716 = vpop.f32.mrb[0].mxu0
  %v6717 = vpop.f32.mrb[0].mxu0
  %v6718 = vadd.f32 0.0, %v6717
  %v6719 = vpop.f32.mrb[0].mxu0
  %6720 = vdwg.mxu0
  %v6721 = vadd.f32 %v6568, %v6659
  %v6722 = vadd.f32 %v6569, %v6662
  %v6723 = vadd.f32 %v6570, %v6667
  %v6724 = vadd.f32 %v6571, %v6670
  %v6725 = vadd.f32 %v6572, %v6675
  %v6726 = vadd.f32 %v6573, %v6678
  %v6727 = vadd.f32 %v6574, %v6683
  %v6728 = vadd.f32 %v6575, %v6686
  %v6729 = vadd.f32 %v6576, %v6691
  %v6730 = vadd.f32 %v6577, %v6694
  %v6731 = vadd.f32 %v6578, %v6699
  %v6732 = vadd.f32 %v6579, %v6702
  %v6733 = vadd.f32 %v6580, %v6707
  %v6734 = vadd.f32 %v6581, %v6710
  %v6735 = vadd.f32 %v6582, %v6715
  %v6736 = vadd.f32 %v6583, %v6718
  %s6737 = scalar_lea.vmem %s5, 36
  %v6738 = vld [vmem:[%s6737] sm:$0xf]
  %v6739 = vld [vmem:[%s6737 + $0x4] sm:$0xf]
  %v6740 = vld [vmem:[%s6737 + $0x8] sm:$0xf]
  %v6744 = vunpack.c.l.b16 %v6738
  %v6745 = vunpack.c.l.b16 %v6739
  %v6746 = vunpack.c.l.b16 %v6740
  %v6747 = vpack.c.b16 %v6745, %v6744
  %v6748 = vpack.c.b16 %v6746, %v6746
  %v6751 = vsel %vm6305, %v6278, 0
  %v6754 = vsel %vm6305, %v6279, 0
  %v6757 = vsel %vm6305, %v6280, 0
  %v6760 = vsel %vm6305, %v6281, 0
  %v6763 = vsel %vm6305, %v6282, 0
  %v6766 = vsel %vm6305, %v6283, 0
  %v6769 = vsel %vm6305, %v6284, 0
  %v6772 = vsel %vm6305, %v6285, 0
  %v6775 = vsel %vm6330, %v6748, 0
  %6777 = vmatprep.subr.bf16.mxu0 0
  %6778 = vmatpush1.bf16.msra.mxu0 %v6747
  %6779 = vmatprep.subr.bf16.mxu0 0
  %6780 = vmatpush1.bf16.msra.mxu0 %v6775
  %6781 = vmatprep.subr.bf16.mxu0 0
  %6782 = vmatpush1.bf16.msra.mxu0 0
  %6783 = vmatprep.subr.bf16.mxu0 0
  %6784 = vmatpush1.bf16.msra.mxu0 0
  %6785 = vmatprep.subr.bf16.mxu0 0
  %6786 = vmatpush1.bf16.msra.mxu0 0
  %6787 = vmatprep.subr.bf16.mxu0 0
  %6788 = vmatpush1.bf16.msra.mxu0 0
  %6789 = vmatprep.subr.bf16.mxu0 0
  %6790 = vmatpush1.bf16.msra.mxu0 0
  %6791 = vmatprep.subr.bf16.mxu0 0
  %6792 = vmatpush1.bf16.msra.mxu0 0
  %6793 = vmatprep.subr.bf16.mxu0 0
  %6794 = vmatpush1.bf16.msra.mxu0 0
  %6795 = vmatprep.subr.bf16.mxu0 0
  %6796 = vmatpush1.bf16.msra.mxu0 0
  %6797 = vmatprep.subr.bf16.mxu0 0
  %6798 = vmatpush1.bf16.msra.mxu0 0
  %6799 = vmatprep.subr.bf16.mxu0 0
  %6800 = vmatpush1.bf16.msra.mxu0 0
  %6801 = vmatprep.subr.bf16.mxu0 0
  %6802 = vmatpush1.bf16.msra.mxu0 0
  %6803 = vmatprep.subr.bf16.mxu0 0
  %6804 = vmatpush1.bf16.msra.mxu0 0
  %6805 = vmatprep.subr.bf16.mxu0 0
  %6806 = vmatpush1.bf16.msra.mxu0 0
  %6807 = vmatprep.subr.bf16.mxu0 0
  %6808 = vmatpush1.bf16.msra.mxu0 0
  %6809 = vmatprep.mubr.bf16.mxu0 0
  %6810 = vmatmul.mubr.bf16.gmra.mrb[0].mxu0 %v6751
  %v6811 = vpop.f32.mrb[0].mxu0
  %v6812 = vadd.f32 0.0, %v6811
  %v6813 = vpop.f32.mrb[0].mxu0
  %v6814 = vpop.f32.mrb[0].mxu0
  %v6815 = vadd.f32 0.0, %v6814
  %v6816 = vpop.f32.mrb[0].mxu0
  %6817 = vmatprep.mubr.bf16.mxu0 0
  %6818 = vmatmul.mubr.bf16.gmra.mrb[0].mxu0 %v6754
  %v6819 = vpop.f32.mrb[0].mxu0
  %v6820 = vadd.f32 0.0, %v6819
  %v6821 = vpop.f32.mrb[0].mxu0
  %v6822 = vpop.f32.mrb[0].mxu0
  %v6823 = vadd.f32 0.0, %v6822
  %v6824 = vpop.f32.mrb[0].mxu0
  %6825 = vmatprep.mubr.bf16.mxu0 0
  %6826 = vmatmul.mubr.bf16.gmra.mrb[0].mxu0 %v6757
  %v6827 = vpop.f32.mrb[0].mxu0
  %v6828 = vadd.f32 0.0, %v6827
  %v6829 = vpop.f32.mrb[0].mxu0
  %v6830 = vpop.f32.mrb[0].mxu0
  %v6831 = vadd.f32 0.0, %v6830
  %v6832 = vpop.f32.mrb[0].mxu0
  %6833 = vmatprep.mubr.bf16.mxu0 0
  %6834 = vmatmul.mubr.bf16.gmra.mrb[0].mxu0 %v6760
  %v6835 = vpop.f32.mrb[0].mxu0
  %v6836 = vadd.f32 0.0, %v6835
  %v6837 = vpop.f32.mrb[0].mxu0
  %v6838 = vpop.f32.mrb[0].mxu0
  %v6839 = vadd.f32 0.0, %v6838
  %v6840 = vpop.f32.mrb[0].mxu0
  %6841 = vmatprep.mubr.bf16.mxu0 0
  %6842 = vmatmul.mubr.bf16.gmra.mrb[0].mxu0 %v6763
  %v6843 = vpop.f32.mrb[0].mxu0
  %v6844 = vadd.f32 0.0, %v6843
  %v6845 = vpop.f32.mrb[0].mxu0
  %v6846 = vpop.f32.mrb[0].mxu0
  %v6847 = vadd.f32 0.0, %v6846
  %v6848 = vpop.f32.mrb[0].mxu0
  %6849 = vmatprep.mubr.bf16.mxu0 0
  %6850 = vmatmul.mubr.bf16.gmra.mrb[0].mxu0 %v6766
  %v6851 = vpop.f32.mrb[0].mxu0
  %v6852 = vadd.f32 0.0, %v6851
  %v6853 = vpop.f32.mrb[0].mxu0
  %v6854 = vpop.f32.mrb[0].mxu0
  %v6855 = vadd.f32 0.0, %v6854
  %v6856 = vpop.f32.mrb[0].mxu0
  %6857 = vmatprep.mubr.bf16.mxu0 0
  %6858 = vmatmul.mubr.bf16.gmra.mrb[0].mxu0 %v6769
  %v6859 = vpop.f32.mrb[0].mxu0
  %v6860 = vadd.f32 0.0, %v6859
  %v6861 = vpop.f32.mrb[0].mxu0
  %v6862 = vpop.f32.mrb[0].mxu0
  %v6863 = vadd.f32 0.0, %v6862
  %v6864 = vpop.f32.mrb[0].mxu0
  %6865 = vmatprep.mubr.bf16.mxu0 0
  %6866 = vmatmul.mubr.bf16.gmra.mrb[0].mxu0 %v6772
  %v6867 = vpop.f32.mrb[0].mxu0
  %v6868 = vadd.f32 0.0, %v6867
  %v6869 = vpop.f32.mrb[0].mxu0
  %v6870 = vpop.f32.mrb[0].mxu0
  %v6871 = vadd.f32 0.0, %v6870
  %v6872 = vpop.f32.mrb[0].mxu0
  %6873 = vdwg.mxu0
  %v6874 = vadd.f32 %v6721, %v6812
  %v6875 = vadd.f32 %v6722, %v6815
  %v6876 = vadd.f32 %v6723, %v6820
  %v6877 = vadd.f32 %v6724, %v6823
  %v6878 = vadd.f32 %v6725, %v6828
  %v6879 = vadd.f32 %v6726, %v6831
  %v6880 = vadd.f32 %v6727, %v6836
  %v6881 = vadd.f32 %v6728, %v6839
  %v6882 = vadd.f32 %v6729, %v6844
  %v6883 = vadd.f32 %v6730, %v6847
  %v6884 = vadd.f32 %v6731, %v6852
  %v6885 = vadd.f32 %v6732, %v6855
  %v6886 = vadd.f32 %v6733, %v6860
  %v6887 = vadd.f32 %v6734, %v6863
  %v6888 = vadd.f32 %v6735, %v6868
  %v6889 = vadd.f32 %v6736, %v6871
  %v6890 = vsub.f32 0.0, %v6874
  %v6891 = vsub.f32 0.0, %v6875
  %v6892 = vsub.f32 0.0, %v6876
  %v6893 = vsub.f32 0.0, %v6877
  %v6894 = vsub.f32 0.0, %v6878
  %v6895 = vsub.f32 0.0, %v6879
  %v6896 = vsub.f32 0.0, %v6880
  %v6897 = vsub.f32 0.0, %v6881
  %v6898 = vsub.f32 0.0, %v6882
  %v6899 = vsub.f32 0.0, %v6883
  %v6900 = vsub.f32 0.0, %v6884
  %v6901 = vsub.f32 0.0, %v6885
  %v6902 = vsub.f32 0.0, %v6886
  %v6903 = vsub.f32 0.0, %v6887
  %v6904 = vsub.f32 0.0, %v6888
  %v6905 = vsub.f32 0.0, %v6889
  %v6906 = vmul.f32 %v6890, 1.442695
  %v6907 = vpow.pop %v6906
  %v6908 = vmul.f32 %v6891, 1.442695
  %v6909 = vpow.pop %v6908
  %v6910 = vmul.f32 %v6892, 1.442695
  %v6911 = vpow.pop %v6910
  %v6912 = vmul.f32 %v6893, 1.442695
  %v6913 = vpow.pop %v6912
  %v6914 = vmul.f32 %v6894, 1.442695
  %v6915 = vpow.pop %v6914
  %v6916 = vmul.f32 %v6895, 1.442695
  %v6917 = vpow.pop %v6916
  %v6918 = vmul.f32 %v6896, 1.442695
  %v6919 = vpow.pop %v6918
  %v6920 = vmul.f32 %v6897, 1.442695
  %v6921 = vpow.pop %v6920
  %v6922 = vmul.f32 %v6898, 1.442695
  %v6923 = vpow.pop %v6922
  %v6924 = vmul.f32 %v6899, 1.442695
  %v6925 = vpow.pop %v6924
  %v6926 = vmul.f32 %v6900, 1.442695
  %v6927 = vpow.pop %v6926
  %v6928 = vmul.f32 %v6901, 1.442695
  %v6929 = vpow.pop %v6928
  %v6930 = vmul.f32 %v6902, 1.442695
  %v6931 = vpow.pop %v6930
  %v6932 = vmul.f32 %v6903, 1.442695
  %v6933 = vpow.pop %v6932
  %v6934 = vmul.f32 %v6904, 1.442695
  %v6935 = vpow.pop %v6934
  %v6936 = vmul.f32 %v6905, 1.442695
  %v6937 = vpow.pop %v6936
  %v6938 = vadd.f32 %v6907, 1.0
  %v6939 = vadd.f32 %v6909, 1.0
  %v6940 = vadd.f32 %v6911, 1.0
  %v6941 = vadd.f32 %v6913, 1.0
  %v6942 = vadd.f32 %v6915, 1.0
  %v6943 = vadd.f32 %v6917, 1.0
  %v6944 = vadd.f32 %v6919, 1.0
  %v6945 = vadd.f32 %v6921, 1.0
  %v6946 = vadd.f32 %v6923, 1.0
  %v6947 = vadd.f32 %v6925, 1.0
  %v6948 = vadd.f32 %v6927, 1.0
  %v6949 = vadd.f32 %v6929, 1.0
  %v6950 = vadd.f32 %v6931, 1.0
  %v6951 = vadd.f32 %v6933, 1.0
  %v6952 = vadd.f32 %v6935, 1.0
  %v6953 = vadd.f32 %v6937, 1.0
  %v6954 = vrcp.pop %v6938
  %v6955 = vrcp.pop %v6939
  %v6956 = vrcp.pop %v6940
  %v6957 = vrcp.pop %v6941
  %v6958 = vrcp.pop %v6942
  %v6959 = vrcp.pop %v6943
  %v6960 = vrcp.pop %v6944
  %v6961 = vrcp.pop %v6945
  %v6962 = vrcp.pop %v6946
  %v6963 = vrcp.pop %v6947
  %v6964 = vrcp.pop %v6948
  %v6965 = vrcp.pop %v6949
  %v6966 = vrcp.pop %v6950
  %v6967 = vrcp.pop %v6951
  %v6968 = vrcp.pop %v6952
  %v6969 = vrcp.pop %v6953
  %v6970 = vmul.f32 %v6874, %v6954
  %v6971 = vmul.f32 %v6875, %v6955
  %v6972 = vmul.f32 %v6876, %v6956
  %v6973 = vmul.f32 %v6877, %v6957
  %v6974 = vmul.f32 %v6878, %v6958
  %v6975 = vmul.f32 %v6879, %v6959
  %v6976 = vmul.f32 %v6880, %v6960
  %v6977 = vmul.f32 %v6881, %v6961
  %v6978 = vmul.f32 %v6882, %v6962
  %v6979 = vmul.f32 %v6883, %v6963
  %v6980 = vmul.f32 %v6884, %v6964
  %v6981 = vmul.f32 %v6885, %v6965
  %v6982 = vmul.f32 %v6886, %v6966
  %v6983 = vmul.f32 %v6887, %v6967
  %v6984 = vmul.f32 %v6888, %v6968
  %v6985 = vmul.f32 %v6889, %v6969
  %v6986 = vpack.c.bf16 %v6971, %v6970
  %v6987 = vpack.c.bf16 %v6973, %v6972
  %v6988 = vpack.c.bf16 %v6975, %v6974
  %v6989 = vpack.c.bf16 %v6977, %v6976
  %v6990 = vpack.c.bf16 %v6979, %v6978
  %v6991 = vpack.c.bf16 %v6981, %v6980
  %v6992 = vpack.c.bf16 %v6983, %v6982
  %v6993 = vpack.c.bf16 %v6985, %v6984
  %v6994 = vld [vmem:[%s7] sm:$0xf]
  %v6995 = vld [vmem:[%s7 + $0x4] sm:$0xf]
  %v6996 = vld [vmem:[%s7 + $0x8] sm:$0xf]
  %v6997 = vld [vmem:[%s7 + $0xc] sm:$0xf]
  %v6998 = vld [vmem:[%s8] sm:$0x1]
  %v7000 = vlaneseq
  %v7001 = vshrl.u32 %v7000, 7
  %v7002 = vsub.s32 0, %v7001
  %v7003 = vrot.slane %v6998, %v7002
  %v7009 = vunpack.c.l.b16 %v6994
  %v7010 = vunpack.c.l.b16 %v6995
  %v7011 = vunpack.c.l.b16 %v6996
  %v7012 = vunpack.c.l.b16 %v6997
  %v7013 = vpack.c.b16 %v7010, %v7009
  %v7014 = vpack.c.b16 %v7012, %v7011
  %vm7017 = vcmask 261120
  %v7019 = vsel %vm7017, %v6986, 0
  %v7022 = vsel %vm7017, %v6987, 0
  %7024 = vmatprep.subr.bf16.mxu0 0
  %7025 = vmatpush1.bf16.msra.mxu0 %v7013
  %7026 = vmatprep.subr.bf16.mxu0 0
  %7027 = vmatpush1.bf16.msra.mxu0 %v7014
  %7028 = vmatprep.subr.bf16.mxu0 0
  %7029 = vmatpush1.bf16.msra.mxu0 0
  %7030 = vmatprep.subr.bf16.mxu0 0
  %7031 = vmatpush1.bf16.msra.mxu0 0
  %7032 = vmatprep.subr.bf16.mxu0 0
  %7033 = vmatpush1.bf16.msra.mxu0 0
  %7034 = vmatprep.subr.bf16.mxu0 0
  %7035 = vmatpush1.bf16.msra.mxu0 0
  %7036 = vmatprep.subr.bf16.mxu0 0
  %7037 = vmatpush1.bf16.msra.mxu0 0
  %7038 = vmatprep.subr.bf16.mxu0 0
  %7039 = vmatpush1.bf16.msra.mxu0 0
  %7040 = vmatprep.subr.bf16.mxu0 0
  %7041 = vmatpush1.bf16.msra.mxu0 0
  %7042 = vmatprep.subr.bf16.mxu0 0
  %7043 = vmatpush1.bf16.msra.mxu0 0
  %7044 = vmatprep.subr.bf16.mxu0 0
  %7045 = vmatpush1.bf16.msra.mxu0 0
  %7046 = vmatprep.subr.bf16.mxu0 0
  %7047 = vmatpush1.bf16.msra.mxu0 0
  %7048 = vmatprep.subr.bf16.mxu0 0
  %7049 = vmatpush1.bf16.msra.mxu0 0
  %7050 = vmatprep.subr.bf16.mxu0 0
  %7051 = vmatpush1.bf16.msra.mxu0 0
  %7052 = vmatprep.subr.bf16.mxu0 0
  %7053 = vmatpush1.bf16.msra.mxu0 0
  %7054 = vmatprep.subr.bf16.mxu0 0
  %7055 = vmatpush1.bf16.msra.mxu0 0
  %7056 = vmatprep.mubr.bf16.mxu0 0
  %7057 = vmatmul.mubr.bf16.gmra.mrb[0].mxu0 %v7019
  %v7058 = vpop.f32.mrb[0].mxu0
  %v7059 = vadd.f32 %v7003, %v7058
  %v7060 = vpop.f32.mrb[0].mxu0
  %v7061 = vpop.f32.mrb[0].mxu0
  %v7062 = vadd.f32 %v7003, %v7061
  %v7063 = vpop.f32.mrb[0].mxu0
  %7064 = vmatprep.mubr.bf16.mxu0 0
  %7065 = vmatmul.mubr.bf16.gmra.mrb[0].mxu0 %v7022
  %v7066 = vpop.f32.mrb[0].mxu0
  %v7067 = vadd.f32 %v7003, %v7066
  %v7068 = vpop.f32.mrb[0].mxu0
  %v7069 = vpop.f32.mrb[0].mxu0
  %v7070 = vadd.f32 %v7003, %v7069
  %v7071 = vpop.f32.mrb[0].mxu0
  %7072 = vdwg.mxu0
  %s7073 = scalar_lea.vmem %s7, 16
  %v7074 = vld [vmem:[%s7073] sm:$0xf]
  %v7075 = vld [vmem:[%s7073 + $0x4] sm:$0xf]
  %v7076 = vld [vmem:[%s7073 + $0x8] sm:$0xf]
  %v7077 = vld [vmem:[%s7073 + $0xc] sm:$0xf]
  %v7082 = vunpack.c.l.b16 %v7074
  %v7083 = vunpack.c.l.b16 %v7075
  %v7084 = vunpack.c.l.b16 %v7076
  %v7085 = vunpack.c.l.b16 %v7077
  %v7086 = vpack.c.b16 %v7083, %v7082
  %v7087 = vpack.c.b16 %v7085, %v7084
  %v7091 = vsel %vm7017, %v6988, 0
  %v7094 = vsel %vm7017, %v6989, 0
  %7096 = vmatprep.subr.bf16.mxu0 0
  %7097 = vmatpush1.bf16.msra.mxu0 %v7086
  %7098 = vmatprep.subr.bf16.mxu0 0
  %7099 = vmatpush1.bf16.msra.mxu0 %v7087
  %7100 = vmatprep.subr.bf16.mxu0 0
  %7101 = vmatpush1.bf16.msra.mxu0 0
  %7102 = vmatprep.subr.bf16.mxu0 0
  %7103 = vmatpush1.bf16.msra.mxu0 0
  %7104 = vmatprep.subr.bf16.mxu0 0
  %7105 = vmatpush1.bf16.msra.mxu0 0
  %7106 = vmatprep.subr.bf16.mxu0 0
  %7107 = vmatpush1.bf16.msra.mxu0 0
  %7108 = vmatprep.subr.bf16.mxu0 0
  %7109 = vmatpush1.bf16.msra.mxu0 0
  %7110 = vmatprep.subr.bf16.mxu0 0
  %7111 = vmatpush1.bf16.msra.mxu0 0
  %7112 = vmatprep.subr.bf16.mxu0 0
  %7113 = vmatpush1.bf16.msra.mxu0 0
  %7114 = vmatprep.subr.bf16.mxu0 0
  %7115 = vmatpush1.bf16.msra.mxu0 0
  %7116 = vmatprep.subr.bf16.mxu0 0
  %7117 = vmatpush1.bf16.msra.mxu0 0
  %7118 = vmatprep.subr.bf16.mxu0 0
  %7119 = vmatpush1.bf16.msra.mxu0 0
  %7120 = vmatprep.subr.bf16.mxu0 0
  %7121 = vmatpush1.bf16.msra.mxu0 0
  %7122 = vmatprep.subr.bf16.mxu0 0
  %7123 = vmatpush1.bf16.msra.mxu0 0
  %7124 = vmatprep.subr.bf16.mxu0 0
  %7125 = vmatpush1.bf16.msra.mxu0 0
  %7126 = vmatprep.subr.bf16.mxu0 0
  %7127 = vmatpush1.bf16.msra.mxu0 0
  %7128 = vmatprep.mubr.bf16.mxu0 0
  %7129 = vmatmul.mubr.bf16.gmra.mrb[0].mxu0 %v7091
  %v7130 = vpop.f32.mrb[0].mxu0
  %v7131 = vadd.f32 0.0, %v7130
  %v7132 = vpop.f32.mrb[0].mxu0
  %v7133 = vpop.f32.mrb[0].mxu0
  %v7134 = vadd.f32 0.0, %v7133
  %v7135 = vpop.f32.mrb[0].mxu0
  %7136 = vmatprep.mubr.bf16.mxu0 0
  %7137 = vmatmul.mubr.bf16.gmra.mrb[0].mxu0 %v7094
  %v7138 = vpop.f32.mrb[0].mxu0
  %v7139 = vadd.f32 0.0, %v7138
  %v7140 = vpop.f32.mrb[0].mxu0
  %v7141 = vpop.f32.mrb[0].mxu0
  %v7142 = vadd.f32 0.0, %v7141
  %v7143 = vpop.f32.mrb[0].mxu0
  %7144 = vdwg.mxu0
  %v7145 = vadd.f32 %v7059, %v7131
  %v7146 = vadd.f32 %v7062, %v7134
  %v7147 = vadd.f32 %v7067, %v7139
  %v7148 = vadd.f32 %v7070, %v7142
  %s7149 = scalar_lea.vmem %s7, 32
  %v7150 = vld [vmem:[%s7149] sm:$0xf]
  %v7151 = vld [vmem:[%s7149 + $0x4] sm:$0xf]
  %v7152 = vld [vmem:[%s7149 + $0x8] sm:$0xf]
  %v7153 = vld [vmem:[%s7149 + $0xc] sm:$0xf]
  %v7158 = vunpack.c.l.b16 %v7150
  %v7159 = vunpack.c.l.b16 %v7151
  %v7160 = vunpack.c.l.b16 %v7152
  %v7161 = vunpack.c.l.b16 %v7153
  %v7162 = vpack.c.b16 %v7159, %v7158
  %v7163 = vpack.c.b16 %v7161, %v7160
  %v7167 = vsel %vm7017, %v6990, 0
  %v7170 = vsel %vm7017, %v6991, 0
  %7172 = vmatprep.subr.bf16.mxu0 0
  %7173 = vmatpush1.bf16.msra.mxu0 %v7162
  %7174 = vmatprep.subr.bf16.mxu0 0
  %7175 = vmatpush1.bf16.msra.mxu0 %v7163
  %7176 = vmatprep.subr.bf16.mxu0 0
  %7177 = vmatpush1.bf16.msra.mxu0 0
  %7178 = vmatprep.subr.bf16.mxu0 0
  %7179 = vmatpush1.bf16.msra.mxu0 0
  %7180 = vmatprep.subr.bf16.mxu0 0
  %7181 = vmatpush1.bf16.msra.mxu0 0
  %7182 = vmatprep.subr.bf16.mxu0 0
  %7183 = vmatpush1.bf16.msra.mxu0 0
  %7184 = vmatprep.subr.bf16.mxu0 0
  %7185 = vmatpush1.bf16.msra.mxu0 0
  %7186 = vmatprep.subr.bf16.mxu0 0
  %7187 = vmatpush1.bf16.msra.mxu0 0
  %7188 = vmatprep.subr.bf16.mxu0 0
  %7189 = vmatpush1.bf16.msra.mxu0 0
  %7190 = vmatprep.subr.bf16.mxu0 0
  %7191 = vmatpush1.bf16.msra.mxu0 0
  %7192 = vmatprep.subr.bf16.mxu0 0
  %7193 = vmatpush1.bf16.msra.mxu0 0
  %7194 = vmatprep.subr.bf16.mxu0 0
  %7195 = vmatpush1.bf16.msra.mxu0 0
  %7196 = vmatprep.subr.bf16.mxu0 0
  %7197 = vmatpush1.bf16.msra.mxu0 0
  %7198 = vmatprep.subr.bf16.mxu0 0
  %7199 = vmatpush1.bf16.msra.mxu0 0
  %7200 = vmatprep.subr.bf16.mxu0 0
  %7201 = vmatpush1.bf16.msra.mxu0 0
  %7202 = vmatprep.subr.bf16.mxu0 0
  %7203 = vmatpush1.bf16.msra.mxu0 0
  %7204 = vmatprep.mubr.bf16.mxu0 0
  %7205 = vmatmul.mubr.bf16.gmra.mrb[0].mxu0 %v7167
  %v7206 = vpop.f32.mrb[0].mxu0
  %v7207 = vadd.f32 0.0, %v7206
  %v7208 = vpop.f32.mrb[0].mxu0
  %v7209 = vpop.f32.mrb[0].mxu0
  %v7210 = vadd.f32 0.0, %v7209
  %v7211 = vpop.f32.mrb[0].mxu0
  %7212 = vmatprep.mubr.bf16.mxu0 0
  %7213 = vmatmul.mubr.bf16.gmra.mrb[0].mxu0 %v7170
  %v7214 = vpop.f32.mrb[0].mxu0
  %v7215 = vadd.f32 0.0, %v7214
  %v7216 = vpop.f32.mrb[0].mxu0
  %v7217 = vpop.f32.mrb[0].mxu0
  %v7218 = vadd.f32 0.0, %v7217
  %v7219 = vpop.f32.mrb[0].mxu0
  %7220 = vdwg.mxu0
  %v7221 = vadd.f32 %v7145, %v7207
  %v7222 = vadd.f32 %v7146, %v7210
  %v7223 = vadd.f32 %v7147, %v7215
  %v7224 = vadd.f32 %v7148, %v7218
  %s7225 = scalar_lea.vmem %s7, 48
  %v7226 = vld [vmem:[%s7225] sm:$0xf]
  %v7227 = vld [vmem:[%s7225 + $0x4] sm:$0xf]
  %v7228 = vld [vmem:[%s7225 + $0x8] sm:$0xf]
  %v7229 = vld [vmem:[%s7225 + $0xc] sm:$0xf]
  %v7234 = vunpack.c.l.b16 %v7226
  %v7235 = vunpack.c.l.b16 %v7227
  %v7236 = vunpack.c.l.b16 %v7228
  %v7237 = vunpack.c.l.b16 %v7229
  %v7238 = vpack.c.b16 %v7235, %v7234
  %v7239 = vpack.c.b16 %v7237, %v7236
  %v7243 = vsel %vm7017, %v6992, 0
  %v7246 = vsel %vm7017, %v6993, 0
  %7248 = vmatprep.subr.bf16.mxu0 0
  %7249 = vmatpush1.bf16.msra.mxu0 %v7238
  %7250 = vmatprep.subr.bf16.mxu0 0
  %7251 = vmatpush1.bf16.msra.mxu0 %v7239
  %7252 = vmatprep.subr.bf16.mxu0 0
  %7253 = vmatpush1.bf16.msra.mxu0 0
  %7254 = vmatprep.subr.bf16.mxu0 0
  %7255 = vmatpush1.bf16.msra.mxu0 0
  %7256 = vmatprep.subr.bf16.mxu0 0
  %7257 = vmatpush1.bf16.msra.mxu0 0
  %7258 = vmatprep.subr.bf16.mxu0 0
  %7259 = vmatpush1.bf16.msra.mxu0 0
  %7260 = vmatprep.subr.bf16.mxu0 0
  %7261 = vmatpush1.bf16.msra.mxu0 0
  %7262 = vmatprep.subr.bf16.mxu0 0
  %7263 = vmatpush1.bf16.msra.mxu0 0
  %7264 = vmatprep.subr.bf16.mxu0 0
  %7265 = vmatpush1.bf16.msra.mxu0 0
  %7266 = vmatprep.subr.bf16.mxu0 0
  %7267 = vmatpush1.bf16.msra.mxu0 0
  %7268 = vmatprep.subr.bf16.mxu0 0
  %7269 = vmatpush1.bf16.msra.mxu0 0
  %7270 = vmatprep.subr.bf16.mxu0 0
  %7271 = vmatpush1.bf16.msra.mxu0 0
  %7272 = vmatprep.subr.bf16.mxu0 0
  %7273 = vmatpush1.bf16.msra.mxu0 0
  %7274 = vmatprep.subr.bf16.mxu0 0
  %7275 = vmatpush1.bf16.msra.mxu0 0
  %7276 = vmatprep.subr.bf16.mxu0 0
  %7277 = vmatpush1.bf16.msra.mxu0 0
  %7278 = vmatprep.subr.bf16.mxu0 0
  %7279 = vmatpush1.bf16.msra.mxu0 0
  %7280 = vmatprep.mubr.bf16.mxu0 0
  %7281 = vmatmul.mubr.bf16.gmra.mrb[0].mxu0 %v7243
  %v7282 = vpop.f32.mrb[0].mxu0
  %v7283 = vadd.f32 0.0, %v7282
  %v7284 = vpop.f32.mrb[0].mxu0
  %v7285 = vpop.f32.mrb[0].mxu0
  %v7286 = vadd.f32 0.0, %v7285
  %v7287 = vpop.f32.mrb[0].mxu0
  %7288 = vmatprep.mubr.bf16.mxu0 0
  %7289 = vmatmul.mubr.bf16.gmra.mrb[0].mxu0 %v7246
  %v7290 = vpop.f32.mrb[0].mxu0
  %v7291 = vadd.f32 0.0, %v7290
  %v7292 = vpop.f32.mrb[0].mxu0
  %v7293 = vpop.f32.mrb[0].mxu0
  %v7294 = vadd.f32 0.0, %v7293
  %v7295 = vpop.f32.mrb[0].mxu0
  %7296 = vdwg.mxu0
  %v7297 = vadd.f32 %v7221, %v7283
  %v7298 = vadd.f32 %v7222, %v7286
  %v7299 = vadd.f32 %v7223, %v7291
  %v7300 = vadd.f32 %v7224, %v7294
  %v7301 = vsub.f32 0.0, %v7297
  %v7302 = vsub.f32 0.0, %v7298
  %v7303 = vsub.f32 0.0, %v7299
  %v7304 = vsub.f32 0.0, %v7300
  %v7305 = vmul.f32 %v7301, 1.442695
  %v7306 = vpow.pop %v7305
  %v7307 = vmul.f32 %v7302, 1.442695
  %v7308 = vpow.pop %v7307
  %v7309 = vmul.f32 %v7303, 1.442695
  %v7310 = vpow.pop %v7309
  %v7311 = vmul.f32 %v7304, 1.442695
  %v7312 = vpow.pop %v7311
  %v7313 = vadd.f32 %v7306, 1.0
  %v7314 = vadd.f32 %v7308, 1.0
  %v7315 = vadd.f32 %v7310, 1.0
  %v7316 = vadd.f32 %v7312, 1.0
  %v7317 = vrcp.pop %v7313
  %v7318 = vrcp.pop %v7314
  %v7319 = vrcp.pop %v7315
  %v7320 = vrcp.pop %v7316
  %v7321 = vmul.f32 %v7297, %v7317
  %v7322 = vmul.f32 %v7298, %v7318
  %v7323 = vmul.f32 %v7299, %v7319
  %v7324 = vmul.f32 %v7300, %v7320
  %v7325 = vpack.c.bf16 %v7322, %v7321
  %v7326 = vpack.c.bf16 %v7324, %v7323
  %v7327 = vld [vmem:[%s9] sm:$0xf]
  %v7328 = vld [vmem:[%s9 + $0x4] sm:$0xf]
  %v7329 = vld [vmem:[%s9 + $0x8] sm:$0xf]
  %v7330 = vld [vmem:[%s9 + $0xc] sm:$0xf]
  %v7331 = vld [vmem:[%s9 + $0x10] sm:$0xf]
  %v7332 = vld [vmem:[%s9 + $0x14] sm:$0xf]
  %v7333 = vld [vmem:[%s10] sm:$0x1]
  %v7335 = vlaneseq
  %v7336 = vshrl.u32 %v7335, 7
  %v7337 = vsub.s32 0, %v7336
  %v7338 = vrot.slane %v7333, %v7337
  %v7346 = vunpack.c.l.b16 %v7327
  %v7347 = vunpack.c.l.b16 %v7328
  %v7348 = vunpack.c.l.b16 %v7329
  %v7349 = vunpack.c.l.b16 %v7330
  %v7350 = vunpack.c.l.b16 %v7331
  %v7351 = vunpack.c.l.b16 %v7332
  %v7352 = vpack.c.b16 %v7347, %v7346
  %v7353 = vpack.c.b16 %v7349, %v7348
  %v7354 = vpack.c.b16 %v7351, %v7350
  %vm7358 = vcmask 392192
  %v7360 = vsel %vm7358, %v7325, 0
  %7362 = vmatprep.subr.bf16.mxu0 0
  %7363 = vmatpush1.bf16.msra.mxu0 %v7352
  %7364 = vmatprep.subr.bf16.mxu0 0
  %7365 = vmatpush1.bf16.msra.mxu0 %v7353
  %7366 = vmatprep.subr.bf16.mxu0 0
  %7367 = vmatpush1.bf16.msra.mxu0 %v7354
  %7368 = vmatprep.subr.bf16.mxu0 0
  %7369 = vmatpush1.bf16.msra.mxu0 0
  %7370 = vmatprep.subr.bf16.mxu0 0
  %7371 = vmatpush1.bf16.msra.mxu0 0
  %7372 = vmatprep.subr.bf16.mxu0 0
  %7373 = vmatpush1.bf16.msra.mxu0 0
  %7374 = vmatprep.subr.bf16.mxu0 0
  %7375 = vmatpush1.bf16.msra.mxu0 0
  %7376 = vmatprep.subr.bf16.mxu0 0
  %7377 = vmatpush1.bf16.msra.mxu0 0
  %7378 = vmatprep.subr.bf16.mxu0 0
  %7379 = vmatpush1.bf16.msra.mxu0 0
  %7380 = vmatprep.subr.bf16.mxu0 0
  %7381 = vmatpush1.bf16.msra.mxu0 0
  %7382 = vmatprep.subr.bf16.mxu0 0
  %7383 = vmatpush1.bf16.msra.mxu0 0
  %7384 = vmatprep.subr.bf16.mxu0 0
  %7385 = vmatpush1.bf16.msra.mxu0 0
  %7386 = vmatprep.subr.bf16.mxu0 0
  %7387 = vmatpush1.bf16.msra.mxu0 0
  %7388 = vmatprep.subr.bf16.mxu0 0
  %7389 = vmatpush1.bf16.msra.mxu0 0
  %7390 = vmatprep.subr.bf16.mxu0 0
  %7391 = vmatpush1.bf16.msra.mxu0 0
  %7392 = vmatprep.subr.bf16.mxu0 0
  %7393 = vmatpush1.bf16.msra.mxu0 0
  %7394 = vmatprep.mubr.bf16.mxu0 0
  %7395 = vmatmul.mubr.bf16.gmra.mrb[0].mxu0 %v7360
  %v7396 = vpop.f32.mrb[0].mxu0
  %v7397 = vadd.f32 %v7338, %v7396
  %v7398 = vpop.f32.mrb[0].mxu0
  %v7399 = vpop.f32.mrb[0].mxu0
  %v7400 = vpop.f32.mrb[0].mxu0
  %7401 = vdwg.mxu0
  %s7402 = scalar_lea.vmem %s9, 24
  %v7403 = vld [vmem:[%s7402] sm:$0xf]
  %v7404 = vld [vmem:[%s7402 + $0x4] sm:$0xf]
  %v7405 = vld [vmem:[%s7402 + $0x8] sm:$0xf]
  %v7406 = vld [vmem:[%s7402 + $0xc] sm:$0xf]
  %v7407 = vld [vmem:[%s7402 + $0x10] sm:$0xf]
  %v7408 = vld [vmem:[%s7402 + $0x14] sm:$0xf]
  %v7410 = vrot.slane %v7325, 4
  %v7417 = vunpack.c.l.b16 %v7403
  %v7418 = vunpack.c.l.b16 %v7404
  %v7419 = vunpack.c.l.b16 %v7405
  %v7420 = vunpack.c.l.b16 %v7406
  %v7421 = vunpack.c.l.b16 %v7407
  %v7422 = vunpack.c.l.b16 %v7408
  %v7423 = vpack.c.b16 %v7418, %v7417
  %v7424 = vpack.c.b16 %v7420, %v7419
  %v7425 = vpack.c.b16 %v7422, %v7421
  %v7430 = vsel %vm7358, %v7410, 0
  %7432 = vmatprep.subr.bf16.mxu0 0
  %7433 = vmatpush1.bf16.msra.mxu0 %v7423
  %7434 = vmatprep.subr.bf16.mxu0 0
  %7435 = vmatpush1.bf16.msra.mxu0 %v7424
  %7436 = vmatprep.subr.bf16.mxu0 0
  %7437 = vmatpush1.bf16.msra.mxu0 %v7425
  %7438 = vmatprep.subr.bf16.mxu0 0
  %7439 = vmatpush1.bf16.msra.mxu0 0
  %7440 = vmatprep.subr.bf16.mxu0 0
  %7441 = vmatpush1.bf16.msra.mxu0 0
  %7442 = vmatprep.subr.bf16.mxu0 0
  %7443 = vmatpush1.bf16.msra.mxu0 0
  %7444 = vmatprep.subr.bf16.mxu0 0
  %7445 = vmatpush1.bf16.msra.mxu0 0
  %7446 = vmatprep.subr.bf16.mxu0 0
  %7447 = vmatpush1.bf16.msra.mxu0 0
  %7448 = vmatprep.subr.bf16.mxu0 0
  %7449 = vmatpush1.bf16.msra.mxu0 0
  %7450 = vmatprep.subr.bf16.mxu0 0
  %7451 = vmatpush1.bf16.msra.mxu0 0
  %7452 = vmatprep.subr.bf16.mxu0 0
  %7453 = vmatpush1.bf16.msra.mxu0 0
  %7454 = vmatprep.subr.bf16.mxu0 0
  %7455 = vmatpush1.bf16.msra.mxu0 0
  %7456 = vmatprep.subr.bf16.mxu0 0
  %7457 = vmatpush1.bf16.msra.mxu0 0
  %7458 = vmatprep.subr.bf16.mxu0 0
  %7459 = vmatpush1.bf16.msra.mxu0 0
  %7460 = vmatprep.subr.bf16.mxu0 0
  %7461 = vmatpush1.bf16.msra.mxu0 0
  %7462 = vmatprep.subr.bf16.mxu0 0
  %7463 = vmatpush1.bf16.msra.mxu0 0
  %7464 = vmatprep.mubr.bf16.mxu0 0
  %7465 = vmatmul.mubr.bf16.gmra.mrb[0].mxu0 %v7430
  %v7466 = vpop.f32.mrb[0].mxu0
  %v7467 = vadd.f32 0.0, %v7466
  %v7468 = vpop.f32.mrb[0].mxu0
  %v7469 = vpop.f32.mrb[0].mxu0
  %v7470 = vpop.f32.mrb[0].mxu0
  %7471 = vdwg.mxu0
  %v7472 = vadd.f32 %v7397, %v7467
  %s7473 = scalar_lea.vmem %s9, 48
  %v7474 = vld [vmem:[%s7473] sm:$0xf]
  %v7475 = vld [vmem:[%s7473 + $0x4] sm:$0xf]
  %v7476 = vld [vmem:[%s7473 + $0x8] sm:$0xf]
  %v7477 = vld [vmem:[%s7473 + $0xc] sm:$0xf]
  %v7478 = vld [vmem:[%s7473 + $0x10] sm:$0xf]
  %v7479 = vld [vmem:[%s7473 + $0x14] sm:$0xf]
  %v7486 = vunpack.c.l.b16 %v7474
  %v7487 = vunpack.c.l.b16 %v7475
  %v7488 = vunpack.c.l.b16 %v7476
  %v7489 = vunpack.c.l.b16 %v7477
  %v7490 = vunpack.c.l.b16 %v7478
  %v7491 = vunpack.c.l.b16 %v7479
  %v7492 = vpack.c.b16 %v7487, %v7486
  %v7493 = vpack.c.b16 %v7489, %v7488
  %v7494 = vpack.c.b16 %v7491, %v7490
  %v7499 = vsel %vm7358, %v7326, 0
  %7501 = vmatprep.subr.bf16.mxu0 0
  %7502 = vmatpush1.bf16.msra.mxu0 %v7492
  %7503 = vmatprep.subr.bf16.mxu0 0
  %7504 = vmatpush1.bf16.msra.mxu0 %v7493
  %7505 = vmatprep.subr.bf16.mxu0 0
  %7506 = vmatpush1.bf16.msra.mxu0 %v7494
  %7507 = vmatprep.subr.bf16.mxu0 0
  %7508 = vmatpush1.bf16.msra.mxu0 0
  %7509 = vmatprep.subr.bf16.mxu0 0
  %7510 = vmatpush1.bf16.msra.mxu0 0
  %7511 = vmatprep.subr.bf16.mxu0 0
  %7512 = vmatpush1.bf16.msra.mxu0 0
  %7513 = vmatprep.subr.bf16.mxu0 0
  %7514 = vmatpush1.bf16.msra.mxu0 0
  %7515 = vmatprep.subr.bf16.mxu0 0
  %7516 = vmatpush1.bf16.msra.mxu0 0
  %7517 = vmatprep.subr.bf16.mxu0 0
  %7518 = vmatpush1.bf16.msra.mxu0 0
  %7519 = vmatprep.subr.bf16.mxu0 0
  %7520 = vmatpush1.bf16.msra.mxu0 0
  %7521 = vmatprep.subr.bf16.mxu0 0
  %7522 = vmatpush1.bf16.msra.mxu0 0
  %7523 = vmatprep.subr.bf16.mxu0 0
  %7524 = vmatpush1.bf16.msra.mxu0 0
  %7525 = vmatprep.subr.bf16.mxu0 0
  %7526 = vmatpush1.bf16.msra.mxu0 0
  %7527 = vmatprep.subr.bf16.mxu0 0
  %7528 = vmatpush1.bf16.msra.mxu0 0
  %7529 = vmatprep.subr.bf16.mxu0 0
  %7530 = vmatpush1.bf16.msra.mxu0 0
  %7531 = vmatprep.subr.bf16.mxu0 0
  %7532 = vmatpush1.bf16.msra.mxu0 0
  %7533 = vmatprep.mubr.bf16.mxu0 0
  %7534 = vmatmul.mubr.bf16.gmra.mrb[0].mxu0 %v7499
  %v7535 = vpop.f32.mrb[0].mxu0
  %v7536 = vadd.f32 0.0, %v7535
  %v7537 = vpop.f32.mrb[0].mxu0
  %v7538 = vpop.f32.mrb[0].mxu0
  %v7539 = vpop.f32.mrb[0].mxu0
  %7540 = vdwg.mxu0
  %v7541 = vadd.f32 %v7472, %v7536
  %s7542 = scalar_lea.vmem %s9, 72
  %v7543 = vld [vmem:[%s7542] sm:$0xf]
  %v7544 = vld [vmem:[%s7542 + $0x4] sm:$0xf]
  %v7545 = vld [vmem:[%s7542 + $0x8] sm:$0xf]
  %v7546 = vld [vmem:[%s7542 + $0xc] sm:$0xf]
  %v7547 = vld [vmem:[%s7542 + $0x10] sm:$0xf]
  %v7548 = vld [vmem:[%s7542 + $0x14] sm:$0xf]
  %v7550 = vrot.slane %v7326, 4
  %v7557 = vunpack.c.l.b16 %v7543
  %v7558 = vunpack.c.l.b16 %v7544
  %v7559 = vunpack.c.l.b16 %v7545
  %v7560 = vunpack.c.l.b16 %v7546
  %v7561 = vunpack.c.l.b16 %v7547
  %v7562 = vunpack.c.l.b16 %v7548
  %v7563 = vpack.c.b16 %v7558, %v7557
  %v7564 = vpack.c.b16 %v7560, %v7559
  %v7565 = vpack.c.b16 %v7562, %v7561
  %v7570 = vsel %vm7358, %v7550, 0
  %7572 = vmatprep.subr.bf16.mxu0 0
  %7573 = vmatpush1.bf16.msra.mxu0 %v7563
  %7574 = vmatprep.subr.bf16.mxu0 0
  %7575 = vmatpush1.bf16.msra.mxu0 %v7564
  %7576 = vmatprep.subr.bf16.mxu0 0
  %7577 = vmatpush1.bf16.msra.mxu0 %v7565
  %7578 = vmatprep.subr.bf16.mxu0 0
  %7579 = vmatpush1.bf16.msra.mxu0 0
  %7580 = vmatprep.subr.bf16.mxu0 0
  %7581 = vmatpush1.bf16.msra.mxu0 0
  %7582 = vmatprep.subr.bf16.mxu0 0
  %7583 = vmatpush1.bf16.msra.mxu0 0
  %7584 = vmatprep.subr.bf16.mxu0 0
  %7585 = vmatpush1.bf16.msra.mxu0 0
  %7586 = vmatprep.subr.bf16.mxu0 0
  %7587 = vmatpush1.bf16.msra.mxu0 0
  %7588 = vmatprep.subr.bf16.mxu0 0
  %7589 = vmatpush1.bf16.msra.mxu0 0
  %7590 = vmatprep.subr.bf16.mxu0 0
  %7591 = vmatpush1.bf16.msra.mxu0 0
  %7592 = vmatprep.subr.bf16.mxu0 0
  %7593 = vmatpush1.bf16.msra.mxu0 0
  %7594 = vmatprep.subr.bf16.mxu0 0
  %7595 = vmatpush1.bf16.msra.mxu0 0
  %7596 = vmatprep.subr.bf16.mxu0 0
  %7597 = vmatpush1.bf16.msra.mxu0 0
  %7598 = vmatprep.subr.bf16.mxu0 0
  %7599 = vmatpush1.bf16.msra.mxu0 0
  %7600 = vmatprep.subr.bf16.mxu0 0
  %7601 = vmatpush1.bf16.msra.mxu0 0
  %7602 = vmatprep.subr.bf16.mxu0 0
  %7603 = vmatpush1.bf16.msra.mxu0 0
  %7604 = vmatprep.mubr.bf16.mxu0 0
  %7605 = vmatmul.mubr.bf16.gmra.mrb[0].mxu0 %v7570
  %v7606 = vpop.f32.mrb[0].mxu0
  %v7607 = vadd.f32 0.0, %v7606
  %v7608 = vpop.f32.mrb[0].mxu0
  %v7609 = vpop.f32.mrb[0].mxu0
  %v7610 = vpop.f32.mrb[0].mxu0
  %7611 = vdwg.mxu0
  %v7612 = vadd.f32 %v7541, %v7607
  %v7613 = vsub.f32 0.0, %v7612
  %v7614 = vmul.f32 %v7613, 1.442695
  %v7615 = vpow.pop %v7614
  %v7616 = vadd.f32 %v7615, 1.0
  %v7617 = vrcp.pop %v7616
  %v7618 = vmul.f32 %v7612, %v7617
  %v7619 = vpack.c.bf16 %v7618, %v7618
  %v7620 = vld [vmem:[%s11] sm:$0xf]
  %v7621 = vld [vmem:[%s11 + $0x4] sm:$0xf]
  %v7622 = vld [vmem:[%s11 + $0x8] sm:$0xf]
  %v7623 = vld [vmem:[%s11 + $0xc] sm:$0xf]
  %v7624 = vld [vmem:[%s12] sm:$0x1]
  %v7626 = vlaneseq
  %v7627 = vshrl.u32 %v7626, 7
  %v7628 = vsub.s32 0, %v7627
  %v7629 = vrot.slane %v7624, %v7628
  %v7635 = vunpack.c.l.b16 %v7620
  %v7636 = vunpack.c.l.b16 %v7621
  %v7637 = vunpack.c.l.b16 %v7622
  %v7638 = vunpack.c.l.b16 %v7623
  %v7639 = vpack.c.b16 %v7636, %v7635
  %v7640 = vpack.c.b16 %v7638, %v7637
  %7643 = vmatprep.subr.bf16.mxu0 0
  %7644 = vmatpush1.bf16.msra.mxu0 %v7639
  %7645 = vmatprep.subr.bf16.mxu0 0
  %7646 = vmatpush1.bf16.msra.mxu0 %v7640
  %7647 = vmatprep.subr.bf16.mxu0 0
  %7648 = vmatpush1.bf16.msra.mxu0 0
  %7649 = vmatprep.subr.bf16.mxu0 0
  %7650 = vmatpush1.bf16.msra.mxu0 0
  %7651 = vmatprep.subr.bf16.mxu0 0
  %7652 = vmatpush1.bf16.msra.mxu0 0
  %7653 = vmatprep.subr.bf16.mxu0 0
  %7654 = vmatpush1.bf16.msra.mxu0 0
  %7655 = vmatprep.subr.bf16.mxu0 0
  %7656 = vmatpush1.bf16.msra.mxu0 0
  %7657 = vmatprep.subr.bf16.mxu0 0
  %7658 = vmatpush1.bf16.msra.mxu0 0
  %7659 = vmatprep.subr.bf16.mxu0 0
  %7660 = vmatpush1.bf16.msra.mxu0 0
  %7661 = vmatprep.subr.bf16.mxu0 0
  %7662 = vmatpush1.bf16.msra.mxu0 0
  %7663 = vmatprep.subr.bf16.mxu0 0
  %7664 = vmatpush1.bf16.msra.mxu0 0
  %7665 = vmatprep.subr.bf16.mxu0 0
  %7666 = vmatpush1.bf16.msra.mxu0 0
  %7667 = vmatprep.subr.bf16.mxu0 0
  %7668 = vmatpush1.bf16.msra.mxu0 0
  %7669 = vmatprep.subr.bf16.mxu0 0
  %7670 = vmatpush1.bf16.msra.mxu0 0
  %7671 = vmatprep.subr.bf16.mxu0 0
  %7672 = vmatpush1.bf16.msra.mxu0 0
  %7673 = vmatprep.subr.bf16.mxu0 0
  %7674 = vmatpush1.bf16.msra.mxu0 0
  %7675 = vmatprep.mubr.bf16.mxu0 0
  %7676 = vmatmul.mubr.bf16.gmra.mrb[0].mxu0 %v7019
  %v7677 = vpop.f32.mrb[0].mxu0
  %v7678 = vadd.f32 %v7629, %v7677
  %v7679 = vpop.f32.mrb[0].mxu0
  %v7680 = vpop.f32.mrb[0].mxu0
  %v7681 = vadd.f32 %v7629, %v7680
  %v7682 = vpop.f32.mrb[0].mxu0
  %7683 = vmatprep.mubr.bf16.mxu0 0
  %7684 = vmatmul.mubr.bf16.gmra.mrb[0].mxu0 %v7022
  %v7685 = vpop.f32.mrb[0].mxu0
  %v7686 = vadd.f32 %v7629, %v7685
  %v7687 = vpop.f32.mrb[0].mxu0
  %v7688 = vpop.f32.mrb[0].mxu0
  %v7689 = vadd.f32 %v7629, %v7688
  %v7690 = vpop.f32.mrb[0].mxu0
  %7691 = vmatprep.mubr.bf16.mxu0 0
  %7692 = vmatmul.mubr.bf16.gmra.mrb[0].mxu0 %v7091
  %v7693 = vpop.f32.mrb[0].mxu0
  %v7694 = vadd.f32 %v7629, %v7693
  %v7695 = vpop.f32.mrb[0].mxu0
  %v7696 = vpop.f32.mrb[0].mxu0
  %v7697 = vadd.f32 %v7629, %v7696
  %v7698 = vpop.f32.mrb[0].mxu0
  %7699 = vmatprep.mubr.bf16.mxu0 0
  %7700 = vmatmul.mubr.bf16.gmra.mrb[0].mxu0 %v7094
  %v7701 = vpop.f32.mrb[0].mxu0
  %v7702 = vadd.f32 %v7629, %v7701
  %v7703 = vpop.f32.mrb[0].mxu0
  %v7704 = vpop.f32.mrb[0].mxu0
  %v7705 = vadd.f32 %v7629, %v7704
  %v7706 = vpop.f32.mrb[0].mxu0
  %7707 = vmatprep.mubr.bf16.mxu0 0
  %7708 = vmatmul.mubr.bf16.gmra.mrb[0].mxu0 %v7167
  %v7709 = vpop.f32.mrb[0].mxu0
  %v7710 = vadd.f32 %v7629, %v7709
  %v7711 = vpop.f32.mrb[0].mxu0
  %v7712 = vpop.f32.mrb[0].mxu0
  %v7713 = vadd.f32 %v7629, %v7712
  %v7714 = vpop.f32.mrb[0].mxu0
  %7715 = vmatprep.mubr.bf16.mxu0 0
  %7716 = vmatmul.mubr.bf16.gmra.mrb[0].mxu0 %v7170
  %v7717 = vpop.f32.mrb[0].mxu0
  %v7718 = vadd.f32 %v7629, %v7717
  %v7719 = vpop.f32.mrb[0].mxu0
  %v7720 = vpop.f32.mrb[0].mxu0
  %v7721 = vadd.f32 %v7629, %v7720
  %v7722 = vpop.f32.mrb[0].mxu0
  %7723 = vmatprep.mubr.bf16.mxu0 0
  %7724 = vmatmul.mubr.bf16.gmra.mrb[0].mxu0 %v7243
  %v7725 = vpop.f32.mrb[0].mxu0
  %v7726 = vadd.f32 %v7629, %v7725
  %v7727 = vpop.f32.mrb[0].mxu0
  %v7728 = vpop.f32.mrb[0].mxu0
  %v7729 = vadd.f32 %v7629, %v7728
  %v7730 = vpop.f32.mrb[0].mxu0
  %7731 = vmatprep.mubr.bf16.mxu0 0
  %7732 = vmatmul.mubr.bf16.gmra.mrb[0].mxu0 %v7246
  %v7733 = vpop.f32.mrb[0].mxu0
  %v7734 = vadd.f32 %v7629, %v7733
  %v7735 = vpop.f32.mrb[0].mxu0
  %v7736 = vpop.f32.mrb[0].mxu0
  %v7737 = vadd.f32 %v7629, %v7736
  %v7738 = vpop.f32.mrb[0].mxu0
  %7739 = vdwg.mxu0
  %v7740 = vsub.f32 0.0, %v7678
  %v7741 = vsub.f32 0.0, %v7681
  %v7742 = vsub.f32 0.0, %v7686
  %v7743 = vsub.f32 0.0, %v7689
  %v7744 = vsub.f32 0.0, %v7694
  %v7745 = vsub.f32 0.0, %v7697
  %v7746 = vsub.f32 0.0, %v7702
  %v7747 = vsub.f32 0.0, %v7705
  %v7748 = vsub.f32 0.0, %v7710
  %v7749 = vsub.f32 0.0, %v7713
  %v7750 = vsub.f32 0.0, %v7718
  %v7751 = vsub.f32 0.0, %v7721
  %v7752 = vsub.f32 0.0, %v7726
  %v7753 = vsub.f32 0.0, %v7729
  %v7754 = vsub.f32 0.0, %v7734
  %v7755 = vsub.f32 0.0, %v7737
  %v7756 = vmul.f32 %v7740, 1.442695
  %v7757 = vpow.pop %v7756
  %v7758 = vmul.f32 %v7741, 1.442695
  %v7759 = vpow.pop %v7758
  %v7760 = vmul.f32 %v7742, 1.442695
  %v7761 = vpow.pop %v7760
  %v7762 = vmul.f32 %v7743, 1.442695
  %v7763 = vpow.pop %v7762
  %v7764 = vmul.f32 %v7744, 1.442695
  %v7765 = vpow.pop %v7764
  %v7766 = vmul.f32 %v7745, 1.442695
  %v7767 = vpow.pop %v7766
  %v7768 = vmul.f32 %v7746, 1.442695
  %v7769 = vpow.pop %v7768
  %v7770 = vmul.f32 %v7747, 1.442695
  %v7771 = vpow.pop %v7770
  %v7772 = vmul.f32 %v7748, 1.442695
  %v7773 = vpow.pop %v7772
  %v7774 = vmul.f32 %v7749, 1.442695
  %v7775 = vpow.pop %v7774
  %v7776 = vmul.f32 %v7750, 1.442695
  %v7777 = vpow.pop %v7776
  %v7778 = vmul.f32 %v7751, 1.442695
  %v7779 = vpow.pop %v7778
  %v7780 = vmul.f32 %v7752, 1.442695
  %v7781 = vpow.pop %v7780
  %v7782 = vmul.f32 %v7753, 1.442695
  %v7783 = vpow.pop %v7782
  %v7784 = vmul.f32 %v7754, 1.442695
  %v7785 = vpow.pop %v7784
  %v7786 = vmul.f32 %v7755, 1.442695
  %v7787 = vpow.pop %v7786
  %v7788 = vadd.f32 %v7757, 1.0
  %v7789 = vadd.f32 %v7759, 1.0
  %v7790 = vadd.f32 %v7761, 1.0
  %v7791 = vadd.f32 %v7763, 1.0
  %v7792 = vadd.f32 %v7765, 1.0
  %v7793 = vadd.f32 %v7767, 1.0
  %v7794 = vadd.f32 %v7769, 1.0
  %v7795 = vadd.f32 %v7771, 1.0
  %v7796 = vadd.f32 %v7773, 1.0
  %v7797 = vadd.f32 %v7775, 1.0
  %v7798 = vadd.f32 %v7777, 1.0
  %v7799 = vadd.f32 %v7779, 1.0
  %v7800 = vadd.f32 %v7781, 1.0
  %v7801 = vadd.f32 %v7783, 1.0
  %v7802 = vadd.f32 %v7785, 1.0
  %v7803 = vadd.f32 %v7787, 1.0
  %v7804 = vrcp.pop %v7788
  %v7805 = vrcp.pop %v7789
  %v7806 = vrcp.pop %v7790
  %v7807 = vrcp.pop %v7791
  %v7808 = vrcp.pop %v7792
  %v7809 = vrcp.pop %v7793
  %v7810 = vrcp.pop %v7794
  %v7811 = vrcp.pop %v7795
  %v7812 = vrcp.pop %v7796
  %v7813 = vrcp.pop %v7797
  %v7814 = vrcp.pop %v7798
  %v7815 = vrcp.pop %v7799
  %v7816 = vrcp.pop %v7800
  %v7817 = vrcp.pop %v7801
  %v7818 = vrcp.pop %v7802
  %v7819 = vrcp.pop %v7803
  %v7820 = vld [vmem:[%s13] sm:$0x7]
  %v7821 = vmul.f32 %v7804, %v7804
  %v7822 = vmul.f32 %v7805, %v7805
  %v7823 = vmul.f32 %v7806, %v7806
  %v7824 = vmul.f32 %v7807, %v7807
  %v7825 = vmul.f32 %v7808, %v7808
  %v7826 = vmul.f32 %v7809, %v7809
  %v7827 = vmul.f32 %v7810, %v7810
  %v7828 = vmul.f32 %v7811, %v7811
  %v7829 = vmul.f32 %v7812, %v7812
  %v7830 = vmul.f32 %v7813, %v7813
  %v7831 = vmul.f32 %v7814, %v7814
  %v7832 = vmul.f32 %v7815, %v7815
  %v7833 = vmul.f32 %v7816, %v7816
  %v7834 = vmul.f32 %v7817, %v7817
  %v7835 = vmul.f32 %v7818, %v7818
  %v7836 = vmul.f32 %v7819, %v7819
  %v7837 = vlaneseq
  %v7838 = vshrl.u32 %v7837, 7
  %v7839 = vsub.s32 0, %v7838
  %v7840 = vrot.slane %v7820, %v7839
  %v7841 = vmul.f32 %v7840, %v7821
  %v7842 = vmul.f32 %v7840, %v7822
  %v7843 = vmul.f32 %v7840, %v7823
  %v7844 = vmul.f32 %v7840, %v7824
  %v7845 = vmul.f32 %v7840, %v7825
  %v7846 = vmul.f32 %v7840, %v7826
  %v7847 = vmul.f32 %v7840, %v7827
  %v7848 = vmul.f32 %v7840, %v7828
  %v7849 = vmul.f32 %v7840, %v7829
  %v7850 = vmul.f32 %v7840, %v7830
  %v7851 = vmul.f32 %v7840, %v7831
  %v7852 = vmul.f32 %v7840, %v7832
  %v7853 = vmul.f32 %v7840, %v7833
  %v7854 = vmul.f32 %v7840, %v7834
  %v7855 = vmul.f32 %v7840, %v7835
  %v7856 = vmul.f32 %v7840, %v7836
  %v7857 = vlaneseq
  %v7858 = vshrl.u32 %v7857, 7
  %v7859 = vsub.s32 1, %v7858
  %v7860 = vrot.slane %v7820, %v7859
  %v7861 = vmul.f32 %v7860, %v7804
  %v7862 = vmul.f32 %v7860, %v7805
  %v7863 = vmul.f32 %v7860, %v7806
  %v7864 = vmul.f32 %v7860, %v7807
  %v7865 = vmul.f32 %v7860, %v7808
  %v7866 = vmul.f32 %v7860, %v7809
  %v7867 = vmul.f32 %v7860, %v7810
  %v7868 = vmul.f32 %v7860, %v7811
  %v7869 = vmul.f32 %v7860, %v7812
  %v7870 = vmul.f32 %v7860, %v7813
  %v7871 = vmul.f32 %v7860, %v7814
  %v7872 = vmul.f32 %v7860, %v7815
  %v7873 = vmul.f32 %v7860, %v7816
  %v7874 = vmul.f32 %v7860, %v7817
  %v7875 = vmul.f32 %v7860, %v7818
  %v7876 = vmul.f32 %v7860, %v7819
  %v7877 = vadd.f32 %v7841, %v7861
  %v7878 = vadd.f32 %v7842, %v7862
  %v7879 = vadd.f32 %v7843, %v7863
  %v7880 = vadd.f32 %v7844, %v7864
  %v7881 = vadd.f32 %v7845, %v7865
  %v7882 = vadd.f32 %v7846, %v7866
  %v7883 = vadd.f32 %v7847, %v7867
  %v7884 = vadd.f32 %v7848, %v7868
  %v7885 = vadd.f32 %v7849, %v7869
  %v7886 = vadd.f32 %v7850, %v7870
  %v7887 = vadd.f32 %v7851, %v7871
  %v7888 = vadd.f32 %v7852, %v7872
  %v7889 = vadd.f32 %v7853, %v7873
  %v7890 = vadd.f32 %v7854, %v7874
  %v7891 = vadd.f32 %v7855, %v7875
  %v7892 = vadd.f32 %v7856, %v7876
  %v7893 = vlaneseq
  %v7894 = vshrl.u32 %v7893, 7
  %v7895 = vsub.s32 2, %v7894
  %v7896 = vrot.slane %v7820, %v7895
  %v7897 = vmul.f32 %v7896, %v7678
  %v7898 = vmul.f32 %v7896, %v7681
  %v7899 = vmul.f32 %v7896, %v7686
  %v7900 = vmul.f32 %v7896, %v7689
  %v7901 = vmul.f32 %v7896, %v7694
  %v7902 = vmul.f32 %v7896, %v7697
  %v7903 = vmul.f32 %v7896, %v7702
  %v7904 = vmul.f32 %v7896, %v7705
  %v7905 = vmul.f32 %v7896, %v7710
  %v7906 = vmul.f32 %v7896, %v7713
  %v7907 = vmul.f32 %v7896, %v7718
  %v7908 = vmul.f32 %v7896, %v7721
  %v7909 = vmul.f32 %v7896, %v7726
  %v7910 = vmul.f32 %v7896, %v7729
  %v7911 = vmul.f32 %v7896, %v7734
  %v7912 = vmul.f32 %v7896, %v7737
  %v7913 = vadd.f32 %v7877, %v7897
  %v7914 = vadd.f32 %v7878, %v7898
  %v7915 = vadd.f32 %v7879, %v7899
  %v7916 = vadd.f32 %v7880, %v7900
  %v7917 = vadd.f32 %v7881, %v7901
  %v7918 = vadd.f32 %v7882, %v7902
  %v7919 = vadd.f32 %v7883, %v7903
  %v7920 = vadd.f32 %v7884, %v7904
  %v7921 = vadd.f32 %v7885, %v7905
  %v7922 = vadd.f32 %v7886, %v7906
  %v7923 = vadd.f32 %v7887, %v7907
  %v7924 = vadd.f32 %v7888, %v7908
  %v7925 = vadd.f32 %v7889, %v7909
  %v7926 = vadd.f32 %v7890, %v7910
  %v7927 = vadd.f32 %v7891, %v7911
  %v7928 = vadd.f32 %v7892, %v7912
  %v7929 = vld [vmem:[%s14] sm:$0xff]
  %v7930 = vld [vmem:[%s14 + $0x8] sm:$0xff]
  %v7931 = vld [vmem:[%s14 + $0x10] sm:$0xff]
  %v7932 = vld [vmem:[%s14 + $0x18] sm:$0xff]
  %v7933 = vld [vmem:[%s14 + $0x20] sm:$0xff]
  %v7934 = vld [vmem:[%s14 + $0x28] sm:$0xff]
  %v7935 = vld [vmem:[%s14 + $0x30] sm:$0xff]
  %v7936 = vld [vmem:[%s14 + $0x38] sm:$0xff]
  %v7937 = vld [vmem:[%s14 + $0x40] sm:$0xff]
  %v7938 = vld [vmem:[%s14 + $0x48] sm:$0xff]
  %v7939 = vld [vmem:[%s14 + $0x50] sm:$0xff]
  %v7940 = vld [vmem:[%s14 + $0x58] sm:$0xff]
  %v7941 = vld [vmem:[%s14 + $0x60] sm:$0xff]
  %v7942 = vld [vmem:[%s14 + $0x68] sm:$0xff]
  %v7943 = vld [vmem:[%s14 + $0x70] sm:$0xff]
  %v7944 = vld [vmem:[%s14 + $0x78] sm:$0xff]
  %v7945 = vadd.f32 %v7913, %v7929
  %v7946 = vadd.f32 %v7914, %v7930
  %v7947 = vadd.f32 %v7915, %v7931
  %v7948 = vadd.f32 %v7916, %v7932
  %v7949 = vadd.f32 %v7917, %v7933
  %v7950 = vadd.f32 %v7918, %v7934
  %v7951 = vadd.f32 %v7919, %v7935
  %v7952 = vadd.f32 %v7920, %v7936
  %v7953 = vadd.f32 %v7921, %v7937
  %v7954 = vadd.f32 %v7922, %v7938
  %v7955 = vadd.f32 %v7923, %v7939
  %v7956 = vadd.f32 %v7924, %v7940
  %v7957 = vadd.f32 %v7925, %v7941
  %v7958 = vadd.f32 %v7926, %v7942
  %v7959 = vadd.f32 %v7927, %v7943
  %v7960 = vadd.f32 %v7928, %v7944
  %7961 = vst [vmem:[%s23] sm:$0xff] %v7945
  %7962 = vst [vmem:[%s23 + $0x10] sm:$0xff] %v7946
  %7963 = vst [vmem:[%s23 + $0x20] sm:$0xff] %v7947
  %7964 = vst [vmem:[%s23 + $0x30] sm:$0xff] %v7948
  %7965 = vst [vmem:[%s23 + $0x40] sm:$0xff] %v7949
  %7966 = vst [vmem:[%s23 + $0x50] sm:$0xff] %v7950
  %7967 = vst [vmem:[%s23 + $0x60] sm:$0xff] %v7951
  %7968 = vst [vmem:[%s23 + $0x70] sm:$0xff] %v7952
  %7969 = vst [vmem:[%s23 + $0x80] sm:$0xff] %v7953
  %7970 = vst [vmem:[%s23 + $0x90] sm:$0xff] %v7954
  %7971 = vst [vmem:[%s23 + $0xa0] sm:$0xff] %v7955
  %7972 = vst [vmem:[%s23 + $0xb0] sm:$0xff] %v7956
  %7973 = vst [vmem:[%s23 + $0xc0] sm:$0xff] %v7957
  %7974 = vst [vmem:[%s23 + $0xd0] sm:$0xff] %v7958
  %7975 = vst [vmem:[%s23 + $0xe0] sm:$0xff] %v7959
  %7976 = vst [vmem:[%s23 + $0xf0] sm:$0xff] %v7960
  %7977 = vst [vmem:[%s23 + $0x8] sm:$0xff] %v7678
  %7978 = vst [vmem:[%s23 + $0x18] sm:$0xff] %v7681
  %7979 = vst [vmem:[%s23 + $0x28] sm:$0xff] %v7686
  %7980 = vst [vmem:[%s23 + $0x38] sm:$0xff] %v7689
  %7981 = vst [vmem:[%s23 + $0x48] sm:$0xff] %v7694
  %7982 = vst [vmem:[%s23 + $0x58] sm:$0xff] %v7697
  %7983 = vst [vmem:[%s23 + $0x68] sm:$0xff] %v7702
  %7984 = vst [vmem:[%s23 + $0x78] sm:$0xff] %v7705
  %7985 = vst [vmem:[%s23 + $0x88] sm:$0xff] %v7710
  %7986 = vst [vmem:[%s23 + $0x98] sm:$0xff] %v7713
  %7987 = vst [vmem:[%s23 + $0xa8] sm:$0xff] %v7718
  %7988 = vst [vmem:[%s23 + $0xb8] sm:$0xff] %v7721
  %7989 = vst [vmem:[%s23 + $0xc8] sm:$0xff] %v7726
  %7990 = vst [vmem:[%s23 + $0xd8] sm:$0xff] %v7729
  %7991 = vst [vmem:[%s23 + $0xe8] sm:$0xff] %v7734
  %7992 = vst [vmem:[%s23 + $0xf8] sm:$0xff] %v7737
  %v7993 = vld [vmem:[%s15] sm:$0xf]
  %v7994 = vld [vmem:[%s15 + $0x4] sm:$0xf]
  %v7995 = vld [vmem:[%s15 + $0x8] sm:$0xf]
  %v7996 = vld [vmem:[%s15 + $0xc] sm:$0xf]
  %v7997 = vld [vmem:[%s15 + $0x10] sm:$0xf]
  %v7998 = vld [vmem:[%s15 + $0x14] sm:$0xf]
  %v7999 = vld [vmem:[%s16] sm:$0x1]
  %v8001 = vlaneseq
  %v8002 = vshrl.u32 %v8001, 7
  %v8003 = vsub.s32 0, %v8002
  %v8004 = vrot.slane %v7999, %v8003
  %v8012 = vunpack.c.l.b16 %v7993
  %v8013 = vunpack.c.l.b16 %v7994
  %v8014 = vunpack.c.l.b16 %v7995
  %v8015 = vunpack.c.l.b16 %v7996
  %v8016 = vunpack.c.l.b16 %v7997
  %v8017 = vunpack.c.l.b16 %v7998
  %v8018 = vpack.c.b16 %v8013, %v8012
  %v8019 = vpack.c.b16 %v8015, %v8014
  %v8020 = vpack.c.b16 %v8017, %v8016
  %8024 = vmatprep.subr.bf16.mxu0 0
  %8025 = vmatpush1.bf16.msra.mxu0 %v8018
  %8026 = vmatprep.subr.bf16.mxu0 0
  %8027 = vmatpush1.bf16.msra.mxu0 %v8019
  %8028 = vmatprep.subr.bf16.mxu0 0
  %8029 = vmatpush1.bf16.msra.mxu0 %v8020
  %8030 = vmatprep.subr.bf16.mxu0 0
  %8031 = vmatpush1.bf16.msra.mxu0 0
  %8032 = vmatprep.subr.bf16.mxu0 0
  %8033 = vmatpush1.bf16.msra.mxu0 0
  %8034 = vmatprep.subr.bf16.mxu0 0
  %8035 = vmatpush1.bf16.msra.mxu0 0
  %8036 = vmatprep.subr.bf16.mxu0 0
  %8037 = vmatpush1.bf16.msra.mxu0 0
  %8038 = vmatprep.subr.bf16.mxu0 0
  %8039 = vmatpush1.bf16.msra.mxu0 0
  %8040 = vmatprep.subr.bf16.mxu0 0
  %8041 = vmatpush1.bf16.msra.mxu0 0
  %8042 = vmatprep.subr.bf16.mxu0 0
  %8043 = vmatpush1.bf16.msra.mxu0 0
  %8044 = vmatprep.subr.bf16.mxu0 0
  %8045 = vmatpush1.bf16.msra.mxu0 0
  %8046 = vmatprep.subr.bf16.mxu0 0
  %8047 = vmatpush1.bf16.msra.mxu0 0
  %8048 = vmatprep.subr.bf16.mxu0 0
  %8049 = vmatpush1.bf16.msra.mxu0 0
  %8050 = vmatprep.subr.bf16.mxu0 0
  %8051 = vmatpush1.bf16.msra.mxu0 0
  %8052 = vmatprep.subr.bf16.mxu0 0
  %8053 = vmatpush1.bf16.msra.mxu0 0
  %8054 = vmatprep.subr.bf16.mxu0 0
  %8055 = vmatpush1.bf16.msra.mxu0 0
  %8056 = vmatprep.mubr.bf16.mxu0 0
  %8057 = vmatmul.mubr.bf16.gmra.mrb[0].mxu0 %v7360
  %v8058 = vpop.f32.mrb[0].mxu0
  %v8059 = vadd.f32 %v8004, %v8058
  %v8060 = vpop.f32.mrb[0].mxu0
  %v8061 = vpop.f32.mrb[0].mxu0
  %v8062 = vadd.f32 %v8004, %v8061
  %v8063 = vpop.f32.mrb[0].mxu0
  %8064 = vmatprep.mubr.bf16.mxu0 0
  %8065 = vmatmul.mubr.bf16.gmra.mrb[0].mxu0 %v7499
  %v8066 = vpop.f32.mrb[0].mxu0
  %v8067 = vadd.f32 %v8004, %v8066
  %v8068 = vpop.f32.mrb[0].mxu0
  %v8069 = vpop.f32.mrb[0].mxu0
  %v8070 = vadd.f32 %v8004, %v8069
  %v8071 = vpop.f32.mrb[0].mxu0
  %8072 = vdwg.mxu0
  %v8073 = vsub.f32 0.0, %v8059
  %v8074 = vsub.f32 0.0, %v8062
  %v8075 = vsub.f32 0.0, %v8067
  %v8076 = vsub.f32 0.0, %v8070
  %v8077 = vmul.f32 %v8073, 1.442695
  %v8078 = vpow.pop %v8077
  %v8079 = vmul.f32 %v8074, 1.442695
  %v8080 = vpow.pop %v8079
  %v8081 = vmul.f32 %v8075, 1.442695
  %v8082 = vpow.pop %v8081
  %v8083 = vmul.f32 %v8076, 1.442695
  %v8084 = vpow.pop %v8083
  %v8085 = vadd.f32 %v8078, 1.0
  %v8086 = vadd.f32 %v8080, 1.0
  %v8087 = vadd.f32 %v8082, 1.0
  %v8088 = vadd.f32 %v8084, 1.0
  %v8089 = vrcp.pop %v8085
  %v8090 = vrcp.pop %v8086
  %v8091 = vrcp.pop %v8087
  %v8092 = vrcp.pop %v8088
  %v8093 = vld [vmem:[%s17] sm:$0x7]
  %v8094 = vmul.f32 %v8089, %v8089
  %v8095 = vmul.f32 %v8090, %v8090
  %v8096 = vmul.f32 %v8091, %v8091
  %v8097 = vmul.f32 %v8092, %v8092
  %v8098 = vlaneseq
  %v8099 = vshrl.u32 %v8098, 7
  %v8100 = vsub.s32 0, %v8099
  %v8101 = vrot.slane %v8093, %v8100
  %v8102 = vmul.f32 %v8101, %v8094
  %v8103 = vmul.f32 %v8101, %v8095
  %v8104 = vmul.f32 %v8101, %v8096
  %v8105 = vmul.f32 %v8101, %v8097
  %v8106 = vlaneseq
  %v8107 = vshrl.u32 %v8106, 7
  %v8108 = vsub.s32 1, %v8107
  %v8109 = vrot.slane %v8093, %v8108
  %v8110 = vmul.f32 %v8109, %v8089
  %v8111 = vmul.f32 %v8109, %v8090
  %v8112 = vmul.f32 %v8109, %v8091
  %v8113 = vmul.f32 %v8109, %v8092
  %v8114 = vadd.f32 %v8102, %v8110
  %v8115 = vadd.f32 %v8103, %v8111
  %v8116 = vadd.f32 %v8104, %v8112
  %v8117 = vadd.f32 %v8105, %v8113
  %v8118 = vlaneseq
  %v8119 = vshrl.u32 %v8118, 7
  %v8120 = vsub.s32 2, %v8119
  %v8121 = vrot.slane %v8093, %v8120
  %v8122 = vmul.f32 %v8121, %v8059
  %v8123 = vmul.f32 %v8121, %v8062
  %v8124 = vmul.f32 %v8121, %v8067
  %v8125 = vmul.f32 %v8121, %v8070
  %v8126 = vadd.f32 %v8114, %v8122
  %v8127 = vadd.f32 %v8115, %v8123
  %v8128 = vadd.f32 %v8116, %v8124
  %v8129 = vadd.f32 %v8117, %v8125
  %v8130 = vld [vmem:[%s18] sm:$0xff]
  %v8131 = vld [vmem:[%s18 + $0x8] sm:$0xff]
  %v8132 = vld [vmem:[%s18 + $0x10] sm:$0xff]
  %v8133 = vld [vmem:[%s18 + $0x18] sm:$0xff]
  %v8134 = vadd.f32 %v8126, %v8130
  %v8135 = vadd.f32 %v8127, %v8131
  %v8136 = vadd.f32 %v8128, %v8132
  %v8137 = vadd.f32 %v8129, %v8133
  %8138 = vst [vmem:[%s23 + $0x100] sm:$0xff] %v8134
  %8139 = vst [vmem:[%s23 + $0x110] sm:$0xff] %v8135
  %8140 = vst [vmem:[%s23 + $0x120] sm:$0xff] %v8136
  %8141 = vst [vmem:[%s23 + $0x130] sm:$0xff] %v8137
  %8142 = vst [vmem:[%s23 + $0x108] sm:$0xff] %v8059
  %8143 = vst [vmem:[%s23 + $0x118] sm:$0xff] %v8062
  %8144 = vst [vmem:[%s23 + $0x128] sm:$0xff] %v8067
  %8145 = vst [vmem:[%s23 + $0x138] sm:$0xff] %v8070
  %v8146 = vld [vmem:[%s19] sm:$0xf]
  %v8147 = vld [vmem:[%s19 + $0x4] sm:$0xf]
  %v8148 = vld [vmem:[%s19 + $0x8] sm:$0xf]
  %v8149 = vld [vmem:[%s19 + $0xc] sm:$0xf]
  %v8150 = vld [vmem:[%s19 + $0x10] sm:$0xf]
  %v8151 = vld [vmem:[%s19 + $0x14] sm:$0xf]
  %v8152 = vld [vmem:[%s19 + $0x18] sm:$0xf]
  %v8153 = vld [vmem:[%s19 + $0x1c] sm:$0xf]
  %v8154 = vld [vmem:[%s20] sm:$0x1]
  %v8156 = vlaneseq
  %v8157 = vshrl.u32 %v8156, 7
  %v8158 = vsub.s32 0, %v8157
  %v8159 = vrot.slane %v8154, %v8158
  %v8169 = vunpack.c.l.b16 %v8146
  %v8170 = vunpack.c.l.b16 %v8147
  %v8171 = vunpack.c.l.b16 %v8148
  %v8172 = vunpack.c.l.b16 %v8149
  %v8173 = vunpack.c.l.b16 %v8150
  %v8174 = vunpack.c.l.b16 %v8151
  %v8175 = vunpack.c.l.b16 %v8152
  %v8176 = vunpack.c.l.b16 %v8153
  %v8177 = vpack.c.b16 %v8170, %v8169
  %v8178 = vpack.c.b16 %v8172, %v8171
  %v8179 = vpack.c.b16 %v8174, %v8173
  %v8180 = vpack.c.b16 %v8176, %v8175
  %vm8185 = vcmask 523264
  %v8187 = vsel %vm8185, %v7619, 0
  %8189 = vmatprep.subr.bf16.mxu0 0
  %8190 = vmatpush1.bf16.msra.mxu0 %v8177
  %8191 = vmatprep.subr.bf16.mxu0 0
  %8192 = vmatpush1.bf16.msra.mxu0 %v8178
  %8193 = vmatprep.subr.bf16.mxu0 0
  %8194 = vmatpush1.bf16.msra.mxu0 %v8179
  %8195 = vmatprep.subr.bf16.mxu0 0
  %8196 = vmatpush1.bf16.msra.mxu0 %v8180
  %8197 = vmatprep.subr.bf16.mxu0 0
  %8198 = vmatpush1.bf16.msra.mxu0 0
  %8199 = vmatprep.subr.bf16.mxu0 0
  %8200 = vmatpush1.bf16.msra.mxu0 0
  %8201 = vmatprep.subr.bf16.mxu0 0
  %8202 = vmatpush1.bf16.msra.mxu0 0
  %8203 = vmatprep.subr.bf16.mxu0 0
  %8204 = vmatpush1.bf16.msra.mxu0 0
  %8205 = vmatprep.subr.bf16.mxu0 0
  %8206 = vmatpush1.bf16.msra.mxu0 0
  %8207 = vmatprep.subr.bf16.mxu0 0
  %8208 = vmatpush1.bf16.msra.mxu0 0
  %8209 = vmatprep.subr.bf16.mxu0 0
  %8210 = vmatpush1.bf16.msra.mxu0 0
  %8211 = vmatprep.subr.bf16.mxu0 0
  %8212 = vmatpush1.bf16.msra.mxu0 0
  %8213 = vmatprep.subr.bf16.mxu0 0
  %8214 = vmatpush1.bf16.msra.mxu0 0
  %8215 = vmatprep.subr.bf16.mxu0 0
  %8216 = vmatpush1.bf16.msra.mxu0 0
  %8217 = vmatprep.subr.bf16.mxu0 0
  %8218 = vmatpush1.bf16.msra.mxu0 0
  %8219 = vmatprep.subr.bf16.mxu0 0
  %8220 = vmatpush1.bf16.msra.mxu0 0
  %8221 = vmatprep.mubr.bf16.mxu0 0
  %8222 = vmatmul.mubr.bf16.gmra.mrb[0].mxu0 %v8187
  %v8223 = vpop.f32.mrb[0].mxu0
  %v8224 = vadd.f32 %v8159, %v8223
  %v8225 = vpop.f32.mrb[0].mxu0
  %v8226 = vpop.f32.mrb[0].mxu0
  %v8227 = vpop.f32.mrb[0].mxu0
  %8228 = vdwg.mxu0
  %v8229 = vsub.f32 0.0, %v8224
  %v8230 = vmul.f32 %v8229, 1.442695
  %v8231 = vpow.pop %v8230
  %v8232 = vadd.f32 %v8231, 1.0
  %v8233 = vrcp.pop %v8232
  %v8234 = vld [vmem:[%s21] sm:$0x7]
  %v8235 = vmul.f32 %v8233, %v8233
  %v8236 = vlaneseq
  %v8237 = vshrl.u32 %v8236, 7
  %v8238 = vsub.s32 0, %v8237
  %v8239 = vrot.slane %v8234, %v8238
  %v8240 = vmul.f32 %v8239, %v8235
  %v8241 = vlaneseq
  %v8242 = vshrl.u32 %v8241, 7
  %v8243 = vsub.s32 1, %v8242
  %v8244 = vrot.slane %v8234, %v8243
  %v8245 = vmul.f32 %v8244, %v8233
  %v8246 = vadd.f32 %v8240, %v8245
  %v8247 = vlaneseq
  %v8248 = vshrl.u32 %v8247, 7
  %v8249 = vsub.s32 2, %v8248
  %v8250 = vrot.slane %v8234, %v8249
  %v8251 = vmul.f32 %v8250, %v8224
  %v8252 = vadd.f32 %v8246, %v8251
  %v8253 = vld [vmem:[%s22] sm:$0xff]
  %v8254 = vadd.f32 %v8252, %v8253
  %8255 = vst [vmem:[%s23 + $0x140] sm:$0xff] %v8254
  %8256 = vst [vmem:[%s23 + $0x148] sm:$0xff] %v8224
  // Predicated region
  $region94: #{model_forward.1} parent=0 // pred_check
    _
  $region95: #{model_forward.1} parent=0 // pred_check_branch
    %8258 = sbr.rel (0) target = $region97
  $region96: #{model_forward.1} parent=0 // pred_region
    _
  $region97: #{model_forward.1} parent=0 // pred_fallthru
    _
  // Predicated region
  $region98: #{model_forward.1} parent=0 // pred_check
    _
  $region99: #{model_forward.1} parent=0 // pred_check_branch
    %8260 = sbr.rel (0) target = $region101
  $region100: #{model_forward.1} parent=0 // pred_region
    _
  $region101: #{model_forward.1} parent=0 // pred_fallthru
    _

</llo_original>
